<compile_context>
chip_gen: v5e
topology: v5e:2x2
jax: 0.10.0
libtpu: 0.0.40
codegen_flags: <defaults>
</compile_context>

<pallas_src>
import functools
import math

import jax
import jax.numpy as jnp
from jax.experimental import pallas as pl
from jax.experimental.pallas import tpu as pltpu


# ----------------------------------------------------------------------------
# In-kernel helpers
# ----------------------------------------------------------------------------
def _layer_norm_all(x, eps=1e-5):
    """torch.layer_norm(x, x.shape[1:]) (no affine): normalize over the whole
    per-sample tile, one-pass statistics, rsqrt on the EUP."""
    cnt = x.shape[0] * x.shape[1]
    s = jnp.sum(x)
    ss = jnp.sum(x * x)
    mu = s / cnt
    var = ss / cnt - mu * mu
    return (x - mu) * jax.lax.rsqrt(var + eps)


def _conv2d_same(pad_ref, w_ref, b_ref, *, H, W, k, mm_dtype):
    """k x k 'SAME' conv (stride 1) as k*k shifted-window MXU matmuls.

    pad_ref : (Cin, H*W + 2*pad*(W+1)) ref -- row-major flattened image with a
              zero halo of pad*(W+1) elements on each side.  The halo covers
              the top/bottom padding rows; left/right column wrap-around is
              masked here.
    w_ref   : (k*k, Cout, Cin) ref (bf16), tap-major.
    b_ref   : (Cout, 1) ref (f32).
    returns : (Cout, H*W) f32 == conv(x) + bias  (HW on the lane axis).
    """
    HW = H * W
    pad = k // 2
    cin = pad_ref.shape[0]
    cout = w_ref.shape[1]

    # column index of every output position (to mask the left/right wrap)
    col = jax.lax.broadcasted_iota(jnp.int32, (cin, HW), 1) % W

    acc = jnp.zeros((cout, HW), jnp.float32)
    for dy in range(k):
        for dx in range(k):
            s = dy * W + dx
            tap = pad_ref[:, s:s + HW]                      # (Cin, HW)
            if dx != pad:                                   # column wrap mask
                xv = col + (dx - pad)
                tap = jnp.where((xv >= 0) & (xv < W), tap, 0.0)
            acc = acc + jnp.dot(w_ref[dy * k + dx], tap.astype(mm_dtype),
                                preferred_element_type=jnp.float32)
    return acc + b_ref[...]


def _mimn_fused_kernel(h_pad_ref, n_pad_ref,
                       w_hd_ref, b_hd_ref, w_n_ref, b_n_ref,
                       w_no_ref, b_no_ref,
                       n_out_ref, d_out_ref,
                       nn_pad_ref,
                       *, hidden, H, W, k, forget_bias, mm_dtype):
    """One grid step == one batch sample.  Full MIMN forward, fused."""
    HW = H * W
    pad = k // 2
    halo = pad * (W + 1)
    Ch = hidden

    hd = _layer_norm_all(_conv2d_same(h_pad_ref, w_hd_ref, b_hd_ref,
                                      H=H, W=W, k=k, mm_dtype=mm_dtype))
    nc = _layer_norm_all(_conv2d_same(n_pad_ref, w_n_ref, b_n_ref,
                                      H=H, W=W, k=k, mm_dtype=mm_dtype))

    # gate splits are sublane slices of (4Ch, HW) / (3Ch, HW)
    g = jnp.tanh(hd[0 * Ch:1 * Ch] + nc[0 * Ch:1 * Ch])
    i = jax.nn.sigmoid(hd[1 * Ch:2 * Ch] + nc[1 * Ch:2 * Ch])
    f = jax.nn.sigmoid(hd[2 * Ch:3 * Ch] + nc[2 * Ch:3 * Ch] + forget_bias)
    o_h = hd[3 * Ch:4 * Ch]

    n_cur = n_pad_ref[:, halo:halo + HW]                    # unpadded n
    n_new = f * n_cur + i * g                               # (Ch, HW) f32

    # zero-haloed copy of n_new kept in VMEM -> conv_w_no never touches HBM.
    # (halo is re-zeroed every step so "parallel" megacore partitioning stays
    #  correct; the cost is a few KB of VMEM stores.)
    nn_pad_ref[:, :halo] = jnp.zeros((Ch, halo), jnp.float32)
    nn_pad_ref[:, halo + HW:] = jnp.zeros((Ch, halo), jnp.float32)
    nn_pad_ref[:, halo:halo + HW] = n_new

    o_n = _layer_norm_all(_conv2d_same(nn_pad_ref, w_no_ref, b_no_ref,
                                       H=H, W=W, k=k, mm_dtype=mm_dtype))
    o = jax.nn.sigmoid(o_h + o_n)

    n_out_ref[...] = n_new.astype(n_out_ref.dtype)
    d_out_ref[...] = (o * jnp.tanh(n_new)).astype(d_out_ref.dtype)


# ----------------------------------------------------------------------------
# Wrapper
# ----------------------------------------------------------------------------
class MIMNPallas:
    """Pallas implementation of MIMN.forward.  Weights are deterministic."""

    def __init__(self, in_channels, hidden_channels, kernel_size,
                 forget_bias=0.01, key=None, mm_dtype=jnp.bfloat16):
        self.in_channels = in_channels
        self.hidden = hidden_channels
        self.k = kernel_size
        self.forget_bias = float(forget_bias)
        self.mm_dtype = mm_dtype

        if key is None:
            key = jax.random.PRNGKey(42)
        k1, k2, k3, k4, k5, k6 = jax.random.split(key, 6)
        kk = kernel_size * kernel_size

        def conv_init(wkey, bkey, cin, cout):
            bound = 1.0 / math.sqrt(cin * kk)      # torch Conv2d default init
            w = jax.random.uniform(wkey, (kernel_size, kernel_size, cin, cout),
                                   jnp.float32, -bound, bound)      # HWIO
            b = jax.random.uniform(bkey, (cout,), jnp.float32, -bound, bound)
            return w, b

        self.w_hd, self.b_hd = conv_init(k1, k2, in_channels, 4 * hidden_channels)
        self.w_n, self.b_n = conv_init(k3, k4, hidden_channels, 3 * hidden_channels)
        self.w_no, self.b_no = conv_init(k5, k6, hidden_channels, hidden_channels)

        # kernel-side layouts: per-tap (Cout, Cin) bf16 matrices, (Cout,1) bias
        def pack(w):  # (kh, kw, cin, cout) -> (kk, cout, cin)
            kh, kw, cin, cout = w.shape
            return jnp.transpose(w, (0, 1, 3, 2)).reshape(kh * kw, cout, cin
                                                          ).astype(mm_dtype)

        self.w_hd_k = pack(self.w_hd)
        self.w_n_k = pack(self.w_n)
        self.w_no_k = pack(self.w_no)
        self.b_hd_k = self.b_hd.reshape(-1, 1)
        self.b_n_k = self.b_n.reshape(-1, 1)
        self.b_no_k = self.b_no.reshape(-1, 1)

    def __call__(self, h_diff_nchw, n_nchw):
        B, Cin, H, W = h_diff_nchw.shape
        Ch, k = self.hidden, self.k
        HW = H * W
        kk = k * k
        pad = k // 2
        halo = pad * (W + 1)
        HWp = HW + 2 * halo

        # NCHW -> (B, C, H*W) is a pure reshape (no transpose); the small zero
        # halo lets the kernel read shifted conv windows without OOB.
        # Activations stay f32 in HBM because n also feeds the f32 gate math.
        h_pad = jnp.pad(h_diff_nchw.reshape(B, Cin, HW),
                        ((0, 0), (0, 0), (halo, halo)))
        n_pad = jnp.pad(n_nchw.reshape(B, Ch, HW),
                        ((0, 0), (0, 0), (halo, halo)))

        kernel = functools.partial(
            _mimn_fused_kernel, hidden=Ch, H=H, W=W, k=k,
            forget_bias=self.forget_bias, mm_dtype=self.mm_dtype)

        flops = 2 * B * HW * kk * (Cin * 4 * Ch + Ch * 3 * Ch + Ch * Ch)
        transcendentals = 5 * B * HW * Ch
        bytes_accessed = (4 * B * (Cin + Ch) * HWp                       # inputs
                          + 2 * kk * (4 * Ch * Cin + 3 * Ch * Ch + Ch * Ch)  # w
                          + 4 * 8 * Ch                                   # biases
                          + 4 * 2 * B * Ch * HW)                         # outputs

        n_new_flat, d_flat = pl.pallas_call(
            kernel,
            out_shape=(jax.ShapeDtypeStruct((B, Ch, HW), jnp.float32),
                       jax.ShapeDtypeStruct((B, Ch, HW), jnp.float32)),
            grid=(B,),
            in_specs=[
                pl.BlockSpec((None, Cin, HWp), lambda b: (b, 0, 0)),
                pl.BlockSpec((None, Ch, HWp), lambda b: (b, 0, 0)),
                pl.BlockSpec((kk, 4 * Ch, Cin), lambda b: (0, 0, 0)),
                pl.BlockSpec((4 * Ch, 1), lambda b: (0, 0)),
                pl.BlockSpec((kk, 3 * Ch, Ch), lambda b: (0, 0, 0)),
                pl.BlockSpec((3 * Ch, 1), lambda b: (0, 0)),
                pl.BlockSpec((kk, Ch, Ch), lambda b: (0, 0, 0)),
                pl.BlockSpec((Ch, 1), lambda b: (0, 0)),
            ],
            out_specs=[
                pl.BlockSpec((None, Ch, HW), lambda b: (b, 0, 0)),
                pl.BlockSpec((None, Ch, HW), lambda b: (b, 0, 0)),
            ],
            scratch_shapes=[pltpu.VMEM((Ch, HWp), jnp.float32)],
            compiler_params=pltpu.CompilerParams(
                dimension_semantics=("parallel",)),
            cost_estimate=pl.CostEstimate(flops=flops,
                                          transcendentals=transcendentals,
                                          bytes_accessed=bytes_accessed),
        )(h_pad, n_pad, self.w_hd_k, self.b_hd_k, self.w_n_k, self.b_n_k,
          self.w_no_k, self.b_no_k)

        return (n_new_flat.reshape(B, Ch, H, W),
                d_flat.reshape(B, Ch, H, W))


# ----------------------------------------------------------------------------
# Pure-JAX reference (correctness check)
# ----------------------------------------------------------------------------
def _reference(model: MIMNPallas, h_diff, n, mm_dtype=jnp.bfloat16):
    """Reference MIMN forward.  `mm_dtype` controls the conv operand precision
    so we can check the kernel tightly against a bf16-operand reference and
    loosely against the pure-f32 module semantics."""
    def conv(x, w, b):
        y = jax.lax.conv_general_dilated(
            x.astype(mm_dtype), w.astype(mm_dtype),
            window_strides=(1, 1), padding="SAME",
            dimension_numbers=("NCHW", "HWIO", "NCHW"),
            preferred_element_type=jnp.float32)
        return y + b.reshape(1, -1, 1, 1)

    def ln(x):
        mu = jnp.mean(x, axis=(1, 2, 3), keepdims=True)
        var = jnp.mean((x - mu) ** 2, axis=(1, 2, 3), keepdims=True)
        return (x - mu) * jax.lax.rsqrt(var + 1e-5)

    hd = ln(conv(h_diff, model.w_hd, model.b_hd))
    nc = ln(conv(n, model.w_n, model.b_n))
    g_h, i_h, f_h, o_h = jnp.split(hd, 4, axis=1)
    g_n, i_n, f_n = jnp.split(nc, 3, axis=1)
    g = jnp.tanh(g_h + g_n)
    i = jax.nn.sigmoid(i_h + i_n)
    f = jax.nn.sigmoid(f_h + f_n + model.forget_bias)
    n_new = f * n + i * g
    o_n = ln(conv(n_new, model.w_no, model.b_no))
    o = jax.nn.sigmoid(o_h + o_n)
    return n_new, o * jnp.tanh(n_new)


if __name__ == "__main__":
    B, Cin, H, W = 2, 4, 16, 16
    hidden = 32
    kernel_size = 3

    key = jax.random.PRNGKey(0)
    kx, kn = jax.random.split(key)
    h_diff = jax.random.normal(kx, (B, Cin, H, W), jnp.float32)
    n_state = jax.random.normal(kn, (B, hidden, H, W), jnp.float32)

    model = MIMNPallas(Cin, hidden, kernel_size, forget_bias=0.01)

    n_new, d = model(h_diff, n_state)
    jax.block_until_ready((n_new, d))
    assert n_new.shape == (B, hidden, H, W) and d.shape == (B, hidden, H, W)

    # Gold check: reference with the SAME bf16 matmul operands / f32 accum as
    # the kernel -> tight tolerance catches structural mistakes (tap order,
    # masking, LN, gate wiring).
    n_ref, d_ref = _reference(model, h_diff, n_state, mm_dtype=jnp.bfloat16)
    assert jnp.allclose(n_new, n_ref, atol=1e-3, rtol=1e-3)
    assert jnp.allclose(d, d_ref, atol=1e-3, rtol=1e-3)

    # Sanity check vs. the pure-f32 module semantics; the looser tolerance
    # only reflects the bf16 MXU operands used in the kernel.
    n_f32, d_f32 = _reference(model, h_diff, n_state, mm_dtype=jnp.float32)
    assert jnp.allclose(n_new, n_f32, atol=5e-2, rtol=5e-2)
    assert jnp.allclose(d, d_f32, atol=5e-2, rtol=5e-2)

    print("KERNEL_OK")
</pallas_src>

<mosaic_0001>
module attributes {stable_mosaic.version = 11 : i64} {
  func.func @_mimn_fused_kernel(%arg0: i32, %arg1: memref<1x4x290xf32, #tpu.memory_space<vmem>>, %arg2: memref<1x32x290xf32, #tpu.memory_space<vmem>>, %arg3: memref<9x128x4xbf16, #tpu.memory_space<vmem>>, %arg4: memref<128x1xf32, #tpu.memory_space<vmem>>, %arg5: memref<9x96x32xbf16, #tpu.memory_space<vmem>>, %arg6: memref<96x1xf32, #tpu.memory_space<vmem>>, %arg7: memref<9x32x32xbf16, #tpu.memory_space<vmem>>, %arg8: memref<32x1xf32, #tpu.memory_space<vmem>>, %arg9: memref<1x32x256xf32, #tpu.memory_space<vmem>>, %arg10: memref<1x32x256xf32, #tpu.memory_space<vmem>>, %arg11: memref<32x290xf32, #tpu.memory_space<vmem>>) attributes {dimension_semantics = [#tpu.dimension_semantics<parallel>], iteration_bounds = array<i64: 2>, scalar_prefetch = 0 : i64, scratch_operands = 1 : i64, tpu.core_type = #tpu.core_type<tc>, window_params = [{transform_indices = @transform_0, window_bounds = array<i64: 1, 4, 290>}, {transform_indices = @transform_1, window_bounds = array<i64: 1, 32, 290>}, {pipeline_mode = #tpu.pipeline_mode<synchronous>, transform_indices = @transform_2, window_bounds = array<i64: 9, 128, 4>}, {pipeline_mode = #tpu.pipeline_mode<synchronous>, transform_indices = @transform_3, window_bounds = array<i64: 128, 1>}, {pipeline_mode = #tpu.pipeline_mode<synchronous>, transform_indices = @transform_4, window_bounds = array<i64: 9, 96, 32>}, {pipeline_mode = #tpu.pipeline_mode<synchronous>, transform_indices = @transform_5, window_bounds = array<i64: 96, 1>}, {pipeline_mode = #tpu.pipeline_mode<synchronous>, transform_indices = @transform_6, window_bounds = array<i64: 9, 32, 32>}, {pipeline_mode = #tpu.pipeline_mode<synchronous>, transform_indices = @transform_7, window_bounds = array<i64: 32, 1>}, {transform_indices = @transform_8, window_bounds = array<i64: 1, 32, 256>}, {transform_indices = @transform_9, window_bounds = array<i64: 1, 32, 256>}]} {
    %0 = tpu.iota {dimensions = array<i32: 1>} : vector<4x256xi32>
    %c16_i32 = arith.constant 16 : i32
    %c0_i32 = arith.constant 0 : i32
    %1 = arith.cmpi eq, %c16_i32, %c0_i32 : i32
    %c1_i32 = arith.constant 1 : i32
    %2 = arith.select %1, %c1_i32, %c16_i32 : i32
    %3 = vector.broadcast %2 : i32 to vector<4x256xi32>
    %4 = arith.remsi %0, %3 : vector<4x256xi32>
    %c0_i32_0 = arith.constant 0 : i32
    %5 = vector.broadcast %c0_i32_0 : i32 to vector<4x256xi32>
    %6 = arith.cmpi ne, %4, %5 : vector<4x256xi32>
    %c0_i32_1 = arith.constant 0 : i32
    %7 = vector.broadcast %c0_i32_1 : i32 to vector<4x256xi32>
    %8 = arith.cmpi slt, %4, %7 : vector<4x256xi32>
    %c0_i32_2 = arith.constant 0 : i32
    %9 = arith.cmpi slt, %2, %c0_i32_2 : i32
    %10 = vector.broadcast %9 : i1 to vector<4x256xi1>
    %11 = vector.broadcast %10 : vector<4x256xi1> to vector<4x256xi1>
    %12 = arith.xori %8, %11 : vector<4x256xi1>
    %13 = arith.andi %12, %6 : vector<4x256xi1>
    %14 = vector.broadcast %2 : i32 to vector<4x256xi32>
    %15 = arith.addi %4, %14 : vector<4x256xi32>
    %16 = arith.select %13, %15, %4 : vector<4x256xi1>, vector<4x256xi32>
    %cst = arith.constant 0.000000e+00 : f32
    %17 = vector.broadcast %cst : f32 to vector<128x256xf32>
    %c0 = arith.constant 0 : index
    %c0_3 = arith.constant 0 : index
    %c0_4 = arith.constant 0 : index
    %18 = vector.load %arg1[%c0, %c0_3, %c0_4] : memref<1x4x290xf32, #tpu.memory_space<vmem>>, vector<1x4x256xf32>
    %19 = vector.shape_cast %18 : vector<1x4x256xf32> to vector<4x256xf32>
    %c-1_i32 = arith.constant -1 : i32
    %20 = vector.broadcast %c-1_i32 : i32 to vector<4x256xi32>
    %21 = arith.addi %16, %20 : vector<4x256xi32>
    %c0_i32_5 = arith.constant 0 : i32
    %22 = vector.broadcast %c0_i32_5 : i32 to vector<4x256xi32>
    %23 = arith.cmpi sge, %21, %22 : vector<4x256xi32>
    %c16_i32_6 = arith.constant 16 : i32
    %24 = vector.broadcast %c16_i32_6 : i32 to vector<4x256xi32>
    %25 = arith.cmpi slt, %21, %24 : vector<4x256xi32>
    %26 = arith.andi %23, %25 : vector<4x256xi1>
    %cst_7 = arith.constant 0.000000e+00 : f32
    %27 = vector.broadcast %cst_7 : f32 to vector<4x256xf32>
    %28 = arith.select %26, %19, %27 : vector<4x256xi1>, vector<4x256xf32>
    %c0_8 = arith.constant 0 : index
    %c0_9 = arith.constant 0 : index
    %c0_10 = arith.constant 0 : index
    %29 = vector.load %arg3[%c0_8, %c0_9, %c0_10] : memref<9x128x4xbf16, #tpu.memory_space<vmem>>, vector<1x128x4xbf16>
    %30 = vector.shape_cast %29 : vector<1x128x4xbf16> to vector<128x4xbf16>
    %31 = arith.truncf %28 : vector<4x256xf32> to vector<4x256xbf16>
    %cst_11 = arith.constant dense<0.000000e+00> : vector<128x256xf32>
    %32 = tpu.matmul %30, %31, %cst_11 {dimension_numbers = #tpu.dot_dimension_numbers<[1], [0], [0], [1], [0, 0, 1, 1], [], []>} : vector<128x4xbf16>, vector<4x256xbf16>, vector<128x256xf32> -> vector<128x256xf32>
    %33 = arith.addf %17, %32 : vector<128x256xf32>
    %c0_12 = arith.constant 0 : index
    %c0_13 = arith.constant 0 : index
    %c1 = arith.constant 1 : index
    %34 = vector.load %arg1[%c0_12, %c0_13, %c1] : memref<1x4x290xf32, #tpu.memory_space<vmem>>, vector<1x4x256xf32>
    %35 = vector.shape_cast %34 : vector<1x4x256xf32> to vector<4x256xf32>
    %c1_14 = arith.constant 1 : index
    %c0_15 = arith.constant 0 : index
    %c0_16 = arith.constant 0 : index
    %36 = vector.load %arg3[%c1_14, %c0_15, %c0_16] : memref<9x128x4xbf16, #tpu.memory_space<vmem>>, vector<1x128x4xbf16>
    %37 = vector.shape_cast %36 : vector<1x128x4xbf16> to vector<128x4xbf16>
    %38 = arith.truncf %35 : vector<4x256xf32> to vector<4x256xbf16>
    %cst_17 = arith.constant dense<0.000000e+00> : vector<128x256xf32>
    %39 = tpu.matmul %37, %38, %cst_17 {dimension_numbers = #tpu.dot_dimension_numbers<[1], [0], [0], [1], [0, 0, 1, 1], [], []>} : vector<128x4xbf16>, vector<4x256xbf16>, vector<128x256xf32> -> vector<128x256xf32>
    %40 = arith.addf %33, %39 : vector<128x256xf32>
    %c0_18 = arith.constant 0 : index
    %c0_19 = arith.constant 0 : index
    %c2 = arith.constant 2 : index
    %41 = vector.load %arg1[%c0_18, %c0_19, %c2] : memref<1x4x290xf32, #tpu.memory_space<vmem>>, vector<1x4x256xf32>
    %42 = vector.shape_cast %41 : vector<1x4x256xf32> to vector<4x256xf32>
    %c1_i32_20 = arith.constant 1 : i32
    %43 = vector.broadcast %c1_i32_20 : i32 to vector<4x256xi32>
    %44 = arith.addi %16, %43 : vector<4x256xi32>
    %c0_i32_21 = arith.constant 0 : i32
    %45 = vector.broadcast %c0_i32_21 : i32 to vector<4x256xi32>
    %46 = arith.cmpi sge, %44, %45 : vector<4x256xi32>
    %c16_i32_22 = arith.constant 16 : i32
    %47 = vector.broadcast %c16_i32_22 : i32 to vector<4x256xi32>
    %48 = arith.cmpi slt, %44, %47 : vector<4x256xi32>
    %49 = arith.andi %46, %48 : vector<4x256xi1>
    %cst_23 = arith.constant 0.000000e+00 : f32
    %50 = vector.broadcast %cst_23 : f32 to vector<4x256xf32>
    %51 = arith.select %49, %42, %50 : vector<4x256xi1>, vector<4x256xf32>
    %c2_24 = arith.constant 2 : index
    %c0_25 = arith.constant 0 : index
    %c0_26 = arith.constant 0 : index
    %52 = vector.load %arg3[%c2_24, %c0_25, %c0_26] : memref<9x128x4xbf16, #tpu.memory_space<vmem>>, vector<1x128x4xbf16>
    %53 = vector.shape_cast %52 : vector<1x128x4xbf16> to vector<128x4xbf16>
    %54 = arith.truncf %51 : vector<4x256xf32> to vector<4x256xbf16>
    %cst_27 = arith.constant dense<0.000000e+00> : vector<128x256xf32>
    %55 = tpu.matmul %53, %54, %cst_27 {dimension_numbers = #tpu.dot_dimension_numbers<[1], [0], [0], [1], [0, 0, 1, 1], [], []>} : vector<128x4xbf16>, vector<4x256xbf16>, vector<128x256xf32> -> vector<128x256xf32>
    %56 = arith.addf %40, %55 : vector<128x256xf32>
    %c0_28 = arith.constant 0 : index
    %c0_29 = arith.constant 0 : index
    %c16 = arith.constant 16 : index
    %57 = vector.load %arg1[%c0_28, %c0_29, %c16] : memref<1x4x290xf32, #tpu.memory_space<vmem>>, vector<1x4x256xf32>
    %58 = vector.shape_cast %57 : vector<1x4x256xf32> to vector<4x256xf32>
    %c-1_i32_30 = arith.constant -1 : i32
    %59 = vector.broadcast %c-1_i32_30 : i32 to vector<4x256xi32>
    %60 = arith.addi %16, %59 : vector<4x256xi32>
    %c0_i32_31 = arith.constant 0 : i32
    %61 = vector.broadcast %c0_i32_31 : i32 to vector<4x256xi32>
    %62 = arith.cmpi sge, %60, %61 : vector<4x256xi32>
    %c16_i32_32 = arith.constant 16 : i32
    %63 = vector.broadcast %c16_i32_32 : i32 to vector<4x256xi32>
    %64 = arith.cmpi slt, %60, %63 : vector<4x256xi32>
    %65 = arith.andi %62, %64 : vector<4x256xi1>
    %cst_33 = arith.constant 0.000000e+00 : f32
    %66 = vector.broadcast %cst_33 : f32 to vector<4x256xf32>
    %67 = arith.select %65, %58, %66 : vector<4x256xi1>, vector<4x256xf32>
    %c3 = arith.constant 3 : index
    %c0_34 = arith.constant 0 : index
    %c0_35 = arith.constant 0 : index
    %68 = vector.load %arg3[%c3, %c0_34, %c0_35] : memref<9x128x4xbf16, #tpu.memory_space<vmem>>, vector<1x128x4xbf16>
    %69 = vector.shape_cast %68 : vector<1x128x4xbf16> to vector<128x4xbf16>
    %70 = arith.truncf %67 : vector<4x256xf32> to vector<4x256xbf16>
    %cst_36 = arith.constant dense<0.000000e+00> : vector<128x256xf32>
    %71 = tpu.matmul %69, %70, %cst_36 {dimension_numbers = #tpu.dot_dimension_numbers<[1], [0], [0], [1], [0, 0, 1, 1], [], []>} : vector<128x4xbf16>, vector<4x256xbf16>, vector<128x256xf32> -> vector<128x256xf32>
    %72 = arith.addf %56, %71 : vector<128x256xf32>
    %c0_37 = arith.constant 0 : index
    %c0_38 = arith.constant 0 : index
    %c17 = arith.constant 17 : index
    %73 = vector.load %arg1[%c0_37, %c0_38, %c17] : memref<1x4x290xf32, #tpu.memory_space<vmem>>, vector<1x4x256xf32>
    %74 = vector.shape_cast %73 : vector<1x4x256xf32> to vector<4x256xf32>
    %c4 = arith.constant 4 : index
    %c0_39 = arith.constant 0 : index
    %c0_40 = arith.constant 0 : index
    %75 = vector.load %arg3[%c4, %c0_39, %c0_40] : memref<9x128x4xbf16, #tpu.memory_space<vmem>>, vector<1x128x4xbf16>
    %76 = vector.shape_cast %75 : vector<1x128x4xbf16> to vector<128x4xbf16>
    %77 = arith.truncf %74 : vector<4x256xf32> to vector<4x256xbf16>
    %cst_41 = arith.constant dense<0.000000e+00> : vector<128x256xf32>
    %78 = tpu.matmul %76, %77, %cst_41 {dimension_numbers = #tpu.dot_dimension_numbers<[1], [0], [0], [1], [0, 0, 1, 1], [], []>} : vector<128x4xbf16>, vector<4x256xbf16>, vector<128x256xf32> -> vector<128x256xf32>
    %79 = arith.addf %72, %78 : vector<128x256xf32>
    %c0_42 = arith.constant 0 : index
    %c0_43 = arith.constant 0 : index
    %c18 = arith.constant 18 : index
    %80 = vector.load %arg1[%c0_42, %c0_43, %c18] : memref<1x4x290xf32, #tpu.memory_space<vmem>>, vector<1x4x256xf32>
    %81 = vector.shape_cast %80 : vector<1x4x256xf32> to vector<4x256xf32>
    %c1_i32_44 = arith.constant 1 : i32
    %82 = vector.broadcast %c1_i32_44 : i32 to vector<4x256xi32>
    %83 = arith.addi %16, %82 : vector<4x256xi32>
    %c0_i32_45 = arith.constant 0 : i32
    %84 = vector.broadcast %c0_i32_45 : i32 to vector<4x256xi32>
    %85 = arith.cmpi sge, %83, %84 : vector<4x256xi32>
    %c16_i32_46 = arith.constant 16 : i32
    %86 = vector.broadcast %c16_i32_46 : i32 to vector<4x256xi32>
    %87 = arith.cmpi slt, %83, %86 : vector<4x256xi32>
    %88 = arith.andi %85, %87 : vector<4x256xi1>
    %cst_47 = arith.constant 0.000000e+00 : f32
    %89 = vector.broadcast %cst_47 : f32 to vector<4x256xf32>
    %90 = arith.select %88, %81, %89 : vector<4x256xi1>, vector<4x256xf32>
    %c5 = arith.constant 5 : index
    %c0_48 = arith.constant 0 : index
    %c0_49 = arith.constant 0 : index
    %91 = vector.load %arg3[%c5, %c0_48, %c0_49] : memref<9x128x4xbf16, #tpu.memory_space<vmem>>, vector<1x128x4xbf16>
    %92 = vector.shape_cast %91 : vector<1x128x4xbf16> to vector<128x4xbf16>
    %93 = arith.truncf %90 : vector<4x256xf32> to vector<4x256xbf16>
    %cst_50 = arith.constant dense<0.000000e+00> : vector<128x256xf32>
    %94 = tpu.matmul %92, %93, %cst_50 {dimension_numbers = #tpu.dot_dimension_numbers<[1], [0], [0], [1], [0, 0, 1, 1], [], []>} : vector<128x4xbf16>, vector<4x256xbf16>, vector<128x256xf32> -> vector<128x256xf32>
    %95 = arith.addf %79, %94 : vector<128x256xf32>
    %c0_51 = arith.constant 0 : index
    %c0_52 = arith.constant 0 : index
    %c32 = arith.constant 32 : index
    %96 = vector.load %arg1[%c0_51, %c0_52, %c32] : memref<1x4x290xf32, #tpu.memory_space<vmem>>, vector<1x4x256xf32>
    %97 = vector.shape_cast %96 : vector<1x4x256xf32> to vector<4x256xf32>
    %c-1_i32_53 = arith.constant -1 : i32
    %98 = vector.broadcast %c-1_i32_53 : i32 to vector<4x256xi32>
    %99 = arith.addi %16, %98 : vector<4x256xi32>
    %c0_i32_54 = arith.constant 0 : i32
    %100 = vector.broadcast %c0_i32_54 : i32 to vector<4x256xi32>
    %101 = arith.cmpi sge, %99, %100 : vector<4x256xi32>
    %c16_i32_55 = arith.constant 16 : i32
    %102 = vector.broadcast %c16_i32_55 : i32 to vector<4x256xi32>
    %103 = arith.cmpi slt, %99, %102 : vector<4x256xi32>
    %104 = arith.andi %101, %103 : vector<4x256xi1>
    %cst_56 = arith.constant 0.000000e+00 : f32
    %105 = vector.broadcast %cst_56 : f32 to vector<4x256xf32>
    %106 = arith.select %104, %97, %105 : vector<4x256xi1>, vector<4x256xf32>
    %c6 = arith.constant 6 : index
    %c0_57 = arith.constant 0 : index
    %c0_58 = arith.constant 0 : index
    %107 = vector.load %arg3[%c6, %c0_57, %c0_58] : memref<9x128x4xbf16, #tpu.memory_space<vmem>>, vector<1x128x4xbf16>
    %108 = vector.shape_cast %107 : vector<1x128x4xbf16> to vector<128x4xbf16>
    %109 = arith.truncf %106 : vector<4x256xf32> to vector<4x256xbf16>
    %cst_59 = arith.constant dense<0.000000e+00> : vector<128x256xf32>
    %110 = tpu.matmul %108, %109, %cst_59 {dimension_numbers = #tpu.dot_dimension_numbers<[1], [0], [0], [1], [0, 0, 1, 1], [], []>} : vector<128x4xbf16>, vector<4x256xbf16>, vector<128x256xf32> -> vector<128x256xf32>
    %111 = arith.addf %95, %110 : vector<128x256xf32>
    %c0_60 = arith.constant 0 : index
    %c0_61 = arith.constant 0 : index
    %c33 = arith.constant 33 : index
    %112 = vector.load %arg1[%c0_60, %c0_61, %c33] : memref<1x4x290xf32, #tpu.memory_space<vmem>>, vector<1x4x256xf32>
    %113 = vector.shape_cast %112 : vector<1x4x256xf32> to vector<4x256xf32>
    %c7 = arith.constant 7 : index
    %c0_62 = arith.constant 0 : index
    %c0_63 = arith.constant 0 : index
    %114 = vector.load %arg3[%c7, %c0_62, %c0_63] : memref<9x128x4xbf16, #tpu.memory_space<vmem>>, vector<1x128x4xbf16>
    %115 = vector.shape_cast %114 : vector<1x128x4xbf16> to vector<128x4xbf16>
    %116 = arith.truncf %113 : vector<4x256xf32> to vector<4x256xbf16>
    %cst_64 = arith.constant dense<0.000000e+00> : vector<128x256xf32>
    %117 = tpu.matmul %115, %116, %cst_64 {dimension_numbers = #tpu.dot_dimension_numbers<[1], [0], [0], [1], [0, 0, 1, 1], [], []>} : vector<128x4xbf16>, vector<4x256xbf16>, vector<128x256xf32> -> vector<128x256xf32>
    %118 = arith.addf %111, %117 : vector<128x256xf32>
    %c0_65 = arith.constant 0 : index
    %c0_66 = arith.constant 0 : index
    %c34 = arith.constant 34 : index
    %119 = vector.load %arg1[%c0_65, %c0_66, %c34] : memref<1x4x290xf32, #tpu.memory_space<vmem>>, vector<1x4x256xf32>
    %120 = vector.shape_cast %119 : vector<1x4x256xf32> to vector<4x256xf32>
    %c1_i32_67 = arith.constant 1 : i32
    %121 = vector.broadcast %c1_i32_67 : i32 to vector<4x256xi32>
    %122 = arith.addi %16, %121 : vector<4x256xi32>
    %c0_i32_68 = arith.constant 0 : i32
    %123 = vector.broadcast %c0_i32_68 : i32 to vector<4x256xi32>
    %124 = arith.cmpi sge, %122, %123 : vector<4x256xi32>
    %c16_i32_69 = arith.constant 16 : i32
    %125 = vector.broadcast %c16_i32_69 : i32 to vector<4x256xi32>
    %126 = arith.cmpi slt, %122, %125 : vector<4x256xi32>
    %127 = arith.andi %124, %126 : vector<4x256xi1>
    %cst_70 = arith.constant 0.000000e+00 : f32
    %128 = vector.broadcast %cst_70 : f32 to vector<4x256xf32>
    %129 = arith.select %127, %120, %128 : vector<4x256xi1>, vector<4x256xf32>
    %c8 = arith.constant 8 : index
    %c0_71 = arith.constant 0 : index
    %c0_72 = arith.constant 0 : index
    %130 = vector.load %arg3[%c8, %c0_71, %c0_72] : memref<9x128x4xbf16, #tpu.memory_space<vmem>>, vector<1x128x4xbf16>
    %131 = vector.shape_cast %130 : vector<1x128x4xbf16> to vector<128x4xbf16>
    %132 = arith.truncf %129 : vector<4x256xf32> to vector<4x256xbf16>
    %cst_73 = arith.constant dense<0.000000e+00> : vector<128x256xf32>
    %133 = tpu.matmul %131, %132, %cst_73 {dimension_numbers = #tpu.dot_dimension_numbers<[1], [0], [0], [1], [0, 0, 1, 1], [], []>} : vector<128x4xbf16>, vector<4x256xbf16>, vector<128x256xf32> -> vector<128x256xf32>
    %134 = arith.addf %118, %133 : vector<128x256xf32>
    %c0_74 = arith.constant 0 : index
    %c0_75 = arith.constant 0 : index
    %135 = vector.load %arg4[%c0_74, %c0_75] : memref<128x1xf32, #tpu.memory_space<vmem>>, vector<128x1xf32>
    %136 = vector.broadcast %135 : vector<128x1xf32> to vector<128x256xf32>
    %137 = arith.addf %134, %136 : vector<128x256xf32>
    %138 = vector.shape_cast %137 : vector<128x256xf32> to vector<1x128x256xf32>
    %cst_76 = arith.constant dense<0.000000e+00> : vector<1xf32>
    %139 = vector.multi_reduction <add>, %138, %cst_76 [1, 2] : vector<1x128x256xf32> to vector<1xf32>
    %140 = vector.shape_cast %139 : vector<1xf32> to vector<1x1x1xf32>
    %141 = vector.extract %140[0, 0, 0] : f32 from vector<1x1x1xf32>
    %142 = arith.mulf %137, %137 : vector<128x256xf32>
    %143 = vector.shape_cast %142 : vector<128x256xf32> to vector<1x128x256xf32>
    %cst_77 = arith.constant dense<0.000000e+00> : vector<1xf32>
    %144 = vector.multi_reduction <add>, %143, %cst_77 [1, 2] : vector<1x128x256xf32> to vector<1xf32>
    %145 = vector.shape_cast %144 : vector<1xf32> to vector<1x1x1xf32>
    %146 = vector.extract %145[0, 0, 0] : f32 from vector<1x1x1xf32>
    %cst_78 = arith.constant 3.276800e+04 : f32
    %147 = arith.divf %141, %cst_78 : f32
    %cst_79 = arith.constant 3.276800e+04 : f32
    %148 = arith.divf %146, %cst_79 : f32
    %149 = arith.mulf %147, %147 : f32
    %150 = arith.subf %148, %149 : f32
    %151 = vector.broadcast %147 : f32 to vector<128x256xf32>
    %152 = arith.subf %137, %151 : vector<128x256xf32>
    %cst_80 = arith.constant 9.99999974E-6 : f32
    %153 = arith.addf %150, %cst_80 : f32
    %154 = math.rsqrt %153 : f32
    %155 = vector.broadcast %154 : f32 to vector<128x256xf32>
    %156 = arith.mulf %152, %155 : vector<128x256xf32>
    %157 = tpu.iota {dimensions = array<i32: 1>} : vector<32x256xi32>
    %c16_i32_81 = arith.constant 16 : i32
    %c0_i32_82 = arith.constant 0 : i32
    %158 = arith.cmpi eq, %c16_i32_81, %c0_i32_82 : i32
    %c1_i32_83 = arith.constant 1 : i32
    %159 = arith.select %158, %c1_i32_83, %c16_i32_81 : i32
    %160 = vector.broadcast %159 : i32 to vector<32x256xi32>
    %161 = arith.remsi %157, %160 : vector<32x256xi32>
    %c0_i32_84 = arith.constant 0 : i32
    %162 = vector.broadcast %c0_i32_84 : i32 to vector<32x256xi32>
    %163 = arith.cmpi ne, %161, %162 : vector<32x256xi32>
    %c0_i32_85 = arith.constant 0 : i32
    %164 = vector.broadcast %c0_i32_85 : i32 to vector<32x256xi32>
    %165 = arith.cmpi slt, %161, %164 : vector<32x256xi32>
    %c0_i32_86 = arith.constant 0 : i32
    %166 = arith.cmpi slt, %159, %c0_i32_86 : i32
    %167 = vector.broadcast %166 : i1 to vector<32x256xi1>
    %168 = vector.broadcast %167 : vector<32x256xi1> to vector<32x256xi1>
    %169 = arith.xori %165, %168 : vector<32x256xi1>
    %170 = arith.andi %169, %163 : vector<32x256xi1>
    %171 = vector.broadcast %159 : i32 to vector<32x256xi32>
    %172 = arith.addi %161, %171 : vector<32x256xi32>
    %173 = arith.select %170, %172, %161 : vector<32x256xi1>, vector<32x256xi32>
    %cst_87 = arith.constant 0.000000e+00 : f32
    %174 = vector.broadcast %cst_87 : f32 to vector<96x256xf32>
    %c0_88 = arith.constant 0 : index
    %c0_89 = arith.constant 0 : index
    %c0_90 = arith.constant 0 : index
    %175 = vector.load %arg2[%c0_88, %c0_89, %c0_90] : memref<1x32x290xf32, #tpu.memory_space<vmem>>, vector<1x32x256xf32>
    %176 = vector.shape_cast %175 : vector<1x32x256xf32> to vector<32x256xf32>
    %c-1_i32_91 = arith.constant -1 : i32
    %177 = vector.broadcast %c-1_i32_91 : i32 to vector<32x256xi32>
    %178 = arith.addi %173, %177 : vector<32x256xi32>
    %c0_i32_92 = arith.constant 0 : i32
    %179 = vector.broadcast %c0_i32_92 : i32 to vector<32x256xi32>
    %180 = arith.cmpi sge, %178, %179 : vector<32x256xi32>
    %c16_i32_93 = arith.constant 16 : i32
    %181 = vector.broadcast %c16_i32_93 : i32 to vector<32x256xi32>
    %182 = arith.cmpi slt, %178, %181 : vector<32x256xi32>
    %183 = arith.andi %180, %182 : vector<32x256xi1>
    %cst_94 = arith.constant 0.000000e+00 : f32
    %184 = vector.broadcast %cst_94 : f32 to vector<32x256xf32>
    %185 = arith.select %183, %176, %184 : vector<32x256xi1>, vector<32x256xf32>
    %c0_95 = arith.constant 0 : index
    %c0_96 = arith.constant 0 : index
    %c0_97 = arith.constant 0 : index
    %186 = vector.load %arg5[%c0_95, %c0_96, %c0_97] : memref<9x96x32xbf16, #tpu.memory_space<vmem>>, vector<1x96x32xbf16>
    %187 = vector.shape_cast %186 : vector<1x96x32xbf16> to vector<96x32xbf16>
    %188 = arith.truncf %185 : vector<32x256xf32> to vector<32x256xbf16>
    %cst_98 = arith.constant dense<0.000000e+00> : vector<96x256xf32>
    %189 = tpu.matmul %187, %188, %cst_98 {dimension_numbers = #tpu.dot_dimension_numbers<[1], [0], [0], [1], [0, 0, 1, 1], [], []>} : vector<96x32xbf16>, vector<32x256xbf16>, vector<96x256xf32> -> vector<96x256xf32>
    %190 = arith.addf %174, %189 : vector<96x256xf32>
    %c0_99 = arith.constant 0 : index
    %c0_100 = arith.constant 0 : index
    %c1_101 = arith.constant 1 : index
    %191 = vector.load %arg2[%c0_99, %c0_100, %c1_101] : memref<1x32x290xf32, #tpu.memory_space<vmem>>, vector<1x32x256xf32>
    %192 = vector.shape_cast %191 : vector<1x32x256xf32> to vector<32x256xf32>
    %c1_102 = arith.constant 1 : index
    %c0_103 = arith.constant 0 : index
    %c0_104 = arith.constant 0 : index
    %193 = vector.load %arg5[%c1_102, %c0_103, %c0_104] : memref<9x96x32xbf16, #tpu.memory_space<vmem>>, vector<1x96x32xbf16>
    %194 = vector.shape_cast %193 : vector<1x96x32xbf16> to vector<96x32xbf16>
    %195 = arith.truncf %192 : vector<32x256xf32> to vector<32x256xbf16>
    %cst_105 = arith.constant dense<0.000000e+00> : vector<96x256xf32>
    %196 = tpu.matmul %194, %195, %cst_105 {dimension_numbers = #tpu.dot_dimension_numbers<[1], [0], [0], [1], [0, 0, 1, 1], [], []>} : vector<96x32xbf16>, vector<32x256xbf16>, vector<96x256xf32> -> vector<96x256xf32>
    %197 = arith.addf %190, %196 : vector<96x256xf32>
    %c0_106 = arith.constant 0 : index
    %c0_107 = arith.constant 0 : index
    %c2_108 = arith.constant 2 : index
    %198 = vector.load %arg2[%c0_106, %c0_107, %c2_108] : memref<1x32x290xf32, #tpu.memory_space<vmem>>, vector<1x32x256xf32>
    %199 = vector.shape_cast %198 : vector<1x32x256xf32> to vector<32x256xf32>
    %c1_i32_109 = arith.constant 1 : i32
    %200 = vector.broadcast %c1_i32_109 : i32 to vector<32x256xi32>
    %201 = arith.addi %173, %200 : vector<32x256xi32>
    %c0_i32_110 = arith.constant 0 : i32
    %202 = vector.broadcast %c0_i32_110 : i32 to vector<32x256xi32>
    %203 = arith.cmpi sge, %201, %202 : vector<32x256xi32>
    %c16_i32_111 = arith.constant 16 : i32
    %204 = vector.broadcast %c16_i32_111 : i32 to vector<32x256xi32>
    %205 = arith.cmpi slt, %201, %204 : vector<32x256xi32>
    %206 = arith.andi %203, %205 : vector<32x256xi1>
    %cst_112 = arith.constant 0.000000e+00 : f32
    %207 = vector.broadcast %cst_112 : f32 to vector<32x256xf32>
    %208 = arith.select %206, %199, %207 : vector<32x256xi1>, vector<32x256xf32>
    %c2_113 = arith.constant 2 : index
    %c0_114 = arith.constant 0 : index
    %c0_115 = arith.constant 0 : index
    %209 = vector.load %arg5[%c2_113, %c0_114, %c0_115] : memref<9x96x32xbf16, #tpu.memory_space<vmem>>, vector<1x96x32xbf16>
    %210 = vector.shape_cast %209 : vector<1x96x32xbf16> to vector<96x32xbf16>
    %211 = arith.truncf %208 : vector<32x256xf32> to vector<32x256xbf16>
    %cst_116 = arith.constant dense<0.000000e+00> : vector<96x256xf32>
    %212 = tpu.matmul %210, %211, %cst_116 {dimension_numbers = #tpu.dot_dimension_numbers<[1], [0], [0], [1], [0, 0, 1, 1], [], []>} : vector<96x32xbf16>, vector<32x256xbf16>, vector<96x256xf32> -> vector<96x256xf32>
    %213 = arith.addf %197, %212 : vector<96x256xf32>
    %c0_117 = arith.constant 0 : index
    %c0_118 = arith.constant 0 : index
    %c16_119 = arith.constant 16 : index
    %214 = vector.load %arg2[%c0_117, %c0_118, %c16_119] : memref<1x32x290xf32, #tpu.memory_space<vmem>>, vector<1x32x256xf32>
    %215 = vector.shape_cast %214 : vector<1x32x256xf32> to vector<32x256xf32>
    %c-1_i32_120 = arith.constant -1 : i32
    %216 = vector.broadcast %c-1_i32_120 : i32 to vector<32x256xi32>
    %217 = arith.addi %173, %216 : vector<32x256xi32>
    %c0_i32_121 = arith.constant 0 : i32
    %218 = vector.broadcast %c0_i32_121 : i32 to vector<32x256xi32>
    %219 = arith.cmpi sge, %217, %218 : vector<32x256xi32>
    %c16_i32_122 = arith.constant 16 : i32
    %220 = vector.broadcast %c16_i32_122 : i32 to vector<32x256xi32>
    %221 = arith.cmpi slt, %217, %220 : vector<32x256xi32>
    %222 = arith.andi %219, %221 : vector<32x256xi1>
    %cst_123 = arith.constant 0.000000e+00 : f32
    %223 = vector.broadcast %cst_123 : f32 to vector<32x256xf32>
    %224 = arith.select %222, %215, %223 : vector<32x256xi1>, vector<32x256xf32>
    %c3_124 = arith.constant 3 : index
    %c0_125 = arith.constant 0 : index
    %c0_126 = arith.constant 0 : index
    %225 = vector.load %arg5[%c3_124, %c0_125, %c0_126] : memref<9x96x32xbf16, #tpu.memory_space<vmem>>, vector<1x96x32xbf16>
    %226 = vector.shape_cast %225 : vector<1x96x32xbf16> to vector<96x32xbf16>
    %227 = arith.truncf %224 : vector<32x256xf32> to vector<32x256xbf16>
    %cst_127 = arith.constant dense<0.000000e+00> : vector<96x256xf32>
    %228 = tpu.matmul %226, %227, %cst_127 {dimension_numbers = #tpu.dot_dimension_numbers<[1], [0], [0], [1], [0, 0, 1, 1], [], []>} : vector<96x32xbf16>, vector<32x256xbf16>, vector<96x256xf32> -> vector<96x256xf32>
    %229 = arith.addf %213, %228 : vector<96x256xf32>
    %c0_128 = arith.constant 0 : index
    %c0_129 = arith.constant 0 : index
    %c17_130 = arith.constant 17 : index
    %230 = vector.load %arg2[%c0_128, %c0_129, %c17_130] : memref<1x32x290xf32, #tpu.memory_space<vmem>>, vector<1x32x256xf32>
    %231 = vector.shape_cast %230 : vector<1x32x256xf32> to vector<32x256xf32>
    %c4_131 = arith.constant 4 : index
    %c0_132 = arith.constant 0 : index
    %c0_133 = arith.constant 0 : index
    %232 = vector.load %arg5[%c4_131, %c0_132, %c0_133] : memref<9x96x32xbf16, #tpu.memory_space<vmem>>, vector<1x96x32xbf16>
    %233 = vector.shape_cast %232 : vector<1x96x32xbf16> to vector<96x32xbf16>
    %234 = arith.truncf %231 : vector<32x256xf32> to vector<32x256xbf16>
    %cst_134 = arith.constant dense<0.000000e+00> : vector<96x256xf32>
    %235 = tpu.matmul %233, %234, %cst_134 {dimension_numbers = #tpu.dot_dimension_numbers<[1], [0], [0], [1], [0, 0, 1, 1], [], []>} : vector<96x32xbf16>, vector<32x256xbf16>, vector<96x256xf32> -> vector<96x256xf32>
    %236 = arith.addf %229, %235 : vector<96x256xf32>
    %c0_135 = arith.constant 0 : index
    %c0_136 = arith.constant 0 : index
    %c18_137 = arith.constant 18 : index
    %237 = vector.load %arg2[%c0_135, %c0_136, %c18_137] : memref<1x32x290xf32, #tpu.memory_space<vmem>>, vector<1x32x256xf32>
    %238 = vector.shape_cast %237 : vector<1x32x256xf32> to vector<32x256xf32>
    %c1_i32_138 = arith.constant 1 : i32
    %239 = vector.broadcast %c1_i32_138 : i32 to vector<32x256xi32>
    %240 = arith.addi %173, %239 : vector<32x256xi32>
    %c0_i32_139 = arith.constant 0 : i32
    %241 = vector.broadcast %c0_i32_139 : i32 to vector<32x256xi32>
    %242 = arith.cmpi sge, %240, %241 : vector<32x256xi32>
    %c16_i32_140 = arith.constant 16 : i32
    %243 = vector.broadcast %c16_i32_140 : i32 to vector<32x256xi32>
    %244 = arith.cmpi slt, %240, %243 : vector<32x256xi32>
    %245 = arith.andi %242, %244 : vector<32x256xi1>
    %cst_141 = arith.constant 0.000000e+00 : f32
    %246 = vector.broadcast %cst_141 : f32 to vector<32x256xf32>
    %247 = arith.select %245, %238, %246 : vector<32x256xi1>, vector<32x256xf32>
    %c5_142 = arith.constant 5 : index
    %c0_143 = arith.constant 0 : index
    %c0_144 = arith.constant 0 : index
    %248 = vector.load %arg5[%c5_142, %c0_143, %c0_144] : memref<9x96x32xbf16, #tpu.memory_space<vmem>>, vector<1x96x32xbf16>
    %249 = vector.shape_cast %248 : vector<1x96x32xbf16> to vector<96x32xbf16>
    %250 = arith.truncf %247 : vector<32x256xf32> to vector<32x256xbf16>
    %cst_145 = arith.constant dense<0.000000e+00> : vector<96x256xf32>
    %251 = tpu.matmul %249, %250, %cst_145 {dimension_numbers = #tpu.dot_dimension_numbers<[1], [0], [0], [1], [0, 0, 1, 1], [], []>} : vector<96x32xbf16>, vector<32x256xbf16>, vector<96x256xf32> -> vector<96x256xf32>
    %252 = arith.addf %236, %251 : vector<96x256xf32>
    %c0_146 = arith.constant 0 : index
    %c0_147 = arith.constant 0 : index
    %c32_148 = arith.constant 32 : index
    %253 = vector.load %arg2[%c0_146, %c0_147, %c32_148] : memref<1x32x290xf32, #tpu.memory_space<vmem>>, vector<1x32x256xf32>
    %254 = vector.shape_cast %253 : vector<1x32x256xf32> to vector<32x256xf32>
    %c-1_i32_149 = arith.constant -1 : i32
    %255 = vector.broadcast %c-1_i32_149 : i32 to vector<32x256xi32>
    %256 = arith.addi %173, %255 : vector<32x256xi32>
    %c0_i32_150 = arith.constant 0 : i32
    %257 = vector.broadcast %c0_i32_150 : i32 to vector<32x256xi32>
    %258 = arith.cmpi sge, %256, %257 : vector<32x256xi32>
    %c16_i32_151 = arith.constant 16 : i32
    %259 = vector.broadcast %c16_i32_151 : i32 to vector<32x256xi32>
    %260 = arith.cmpi slt, %256, %259 : vector<32x256xi32>
    %261 = arith.andi %258, %260 : vector<32x256xi1>
    %cst_152 = arith.constant 0.000000e+00 : f32
    %262 = vector.broadcast %cst_152 : f32 to vector<32x256xf32>
    %263 = arith.select %261, %254, %262 : vector<32x256xi1>, vector<32x256xf32>
    %c6_153 = arith.constant 6 : index
    %c0_154 = arith.constant 0 : index
    %c0_155 = arith.constant 0 : index
    %264 = vector.load %arg5[%c6_153, %c0_154, %c0_155] : memref<9x96x32xbf16, #tpu.memory_space<vmem>>, vector<1x96x32xbf16>
    %265 = vector.shape_cast %264 : vector<1x96x32xbf16> to vector<96x32xbf16>
    %266 = arith.truncf %263 : vector<32x256xf32> to vector<32x256xbf16>
    %cst_156 = arith.constant dense<0.000000e+00> : vector<96x256xf32>
    %267 = tpu.matmul %265, %266, %cst_156 {dimension_numbers = #tpu.dot_dimension_numbers<[1], [0], [0], [1], [0, 0, 1, 1], [], []>} : vector<96x32xbf16>, vector<32x256xbf16>, vector<96x256xf32> -> vector<96x256xf32>
    %268 = arith.addf %252, %267 : vector<96x256xf32>
    %c0_157 = arith.constant 0 : index
    %c0_158 = arith.constant 0 : index
    %c33_159 = arith.constant 33 : index
    %269 = vector.load %arg2[%c0_157, %c0_158, %c33_159] : memref<1x32x290xf32, #tpu.memory_space<vmem>>, vector<1x32x256xf32>
    %270 = vector.shape_cast %269 : vector<1x32x256xf32> to vector<32x256xf32>
    %c7_160 = arith.constant 7 : index
    %c0_161 = arith.constant 0 : index
    %c0_162 = arith.constant 0 : index
    %271 = vector.load %arg5[%c7_160, %c0_161, %c0_162] : memref<9x96x32xbf16, #tpu.memory_space<vmem>>, vector<1x96x32xbf16>
    %272 = vector.shape_cast %271 : vector<1x96x32xbf16> to vector<96x32xbf16>
    %273 = arith.truncf %270 : vector<32x256xf32> to vector<32x256xbf16>
    %cst_163 = arith.constant dense<0.000000e+00> : vector<96x256xf32>
    %274 = tpu.matmul %272, %273, %cst_163 {dimension_numbers = #tpu.dot_dimension_numbers<[1], [0], [0], [1], [0, 0, 1, 1], [], []>} : vector<96x32xbf16>, vector<32x256xbf16>, vector<96x256xf32> -> vector<96x256xf32>
    %275 = arith.addf %268, %274 : vector<96x256xf32>
    %c0_164 = arith.constant 0 : index
    %c0_165 = arith.constant 0 : index
    %c34_166 = arith.constant 34 : index
    %276 = vector.load %arg2[%c0_164, %c0_165, %c34_166] : memref<1x32x290xf32, #tpu.memory_space<vmem>>, vector<1x32x256xf32>
    %277 = vector.shape_cast %276 : vector<1x32x256xf32> to vector<32x256xf32>
    %c1_i32_167 = arith.constant 1 : i32
    %278 = vector.broadcast %c1_i32_167 : i32 to vector<32x256xi32>
    %279 = arith.addi %173, %278 : vector<32x256xi32>
    %c0_i32_168 = arith.constant 0 : i32
    %280 = vector.broadcast %c0_i32_168 : i32 to vector<32x256xi32>
    %281 = arith.cmpi sge, %279, %280 : vector<32x256xi32>
    %c16_i32_169 = arith.constant 16 : i32
    %282 = vector.broadcast %c16_i32_169 : i32 to vector<32x256xi32>
    %283 = arith.cmpi slt, %279, %282 : vector<32x256xi32>
    %284 = arith.andi %281, %283 : vector<32x256xi1>
    %cst_170 = arith.constant 0.000000e+00 : f32
    %285 = vector.broadcast %cst_170 : f32 to vector<32x256xf32>
    %286 = arith.select %284, %277, %285 : vector<32x256xi1>, vector<32x256xf32>
    %c8_171 = arith.constant 8 : index
    %c0_172 = arith.constant 0 : index
    %c0_173 = arith.constant 0 : index
    %287 = vector.load %arg5[%c8_171, %c0_172, %c0_173] : memref<9x96x32xbf16, #tpu.memory_space<vmem>>, vector<1x96x32xbf16>
    %288 = vector.shape_cast %287 : vector<1x96x32xbf16> to vector<96x32xbf16>
    %289 = arith.truncf %286 : vector<32x256xf32> to vector<32x256xbf16>
    %cst_174 = arith.constant dense<0.000000e+00> : vector<96x256xf32>
    %290 = tpu.matmul %288, %289, %cst_174 {dimension_numbers = #tpu.dot_dimension_numbers<[1], [0], [0], [1], [0, 0, 1, 1], [], []>} : vector<96x32xbf16>, vector<32x256xbf16>, vector<96x256xf32> -> vector<96x256xf32>
    %291 = arith.addf %275, %290 : vector<96x256xf32>
    %c0_175 = arith.constant 0 : index
    %c0_176 = arith.constant 0 : index
    %292 = vector.load %arg6[%c0_175, %c0_176] : memref<96x1xf32, #tpu.memory_space<vmem>>, vector<96x1xf32>
    %293 = vector.broadcast %292 : vector<96x1xf32> to vector<96x256xf32>
    %294 = arith.addf %291, %293 : vector<96x256xf32>
    %295 = vector.shape_cast %294 : vector<96x256xf32> to vector<1x96x256xf32>
    %cst_177 = arith.constant dense<0.000000e+00> : vector<1xf32>
    %296 = vector.multi_reduction <add>, %295, %cst_177 [1, 2] : vector<1x96x256xf32> to vector<1xf32>
    %297 = vector.shape_cast %296 : vector<1xf32> to vector<1x1x1xf32>
    %298 = vector.extract %297[0, 0, 0] : f32 from vector<1x1x1xf32>
    %299 = arith.mulf %294, %294 : vector<96x256xf32>
    %300 = vector.shape_cast %299 : vector<96x256xf32> to vector<1x96x256xf32>
    %cst_178 = arith.constant dense<0.000000e+00> : vector<1xf32>
    %301 = vector.multi_reduction <add>, %300, %cst_178 [1, 2] : vector<1x96x256xf32> to vector<1xf32>
    %302 = vector.shape_cast %301 : vector<1xf32> to vector<1x1x1xf32>
    %303 = vector.extract %302[0, 0, 0] : f32 from vector<1x1x1xf32>
    %cst_179 = arith.constant 2.457600e+04 : f32
    %304 = arith.divf %298, %cst_179 : f32
    %cst_180 = arith.constant 2.457600e+04 : f32
    %305 = arith.divf %303, %cst_180 : f32
    %306 = arith.mulf %304, %304 : f32
    %307 = arith.subf %305, %306 : f32
    %308 = vector.broadcast %304 : f32 to vector<96x256xf32>
    %309 = arith.subf %294, %308 : vector<96x256xf32>
    %cst_181 = arith.constant 9.99999974E-6 : f32
    %310 = arith.addf %307, %cst_181 : f32
    %311 = math.rsqrt %310 : f32
    %312 = vector.broadcast %311 : f32 to vector<96x256xf32>
    %313 = arith.mulf %309, %312 : vector<96x256xf32>
    %314 = vector.extract_strided_slice %156 {offsets = [0, 0], sizes = [32, 256], strides = [1, 1]} : vector<128x256xf32> to vector<32x256xf32>
    %315 = vector.extract_strided_slice %313 {offsets = [0, 0], sizes = [32, 256], strides = [1, 1]} : vector<96x256xf32> to vector<32x256xf32>
    %316 = arith.addf %314, %315 : vector<32x256xf32>
    %317 = math.tanh %316 : vector<32x256xf32>
    %318 = vector.extract_strided_slice %156 {offsets = [32, 0], sizes = [32, 256], strides = [1, 1]} : vector<128x256xf32> to vector<32x256xf32>
    %319 = vector.extract_strided_slice %313 {offsets = [32, 0], sizes = [32, 256], strides = [1, 1]} : vector<96x256xf32> to vector<32x256xf32>
    %320 = arith.addf %318, %319 : vector<32x256xf32>
    %321 = arith.negf %320 : vector<32x256xf32>
    %322 = math.exp %321 : vector<32x256xf32>
    %cst_182 = arith.constant 1.000000e+00 : f32
    %323 = vector.broadcast %cst_182 : f32 to vector<32x256xf32>
    %324 = arith.addf %323, %322 : vector<32x256xf32>
    %325 = arith.divf %323, %324 : vector<32x256xf32>
    %326 = vector.extract_strided_slice %156 {offsets = [64, 0], sizes = [32, 256], strides = [1, 1]} : vector<128x256xf32> to vector<32x256xf32>
    %327 = vector.extract_strided_slice %313 {offsets = [64, 0], sizes = [32, 256], strides = [1, 1]} : vector<96x256xf32> to vector<32x256xf32>
    %328 = arith.addf %326, %327 : vector<32x256xf32>
    %cst_183 = arith.constant 0.00999999977 : f32
    %329 = vector.broadcast %cst_183 : f32 to vector<32x256xf32>
    %330 = arith.addf %328, %329 : vector<32x256xf32>
    %331 = arith.negf %330 : vector<32x256xf32>
    %332 = math.exp %331 : vector<32x256xf32>
    %cst_184 = arith.constant 1.000000e+00 : f32
    %333 = vector.broadcast %cst_184 : f32 to vector<32x256xf32>
    %334 = arith.addf %333, %332 : vector<32x256xf32>
    %335 = arith.divf %333, %334 : vector<32x256xf32>
    %336 = vector.extract_strided_slice %156 {offsets = [96, 0], sizes = [32, 256], strides = [1, 1]} : vector<128x256xf32> to vector<32x256xf32>
    %c0_185 = arith.constant 0 : index
    %c0_186 = arith.constant 0 : index
    %c17_187 = arith.constant 17 : index
    %337 = vector.load %arg2[%c0_185, %c0_186, %c17_187] : memref<1x32x290xf32, #tpu.memory_space<vmem>>, vector<1x32x256xf32>
    %338 = vector.shape_cast %337 : vector<1x32x256xf32> to vector<32x256xf32>
    %339 = arith.mulf %335, %338 : vector<32x256xf32>
    %340 = arith.mulf %325, %317 : vector<32x256xf32>
    %341 = arith.addf %339, %340 : vector<32x256xf32>
    %cst_188 = arith.constant 0.000000e+00 : f32
    %342 = vector.broadcast %cst_188 : f32 to vector<32x17xf32>
    %c0_189 = arith.constant 0 : index
    %c0_190 = arith.constant 0 : index
    %343 = vector.load %arg11[%c0_189, %c0_190] : memref<32x290xf32, #tpu.memory_space<vmem>>, vector<32x17xf32>
    tpu.vector_store %arg11[%c0_189, %c0_190], %342 {strides = array<i32>} : memref<32x290xf32, #tpu.memory_space<vmem>>, vector<32x17xf32>,
    %cst_191 = arith.constant 0.000000e+00 : f32
    %344 = vector.broadcast %cst_191 : f32 to vector<32x17xf32>
    %c0_192 = arith.constant 0 : index
    %c273 = arith.constant 273 : index
    %345 = vector.load %arg11[%c0_192, %c273] : memref<32x290xf32, #tpu.memory_space<vmem>>, vector<32x17xf32>
    tpu.vector_store %arg11[%c0_192, %c273], %344 {strides = array<i32>} : memref<32x290xf32, #tpu.memory_space<vmem>>, vector<32x17xf32>,
    %c0_193 = arith.constant 0 : index
    %c17_194 = arith.constant 17 : index
    %346 = vector.load %arg11[%c0_193, %c17_194] : memref<32x290xf32, #tpu.memory_space<vmem>>, vector<32x256xf32>
    tpu.vector_store %arg11[%c0_193, %c17_194], %341 {strides = array<i32>} : memref<32x290xf32, #tpu.memory_space<vmem>>, vector<32x256xf32>,
    %347 = tpu.iota {dimensions = array<i32: 1>} : vector<32x256xi32>
    %c16_i32_195 = arith.constant 16 : i32
    %c0_i32_196 = arith.constant 0 : i32
    %348 = arith.cmpi eq, %c16_i32_195, %c0_i32_196 : i32
    %c1_i32_197 = arith.constant 1 : i32
    %349 = arith.select %348, %c1_i32_197, %c16_i32_195 : i32
    %350 = vector.broadcast %349 : i32 to vector<32x256xi32>
    %351 = arith.remsi %347, %350 : vector<32x256xi32>
    %c0_i32_198 = arith.constant 0 : i32
    %352 = vector.broadcast %c0_i32_198 : i32 to vector<32x256xi32>
    %353 = arith.cmpi ne, %351, %352 : vector<32x256xi32>
    %c0_i32_199 = arith.constant 0 : i32
    %354 = vector.broadcast %c0_i32_199 : i32 to vector<32x256xi32>
    %355 = arith.cmpi slt, %351, %354 : vector<32x256xi32>
    %c0_i32_200 = arith.constant 0 : i32
    %356 = arith.cmpi slt, %349, %c0_i32_200 : i32
    %357 = vector.broadcast %356 : i1 to vector<32x256xi1>
    %358 = vector.broadcast %357 : vector<32x256xi1> to vector<32x256xi1>
    %359 = arith.xori %355, %358 : vector<32x256xi1>
    %360 = arith.andi %359, %353 : vector<32x256xi1>
    %361 = vector.broadcast %349 : i32 to vector<32x256xi32>
    %362 = arith.addi %351, %361 : vector<32x256xi32>
    %363 = arith.select %360, %362, %351 : vector<32x256xi1>, vector<32x256xi32>
    %cst_201 = arith.constant 0.000000e+00 : f32
    %364 = vector.broadcast %cst_201 : f32 to vector<32x256xf32>
    %c0_202 = arith.constant 0 : index
    %c0_203 = arith.constant 0 : index
    %365 = vector.load %arg11[%c0_202, %c0_203] : memref<32x290xf32, #tpu.memory_space<vmem>>, vector<32x256xf32>
    %c-1_i32_204 = arith.constant -1 : i32
    %366 = vector.broadcast %c-1_i32_204 : i32 to vector<32x256xi32>
    %367 = arith.addi %363, %366 : vector<32x256xi32>
    %c0_i32_205 = arith.constant 0 : i32
    %368 = vector.broadcast %c0_i32_205 : i32 to vector<32x256xi32>
    %369 = arith.cmpi sge, %367, %368 : vector<32x256xi32>
    %c16_i32_206 = arith.constant 16 : i32
    %370 = vector.broadcast %c16_i32_206 : i32 to vector<32x256xi32>
    %371 = arith.cmpi slt, %367, %370 : vector<32x256xi32>
    %372 = arith.andi %369, %371 : vector<32x256xi1>
    %cst_207 = arith.constant 0.000000e+00 : f32
    %373 = vector.broadcast %cst_207 : f32 to vector<32x256xf32>
    %374 = arith.select %372, %365, %373 : vector<32x256xi1>, vector<32x256xf32>
    %c0_208 = arith.constant 0 : index
    %c0_209 = arith.constant 0 : index
    %c0_210 = arith.constant 0 : index
    %375 = vector.load %arg7[%c0_208, %c0_209, %c0_210] : memref<9x32x32xbf16, #tpu.memory_space<vmem>>, vector<1x32x32xbf16>
    %376 = vector.shape_cast %375 : vector<1x32x32xbf16> to vector<32x32xbf16>
    %377 = arith.truncf %374 : vector<32x256xf32> to vector<32x256xbf16>
    %cst_211 = arith.constant dense<0.000000e+00> : vector<32x256xf32>
    %378 = tpu.matmul %376, %377, %cst_211 {dimension_numbers = #tpu.dot_dimension_numbers<[1], [0], [0], [1], [0, 0, 1, 1], [], []>} : vector<32x32xbf16>, vector<32x256xbf16>, vector<32x256xf32> -> vector<32x256xf32>
    %379 = arith.addf %364, %378 : vector<32x256xf32>
    %c0_212 = arith.constant 0 : index
    %c1_213 = arith.constant 1 : index
    %380 = vector.load %arg11[%c0_212, %c1_213] : memref<32x290xf32, #tpu.memory_space<vmem>>, vector<32x256xf32>
    %c1_214 = arith.constant 1 : index
    %c0_215 = arith.constant 0 : index
    %c0_216 = arith.constant 0 : index
    %381 = vector.load %arg7[%c1_214, %c0_215, %c0_216] : memref<9x32x32xbf16, #tpu.memory_space<vmem>>, vector<1x32x32xbf16>
    %382 = vector.shape_cast %381 : vector<1x32x32xbf16> to vector<32x32xbf16>
    %383 = arith.truncf %380 : vector<32x256xf32> to vector<32x256xbf16>
    %cst_217 = arith.constant dense<0.000000e+00> : vector<32x256xf32>
    %384 = tpu.matmul %382, %383, %cst_217 {dimension_numbers = #tpu.dot_dimension_numbers<[1], [0], [0], [1], [0, 0, 1, 1], [], []>} : vector<32x32xbf16>, vector<32x256xbf16>, vector<32x256xf32> -> vector<32x256xf32>
    %385 = arith.addf %379, %384 : vector<32x256xf32>
    %c0_218 = arith.constant 0 : index
    %c2_219 = arith.constant 2 : index
    %386 = vector.load %arg11[%c0_218, %c2_219] : memref<32x290xf32, #tpu.memory_space<vmem>>, vector<32x256xf32>
    %c1_i32_220 = arith.constant 1 : i32
    %387 = vector.broadcast %c1_i32_220 : i32 to vector<32x256xi32>
    %388 = arith.addi %363, %387 : vector<32x256xi32>
    %c0_i32_221 = arith.constant 0 : i32
    %389 = vector.broadcast %c0_i32_221 : i32 to vector<32x256xi32>
    %390 = arith.cmpi sge, %388, %389 : vector<32x256xi32>
    %c16_i32_222 = arith.constant 16 : i32
    %391 = vector.broadcast %c16_i32_222 : i32 to vector<32x256xi32>
    %392 = arith.cmpi slt, %388, %391 : vector<32x256xi32>
    %393 = arith.andi %390, %392 : vector<32x256xi1>
    %cst_223 = arith.constant 0.000000e+00 : f32
    %394 = vector.broadcast %cst_223 : f32 to vector<32x256xf32>
    %395 = arith.select %393, %386, %394 : vector<32x256xi1>, vector<32x256xf32>
    %c2_224 = arith.constant 2 : index
    %c0_225 = arith.constant 0 : index
    %c0_226 = arith.constant 0 : index
    %396 = vector.load %arg7[%c2_224, %c0_225, %c0_226] : memref<9x32x32xbf16, #tpu.memory_space<vmem>>, vector<1x32x32xbf16>
    %397 = vector.shape_cast %396 : vector<1x32x32xbf16> to vector<32x32xbf16>
    %398 = arith.truncf %395 : vector<32x256xf32> to vector<32x256xbf16>
    %cst_227 = arith.constant dense<0.000000e+00> : vector<32x256xf32>
    %399 = tpu.matmul %397, %398, %cst_227 {dimension_numbers = #tpu.dot_dimension_numbers<[1], [0], [0], [1], [0, 0, 1, 1], [], []>} : vector<32x32xbf16>, vector<32x256xbf16>, vector<32x256xf32> -> vector<32x256xf32>
    %400 = arith.addf %385, %399 : vector<32x256xf32>
    %c0_228 = arith.constant 0 : index
    %c16_229 = arith.constant 16 : index
    %401 = vector.load %arg11[%c0_228, %c16_229] : memref<32x290xf32, #tpu.memory_space<vmem>>, vector<32x256xf32>
    %c-1_i32_230 = arith.constant -1 : i32
    %402 = vector.broadcast %c-1_i32_230 : i32 to vector<32x256xi32>
    %403 = arith.addi %363, %402 : vector<32x256xi32>
    %c0_i32_231 = arith.constant 0 : i32
    %404 = vector.broadcast %c0_i32_231 : i32 to vector<32x256xi32>
    %405 = arith.cmpi sge, %403, %404 : vector<32x256xi32>
    %c16_i32_232 = arith.constant 16 : i32
    %406 = vector.broadcast %c16_i32_232 : i32 to vector<32x256xi32>
    %407 = arith.cmpi slt, %403, %406 : vector<32x256xi32>
    %408 = arith.andi %405, %407 : vector<32x256xi1>
    %cst_233 = arith.constant 0.000000e+00 : f32
    %409 = vector.broadcast %cst_233 : f32 to vector<32x256xf32>
    %410 = arith.select %408, %401, %409 : vector<32x256xi1>, vector<32x256xf32>
    %c3_234 = arith.constant 3 : index
    %c0_235 = arith.constant 0 : index
    %c0_236 = arith.constant 0 : index
    %411 = vector.load %arg7[%c3_234, %c0_235, %c0_236] : memref<9x32x32xbf16, #tpu.memory_space<vmem>>, vector<1x32x32xbf16>
    %412 = vector.shape_cast %411 : vector<1x32x32xbf16> to vector<32x32xbf16>
    %413 = arith.truncf %410 : vector<32x256xf32> to vector<32x256xbf16>
    %cst_237 = arith.constant dense<0.000000e+00> : vector<32x256xf32>
    %414 = tpu.matmul %412, %413, %cst_237 {dimension_numbers = #tpu.dot_dimension_numbers<[1], [0], [0], [1], [0, 0, 1, 1], [], []>} : vector<32x32xbf16>, vector<32x256xbf16>, vector<32x256xf32> -> vector<32x256xf32>
    %415 = arith.addf %400, %414 : vector<32x256xf32>
    %c0_238 = arith.constant 0 : index
    %c17_239 = arith.constant 17 : index
    %416 = vector.load %arg11[%c0_238, %c17_239] : memref<32x290xf32, #tpu.memory_space<vmem>>, vector<32x256xf32>
    %c4_240 = arith.constant 4 : index
    %c0_241 = arith.constant 0 : index
    %c0_242 = arith.constant 0 : index
    %417 = vector.load %arg7[%c4_240, %c0_241, %c0_242] : memref<9x32x32xbf16, #tpu.memory_space<vmem>>, vector<1x32x32xbf16>
    %418 = vector.shape_cast %417 : vector<1x32x32xbf16> to vector<32x32xbf16>
    %419 = arith.truncf %416 : vector<32x256xf32> to vector<32x256xbf16>
    %cst_243 = arith.constant dense<0.000000e+00> : vector<32x256xf32>
    %420 = tpu.matmul %418, %419, %cst_243 {dimension_numbers = #tpu.dot_dimension_numbers<[1], [0], [0], [1], [0, 0, 1, 1], [], []>} : vector<32x32xbf16>, vector<32x256xbf16>, vector<32x256xf32> -> vector<32x256xf32>
    %421 = arith.addf %415, %420 : vector<32x256xf32>
    %c0_244 = arith.constant 0 : index
    %c18_245 = arith.constant 18 : index
    %422 = vector.load %arg11[%c0_244, %c18_245] : memref<32x290xf32, #tpu.memory_space<vmem>>, vector<32x256xf32>
    %c1_i32_246 = arith.constant 1 : i32
    %423 = vector.broadcast %c1_i32_246 : i32 to vector<32x256xi32>
    %424 = arith.addi %363, %423 : vector<32x256xi32>
    %c0_i32_247 = arith.constant 0 : i32
    %425 = vector.broadcast %c0_i32_247 : i32 to vector<32x256xi32>
    %426 = arith.cmpi sge, %424, %425 : vector<32x256xi32>
    %c16_i32_248 = arith.constant 16 : i32
    %427 = vector.broadcast %c16_i32_248 : i32 to vector<32x256xi32>
    %428 = arith.cmpi slt, %424, %427 : vector<32x256xi32>
    %429 = arith.andi %426, %428 : vector<32x256xi1>
    %cst_249 = arith.constant 0.000000e+00 : f32
    %430 = vector.broadcast %cst_249 : f32 to vector<32x256xf32>
    %431 = arith.select %429, %422, %430 : vector<32x256xi1>, vector<32x256xf32>
    %c5_250 = arith.constant 5 : index
    %c0_251 = arith.constant 0 : index
    %c0_252 = arith.constant 0 : index
    %432 = vector.load %arg7[%c5_250, %c0_251, %c0_252] : memref<9x32x32xbf16, #tpu.memory_space<vmem>>, vector<1x32x32xbf16>
    %433 = vector.shape_cast %432 : vector<1x32x32xbf16> to vector<32x32xbf16>
    %434 = arith.truncf %431 : vector<32x256xf32> to vector<32x256xbf16>
    %cst_253 = arith.constant dense<0.000000e+00> : vector<32x256xf32>
    %435 = tpu.matmul %433, %434, %cst_253 {dimension_numbers = #tpu.dot_dimension_numbers<[1], [0], [0], [1], [0, 0, 1, 1], [], []>} : vector<32x32xbf16>, vector<32x256xbf16>, vector<32x256xf32> -> vector<32x256xf32>
    %436 = arith.addf %421, %435 : vector<32x256xf32>
    %c0_254 = arith.constant 0 : index
    %c32_255 = arith.constant 32 : index
    %437 = vector.load %arg11[%c0_254, %c32_255] : memref<32x290xf32, #tpu.memory_space<vmem>>, vector<32x256xf32>
    %c-1_i32_256 = arith.constant -1 : i32
    %438 = vector.broadcast %c-1_i32_256 : i32 to vector<32x256xi32>
    %439 = arith.addi %363, %438 : vector<32x256xi32>
    %c0_i32_257 = arith.constant 0 : i32
    %440 = vector.broadcast %c0_i32_257 : i32 to vector<32x256xi32>
    %441 = arith.cmpi sge, %439, %440 : vector<32x256xi32>
    %c16_i32_258 = arith.constant 16 : i32
    %442 = vector.broadcast %c16_i32_258 : i32 to vector<32x256xi32>
    %443 = arith.cmpi slt, %439, %442 : vector<32x256xi32>
    %444 = arith.andi %441, %443 : vector<32x256xi1>
    %cst_259 = arith.constant 0.000000e+00 : f32
    %445 = vector.broadcast %cst_259 : f32 to vector<32x256xf32>
    %446 = arith.select %444, %437, %445 : vector<32x256xi1>, vector<32x256xf32>
    %c6_260 = arith.constant 6 : index
    %c0_261 = arith.constant 0 : index
    %c0_262 = arith.constant 0 : index
    %447 = vector.load %arg7[%c6_260, %c0_261, %c0_262] : memref<9x32x32xbf16, #tpu.memory_space<vmem>>, vector<1x32x32xbf16>
    %448 = vector.shape_cast %447 : vector<1x32x32xbf16> to vector<32x32xbf16>
    %449 = arith.truncf %446 : vector<32x256xf32> to vector<32x256xbf16>
    %cst_263 = arith.constant dense<0.000000e+00> : vector<32x256xf32>
    %450 = tpu.matmul %448, %449, %cst_263 {dimension_numbers = #tpu.dot_dimension_numbers<[1], [0], [0], [1], [0, 0, 1, 1], [], []>} : vector<32x32xbf16>, vector<32x256xbf16>, vector<32x256xf32> -> vector<32x256xf32>
    %451 = arith.addf %436, %450 : vector<32x256xf32>
    %c0_264 = arith.constant 0 : index
    %c33_265 = arith.constant 33 : index
    %452 = vector.load %arg11[%c0_264, %c33_265] : memref<32x290xf32, #tpu.memory_space<vmem>>, vector<32x256xf32>
    %c7_266 = arith.constant 7 : index
    %c0_267 = arith.constant 0 : index
    %c0_268 = arith.constant 0 : index
    %453 = vector.load %arg7[%c7_266, %c0_267, %c0_268] : memref<9x32x32xbf16, #tpu.memory_space<vmem>>, vector<1x32x32xbf16>
    %454 = vector.shape_cast %453 : vector<1x32x32xbf16> to vector<32x32xbf16>
    %455 = arith.truncf %452 : vector<32x256xf32> to vector<32x256xbf16>
    %cst_269 = arith.constant dense<0.000000e+00> : vector<32x256xf32>
    %456 = tpu.matmul %454, %455, %cst_269 {dimension_numbers = #tpu.dot_dimension_numbers<[1], [0], [0], [1], [0, 0, 1, 1], [], []>} : vector<32x32xbf16>, vector<32x256xbf16>, vector<32x256xf32> -> vector<32x256xf32>
    %457 = arith.addf %451, %456 : vector<32x256xf32>
    %c0_270 = arith.constant 0 : index
    %c34_271 = arith.constant 34 : index
    %458 = vector.load %arg11[%c0_270, %c34_271] : memref<32x290xf32, #tpu.memory_space<vmem>>, vector<32x256xf32>
    %c1_i32_272 = arith.constant 1 : i32
    %459 = vector.broadcast %c1_i32_272 : i32 to vector<32x256xi32>
    %460 = arith.addi %363, %459 : vector<32x256xi32>
    %c0_i32_273 = arith.constant 0 : i32
    %461 = vector.broadcast %c0_i32_273 : i32 to vector<32x256xi32>
    %462 = arith.cmpi sge, %460, %461 : vector<32x256xi32>
    %c16_i32_274 = arith.constant 16 : i32
    %463 = vector.broadcast %c16_i32_274 : i32 to vector<32x256xi32>
    %464 = arith.cmpi slt, %460, %463 : vector<32x256xi32>
    %465 = arith.andi %462, %464 : vector<32x256xi1>
    %cst_275 = arith.constant 0.000000e+00 : f32
    %466 = vector.broadcast %cst_275 : f32 to vector<32x256xf32>
    %467 = arith.select %465, %458, %466 : vector<32x256xi1>, vector<32x256xf32>
    %c8_276 = arith.constant 8 : index
    %c0_277 = arith.constant 0 : index
    %c0_278 = arith.constant 0 : index
    %468 = vector.load %arg7[%c8_276, %c0_277, %c0_278] : memref<9x32x32xbf16, #tpu.memory_space<vmem>>, vector<1x32x32xbf16>
    %469 = vector.shape_cast %468 : vector<1x32x32xbf16> to vector<32x32xbf16>
    %470 = arith.truncf %467 : vector<32x256xf32> to vector<32x256xbf16>
    %cst_279 = arith.constant dense<0.000000e+00> : vector<32x256xf32>
    %471 = tpu.matmul %469, %470, %cst_279 {dimension_numbers = #tpu.dot_dimension_numbers<[1], [0], [0], [1], [0, 0, 1, 1], [], []>} : vector<32x32xbf16>, vector<32x256xbf16>, vector<32x256xf32> -> vector<32x256xf32>
    %472 = arith.addf %457, %471 : vector<32x256xf32>
    %c0_280 = arith.constant 0 : index
    %c0_281 = arith.constant 0 : index
    %473 = vector.load %arg8[%c0_280, %c0_281] : memref<32x1xf32, #tpu.memory_space<vmem>>, vector<32x1xf32>
    %474 = vector.broadcast %473 : vector<32x1xf32> to vector<32x256xf32>
    %475 = arith.addf %472, %474 : vector<32x256xf32>
    %476 = vector.shape_cast %475 : vector<32x256xf32> to vector<1x32x256xf32>
    %cst_282 = arith.constant dense<0.000000e+00> : vector<1xf32>
    %477 = vector.multi_reduction <add>, %476, %cst_282 [1, 2] : vector<1x32x256xf32> to vector<1xf32>
    %478 = vector.shape_cast %477 : vector<1xf32> to vector<1x1x1xf32>
    %479 = vector.extract %478[0, 0, 0] : f32 from vector<1x1x1xf32>
    %480 = arith.mulf %475, %475 : vector<32x256xf32>
    %481 = vector.shape_cast %480 : vector<32x256xf32> to vector<1x32x256xf32>
    %cst_283 = arith.constant dense<0.000000e+00> : vector<1xf32>
    %482 = vector.multi_reduction <add>, %481, %cst_283 [1, 2] : vector<1x32x256xf32> to vector<1xf32>
    %483 = vector.shape_cast %482 : vector<1xf32> to vector<1x1x1xf32>
    %484 = vector.extract %483[0, 0, 0] : f32 from vector<1x1x1xf32>
    %cst_284 = arith.constant 8.192000e+03 : f32
    %485 = arith.divf %479, %cst_284 : f32
    %cst_285 = arith.constant 8.192000e+03 : f32
    %486 = arith.divf %484, %cst_285 : f32
    %487 = arith.mulf %485, %485 : f32
    %488 = arith.subf %486, %487 : f32
    %489 = vector.broadcast %485 : f32 to vector<32x256xf32>
    %490 = arith.subf %475, %489 : vector<32x256xf32>
    %cst_286 = arith.constant 9.99999974E-6 : f32
    %491 = arith.addf %488, %cst_286 : f32
    %492 = math.rsqrt %491 : f32
    %493 = vector.broadcast %492 : f32 to vector<32x256xf32>
    %494 = arith.mulf %490, %493 : vector<32x256xf32>
    %495 = arith.addf %336, %494 : vector<32x256xf32>
    %496 = arith.negf %495 : vector<32x256xf32>
    %497 = math.exp %496 : vector<32x256xf32>
    %cst_287 = arith.constant 1.000000e+00 : f32
    %498 = vector.broadcast %cst_287 : f32 to vector<32x256xf32>
    %499 = arith.addf %498, %497 : vector<32x256xf32>
    %500 = arith.divf %498, %499 : vector<32x256xf32>
    %c0_288 = arith.constant 0 : index
    %c0_289 = arith.constant 0 : index
    %c0_290 = arith.constant 0 : index
    %501 = vector.load %arg9[%c0_288, %c0_289, %c0_290] : memref<1x32x256xf32, #tpu.memory_space<vmem>>, vector<1x32x256xf32>
    %502 = vector.shape_cast %501 : vector<1x32x256xf32> to vector<32x256xf32>
    %503 = vector.shape_cast %341 : vector<32x256xf32> to vector<1x32x256xf32>
    tpu.vector_store %arg9[%c0_288, %c0_289, %c0_290], %503 {strides = array<i32>} : memref<1x32x256xf32, #tpu.memory_space<vmem>>, vector<1x32x256xf32>,
    %504 = math.tanh %341 : vector<32x256xf32>
    %505 = arith.mulf %500, %504 : vector<32x256xf32>
    %c0_291 = arith.constant 0 : index
    %c0_292 = arith.constant 0 : index
    %c0_293 = arith.constant 0 : index
    %506 = vector.load %arg10[%c0_291, %c0_292, %c0_293] : memref<1x32x256xf32, #tpu.memory_space<vmem>>, vector<1x32x256xf32>
    %507 = vector.shape_cast %506 : vector<1x32x256xf32> to vector<32x256xf32>
    %508 = vector.shape_cast %505 : vector<32x256xf32> to vector<1x32x256xf32>
    tpu.vector_store %arg10[%c0_291, %c0_292, %c0_293], %508 {strides = array<i32>} : memref<1x32x256xf32, #tpu.memory_space<vmem>>, vector<1x32x256xf32>,
    return
  }
  func.func @transform_0(%arg0: i32) -> (i32, i32, i32) {
    %c0_i32 = arith.constant 0 : i32
    %c0_i32_0 = arith.constant 0 : i32
    %c0_i32_1 = arith.constant 0 : i32
    return %arg0, %c0_i32, %c0_i32_0 : i32, i32, i32
  }
  func.func @transform_1(%arg0: i32) -> (i32, i32, i32) {
    %c0_i32 = arith.constant 0 : i32
    %c0_i32_0 = arith.constant 0 : i32
    %c0_i32_1 = arith.constant 0 : i32
    return %arg0, %c0_i32, %c0_i32_0 : i32, i32, i32
  }
  func.func @transform_2(%arg0: i32) -> (i32, i32, i32) {
    %c0_i32 = arith.constant 0 : i32
    %c0_i32_0 = arith.constant 0 : i32
    %c0_i32_1 = arith.constant 0 : i32
    %c0_i32_2 = arith.constant 0 : i32
    return %c0_i32, %c0_i32_0, %c0_i32_1 : i32, i32, i32
  }
  func.func @transform_3(%arg0: i32) -> (i32, i32) {
    %c0_i32 = arith.constant 0 : i32
    %c0_i32_0 = arith.constant 0 : i32
    %c0_i32_1 = arith.constant 0 : i32
    return %c0_i32, %c0_i32_0 : i32, i32
  }
  func.func @transform_4(%arg0: i32) -> (i32, i32, i32) {
    %c0_i32 = arith.constant 0 : i32
    %c0_i32_0 = arith.constant 0 : i32
    %c0_i32_1 = arith.constant 0 : i32
    %c0_i32_2 = arith.constant 0 : i32
    return %c0_i32, %c0_i32_0, %c0_i32_1 : i32, i32, i32
  }
  func.func @transform_5(%arg0: i32) -> (i32, i32) {
    %c0_i32 = arith.constant 0 : i32
    %c0_i32_0 = arith.constant 0 : i32
    %c0_i32_1 = arith.constant 0 : i32
    return %c0_i32, %c0_i32_0 : i32, i32
  }
  func.func @transform_6(%arg0: i32) -> (i32, i32, i32) {
    %c0_i32 = arith.constant 0 : i32
    %c0_i32_0 = arith.constant 0 : i32
    %c0_i32_1 = arith.constant 0 : i32
    %c0_i32_2 = arith.constant 0 : i32
    return %c0_i32, %c0_i32_0, %c0_i32_1 : i32, i32, i32
  }
  func.func @transform_7(%arg0: i32) -> (i32, i32) {
    %c0_i32 = arith.constant 0 : i32
    %c0_i32_0 = arith.constant 0 : i32
    %c0_i32_1 = arith.constant 0 : i32
    return %c0_i32, %c0_i32_0 : i32, i32
  }
  func.func @transform_8(%arg0: i32) -> (i32, i32, i32) {
    %c0_i32 = arith.constant 0 : i32
    %c0_i32_0 = arith.constant 0 : i32
    %c0_i32_1 = arith.constant 0 : i32
    return %arg0, %c0_i32, %c0_i32_0 : i32, i32, i32
  }
  func.func @transform_9(%arg0: i32) -> (i32, i32, i32) {
    %c0_i32 = arith.constant 0 : i32
    %c0_i32_0 = arith.constant 0 : i32
    %c0_i32_1 = arith.constant 0 : i32
    return %arg0, %c0_i32, %c0_i32_0 : i32, i32, i32
  }
}

</mosaic_0001>

<llo_original>
// kernel: tpu_custom_call.1
$region0: #{tpu_custom_call.1}
  #allocation0 [shape = 'u32[]', space=smem, size = 0x4, offset = 0x4, fixed_abs, tag = 'smem constant byte address 0x4 - core index']
  #allocation1 [shape = 'u32[72,128]{1,0:T(1,128)}', space=vmem, size = 0x9000, scoped, tag = 'internal scratch']
  #allocation2 [shape = 'f32[32,290]{1,0:T(8,128)}', space=vmem, size = 0xc000, scoped, tag = 'scratch operand']
  %s0 = inlined_call_operand.vmem [shape: f32[2,4,290], index: 0, kind: input, shape index: {}]
  %s1 = inlined_call_operand.vmem [shape: f32[2,32,290], index: 1, kind: input, shape index: {}]
  %s2 = inlined_call_operand.vmem [shape: bf16[9,128,4], index: 2, kind: input, shape index: {}]
  %s3 = inlined_call_operand.vmem [shape: f32[128,1], index: 3, kind: input, shape index: {}]
  %s4 = inlined_call_operand.vmem [shape: bf16[9,96,32], index: 4, kind: input, shape index: {}]
  %s5 = inlined_call_operand.vmem [shape: f32[96,1], index: 5, kind: input, shape index: {}]
  %s6 = inlined_call_operand.vmem [shape: bf16[9,32,32], index: 6, kind: input, shape index: {}]
  %s7 = inlined_call_operand.vmem [shape: f32[32,1], index: 7, kind: input, shape index: {}]
  %s8 = inlined_call_operand.hbm [shape: f32[2,32,256], index: 8, kind: output, shape index: {0}]
  %s9 = inlined_call_operand.hbm [shape: f32[2,32,256], index: 9, kind: output, shape index: {1}]
  %10 = xla_tuple %s8, %s9
  %s11 = sld [smem:[#allocation0]]
  $region73: #{tpu_custom_call.1} parent=0
    _
  %s13 = ssub.s32 1, %s11
  %s14 = scalar_select 0, %s13, %s11
  $region1: #{tpu_custom_call.1} parent=0
    #allocation3 [shape = 'u8[65536]{0}', space=vmem, size = 0x10000, scoped, tag = 'output window, operand 0']
    #allocation4 [shape = 's32[2]{0}', space=sflag, size = 0x8, scoped, tag = 'scoped memory for tpu_custom_call.1']
    #allocation5 [shape = 'u8[65536]{0}', space=vmem, size = 0x10000, scoped, tag = 'output window, operand 1']
    #allocation6 [shape = 's32[2]{0}', space=sflag, size = 0x8, scoped, tag = 'scoped memory for tpu_custom_call.1']
    %15 = vsyncpa [#allocation4], 0
    %s16 = scalar_lea.sflag [#allocation4], 1
    %17 = vsyncpa %s16, 0
    %18 = vsyncpa [#allocation6], 0
    %s19 = scalar_lea.sflag [#allocation6], 1
    %20 = vsyncpa %s19, 0
    loop: start=0, step=1, limit=4
    $region2: #{tpu_custom_call.1} parent=1 // loop_pre_header
      _
    $region3: #{tpu_custom_call.1} parent=1 // loop_header
      %s22 = sphi 0, %s26
      %p23 = scmp.ge.s32.totalorder %s22, 4
      %s32 = sphi 0, %s34
      %s35 = sphi 0, %s32
      %s36 = sphi 0, %s35
      %s52 = sphi 0, %s36
      %s58 = sphi 0, %s60
      %s61 = sphi 0, %s58
      %s62 = sphi 0, %s61
      %s78 = sphi 0, %s62
      %s82 = sphi 0, %s82
      %s84 = sphi 0, %s82
      %s85 = sphi 0, %s84
      %s99 = sphi 0, %s85
      %s103 = sphi 0, %s103
      %s105 = sphi 0, %s103
      %s106 = sphi 0, %s105
      %s120 = sphi 0, %s106
      %s124 = sphi 0, %s124
      %s126 = sphi 0, %s124
      %s127 = sphi 0, %s126
      %s141 = sphi 0, %s127
      %s145 = sphi 0, %s145
      %s147 = sphi 0, %s145
      %s148 = sphi 0, %s147
      %s162 = sphi 0, %s148
      %s166 = sphi 0, %s166
      %s168 = sphi 0, %s166
      %s169 = sphi 0, %s168
      %s183 = sphi 0, %s169
      %s187 = sphi 0, %s187
      %s189 = sphi 0, %s187
      %s190 = sphi 0, %s189
      %s204 = sphi 0, %s190
      %s210 = sphi 0, %s212
      %s213 = sphi 0, %s210
      %s214 = sphi 0, %s213
      %s230 = sphi 0, %s214
      %s236 = sphi 0, %s238
      %s239 = sphi 0, %s236
      %s240 = sphi 0, %s239
      %s256 = sphi 0, %s240
    $region4: #{tpu_custom_call.1} parent=1 // loop_header_branch
      %25 = sbr.rel (%p23) target = $region8
    $region5: #{tpu_custom_call.1} parent=1 // loop_body
      %s27 = ssub.s32 %s22, 1
      %s28 = ssub.s32 %s22, 2
      %s29 = sadd.s32 %s22, 1
      %s30 = ssub.s32 %s22, %s29
      %p31 = scmp.eq.s32.totalorder %s30, 0
      %s33 = sadd.s32 %s32, 1
      %s34 = scalar_select %p31, %s32, %s33
      %p37 = pneg %p31
      %p38 = scmp.eq.s32.totalorder %s22, 1
      %p39 = por %p37, %p38
      %p40 = scmp.ne.s32.totalorder %s32, %s35
      %p41 = scmp.eq.s32.totalorder %s22, 0
      %p42 = por %p40, %p41
      %p43 = scmp.ne.s32.totalorder %s32, %s35
      %p44 = scmp.eq.s32.totalorder %s27, 1
      %p45 = por %p43, %p44
      %p46 = scmp.ne.s32.totalorder %s35, %s36
      %p47 = scmp.eq.s32.totalorder %s27, 0
      %p48 = por %p46, %p47
      %p49 = scmp.ne.s32.totalorder %s35, %s36
      %p50 = scmp.eq.s32.totalorder %s28, 1
      %p51 = por %p49, %p50
      %p53 = scmp.ne.s32.totalorder %s36, %s52
      %p54 = scmp.eq.s32.totalorder %s28, 0
      %p55 = por %p53, %p54
      %s56 = ssub.s32 %s22, %s29
      %p57 = scmp.eq.s32.totalorder %s56, 0
      %s59 = sadd.s32 %s58, 1
      %s60 = scalar_select %p57, %s58, %s59
      %p63 = pneg %p57
      %p64 = scmp.eq.s32.totalorder %s22, 1
      %p65 = por %p63, %p64
      %p66 = scmp.ne.s32.totalorder %s58, %s61
      %p67 = scmp.eq.s32.totalorder %s22, 0
      %p68 = por %p66, %p67
      %p69 = scmp.ne.s32.totalorder %s58, %s61
      %p70 = scmp.eq.s32.totalorder %s27, 1
      %p71 = por %p69, %p70
      %p72 = scmp.ne.s32.totalorder %s61, %s62
      %p73 = scmp.eq.s32.totalorder %s27, 0
      %p74 = por %p72, %p73
      %p75 = scmp.ne.s32.totalorder %s61, %s62
      %p76 = scmp.eq.s32.totalorder %s28, 1
      %p77 = por %p75, %p76
      %p79 = scmp.ne.s32.totalorder %s62, %s78
      %p80 = scmp.eq.s32.totalorder %s28, 0
      %p81 = por %p79, %p80
      %s83 = sadd.s32 %s82, 1
      %p86 = scmp.eq.s32.totalorder %s22, 1
      %p87 = scmp.ne.s32.totalorder %s82, %s84
      %p88 = scmp.eq.s32.totalorder %s22, 0
      %p89 = por %p87, %p88
      %p90 = scmp.ne.s32.totalorder %s82, %s84
      %p91 = scmp.eq.s32.totalorder %s27, 1
      %p92 = por %p90, %p91
      %p93 = scmp.ne.s32.totalorder %s84, %s85
      %p94 = scmp.eq.s32.totalorder %s27, 0
      %p95 = por %p93, %p94
      %p96 = scmp.ne.s32.totalorder %s84, %s85
      %p97 = scmp.eq.s32.totalorder %s28, 1
      %p98 = por %p96, %p97
      %p100 = scmp.ne.s32.totalorder %s85, %s99
      %p101 = scmp.eq.s32.totalorder %s28, 0
      %p102 = por %p100, %p101
      %s104 = sadd.s32 %s103, 1
      %p107 = scmp.eq.s32.totalorder %s22, 1
      %p108 = scmp.ne.s32.totalorder %s103, %s105
      %p109 = scmp.eq.s32.totalorder %s22, 0
      %p110 = por %p108, %p109
      %p111 = scmp.ne.s32.totalorder %s103, %s105
      %p112 = scmp.eq.s32.totalorder %s27, 1
      %p113 = por %p111, %p112
      %p114 = scmp.ne.s32.totalorder %s105, %s106
      %p115 = scmp.eq.s32.totalorder %s27, 0
      %p116 = por %p114, %p115
      %p117 = scmp.ne.s32.totalorder %s105, %s106
      %p118 = scmp.eq.s32.totalorder %s28, 1
      %p119 = por %p117, %p118
      %p121 = scmp.ne.s32.totalorder %s106, %s120
      %p122 = scmp.eq.s32.totalorder %s28, 0
      %p123 = por %p121, %p122
      %s125 = sadd.s32 %s124, 1
      %p128 = scmp.eq.s32.totalorder %s22, 1
      %p129 = scmp.ne.s32.totalorder %s124, %s126
      %p130 = scmp.eq.s32.totalorder %s22, 0
      %p131 = por %p129, %p130
      %p132 = scmp.ne.s32.totalorder %s124, %s126
      %p133 = scmp.eq.s32.totalorder %s27, 1
      %p134 = por %p132, %p133
      %p135 = scmp.ne.s32.totalorder %s126, %s127
      %p136 = scmp.eq.s32.totalorder %s27, 0
      %p137 = por %p135, %p136
      %p138 = scmp.ne.s32.totalorder %s126, %s127
      %p139 = scmp.eq.s32.totalorder %s28, 1
      %p140 = por %p138, %p139
      %p142 = scmp.ne.s32.totalorder %s127, %s141
      %p143 = scmp.eq.s32.totalorder %s28, 0
      %p144 = por %p142, %p143
      %s146 = sadd.s32 %s145, 1
      %p149 = scmp.eq.s32.totalorder %s22, 1
      %p150 = scmp.ne.s32.totalorder %s145, %s147
      %p151 = scmp.eq.s32.totalorder %s22, 0
      %p152 = por %p150, %p151
      %p153 = scmp.ne.s32.totalorder %s145, %s147
      %p154 = scmp.eq.s32.totalorder %s27, 1
      %p155 = por %p153, %p154
      %p156 = scmp.ne.s32.totalorder %s147, %s148
      %p157 = scmp.eq.s32.totalorder %s27, 0
      %p158 = por %p156, %p157
      %p159 = scmp.ne.s32.totalorder %s147, %s148
      %p160 = scmp.eq.s32.totalorder %s28, 1
      %p161 = por %p159, %p160
      %p163 = scmp.ne.s32.totalorder %s148, %s162
      %p164 = scmp.eq.s32.totalorder %s28, 0
      %p165 = por %p163, %p164
      %s167 = sadd.s32 %s166, 1
      %p170 = scmp.eq.s32.totalorder %s22, 1
      %p171 = scmp.ne.s32.totalorder %s166, %s168
      %p172 = scmp.eq.s32.totalorder %s22, 0
      %p173 = por %p171, %p172
      %p174 = scmp.ne.s32.totalorder %s166, %s168
      %p175 = scmp.eq.s32.totalorder %s27, 1
      %p176 = por %p174, %p175
      %p177 = scmp.ne.s32.totalorder %s168, %s169
      %p178 = scmp.eq.s32.totalorder %s27, 0
      %p179 = por %p177, %p178
      %p180 = scmp.ne.s32.totalorder %s168, %s169
      %p181 = scmp.eq.s32.totalorder %s28, 1
      %p182 = por %p180, %p181
      %p184 = scmp.ne.s32.totalorder %s169, %s183
      %p185 = scmp.eq.s32.totalorder %s28, 0
      %p186 = por %p184, %p185
      %s188 = sadd.s32 %s187, 1
      %p191 = scmp.eq.s32.totalorder %s22, 1
      %p192 = scmp.ne.s32.totalorder %s187, %s189
      %p193 = scmp.eq.s32.totalorder %s22, 0
      %p194 = por %p192, %p193
      %p195 = scmp.ne.s32.totalorder %s187, %s189
      %p196 = scmp.eq.s32.totalorder %s27, 1
      %p197 = por %p195, %p196
      %p198 = scmp.ne.s32.totalorder %s189, %s190
      %p199 = scmp.eq.s32.totalorder %s27, 0
      %p200 = por %p198, %p199
      %p201 = scmp.ne.s32.totalorder %s189, %s190
      %p202 = scmp.eq.s32.totalorder %s28, 1
      %p203 = por %p201, %p202
      %p205 = scmp.ne.s32.totalorder %s190, %s204
      %p206 = scmp.eq.s32.totalorder %s28, 0
      %p207 = por %p205, %p206
      %s208 = ssub.s32 %s22, %s29
      %p209 = scmp.eq.s32.totalorder %s208, 0
      %s211 = sadd.s32 %s210, 1
      %s212 = scalar_select %p209, %s210, %s211
      %p215 = pneg %p209
      %p216 = scmp.eq.s32.totalorder %s22, 1
      %p217 = por %p215, %p216
      %p218 = scmp.ne.s32.totalorder %s210, %s213
      %p219 = scmp.eq.s32.totalorder %s22, 0
      %p220 = por %p218, %p219
      %p221 = scmp.ne.s32.totalorder %s210, %s213
      %p222 = scmp.eq.s32.totalorder %s27, 1
      %p223 = por %p221, %p222
      %p224 = scmp.ne.s32.totalorder %s213, %s214
      %p225 = scmp.eq.s32.totalorder %s27, 0
      %p226 = por %p224, %p225
      %p227 = scmp.ne.s32.totalorder %s213, %s214
      %p228 = scmp.eq.s32.totalorder %s28, 1
      %p229 = por %p227, %p228
      %p231 = scmp.ne.s32.totalorder %s214, %s230
      %p232 = scmp.eq.s32.totalorder %s28, 0
      %p233 = por %p231, %p232
      %s234 = ssub.s32 %s22, %s29
      %p235 = scmp.eq.s32.totalorder %s234, 0
      %s237 = sadd.s32 %s236, 1
      %s238 = scalar_select %p235, %s236, %s237
      %p241 = pneg %p235
      %p242 = scmp.eq.s32.totalorder %s22, 1
      %p243 = por %p241, %p242
      %p244 = scmp.ne.s32.totalorder %s236, %s239
      %p245 = scmp.eq.s32.totalorder %s22, 0
      %p246 = por %p244, %p245
      %p247 = scmp.ne.s32.totalorder %s236, %s239
      %p248 = scmp.eq.s32.totalorder %s27, 1
      %p249 = por %p247, %p248
      %p250 = scmp.ne.s32.totalorder %s239, %s240
      %p251 = scmp.eq.s32.totalorder %s27, 0
      %p252 = por %p250, %p251
      %p253 = scmp.ne.s32.totalorder %s239, %s240
      %p254 = scmp.eq.s32.totalorder %s28, 1
      %p255 = por %p253, %p254
      %p257 = scmp.ne.s32.totalorder %s240, %s256
      %p258 = scmp.eq.s32.totalorder %s28, 0
      %p259 = por %p257, %p258
      %p260 = scmp.le.s32.totalorder 1, %s22
      %p261 = scmp.lt.s32.totalorder %s22, 3
      %p262 = pnand %p260, %p261
      %p263 = pneg %p262
      // Predicated region
      $region9: #{tpu_custom_call.1} parent=5 // pred_check
        _
      $region10: #{tpu_custom_call.1} parent=5 // pred_check_branch
        %265 = sbr.rel (%p262) target = $region12
      $region11: #{tpu_custom_call.1} parent=5 // pred_region
        %s266 = ssub.s32 %s22, 1
        // Predicated region
        $region13: #{tpu_custom_call.1} parent=11 // pred_check
          %p267 = pneg %p95
        $region14: #{tpu_custom_call.1} parent=11 // pred_check_branch
          %269 = sbr.rel (%p267) target = $region16
        $region15: #{tpu_custom_call.1} parent=11 // pred_region
          _
        $region16: #{tpu_custom_call.1} parent=11 // pred_fallthru
          _
        // Predicated region
        $region17: #{tpu_custom_call.1} parent=11 // pred_check
          %p270 = pneg %p116
        $region18: #{tpu_custom_call.1} parent=11 // pred_check_branch
          %272 = sbr.rel (%p270) target = $region20
        $region19: #{tpu_custom_call.1} parent=11 // pred_region
          _
        $region20: #{tpu_custom_call.1} parent=11 // pred_fallthru
          _
        // Predicated region
        $region21: #{tpu_custom_call.1} parent=11 // pred_check
          %p273 = pneg %p137
        $region22: #{tpu_custom_call.1} parent=11 // pred_check_branch
          %275 = sbr.rel (%p273) target = $region24
        $region23: #{tpu_custom_call.1} parent=11 // pred_region
          _
        $region24: #{tpu_custom_call.1} parent=11 // pred_fallthru
          _
        // Predicated region
        $region25: #{tpu_custom_call.1} parent=11 // pred_check
          %p276 = pneg %p158
        $region26: #{tpu_custom_call.1} parent=11 // pred_check_branch
          %278 = sbr.rel (%p276) target = $region28
        $region27: #{tpu_custom_call.1} parent=11 // pred_region
          _
        $region28: #{tpu_custom_call.1} parent=11 // pred_fallthru
          _
        // Predicated region
        $region29: #{tpu_custom_call.1} parent=11 // pred_check
          %p279 = pneg %p179
        $region30: #{tpu_custom_call.1} parent=11 // pred_check_branch
          %281 = sbr.rel (%p279) target = $region32
        $region31: #{tpu_custom_call.1} parent=11 // pred_region
          _
        $region32: #{tpu_custom_call.1} parent=11 // pred_fallthru
          _
        // Predicated region
        $region33: #{tpu_custom_call.1} parent=11 // pred_check
          %p282 = pneg %p200
        $region34: #{tpu_custom_call.1} parent=11 // pred_check_branch
          %284 = sbr.rel (%p282) target = $region36
        $region35: #{tpu_custom_call.1} parent=11 // pred_region
          _
        $region36: #{tpu_custom_call.1} parent=11 // pred_fallthru
          _
      $region12: #{tpu_custom_call.1} parent=5 // pred_fallthru
        _
      %p285 = scmp.lt.s32.totalorder %s22, 2
      // Predicated region
      $region37: #{tpu_custom_call.1} parent=5 // pred_check
        %p286 = pneg %p285
      $region38: #{tpu_custom_call.1} parent=5 // pred_check_branch
        %288 = sbr.rel (%p286) target = $region40
      $region39: #{tpu_custom_call.1} parent=5 // pred_region
        // Predicated region
        $region41: #{tpu_custom_call.1} parent=39 // pred_check
          %p289 = pneg %p42
        $region42: #{tpu_custom_call.1} parent=39 // pred_check_branch
          %291 = sbr.rel (%p289) target = $region44
        $region43: #{tpu_custom_call.1} parent=39 // pred_region
          %p292 = scmp.lt.s32.totalorder %s22, 1
          %s293 = scalar_select %p292, %s22, 1
          %s294 = smul.addr %s293, 3
          %s295 = smul.addr %s294, 4
          %s296 = scalar_lea.vmem %s0, %s295
        $region44: #{tpu_custom_call.1} parent=39 // pred_fallthru
          _
        // Predicated region
        $region45: #{tpu_custom_call.1} parent=39 // pred_check
          %p297 = pneg %p68
        $region46: #{tpu_custom_call.1} parent=39 // pred_check_branch
          %299 = sbr.rel (%p297) target = $region48
        $region47: #{tpu_custom_call.1} parent=39 // pred_region
          %p300 = scmp.lt.s32.totalorder %s22, 1
          %s301 = scalar_select %p300, %s22, 1
          %s302 = smul.addr %s301, 12
          %s303 = smul.addr %s302, 8
          %s304 = scalar_lea.vmem %s1, %s303
        $region48: #{tpu_custom_call.1} parent=39 // pred_fallthru
          _
      $region40: #{tpu_custom_call.1} parent=5 // pred_fallthru
        _
      %p305 = scmp.le.s32.totalorder 1, %s22
      %p306 = scmp.lt.s32.totalorder %s22, 3
      %p307 = pnand %p305, %p306
      %p308 = pneg %p307
      // Predicated region
      $region49: #{tpu_custom_call.1} parent=5 // pred_check
        _
      $region50: #{tpu_custom_call.1} parent=5 // pred_check_branch
        %310 = sbr.rel (%p307) target = $region52
      $region51: #{tpu_custom_call.1} parent=5 // pred_region
        %s311 = ssub.s32 %s22, 1
        %p312 = scmp.lt.s32.totalorder %s27, 1
        %s313 = scalar_select %p312, %s27, 1
        %s314 = smul.addr %s313, 3
        %s315 = smul.addr %s314, 4
        %s316 = scalar_lea.vmem %s0, %s315
        %p317 = pneg %p48
        %p318 = pneg %p45
        %p319 = scmp.lt.s32.totalorder %s27, 1
        %s320 = scalar_select %p319, %s27, 1
        %s321 = smul.addr %s320, 12
        %s322 = smul.addr %s321, 8
        %s323 = scalar_lea.vmem %s1, %s322
        %p324 = pneg %p74
        %p325 = pneg %p71
        %p326 = pneg %p95
        %p327 = pneg %p92
        %p328 = pneg %p116
        %p329 = pneg %p113
        %p330 = pneg %p137
        %p331 = pneg %p134
        %p332 = pneg %p158
        %p333 = pneg %p155
        %p334 = pneg %p179
        %p335 = pneg %p176
        %p336 = pneg %p200
        %p337 = pneg %p197
        %p338 = pneg %p226
        %p339 = pneg %p223
        %s340 = sand.u32 %s213, 1
        %s341 = scalar_lea.sflag [#allocation4], %s340
        %s342 = sand.u32 %s213, 1
        %s343 = smul.addr %s342, 64
        %s344 = scalar_lea.vmem [#allocation3], %s343
        %p345 = pneg %p252
        %p346 = pneg %p249
        %s347 = sand.u32 %s239, 1
        %s348 = scalar_lea.sflag [#allocation6], %s347
        %s349 = sand.u32 %s239, 1
        %s350 = smul.addr %s349, 64
        %s351 = scalar_lea.vmem [#allocation5], %s350
        %p352 = scmp.lt.s32.totalorder %s27, 1
        %s353 = scalar_select %p352, %s27, 1
        %s354 = smul.addr %s353, 3
        %s355 = smul.addr %s354, 4
        %s356 = scalar_lea.vmem %s0, %s355
        %p357 = scmp.lt.s32.totalorder %s27, 1
        %s358 = scalar_select %p357, %s27, 1
        %s359 = smul.addr %s358, 12
        %s360 = smul.addr %s359, 8
        %s361 = scalar_lea.vmem %s1, %s360
        %v363 = vlaneseq
        %v364 = vand.u32 %v363, 127
        %v365 = vadd.s32 %v364, 128
        %vm366 = vcmp.lt.s32.totalorder %v364, 0
        %v367 = vsub.s32 0, %v364
        %v368 = vsel %vm366, %v367, %v364
        %v369 = vshrl.u32 %v368, 4
        %v370 = vand.u32 %v368, 15
        %v371 = vsub.s32 0, %v370
        %v372 = vsel %vm366, %v371, %v370
        %vm373 = vcmp.lt.s32.totalorder %v365, 0
        %v374 = vsub.s32 0, %v365
        %v375 = vsel %vm373, %v374, %v365
        %v376 = vshrl.u32 %v375, 4
        %v377 = vand.u32 %v375, 15
        %v378 = vsub.s32 0, %v377
        %v379 = vsel %vm373, %v378, %v377
        %vm380 = vcmp.ne.s32.totalorder %v372, 0
        %vm381 = vcmp.ne.s32.totalorder %v379, 0
        %vm382 = vcmp.lt.s32.totalorder %v372, 0
        %vm383 = vcmp.lt.s32.totalorder %v379, 0
        %vm384 = vmand %vm382, %vm380
        %vm385 = vmand %vm383, %vm381
        %v386 = vadd.s32 %v372, 16
        %v387 = vadd.s32 %v379, 16
        %v388 = vsel %vm384, %v386, %v372
        %v389 = vsel %vm385, %v387, %v379
        %v390 = vld [vmem:[%s356] sm:$0xff]
        %v391 = vadd.s32 %v388, 4294967295
        %v392 = vadd.s32 %v389, 4294967295
        %vm393 = vcmp.ge.s32.totalorder %v391, 0
        %vm394 = vcmp.ge.s32.totalorder %v392, 0
        %vm395 = vcmp.lt.s32.totalorder %v391, 16
        %vm396 = vcmp.lt.s32.totalorder %v392, 16
        %vm397 = vmand %vm393, %vm395
        %vm398 = vmand %vm394, %vm396
        %400 = vst [vmem:[#allocation1] ss:$2 sm:$0xff] %v390
        %v401 = vld.sshfl [vmem:[#allocation1] sm:$0xff pattern:$0x75316420]
        %v402 = vld.sshfl [vmem:[#allocation1 + $0x8] sm:$0xff pattern:$0x75316420]
        %v405 = vsel %vm397, %v401, 0.0
        %v406 = vsel %vm398, %v402, 0.0
        %v407 = vld [vmem:[%s2] sm:$0xf]
        %v408 = vld [vmem:[%s2 + $0x4] sm:$0xf]
        %v409 = vld [vmem:[%s2 + $0x8] sm:$0xf]
        %v410 = vld [vmem:[%s2 + $0xc] sm:$0xf]
        %v411 = vld [vmem:[%s2 + $0x10] sm:$0xf]
        %v412 = vld [vmem:[%s2 + $0x14] sm:$0xf]
        %v413 = vld [vmem:[%s2 + $0x18] sm:$0xf]
        %v414 = vld [vmem:[%s2 + $0x1c] sm:$0xf]
        %v415 = vld [vmem:[%s2 + $0x20] sm:$0xf]
        %v416 = vld [vmem:[%s2 + $0x24] sm:$0xf]
        %v417 = vld [vmem:[%s2 + $0x28] sm:$0xf]
        %v418 = vld [vmem:[%s2 + $0x2c] sm:$0xf]
        %v419 = vld [vmem:[%s2 + $0x30] sm:$0xf]
        %v420 = vld [vmem:[%s2 + $0x34] sm:$0xf]
        %v421 = vld [vmem:[%s2 + $0x38] sm:$0xf]
        %v422 = vld [vmem:[%s2 + $0x3c] sm:$0xf]
        %v423 = vpack.c.bf16 %v405, %v405
        %v424 = vpack.c.bf16 %v406, %v406
        %v425 = vld [vmem:[%s356] sm:$0xff]
        %v426 = vld [vmem:[%s356 + $0x8] sm:$0xf]
        %s427 = scalar_lea.vmem %s2, 64
        %v428 = vld [vmem:[%s427] sm:$0xf]
        %v429 = vld [vmem:[%s427 + $0x4] sm:$0xf]
        %v430 = vld [vmem:[%s427 + $0x8] sm:$0xf]
        %v431 = vld [vmem:[%s427 + $0xc] sm:$0xf]
        %v432 = vld [vmem:[%s427 + $0x10] sm:$0xf]
        %v433 = vld [vmem:[%s427 + $0x14] sm:$0xf]
        %v434 = vld [vmem:[%s427 + $0x18] sm:$0xf]
        %v435 = vld [vmem:[%s427 + $0x1c] sm:$0xf]
        %v436 = vld [vmem:[%s427 + $0x20] sm:$0xf]
        %v437 = vld [vmem:[%s427 + $0x24] sm:$0xf]
        %v438 = vld [vmem:[%s427 + $0x28] sm:$0xf]
        %v439 = vld [vmem:[%s427 + $0x2c] sm:$0xf]
        %v440 = vld [vmem:[%s427 + $0x30] sm:$0xf]
        %v441 = vld [vmem:[%s427 + $0x34] sm:$0xf]
        %v442 = vld [vmem:[%s427 + $0x38] sm:$0xf]
        %v443 = vld [vmem:[%s427 + $0x3c] sm:$0xf]
        %446 = vst [vmem:[#allocation1] ss:$2 sm:$0xff] %v425
        %s447 = scalar_lea.vmem [#allocation1], 16
        %448 = vst [vmem:[%s447] ss:$2 sm:$0xff] %v426
        %v449 = vld.sshfl [vmem:[#allocation1] sm:$0xff pattern:$0x75316420]
        %v450 = vld.sshfl [vmem:[#allocation1 + $0x8] sm:$0xff pattern:$0x75316420]
        %v451 = vld.sshfl [vmem:[#allocation1 + $0x10] sm:$0xff pattern:$0x75316420]
        %v455 = vpack.c.bf16 %v449, %v449
        %v456 = vpack.c.bf16 %v450, %v450
        %v457 = vpack.c.bf16 %v451, %v451
        %v474 = vunpack.c.l.b16 %v428
        %v475 = vunpack.c.l.b16 %v429
        %v476 = vunpack.c.l.b16 %v430
        %v477 = vunpack.c.l.b16 %v431
        %v478 = vunpack.c.l.b16 %v432
        %v479 = vunpack.c.l.b16 %v433
        %v480 = vunpack.c.l.b16 %v434
        %v481 = vunpack.c.l.b16 %v435
        %v482 = vunpack.c.l.b16 %v436
        %v483 = vunpack.c.l.b16 %v437
        %v484 = vunpack.c.l.b16 %v438
        %v485 = vunpack.c.l.b16 %v439
        %v486 = vunpack.c.l.b16 %v440
        %v487 = vunpack.c.l.b16 %v441
        %v488 = vunpack.c.l.b16 %v442
        %v489 = vunpack.c.l.b16 %v443
        %v490 = vpack.c.b16 %v475, %v474
        %v491 = vpack.c.b16 %v477, %v476
        %v492 = vpack.c.b16 %v479, %v478
        %v493 = vpack.c.b16 %v481, %v480
        %v494 = vpack.c.b16 %v483, %v482
        %v495 = vpack.c.b16 %v485, %v484
        %v496 = vpack.c.b16 %v487, %v486
        %v497 = vpack.c.b16 %v489, %v488
        %501 = vrot.lane.b32.xlu0 %v455, 127
        %v502 = vpop.permute.xlu0 %501
        %503 = vrot.lane.b32.xlu0 %v456, 127
        %v504 = vpop.permute.xlu0 %503
        %505 = vrot.lane.b32.xlu0 %v457, 127
        %v506 = vpop.permute.xlu0 %505
        %vm507 = vcmask 1039360
        %v508 = vsel %vm507, %v502, %v504
        %v509 = vsel %vm507, %v504, %v506
        %vm510 = vcmask 31744
        %v512 = vsel %vm510, %v490, 0
        %v515 = vsel %vm510, %v491, 0
        %v518 = vsel %vm510, %v492, 0
        %v521 = vsel %vm510, %v493, 0
        %v524 = vsel %vm510, %v494, 0
        %v527 = vsel %vm510, %v495, 0
        %v530 = vsel %vm510, %v496, 0
        %v533 = vsel %vm510, %v497, 0
        %vm535 = vcmask 1041408
        %v537 = vsel %vm535, %v508, 0
        %v540 = vsel %vm535, %v509, 0
        %542 = vmatpush.bf16.msra.mxu0 0
        %543 = vmatpush.bf16.msra.mxu0 0
        %544 = vmatpush.bf16.msra.mxu0 0
        %545 = vmatpush.bf16.msra.mxu0 0
        %546 = vmatpush.bf16.msra.mxu0 0
        %547 = vmatpush.bf16.msra.mxu0 0
        %548 = vmatpush.bf16.msra.mxu0 0
        %549 = vmatpush.bf16.msra.mxu0 %v537
        %550 = vmatmul.bf16.gmra.mxu0 %v512
        %v551 = vpop.f32.mrf.mxu0
        %v552 = vadd.f32 0.0, %v551
        %v553 = vpop.f32.mrf.mxu0
        %v554 = vadd.f32 0.0, %v553
        %555 = vmatmul.bf16.gmra.mxu0 %v515
        %v556 = vpop.f32.mrf.mxu0
        %v557 = vadd.f32 0.0, %v556
        %v558 = vpop.f32.mrf.mxu0
        %v559 = vadd.f32 0.0, %v558
        %560 = vmatmul.bf16.gmra.mxu0 %v518
        %v561 = vpop.f32.mrf.mxu0
        %v562 = vadd.f32 0.0, %v561
        %v563 = vpop.f32.mrf.mxu0
        %v564 = vadd.f32 0.0, %v563
        %565 = vmatmul.bf16.gmra.mxu0 %v521
        %v566 = vpop.f32.mrf.mxu0
        %v567 = vadd.f32 0.0, %v566
        %v568 = vpop.f32.mrf.mxu0
        %v569 = vadd.f32 0.0, %v568
        %570 = vmatmul.bf16.gmra.mxu0 %v524
        %v571 = vpop.f32.mrf.mxu0
        %v572 = vadd.f32 0.0, %v571
        %v573 = vpop.f32.mrf.mxu0
        %v574 = vadd.f32 0.0, %v573
        %575 = vmatmul.bf16.gmra.mxu0 %v527
        %v576 = vpop.f32.mrf.mxu0
        %v577 = vadd.f32 0.0, %v576
        %v578 = vpop.f32.mrf.mxu0
        %v579 = vadd.f32 0.0, %v578
        %580 = vmatmul.bf16.gmra.mxu0 %v530
        %v581 = vpop.f32.mrf.mxu0
        %v582 = vadd.f32 0.0, %v581
        %v583 = vpop.f32.mrf.mxu0
        %v584 = vadd.f32 0.0, %v583
        %585 = vmatmul.bf16.gmra.mxu0 %v533
        %v586 = vpop.f32.mrf.mxu0
        %v587 = vadd.f32 0.0, %v586
        %v588 = vpop.f32.mrf.mxu0
        %v589 = vadd.f32 0.0, %v588
        %590 = vdwg.mxu0
        %591 = vmatpush.bf16.msra.mxu0 0
        %592 = vmatpush.bf16.msra.mxu0 0
        %593 = vmatpush.bf16.msra.mxu0 0
        %594 = vmatpush.bf16.msra.mxu0 0
        %595 = vmatpush.bf16.msra.mxu0 0
        %596 = vmatpush.bf16.msra.mxu0 0
        %597 = vmatpush.bf16.msra.mxu0 0
        %598 = vmatpush.bf16.msra.mxu0 %v540
        %599 = vmatmul.bf16.gmra.mxu0 %v512
        %v600 = vpop.f32.mrf.mxu0
        %v601 = vadd.f32 0.0, %v600
        %v602 = vpop.f32.mrf.mxu0
        %v603 = vadd.f32 0.0, %v602
        %604 = vmatmul.bf16.gmra.mxu0 %v515
        %v605 = vpop.f32.mrf.mxu0
        %v606 = vadd.f32 0.0, %v605
        %v607 = vpop.f32.mrf.mxu0
        %v608 = vadd.f32 0.0, %v607
        %609 = vmatmul.bf16.gmra.mxu0 %v518
        %v610 = vpop.f32.mrf.mxu0
        %v611 = vadd.f32 0.0, %v610
        %v612 = vpop.f32.mrf.mxu0
        %v613 = vadd.f32 0.0, %v612
        %614 = vmatmul.bf16.gmra.mxu0 %v521
        %v615 = vpop.f32.mrf.mxu0
        %v616 = vadd.f32 0.0, %v615
        %v617 = vpop.f32.mrf.mxu0
        %v618 = vadd.f32 0.0, %v617
        %619 = vmatmul.bf16.gmra.mxu0 %v524
        %v620 = vpop.f32.mrf.mxu0
        %v621 = vadd.f32 0.0, %v620
        %v622 = vpop.f32.mrf.mxu0
        %v623 = vadd.f32 0.0, %v622
        %624 = vmatmul.bf16.gmra.mxu0 %v527
        %v625 = vpop.f32.mrf.mxu0
        %v626 = vadd.f32 0.0, %v625
        %v627 = vpop.f32.mrf.mxu0
        %v628 = vadd.f32 0.0, %v627
        %629 = vmatmul.bf16.gmra.mxu0 %v530
        %v630 = vpop.f32.mrf.mxu0
        %v631 = vadd.f32 0.0, %v630
        %v632 = vpop.f32.mrf.mxu0
        %v633 = vadd.f32 0.0, %v632
        %634 = vmatmul.bf16.gmra.mxu0 %v533
        %v635 = vpop.f32.mrf.mxu0
        %v636 = vadd.f32 0.0, %v635
        %v637 = vpop.f32.mrf.mxu0
        %v638 = vadd.f32 0.0, %v637
        %639 = vdwg.mxu0
        %v656 = vunpack.c.l.b16 %v407
        %v657 = vunpack.c.l.b16 %v408
        %v658 = vunpack.c.l.b16 %v409
        %v659 = vunpack.c.l.b16 %v410
        %v660 = vunpack.c.l.b16 %v411
        %v661 = vunpack.c.l.b16 %v412
        %v662 = vunpack.c.l.b16 %v413
        %v663 = vunpack.c.l.b16 %v414
        %v664 = vunpack.c.l.b16 %v415
        %v665 = vunpack.c.l.b16 %v416
        %v666 = vunpack.c.l.b16 %v417
        %v667 = vunpack.c.l.b16 %v418
        %v668 = vunpack.c.l.b16 %v419
        %v669 = vunpack.c.l.b16 %v420
        %v670 = vunpack.c.l.b16 %v421
        %v671 = vunpack.c.l.b16 %v422
        %v672 = vpack.c.b16 %v657, %v656
        %v673 = vpack.c.b16 %v659, %v658
        %v674 = vpack.c.b16 %v661, %v660
        %v675 = vpack.c.b16 %v663, %v662
        %v676 = vpack.c.b16 %v665, %v664
        %v677 = vpack.c.b16 %v667, %v666
        %v678 = vpack.c.b16 %v669, %v668
        %v679 = vpack.c.b16 %v671, %v670
        %v681 = vsel %vm510, %v672, 0
        %v684 = vsel %vm510, %v673, 0
        %v687 = vsel %vm510, %v674, 0
        %v690 = vsel %vm510, %v675, 0
        %v693 = vsel %vm510, %v676, 0
        %v696 = vsel %vm510, %v677, 0
        %v699 = vsel %vm510, %v678, 0
        %v702 = vsel %vm510, %v679, 0
        %v705 = vsel %vm535, %v423, 0
        %v708 = vsel %vm535, %v424, 0
        %710 = vmatpush.bf16.msra.mxu0 0
        %711 = vmatpush.bf16.msra.mxu0 0
        %712 = vmatpush.bf16.msra.mxu0 0
        %713 = vmatpush.bf16.msra.mxu0 0
        %714 = vmatpush.bf16.msra.mxu0 0
        %715 = vmatpush.bf16.msra.mxu0 0
        %716 = vmatpush.bf16.msra.mxu0 0
        %717 = vmatpush.bf16.msra.mxu0 %v705
        %718 = vmatmul.bf16.gmra.mxu0 %v681
        %v719 = vpop.f32.mrf.mxu0
        %v720 = vadd.f32 %v552, %v719
        %v721 = vpop.f32.mrf.mxu0
        %v722 = vadd.f32 %v554, %v721
        %723 = vmatmul.bf16.gmra.mxu0 %v684
        %v724 = vpop.f32.mrf.mxu0
        %v725 = vadd.f32 %v557, %v724
        %v726 = vpop.f32.mrf.mxu0
        %v727 = vadd.f32 %v559, %v726
        %728 = vmatmul.bf16.gmra.mxu0 %v687
        %v729 = vpop.f32.mrf.mxu0
        %v730 = vadd.f32 %v562, %v729
        %v731 = vpop.f32.mrf.mxu0
        %v732 = vadd.f32 %v564, %v731
        %733 = vmatmul.bf16.gmra.mxu0 %v690
        %v734 = vpop.f32.mrf.mxu0
        %v735 = vadd.f32 %v567, %v734
        %v736 = vpop.f32.mrf.mxu0
        %v737 = vadd.f32 %v569, %v736
        %738 = vmatmul.bf16.gmra.mxu0 %v693
        %v739 = vpop.f32.mrf.mxu0
        %v740 = vadd.f32 %v572, %v739
        %v741 = vpop.f32.mrf.mxu0
        %v742 = vadd.f32 %v574, %v741
        %743 = vmatmul.bf16.gmra.mxu0 %v696
        %v744 = vpop.f32.mrf.mxu0
        %v745 = vadd.f32 %v577, %v744
        %v746 = vpop.f32.mrf.mxu0
        %v747 = vadd.f32 %v579, %v746
        %748 = vmatmul.bf16.gmra.mxu0 %v699
        %v749 = vpop.f32.mrf.mxu0
        %v750 = vadd.f32 %v582, %v749
        %v751 = vpop.f32.mrf.mxu0
        %v752 = vadd.f32 %v584, %v751
        %753 = vmatmul.bf16.gmra.mxu0 %v702
        %v754 = vpop.f32.mrf.mxu0
        %v755 = vadd.f32 %v587, %v754
        %v756 = vpop.f32.mrf.mxu0
        %v757 = vadd.f32 %v589, %v756
        %758 = vdwg.mxu0
        %759 = vmatpush.bf16.msra.mxu0 0
        %760 = vmatpush.bf16.msra.mxu0 0
        %761 = vmatpush.bf16.msra.mxu0 0
        %762 = vmatpush.bf16.msra.mxu0 0
        %763 = vmatpush.bf16.msra.mxu0 0
        %764 = vmatpush.bf16.msra.mxu0 0
        %765 = vmatpush.bf16.msra.mxu0 0
        %766 = vmatpush.bf16.msra.mxu0 %v708
        %767 = vmatmul.bf16.gmra.mxu0 %v681
        %v768 = vpop.f32.mrf.mxu0
        %v769 = vadd.f32 %v601, %v768
        %v770 = vpop.f32.mrf.mxu0
        %v771 = vadd.f32 %v603, %v770
        %772 = vmatmul.bf16.gmra.mxu0 %v684
        %v773 = vpop.f32.mrf.mxu0
        %v774 = vadd.f32 %v606, %v773
        %v775 = vpop.f32.mrf.mxu0
        %v776 = vadd.f32 %v608, %v775
        %777 = vmatmul.bf16.gmra.mxu0 %v687
        %v778 = vpop.f32.mrf.mxu0
        %v779 = vadd.f32 %v611, %v778
        %v780 = vpop.f32.mrf.mxu0
        %v781 = vadd.f32 %v613, %v780
        %782 = vmatmul.bf16.gmra.mxu0 %v690
        %v783 = vpop.f32.mrf.mxu0
        %v784 = vadd.f32 %v616, %v783
        %v785 = vpop.f32.mrf.mxu0
        %v786 = vadd.f32 %v618, %v785
        %787 = vmatmul.bf16.gmra.mxu0 %v693
        %v788 = vpop.f32.mrf.mxu0
        %v789 = vadd.f32 %v621, %v788
        %v790 = vpop.f32.mrf.mxu0
        %v791 = vadd.f32 %v623, %v790
        %792 = vmatmul.bf16.gmra.mxu0 %v696
        %v793 = vpop.f32.mrf.mxu0
        %v794 = vadd.f32 %v626, %v793
        %v795 = vpop.f32.mrf.mxu0
        %v796 = vadd.f32 %v628, %v795
        %797 = vmatmul.bf16.gmra.mxu0 %v699
        %v798 = vpop.f32.mrf.mxu0
        %v799 = vadd.f32 %v631, %v798
        %v800 = vpop.f32.mrf.mxu0
        %v801 = vadd.f32 %v633, %v800
        %802 = vmatmul.bf16.gmra.mxu0 %v702
        %v803 = vpop.f32.mrf.mxu0
        %v804 = vadd.f32 %v636, %v803
        %v805 = vpop.f32.mrf.mxu0
        %v806 = vadd.f32 %v638, %v805
        %807 = vdwg.mxu0
        %v808 = vld [vmem:[%s356] sm:$0xff]
        %v809 = vld [vmem:[%s356 + $0x8] sm:$0xf]
        %v810 = vadd.s32 %v388, 1
        %v811 = vadd.s32 %v389, 1
        %vm812 = vcmp.ge.s32.totalorder %v810, 0
        %vm813 = vcmp.ge.s32.totalorder %v811, 0
        %vm814 = vcmp.lt.s32.totalorder %v810, 16
        %vm815 = vcmp.lt.s32.totalorder %v811, 16
        %vm816 = vmand %vm812, %vm814
        %vm817 = vmand %vm813, %vm815
        %820 = vst [vmem:[#allocation1] ss:$2 sm:$0xff] %v808
        %s821 = scalar_lea.vmem [#allocation1], 16
        %822 = vst [vmem:[%s821] ss:$2 sm:$0xff] %v809
        %v823 = vld.sshfl [vmem:[#allocation1] sm:$0xff pattern:$0x75316420]
        %v824 = vld.sshfl [vmem:[#allocation1 + $0x8] sm:$0xff pattern:$0x75316420]
        %v825 = vld.sshfl [vmem:[#allocation1 + $0x10] sm:$0xff pattern:$0x75316420]
        %826 = vrot.lane.b32.xlu0 %v823, 126
        %v827 = vpop.permute.xlu0 %826
        %828 = vrot.lane.b32.xlu0 %v824, 126
        %v829 = vpop.permute.xlu0 %828
        %830 = vrot.lane.b32.xlu0 %v825, 126
        %v831 = vpop.permute.xlu0 %830
        %vm832 = vcmask 1031168
        %v833 = vsel %vm832, %v827, %v829
        %v834 = vsel %vm832, %v829, %v831
        %v837 = vsel %vm816, %v833, 0.0
        %v838 = vsel %vm817, %v834, 0.0
        %s839 = scalar_lea.vmem %s2, 128
        %v840 = vld [vmem:[%s839] sm:$0xf]
        %v841 = vld [vmem:[%s839 + $0x4] sm:$0xf]
        %v842 = vld [vmem:[%s839 + $0x8] sm:$0xf]
        %v843 = vld [vmem:[%s839 + $0xc] sm:$0xf]
        %v844 = vld [vmem:[%s839 + $0x10] sm:$0xf]
        %v845 = vld [vmem:[%s839 + $0x14] sm:$0xf]
        %v846 = vld [vmem:[%s839 + $0x18] sm:$0xf]
        %v847 = vld [vmem:[%s839 + $0x1c] sm:$0xf]
        %v848 = vld [vmem:[%s839 + $0x20] sm:$0xf]
        %v849 = vld [vmem:[%s839 + $0x24] sm:$0xf]
        %v850 = vld [vmem:[%s839 + $0x28] sm:$0xf]
        %v851 = vld [vmem:[%s839 + $0x2c] sm:$0xf]
        %v852 = vld [vmem:[%s839 + $0x30] sm:$0xf]
        %v853 = vld [vmem:[%s839 + $0x34] sm:$0xf]
        %v854 = vld [vmem:[%s839 + $0x38] sm:$0xf]
        %v855 = vld [vmem:[%s839 + $0x3c] sm:$0xf]
        %v856 = vpack.c.bf16 %v837, %v837
        %v857 = vpack.c.bf16 %v838, %v838
        %v874 = vunpack.c.l.b16 %v840
        %v875 = vunpack.c.l.b16 %v841
        %v876 = vunpack.c.l.b16 %v842
        %v877 = vunpack.c.l.b16 %v843
        %v878 = vunpack.c.l.b16 %v844
        %v879 = vunpack.c.l.b16 %v845
        %v880 = vunpack.c.l.b16 %v846
        %v881 = vunpack.c.l.b16 %v847
        %v882 = vunpack.c.l.b16 %v848
        %v883 = vunpack.c.l.b16 %v849
        %v884 = vunpack.c.l.b16 %v850
        %v885 = vunpack.c.l.b16 %v851
        %v886 = vunpack.c.l.b16 %v852
        %v887 = vunpack.c.l.b16 %v853
        %v888 = vunpack.c.l.b16 %v854
        %v889 = vunpack.c.l.b16 %v855
        %v890 = vpack.c.b16 %v875, %v874
        %v891 = vpack.c.b16 %v877, %v876
        %v892 = vpack.c.b16 %v879, %v878
        %v893 = vpack.c.b16 %v881, %v880
        %v894 = vpack.c.b16 %v883, %v882
        %v895 = vpack.c.b16 %v885, %v884
        %v896 = vpack.c.b16 %v887, %v886
        %v897 = vpack.c.b16 %v889, %v888
        %v899 = vsel %vm510, %v890, 0
        %v902 = vsel %vm510, %v891, 0
        %v905 = vsel %vm510, %v892, 0
        %v908 = vsel %vm510, %v893, 0
        %v911 = vsel %vm510, %v894, 0
        %v914 = vsel %vm510, %v895, 0
        %v917 = vsel %vm510, %v896, 0
        %v920 = vsel %vm510, %v897, 0
        %v923 = vsel %vm535, %v856, 0
        %v926 = vsel %vm535, %v857, 0
        %928 = vmatpush.bf16.msra.mxu0 0
        %929 = vmatpush.bf16.msra.mxu0 0
        %930 = vmatpush.bf16.msra.mxu0 0
        %931 = vmatpush.bf16.msra.mxu0 0
        %932 = vmatpush.bf16.msra.mxu0 0
        %933 = vmatpush.bf16.msra.mxu0 0
        %934 = vmatpush.bf16.msra.mxu0 0
        %935 = vmatpush.bf16.msra.mxu0 %v923
        %936 = vmatmul.bf16.gmra.mxu0 %v899
        %v937 = vpop.f32.mrf.mxu0
        %v938 = vadd.f32 0.0, %v937
        %v939 = vpop.f32.mrf.mxu0
        %v940 = vadd.f32 0.0, %v939
        %941 = vmatmul.bf16.gmra.mxu0 %v902
        %v942 = vpop.f32.mrf.mxu0
        %v943 = vadd.f32 0.0, %v942
        %v944 = vpop.f32.mrf.mxu0
        %v945 = vadd.f32 0.0, %v944
        %946 = vmatmul.bf16.gmra.mxu0 %v905
        %v947 = vpop.f32.mrf.mxu0
        %v948 = vadd.f32 0.0, %v947
        %v949 = vpop.f32.mrf.mxu0
        %v950 = vadd.f32 0.0, %v949
        %951 = vmatmul.bf16.gmra.mxu0 %v908
        %v952 = vpop.f32.mrf.mxu0
        %v953 = vadd.f32 0.0, %v952
        %v954 = vpop.f32.mrf.mxu0
        %v955 = vadd.f32 0.0, %v954
        %956 = vmatmul.bf16.gmra.mxu0 %v911
        %v957 = vpop.f32.mrf.mxu0
        %v958 = vadd.f32 0.0, %v957
        %v959 = vpop.f32.mrf.mxu0
        %v960 = vadd.f32 0.0, %v959
        %961 = vmatmul.bf16.gmra.mxu0 %v914
        %v962 = vpop.f32.mrf.mxu0
        %v963 = vadd.f32 0.0, %v962
        %v964 = vpop.f32.mrf.mxu0
        %v965 = vadd.f32 0.0, %v964
        %966 = vmatmul.bf16.gmra.mxu0 %v917
        %v967 = vpop.f32.mrf.mxu0
        %v968 = vadd.f32 0.0, %v967
        %v969 = vpop.f32.mrf.mxu0
        %v970 = vadd.f32 0.0, %v969
        %971 = vmatmul.bf16.gmra.mxu0 %v920
        %v972 = vpop.f32.mrf.mxu0
        %v973 = vadd.f32 0.0, %v972
        %v974 = vpop.f32.mrf.mxu0
        %v975 = vadd.f32 0.0, %v974
        %976 = vdwg.mxu0
        %977 = vmatpush.bf16.msra.mxu0 0
        %978 = vmatpush.bf16.msra.mxu0 0
        %979 = vmatpush.bf16.msra.mxu0 0
        %980 = vmatpush.bf16.msra.mxu0 0
        %981 = vmatpush.bf16.msra.mxu0 0
        %982 = vmatpush.bf16.msra.mxu0 0
        %983 = vmatpush.bf16.msra.mxu0 0
        %984 = vmatpush.bf16.msra.mxu0 %v926
        %985 = vmatmul.bf16.gmra.mxu0 %v899
        %v986 = vpop.f32.mrf.mxu0
        %v987 = vadd.f32 0.0, %v986
        %v988 = vpop.f32.mrf.mxu0
        %v989 = vadd.f32 0.0, %v988
        %990 = vmatmul.bf16.gmra.mxu0 %v902
        %v991 = vpop.f32.mrf.mxu0
        %v992 = vadd.f32 0.0, %v991
        %v993 = vpop.f32.mrf.mxu0
        %v994 = vadd.f32 0.0, %v993
        %995 = vmatmul.bf16.gmra.mxu0 %v905
        %v996 = vpop.f32.mrf.mxu0
        %v997 = vadd.f32 0.0, %v996
        %v998 = vpop.f32.mrf.mxu0
        %v999 = vadd.f32 0.0, %v998
        %1000 = vmatmul.bf16.gmra.mxu0 %v908
        %v1001 = vpop.f32.mrf.mxu0
        %v1002 = vadd.f32 0.0, %v1001
        %v1003 = vpop.f32.mrf.mxu0
        %v1004 = vadd.f32 0.0, %v1003
        %1005 = vmatmul.bf16.gmra.mxu0 %v911
        %v1006 = vpop.f32.mrf.mxu0
        %v1007 = vadd.f32 0.0, %v1006
        %v1008 = vpop.f32.mrf.mxu0
        %v1009 = vadd.f32 0.0, %v1008
        %1010 = vmatmul.bf16.gmra.mxu0 %v914
        %v1011 = vpop.f32.mrf.mxu0
        %v1012 = vadd.f32 0.0, %v1011
        %v1013 = vpop.f32.mrf.mxu0
        %v1014 = vadd.f32 0.0, %v1013
        %1015 = vmatmul.bf16.gmra.mxu0 %v917
        %v1016 = vpop.f32.mrf.mxu0
        %v1017 = vadd.f32 0.0, %v1016
        %v1018 = vpop.f32.mrf.mxu0
        %v1019 = vadd.f32 0.0, %v1018
        %1020 = vmatmul.bf16.gmra.mxu0 %v920
        %v1021 = vpop.f32.mrf.mxu0
        %v1022 = vadd.f32 0.0, %v1021
        %v1023 = vpop.f32.mrf.mxu0
        %v1024 = vadd.f32 0.0, %v1023
        %1025 = vdwg.mxu0
        %v1026 = vadd.f32 %v720, %v938
        %v1027 = vadd.f32 %v769, %v987
        %v1028 = vadd.f32 %v722, %v940
        %v1029 = vadd.f32 %v771, %v989
        %v1030 = vadd.f32 %v725, %v943
        %v1031 = vadd.f32 %v774, %v992
        %v1032 = vadd.f32 %v727, %v945
        %v1033 = vadd.f32 %v776, %v994
        %v1034 = vadd.f32 %v730, %v948
        %v1035 = vadd.f32 %v779, %v997
        %v1036 = vadd.f32 %v732, %v950
        %v1037 = vadd.f32 %v781, %v999
        %v1038 = vadd.f32 %v735, %v953
        %v1039 = vadd.f32 %v784, %v1002
        %v1040 = vadd.f32 %v737, %v955
        %v1041 = vadd.f32 %v786, %v1004
        %v1042 = vadd.f32 %v740, %v958
        %v1043 = vadd.f32 %v789, %v1007
        %v1044 = vadd.f32 %v742, %v960
        %v1045 = vadd.f32 %v791, %v1009
        %v1046 = vadd.f32 %v745, %v963
        %v1047 = vadd.f32 %v794, %v1012
        %v1048 = vadd.f32 %v747, %v965
        %v1049 = vadd.f32 %v796, %v1014
        %v1050 = vadd.f32 %v750, %v968
        %v1051 = vadd.f32 %v799, %v1017
        %v1052 = vadd.f32 %v752, %v970
        %v1053 = vadd.f32 %v801, %v1019
        %v1054 = vadd.f32 %v755, %v973
        %v1055 = vadd.f32 %v804, %v1022
        %v1056 = vadd.f32 %v757, %v975
        %v1057 = vadd.f32 %v806, %v1024
        %v1058 = vld [vmem:[%s356] sm:$0xff]
        %v1059 = vld [vmem:[%s356 + $0x8] sm:$0xf]
        %1062 = vst [vmem:[#allocation1] ss:$2 sm:$0xff] %v1058
        %s1063 = scalar_lea.vmem [#allocation1], 16
        %1064 = vst [vmem:[%s1063] ss:$2 sm:$0xff] %v1059
        %v1065 = vld.sshfl [vmem:[#allocation1] sm:$0xff pattern:$0x75316420]
        %v1066 = vld.sshfl [vmem:[#allocation1 + $0x8] sm:$0xff pattern:$0x75316420]
        %v1067 = vld.sshfl [vmem:[#allocation1 + $0x10] sm:$0xff pattern:$0x75316420]
        %1068 = vrot.lane.b32.xlu0 %v1065, 112
        %v1069 = vpop.permute.xlu0 %1068
        %1070 = vrot.lane.b32.xlu0 %v1066, 112
        %v1071 = vpop.permute.xlu0 %1070
        %1072 = vrot.lane.b32.xlu0 %v1067, 112
        %v1073 = vpop.permute.xlu0 %1072
        %vm1074 = vcmask 916480
        %v1075 = vsel %vm1074, %v1069, %v1071
        %v1076 = vsel %vm1074, %v1071, %v1073
        %v1079 = vsel %vm397, %v1075, 0.0
        %v1080 = vsel %vm398, %v1076, 0.0
        %s1081 = scalar_lea.vmem %s2, 192
        %v1082 = vld [vmem:[%s1081] sm:$0xf]
        %v1083 = vld [vmem:[%s1081 + $0x4] sm:$0xf]
        %v1084 = vld [vmem:[%s1081 + $0x8] sm:$0xf]
        %v1085 = vld [vmem:[%s1081 + $0xc] sm:$0xf]
        %v1086 = vld [vmem:[%s1081 + $0x10] sm:$0xf]
        %v1087 = vld [vmem:[%s1081 + $0x14] sm:$0xf]
        %v1088 = vld [vmem:[%s1081 + $0x18] sm:$0xf]
        %v1089 = vld [vmem:[%s1081 + $0x1c] sm:$0xf]
        %v1090 = vld [vmem:[%s1081 + $0x20] sm:$0xf]
        %v1091 = vld [vmem:[%s1081 + $0x24] sm:$0xf]
        %v1092 = vld [vmem:[%s1081 + $0x28] sm:$0xf]
        %v1093 = vld [vmem:[%s1081 + $0x2c] sm:$0xf]
        %v1094 = vld [vmem:[%s1081 + $0x30] sm:$0xf]
        %v1095 = vld [vmem:[%s1081 + $0x34] sm:$0xf]
        %v1096 = vld [vmem:[%s1081 + $0x38] sm:$0xf]
        %v1097 = vld [vmem:[%s1081 + $0x3c] sm:$0xf]
        %v1098 = vpack.c.bf16 %v1079, %v1079
        %v1099 = vpack.c.bf16 %v1080, %v1080
        %v1116 = vunpack.c.l.b16 %v1082
        %v1117 = vunpack.c.l.b16 %v1083
        %v1118 = vunpack.c.l.b16 %v1084
        %v1119 = vunpack.c.l.b16 %v1085
        %v1120 = vunpack.c.l.b16 %v1086
        %v1121 = vunpack.c.l.b16 %v1087
        %v1122 = vunpack.c.l.b16 %v1088
        %v1123 = vunpack.c.l.b16 %v1089
        %v1124 = vunpack.c.l.b16 %v1090
        %v1125 = vunpack.c.l.b16 %v1091
        %v1126 = vunpack.c.l.b16 %v1092
        %v1127 = vunpack.c.l.b16 %v1093
        %v1128 = vunpack.c.l.b16 %v1094
        %v1129 = vunpack.c.l.b16 %v1095
        %v1130 = vunpack.c.l.b16 %v1096
        %v1131 = vunpack.c.l.b16 %v1097
        %v1132 = vpack.c.b16 %v1117, %v1116
        %v1133 = vpack.c.b16 %v1119, %v1118
        %v1134 = vpack.c.b16 %v1121, %v1120
        %v1135 = vpack.c.b16 %v1123, %v1122
        %v1136 = vpack.c.b16 %v1125, %v1124
        %v1137 = vpack.c.b16 %v1127, %v1126
        %v1138 = vpack.c.b16 %v1129, %v1128
        %v1139 = vpack.c.b16 %v1131, %v1130
        %v1141 = vsel %vm510, %v1132, 0
        %v1144 = vsel %vm510, %v1133, 0
        %v1147 = vsel %vm510, %v1134, 0
        %v1150 = vsel %vm510, %v1135, 0
        %v1153 = vsel %vm510, %v1136, 0
        %v1156 = vsel %vm510, %v1137, 0
        %v1159 = vsel %vm510, %v1138, 0
        %v1162 = vsel %vm510, %v1139, 0
        %v1165 = vsel %vm535, %v1098, 0
        %v1168 = vsel %vm535, %v1099, 0
        %1170 = vmatpush.bf16.msra.mxu0 0
        %1171 = vmatpush.bf16.msra.mxu0 0
        %1172 = vmatpush.bf16.msra.mxu0 0
        %1173 = vmatpush.bf16.msra.mxu0 0
        %1174 = vmatpush.bf16.msra.mxu0 0
        %1175 = vmatpush.bf16.msra.mxu0 0
        %1176 = vmatpush.bf16.msra.mxu0 0
        %1177 = vmatpush.bf16.msra.mxu0 %v1165
        %1178 = vmatmul.bf16.gmra.mxu0 %v1141
        %v1179 = vpop.f32.mrf.mxu0
        %v1180 = vadd.f32 0.0, %v1179
        %v1181 = vpop.f32.mrf.mxu0
        %v1182 = vadd.f32 0.0, %v1181
        %1183 = vmatmul.bf16.gmra.mxu0 %v1144
        %v1184 = vpop.f32.mrf.mxu0
        %v1185 = vadd.f32 0.0, %v1184
        %v1186 = vpop.f32.mrf.mxu0
        %v1187 = vadd.f32 0.0, %v1186
        %1188 = vmatmul.bf16.gmra.mxu0 %v1147
        %v1189 = vpop.f32.mrf.mxu0
        %v1190 = vadd.f32 0.0, %v1189
        %v1191 = vpop.f32.mrf.mxu0
        %v1192 = vadd.f32 0.0, %v1191
        %1193 = vmatmul.bf16.gmra.mxu0 %v1150
        %v1194 = vpop.f32.mrf.mxu0
        %v1195 = vadd.f32 0.0, %v1194
        %v1196 = vpop.f32.mrf.mxu0
        %v1197 = vadd.f32 0.0, %v1196
        %1198 = vmatmul.bf16.gmra.mxu0 %v1153
        %v1199 = vpop.f32.mrf.mxu0
        %v1200 = vadd.f32 0.0, %v1199
        %v1201 = vpop.f32.mrf.mxu0
        %v1202 = vadd.f32 0.0, %v1201
        %1203 = vmatmul.bf16.gmra.mxu0 %v1156
        %v1204 = vpop.f32.mrf.mxu0
        %v1205 = vadd.f32 0.0, %v1204
        %v1206 = vpop.f32.mrf.mxu0
        %v1207 = vadd.f32 0.0, %v1206
        %1208 = vmatmul.bf16.gmra.mxu0 %v1159
        %v1209 = vpop.f32.mrf.mxu0
        %v1210 = vadd.f32 0.0, %v1209
        %v1211 = vpop.f32.mrf.mxu0
        %v1212 = vadd.f32 0.0, %v1211
        %1213 = vmatmul.bf16.gmra.mxu0 %v1162
        %v1214 = vpop.f32.mrf.mxu0
        %v1215 = vadd.f32 0.0, %v1214
        %v1216 = vpop.f32.mrf.mxu0
        %v1217 = vadd.f32 0.0, %v1216
        %1218 = vdwg.mxu0
        %1219 = vmatpush.bf16.msra.mxu0 0
        %1220 = vmatpush.bf16.msra.mxu0 0
        %1221 = vmatpush.bf16.msra.mxu0 0
        %1222 = vmatpush.bf16.msra.mxu0 0
        %1223 = vmatpush.bf16.msra.mxu0 0
        %1224 = vmatpush.bf16.msra.mxu0 0
        %1225 = vmatpush.bf16.msra.mxu0 0
        %1226 = vmatpush.bf16.msra.mxu0 %v1168
        %1227 = vmatmul.bf16.gmra.mxu0 %v1141
        %v1228 = vpop.f32.mrf.mxu0
        %v1229 = vadd.f32 0.0, %v1228
        %v1230 = vpop.f32.mrf.mxu0
        %v1231 = vadd.f32 0.0, %v1230
        %1232 = vmatmul.bf16.gmra.mxu0 %v1144
        %v1233 = vpop.f32.mrf.mxu0
        %v1234 = vadd.f32 0.0, %v1233
        %v1235 = vpop.f32.mrf.mxu0
        %v1236 = vadd.f32 0.0, %v1235
        %1237 = vmatmul.bf16.gmra.mxu0 %v1147
        %v1238 = vpop.f32.mrf.mxu0
        %v1239 = vadd.f32 0.0, %v1238
        %v1240 = vpop.f32.mrf.mxu0
        %v1241 = vadd.f32 0.0, %v1240
        %1242 = vmatmul.bf16.gmra.mxu0 %v1150
        %v1243 = vpop.f32.mrf.mxu0
        %v1244 = vadd.f32 0.0, %v1243
        %v1245 = vpop.f32.mrf.mxu0
        %v1246 = vadd.f32 0.0, %v1245
        %1247 = vmatmul.bf16.gmra.mxu0 %v1153
        %v1248 = vpop.f32.mrf.mxu0
        %v1249 = vadd.f32 0.0, %v1248
        %v1250 = vpop.f32.mrf.mxu0
        %v1251 = vadd.f32 0.0, %v1250
        %1252 = vmatmul.bf16.gmra.mxu0 %v1156
        %v1253 = vpop.f32.mrf.mxu0
        %v1254 = vadd.f32 0.0, %v1253
        %v1255 = vpop.f32.mrf.mxu0
        %v1256 = vadd.f32 0.0, %v1255
        %1257 = vmatmul.bf16.gmra.mxu0 %v1159
        %v1258 = vpop.f32.mrf.mxu0
        %v1259 = vadd.f32 0.0, %v1258
        %v1260 = vpop.f32.mrf.mxu0
        %v1261 = vadd.f32 0.0, %v1260
        %1262 = vmatmul.bf16.gmra.mxu0 %v1162
        %v1263 = vpop.f32.mrf.mxu0
        %v1264 = vadd.f32 0.0, %v1263
        %v1265 = vpop.f32.mrf.mxu0
        %v1266 = vadd.f32 0.0, %v1265
        %1267 = vdwg.mxu0
        %v1268 = vadd.f32 %v1026, %v1180
        %v1269 = vadd.f32 %v1027, %v1229
        %v1270 = vadd.f32 %v1028, %v1182
        %v1271 = vadd.f32 %v1029, %v1231
        %v1272 = vadd.f32 %v1030, %v1185
        %v1273 = vadd.f32 %v1031, %v1234
        %v1274 = vadd.f32 %v1032, %v1187
        %v1275 = vadd.f32 %v1033, %v1236
        %v1276 = vadd.f32 %v1034, %v1190
        %v1277 = vadd.f32 %v1035, %v1239
        %v1278 = vadd.f32 %v1036, %v1192
        %v1279 = vadd.f32 %v1037, %v1241
        %v1280 = vadd.f32 %v1038, %v1195
        %v1281 = vadd.f32 %v1039, %v1244
        %v1282 = vadd.f32 %v1040, %v1197
        %v1283 = vadd.f32 %v1041, %v1246
        %v1284 = vadd.f32 %v1042, %v1200
        %v1285 = vadd.f32 %v1043, %v1249
        %v1286 = vadd.f32 %v1044, %v1202
        %v1287 = vadd.f32 %v1045, %v1251
        %v1288 = vadd.f32 %v1046, %v1205
        %v1289 = vadd.f32 %v1047, %v1254
        %v1290 = vadd.f32 %v1048, %v1207
        %v1291 = vadd.f32 %v1049, %v1256
        %v1292 = vadd.f32 %v1050, %v1210
        %v1293 = vadd.f32 %v1051, %v1259
        %v1294 = vadd.f32 %v1052, %v1212
        %v1295 = vadd.f32 %v1053, %v1261
        %v1296 = vadd.f32 %v1054, %v1215
        %v1297 = vadd.f32 %v1055, %v1264
        %v1298 = vadd.f32 %v1056, %v1217
        %v1299 = vadd.f32 %v1057, %v1266
        %v1300 = vld [vmem:[%s356] sm:$0xff]
        %v1301 = vld [vmem:[%s356 + $0x8] sm:$0xf]
        %s1302 = scalar_lea.vmem %s2, 256
        %v1303 = vld [vmem:[%s1302] sm:$0xf]
        %v1304 = vld [vmem:[%s1302 + $0x4] sm:$0xf]
        %v1305 = vld [vmem:[%s1302 + $0x8] sm:$0xf]
        %v1306 = vld [vmem:[%s1302 + $0xc] sm:$0xf]
        %v1307 = vld [vmem:[%s1302 + $0x10] sm:$0xf]
        %v1308 = vld [vmem:[%s1302 + $0x14] sm:$0xf]
        %v1309 = vld [vmem:[%s1302 + $0x18] sm:$0xf]
        %v1310 = vld [vmem:[%s1302 + $0x1c] sm:$0xf]
        %v1311 = vld [vmem:[%s1302 + $0x20] sm:$0xf]
        %v1312 = vld [vmem:[%s1302 + $0x24] sm:$0xf]
        %v1313 = vld [vmem:[%s1302 + $0x28] sm:$0xf]
        %v1314 = vld [vmem:[%s1302 + $0x2c] sm:$0xf]
        %v1315 = vld [vmem:[%s1302 + $0x30] sm:$0xf]
        %v1316 = vld [vmem:[%s1302 + $0x34] sm:$0xf]
        %v1317 = vld [vmem:[%s1302 + $0x38] sm:$0xf]
        %v1318 = vld [vmem:[%s1302 + $0x3c] sm:$0xf]
        %1321 = vst [vmem:[#allocation1] ss:$2 sm:$0xff] %v1300
        %s1322 = scalar_lea.vmem [#allocation1], 16
        %1323 = vst [vmem:[%s1322] ss:$2 sm:$0xff] %v1301
        %v1324 = vld.sshfl [vmem:[#allocation1] sm:$0xff pattern:$0x75316420]
        %v1325 = vld.sshfl [vmem:[#allocation1 + $0x8] sm:$0xff pattern:$0x75316420]
        %v1326 = vld.sshfl [vmem:[#allocation1 + $0x10] sm:$0xff pattern:$0x75316420]
        %v1330 = vpack.c.bf16 %v1324, %v1324
        %v1331 = vpack.c.bf16 %v1325, %v1325
        %v1332 = vpack.c.bf16 %v1326, %v1326
        %v1349 = vunpack.c.l.b16 %v1303
        %v1350 = vunpack.c.l.b16 %v1304
        %v1351 = vunpack.c.l.b16 %v1305
        %v1352 = vunpack.c.l.b16 %v1306
        %v1353 = vunpack.c.l.b16 %v1307
        %v1354 = vunpack.c.l.b16 %v1308
        %v1355 = vunpack.c.l.b16 %v1309
        %v1356 = vunpack.c.l.b16 %v1310
        %v1357 = vunpack.c.l.b16 %v1311
        %v1358 = vunpack.c.l.b16 %v1312
        %v1359 = vunpack.c.l.b16 %v1313
        %v1360 = vunpack.c.l.b16 %v1314
        %v1361 = vunpack.c.l.b16 %v1315
        %v1362 = vunpack.c.l.b16 %v1316
        %v1363 = vunpack.c.l.b16 %v1317
        %v1364 = vunpack.c.l.b16 %v1318
        %v1365 = vpack.c.b16 %v1350, %v1349
        %v1366 = vpack.c.b16 %v1352, %v1351
        %v1367 = vpack.c.b16 %v1354, %v1353
        %v1368 = vpack.c.b16 %v1356, %v1355
        %v1369 = vpack.c.b16 %v1358, %v1357
        %v1370 = vpack.c.b16 %v1360, %v1359
        %v1371 = vpack.c.b16 %v1362, %v1361
        %v1372 = vpack.c.b16 %v1364, %v1363
        %1376 = vrot.lane.b32.xlu0 %v1330, 111
        %v1377 = vpop.permute.xlu0 %1376
        %1378 = vrot.lane.b32.xlu0 %v1331, 111
        %v1379 = vpop.permute.xlu0 %1378
        %1380 = vrot.lane.b32.xlu0 %v1332, 111
        %v1381 = vpop.permute.xlu0 %1380
        %vm1382 = vcmask 908288
        %v1383 = vsel %vm1382, %v1377, %v1379
        %v1384 = vsel %vm1382, %v1379, %v1381
        %v1386 = vsel %vm510, %v1365, 0
        %v1389 = vsel %vm510, %v1366, 0
        %v1392 = vsel %vm510, %v1367, 0
        %v1395 = vsel %vm510, %v1368, 0
        %v1398 = vsel %vm510, %v1369, 0
        %v1401 = vsel %vm510, %v1370, 0
        %v1404 = vsel %vm510, %v1371, 0
        %v1407 = vsel %vm510, %v1372, 0
        %v1410 = vsel %vm535, %v1383, 0
        %v1413 = vsel %vm535, %v1384, 0
        %1415 = vmatpush.bf16.msra.mxu0 0
        %1416 = vmatpush.bf16.msra.mxu0 0
        %1417 = vmatpush.bf16.msra.mxu0 0
        %1418 = vmatpush.bf16.msra.mxu0 0
        %1419 = vmatpush.bf16.msra.mxu0 0
        %1420 = vmatpush.bf16.msra.mxu0 0
        %1421 = vmatpush.bf16.msra.mxu0 0
        %1422 = vmatpush.bf16.msra.mxu0 %v1410
        %1423 = vmatmul.bf16.gmra.mxu0 %v1386
        %v1424 = vpop.f32.mrf.mxu0
        %v1425 = vadd.f32 0.0, %v1424
        %v1426 = vpop.f32.mrf.mxu0
        %v1427 = vadd.f32 0.0, %v1426
        %1428 = vmatmul.bf16.gmra.mxu0 %v1389
        %v1429 = vpop.f32.mrf.mxu0
        %v1430 = vadd.f32 0.0, %v1429
        %v1431 = vpop.f32.mrf.mxu0
        %v1432 = vadd.f32 0.0, %v1431
        %1433 = vmatmul.bf16.gmra.mxu0 %v1392
        %v1434 = vpop.f32.mrf.mxu0
        %v1435 = vadd.f32 0.0, %v1434
        %v1436 = vpop.f32.mrf.mxu0
        %v1437 = vadd.f32 0.0, %v1436
        %1438 = vmatmul.bf16.gmra.mxu0 %v1395
        %v1439 = vpop.f32.mrf.mxu0
        %v1440 = vadd.f32 0.0, %v1439
        %v1441 = vpop.f32.mrf.mxu0
        %v1442 = vadd.f32 0.0, %v1441
        %1443 = vmatmul.bf16.gmra.mxu0 %v1398
        %v1444 = vpop.f32.mrf.mxu0
        %v1445 = vadd.f32 0.0, %v1444
        %v1446 = vpop.f32.mrf.mxu0
        %v1447 = vadd.f32 0.0, %v1446
        %1448 = vmatmul.bf16.gmra.mxu0 %v1401
        %v1449 = vpop.f32.mrf.mxu0
        %v1450 = vadd.f32 0.0, %v1449
        %v1451 = vpop.f32.mrf.mxu0
        %v1452 = vadd.f32 0.0, %v1451
        %1453 = vmatmul.bf16.gmra.mxu0 %v1404
        %v1454 = vpop.f32.mrf.mxu0
        %v1455 = vadd.f32 0.0, %v1454
        %v1456 = vpop.f32.mrf.mxu0
        %v1457 = vadd.f32 0.0, %v1456
        %1458 = vmatmul.bf16.gmra.mxu0 %v1407
        %v1459 = vpop.f32.mrf.mxu0
        %v1460 = vadd.f32 0.0, %v1459
        %v1461 = vpop.f32.mrf.mxu0
        %v1462 = vadd.f32 0.0, %v1461
        %1463 = vdwg.mxu0
        %1464 = vmatpush.bf16.msra.mxu0 0
        %1465 = vmatpush.bf16.msra.mxu0 0
        %1466 = vmatpush.bf16.msra.mxu0 0
        %1467 = vmatpush.bf16.msra.mxu0 0
        %1468 = vmatpush.bf16.msra.mxu0 0
        %1469 = vmatpush.bf16.msra.mxu0 0
        %1470 = vmatpush.bf16.msra.mxu0 0
        %1471 = vmatpush.bf16.msra.mxu0 %v1413
        %1472 = vmatmul.bf16.gmra.mxu0 %v1386
        %v1473 = vpop.f32.mrf.mxu0
        %v1474 = vadd.f32 0.0, %v1473
        %v1475 = vpop.f32.mrf.mxu0
        %v1476 = vadd.f32 0.0, %v1475
        %1477 = vmatmul.bf16.gmra.mxu0 %v1389
        %v1478 = vpop.f32.mrf.mxu0
        %v1479 = vadd.f32 0.0, %v1478
        %v1480 = vpop.f32.mrf.mxu0
        %v1481 = vadd.f32 0.0, %v1480
        %1482 = vmatmul.bf16.gmra.mxu0 %v1392
        %v1483 = vpop.f32.mrf.mxu0
        %v1484 = vadd.f32 0.0, %v1483
        %v1485 = vpop.f32.mrf.mxu0
        %v1486 = vadd.f32 0.0, %v1485
        %1487 = vmatmul.bf16.gmra.mxu0 %v1395
        %v1488 = vpop.f32.mrf.mxu0
        %v1489 = vadd.f32 0.0, %v1488
        %v1490 = vpop.f32.mrf.mxu0
        %v1491 = vadd.f32 0.0, %v1490
        %1492 = vmatmul.bf16.gmra.mxu0 %v1398
        %v1493 = vpop.f32.mrf.mxu0
        %v1494 = vadd.f32 0.0, %v1493
        %v1495 = vpop.f32.mrf.mxu0
        %v1496 = vadd.f32 0.0, %v1495
        %1497 = vmatmul.bf16.gmra.mxu0 %v1401
        %v1498 = vpop.f32.mrf.mxu0
        %v1499 = vadd.f32 0.0, %v1498
        %v1500 = vpop.f32.mrf.mxu0
        %v1501 = vadd.f32 0.0, %v1500
        %1502 = vmatmul.bf16.gmra.mxu0 %v1404
        %v1503 = vpop.f32.mrf.mxu0
        %v1504 = vadd.f32 0.0, %v1503
        %v1505 = vpop.f32.mrf.mxu0
        %v1506 = vadd.f32 0.0, %v1505
        %1507 = vmatmul.bf16.gmra.mxu0 %v1407
        %v1508 = vpop.f32.mrf.mxu0
        %v1509 = vadd.f32 0.0, %v1508
        %v1510 = vpop.f32.mrf.mxu0
        %v1511 = vadd.f32 0.0, %v1510
        %1512 = vdwg.mxu0
        %v1513 = vadd.f32 %v1268, %v1425
        %v1514 = vadd.f32 %v1269, %v1474
        %v1515 = vadd.f32 %v1270, %v1427
        %v1516 = vadd.f32 %v1271, %v1476
        %v1517 = vadd.f32 %v1272, %v1430
        %v1518 = vadd.f32 %v1273, %v1479
        %v1519 = vadd.f32 %v1274, %v1432
        %v1520 = vadd.f32 %v1275, %v1481
        %v1521 = vadd.f32 %v1276, %v1435
        %v1522 = vadd.f32 %v1277, %v1484
        %v1523 = vadd.f32 %v1278, %v1437
        %v1524 = vadd.f32 %v1279, %v1486
        %v1525 = vadd.f32 %v1280, %v1440
        %v1526 = vadd.f32 %v1281, %v1489
        %v1527 = vadd.f32 %v1282, %v1442
        %v1528 = vadd.f32 %v1283, %v1491
        %v1529 = vadd.f32 %v1284, %v1445
        %v1530 = vadd.f32 %v1285, %v1494
        %v1531 = vadd.f32 %v1286, %v1447
        %v1532 = vadd.f32 %v1287, %v1496
        %v1533 = vadd.f32 %v1288, %v1450
        %v1534 = vadd.f32 %v1289, %v1499
        %v1535 = vadd.f32 %v1290, %v1452
        %v1536 = vadd.f32 %v1291, %v1501
        %v1537 = vadd.f32 %v1292, %v1455
        %v1538 = vadd.f32 %v1293, %v1504
        %v1539 = vadd.f32 %v1294, %v1457
        %v1540 = vadd.f32 %v1295, %v1506
        %v1541 = vadd.f32 %v1296, %v1460
        %v1542 = vadd.f32 %v1297, %v1509
        %v1543 = vadd.f32 %v1298, %v1462
        %v1544 = vadd.f32 %v1299, %v1511
        %v1545 = vld [vmem:[%s356] sm:$0xff]
        %v1546 = vld [vmem:[%s356 + $0x8] sm:$0xf]
        %1549 = vst [vmem:[#allocation1] ss:$2 sm:$0xff] %v1545
        %s1550 = scalar_lea.vmem [#allocation1], 16
        %1551 = vst [vmem:[%s1550] ss:$2 sm:$0xff] %v1546
        %v1552 = vld.sshfl [vmem:[#allocation1] sm:$0xff pattern:$0x75316420]
        %v1553 = vld.sshfl [vmem:[#allocation1 + $0x8] sm:$0xff pattern:$0x75316420]
        %v1554 = vld.sshfl [vmem:[#allocation1 + $0x10] sm:$0xff pattern:$0x75316420]
        %1555 = vrot.lane.b32.xlu0 %v1552, 110
        %v1556 = vpop.permute.xlu0 %1555
        %1557 = vrot.lane.b32.xlu0 %v1553, 110
        %v1558 = vpop.permute.xlu0 %1557
        %1559 = vrot.lane.b32.xlu0 %v1554, 110
        %v1560 = vpop.permute.xlu0 %1559
        %vm1561 = vcmask 900096
        %v1562 = vsel %vm1561, %v1556, %v1558
        %v1563 = vsel %vm1561, %v1558, %v1560
        %v1566 = vsel %vm816, %v1562, 0.0
        %v1567 = vsel %vm817, %v1563, 0.0
        %s1568 = scalar_lea.vmem %s2, 320
        %v1569 = vld [vmem:[%s1568] sm:$0xf]
        %v1570 = vld [vmem:[%s1568 + $0x4] sm:$0xf]
        %v1571 = vld [vmem:[%s1568 + $0x8] sm:$0xf]
        %v1572 = vld [vmem:[%s1568 + $0xc] sm:$0xf]
        %v1573 = vld [vmem:[%s1568 + $0x10] sm:$0xf]
        %v1574 = vld [vmem:[%s1568 + $0x14] sm:$0xf]
        %v1575 = vld [vmem:[%s1568 + $0x18] sm:$0xf]
        %v1576 = vld [vmem:[%s1568 + $0x1c] sm:$0xf]
        %v1577 = vld [vmem:[%s1568 + $0x20] sm:$0xf]
        %v1578 = vld [vmem:[%s1568 + $0x24] sm:$0xf]
        %v1579 = vld [vmem:[%s1568 + $0x28] sm:$0xf]
        %v1580 = vld [vmem:[%s1568 + $0x2c] sm:$0xf]
        %v1581 = vld [vmem:[%s1568 + $0x30] sm:$0xf]
        %v1582 = vld [vmem:[%s1568 + $0x34] sm:$0xf]
        %v1583 = vld [vmem:[%s1568 + $0x38] sm:$0xf]
        %v1584 = vld [vmem:[%s1568 + $0x3c] sm:$0xf]
        %v1585 = vpack.c.bf16 %v1566, %v1566
        %v1586 = vpack.c.bf16 %v1567, %v1567
        %v1603 = vunpack.c.l.b16 %v1569
        %v1604 = vunpack.c.l.b16 %v1570
        %v1605 = vunpack.c.l.b16 %v1571
        %v1606 = vunpack.c.l.b16 %v1572
        %v1607 = vunpack.c.l.b16 %v1573
        %v1608 = vunpack.c.l.b16 %v1574
        %v1609 = vunpack.c.l.b16 %v1575
        %v1610 = vunpack.c.l.b16 %v1576
        %v1611 = vunpack.c.l.b16 %v1577
        %v1612 = vunpack.c.l.b16 %v1578
        %v1613 = vunpack.c.l.b16 %v1579
        %v1614 = vunpack.c.l.b16 %v1580
        %v1615 = vunpack.c.l.b16 %v1581
        %v1616 = vunpack.c.l.b16 %v1582
        %v1617 = vunpack.c.l.b16 %v1583
        %v1618 = vunpack.c.l.b16 %v1584
        %v1619 = vpack.c.b16 %v1604, %v1603
        %v1620 = vpack.c.b16 %v1606, %v1605
        %v1621 = vpack.c.b16 %v1608, %v1607
        %v1622 = vpack.c.b16 %v1610, %v1609
        %v1623 = vpack.c.b16 %v1612, %v1611
        %v1624 = vpack.c.b16 %v1614, %v1613
        %v1625 = vpack.c.b16 %v1616, %v1615
        %v1626 = vpack.c.b16 %v1618, %v1617
        %v1628 = vsel %vm510, %v1619, 0
        %v1631 = vsel %vm510, %v1620, 0
        %v1634 = vsel %vm510, %v1621, 0
        %v1637 = vsel %vm510, %v1622, 0
        %v1640 = vsel %vm510, %v1623, 0
        %v1643 = vsel %vm510, %v1624, 0
        %v1646 = vsel %vm510, %v1625, 0
        %v1649 = vsel %vm510, %v1626, 0
        %v1652 = vsel %vm535, %v1585, 0
        %v1655 = vsel %vm535, %v1586, 0
        %1657 = vmatpush.bf16.msra.mxu0 0
        %1658 = vmatpush.bf16.msra.mxu0 0
        %1659 = vmatpush.bf16.msra.mxu0 0
        %1660 = vmatpush.bf16.msra.mxu0 0
        %1661 = vmatpush.bf16.msra.mxu0 0
        %1662 = vmatpush.bf16.msra.mxu0 0
        %1663 = vmatpush.bf16.msra.mxu0 0
        %1664 = vmatpush.bf16.msra.mxu0 %v1652
        %1665 = vmatmul.bf16.gmra.mxu0 %v1628
        %v1666 = vpop.f32.mrf.mxu0
        %v1667 = vadd.f32 0.0, %v1666
        %v1668 = vpop.f32.mrf.mxu0
        %v1669 = vadd.f32 0.0, %v1668
        %1670 = vmatmul.bf16.gmra.mxu0 %v1631
        %v1671 = vpop.f32.mrf.mxu0
        %v1672 = vadd.f32 0.0, %v1671
        %v1673 = vpop.f32.mrf.mxu0
        %v1674 = vadd.f32 0.0, %v1673
        %1675 = vmatmul.bf16.gmra.mxu0 %v1634
        %v1676 = vpop.f32.mrf.mxu0
        %v1677 = vadd.f32 0.0, %v1676
        %v1678 = vpop.f32.mrf.mxu0
        %v1679 = vadd.f32 0.0, %v1678
        %1680 = vmatmul.bf16.gmra.mxu0 %v1637
        %v1681 = vpop.f32.mrf.mxu0
        %v1682 = vadd.f32 0.0, %v1681
        %v1683 = vpop.f32.mrf.mxu0
        %v1684 = vadd.f32 0.0, %v1683
        %1685 = vmatmul.bf16.gmra.mxu0 %v1640
        %v1686 = vpop.f32.mrf.mxu0
        %v1687 = vadd.f32 0.0, %v1686
        %v1688 = vpop.f32.mrf.mxu0
        %v1689 = vadd.f32 0.0, %v1688
        %1690 = vmatmul.bf16.gmra.mxu0 %v1643
        %v1691 = vpop.f32.mrf.mxu0
        %v1692 = vadd.f32 0.0, %v1691
        %v1693 = vpop.f32.mrf.mxu0
        %v1694 = vadd.f32 0.0, %v1693
        %1695 = vmatmul.bf16.gmra.mxu0 %v1646
        %v1696 = vpop.f32.mrf.mxu0
        %v1697 = vadd.f32 0.0, %v1696
        %v1698 = vpop.f32.mrf.mxu0
        %v1699 = vadd.f32 0.0, %v1698
        %1700 = vmatmul.bf16.gmra.mxu0 %v1649
        %v1701 = vpop.f32.mrf.mxu0
        %v1702 = vadd.f32 0.0, %v1701
        %v1703 = vpop.f32.mrf.mxu0
        %v1704 = vadd.f32 0.0, %v1703
        %1705 = vdwg.mxu0
        %1706 = vmatpush.bf16.msra.mxu0 0
        %1707 = vmatpush.bf16.msra.mxu0 0
        %1708 = vmatpush.bf16.msra.mxu0 0
        %1709 = vmatpush.bf16.msra.mxu0 0
        %1710 = vmatpush.bf16.msra.mxu0 0
        %1711 = vmatpush.bf16.msra.mxu0 0
        %1712 = vmatpush.bf16.msra.mxu0 0
        %1713 = vmatpush.bf16.msra.mxu0 %v1655
        %1714 = vmatmul.bf16.gmra.mxu0 %v1628
        %v1715 = vpop.f32.mrf.mxu0
        %v1716 = vadd.f32 0.0, %v1715
        %v1717 = vpop.f32.mrf.mxu0
        %v1718 = vadd.f32 0.0, %v1717
        %1719 = vmatmul.bf16.gmra.mxu0 %v1631
        %v1720 = vpop.f32.mrf.mxu0
        %v1721 = vadd.f32 0.0, %v1720
        %v1722 = vpop.f32.mrf.mxu0
        %v1723 = vadd.f32 0.0, %v1722
        %1724 = vmatmul.bf16.gmra.mxu0 %v1634
        %v1725 = vpop.f32.mrf.mxu0
        %v1726 = vadd.f32 0.0, %v1725
        %v1727 = vpop.f32.mrf.mxu0
        %v1728 = vadd.f32 0.0, %v1727
        %1729 = vmatmul.bf16.gmra.mxu0 %v1637
        %v1730 = vpop.f32.mrf.mxu0
        %v1731 = vadd.f32 0.0, %v1730
        %v1732 = vpop.f32.mrf.mxu0
        %v1733 = vadd.f32 0.0, %v1732
        %1734 = vmatmul.bf16.gmra.mxu0 %v1640
        %v1735 = vpop.f32.mrf.mxu0
        %v1736 = vadd.f32 0.0, %v1735
        %v1737 = vpop.f32.mrf.mxu0
        %v1738 = vadd.f32 0.0, %v1737
        %1739 = vmatmul.bf16.gmra.mxu0 %v1643
        %v1740 = vpop.f32.mrf.mxu0
        %v1741 = vadd.f32 0.0, %v1740
        %v1742 = vpop.f32.mrf.mxu0
        %v1743 = vadd.f32 0.0, %v1742
        %1744 = vmatmul.bf16.gmra.mxu0 %v1646
        %v1745 = vpop.f32.mrf.mxu0
        %v1746 = vadd.f32 0.0, %v1745
        %v1747 = vpop.f32.mrf.mxu0
        %v1748 = vadd.f32 0.0, %v1747
        %1749 = vmatmul.bf16.gmra.mxu0 %v1649
        %v1750 = vpop.f32.mrf.mxu0
        %v1751 = vadd.f32 0.0, %v1750
        %v1752 = vpop.f32.mrf.mxu0
        %v1753 = vadd.f32 0.0, %v1752
        %1754 = vdwg.mxu0
        %v1755 = vadd.f32 %v1513, %v1667
        %v1756 = vadd.f32 %v1514, %v1716
        %v1757 = vadd.f32 %v1515, %v1669
        %v1758 = vadd.f32 %v1516, %v1718
        %v1759 = vadd.f32 %v1517, %v1672
        %v1760 = vadd.f32 %v1518, %v1721
        %v1761 = vadd.f32 %v1519, %v1674
        %v1762 = vadd.f32 %v1520, %v1723
        %v1763 = vadd.f32 %v1521, %v1677
        %v1764 = vadd.f32 %v1522, %v1726
        %v1765 = vadd.f32 %v1523, %v1679
        %v1766 = vadd.f32 %v1524, %v1728
        %v1767 = vadd.f32 %v1525, %v1682
        %v1768 = vadd.f32 %v1526, %v1731
        %v1769 = vadd.f32 %v1527, %v1684
        %v1770 = vadd.f32 %v1528, %v1733
        %v1771 = vadd.f32 %v1529, %v1687
        %v1772 = vadd.f32 %v1530, %v1736
        %v1773 = vadd.f32 %v1531, %v1689
        %v1774 = vadd.f32 %v1532, %v1738
        %v1775 = vadd.f32 %v1533, %v1692
        %v1776 = vadd.f32 %v1534, %v1741
        %v1777 = vadd.f32 %v1535, %v1694
        %v1778 = vadd.f32 %v1536, %v1743
        %v1779 = vadd.f32 %v1537, %v1697
        %v1780 = vadd.f32 %v1538, %v1746
        %v1781 = vadd.f32 %v1539, %v1699
        %v1782 = vadd.f32 %v1540, %v1748
        %v1783 = vadd.f32 %v1541, %v1702
        %v1784 = vadd.f32 %v1542, %v1751
        %v1785 = vadd.f32 %v1543, %v1704
        %v1786 = vadd.f32 %v1544, %v1753
        %v1787 = vld [vmem:[%s356] sm:$0xff]
        %v1788 = vld [vmem:[%s356 + $0x8] sm:$0xf]
        %1791 = vst [vmem:[#allocation1] ss:$2 sm:$0xff] %v1787
        %s1792 = scalar_lea.vmem [#allocation1], 16
        %1793 = vst [vmem:[%s1792] ss:$2 sm:$0xff] %v1788
        %v1794 = vld.sshfl [vmem:[#allocation1] sm:$0xff pattern:$0x75316420]
        %v1795 = vld.sshfl [vmem:[#allocation1 + $0x8] sm:$0xff pattern:$0x75316420]
        %v1796 = vld.sshfl [vmem:[#allocation1 + $0x10] sm:$0xff pattern:$0x75316420]
        %1797 = vrot.lane.b32.xlu0 %v1794, 96
        %v1798 = vpop.permute.xlu0 %1797
        %1799 = vrot.lane.b32.xlu0 %v1795, 96
        %v1800 = vpop.permute.xlu0 %1799
        %1801 = vrot.lane.b32.xlu0 %v1796, 96
        %v1802 = vpop.permute.xlu0 %1801
        %vm1803 = vcmask 785408
        %v1804 = vsel %vm1803, %v1798, %v1800
        %v1805 = vsel %vm1803, %v1800, %v1802
        %v1808 = vsel %vm397, %v1804, 0.0
        %v1809 = vsel %vm398, %v1805, 0.0
        %s1810 = scalar_lea.vmem %s2, 384
        %v1811 = vld [vmem:[%s1810] sm:$0xf]
        %v1812 = vld [vmem:[%s1810 + $0x4] sm:$0xf]
        %v1813 = vld [vmem:[%s1810 + $0x8] sm:$0xf]
        %v1814 = vld [vmem:[%s1810 + $0xc] sm:$0xf]
        %v1815 = vld [vmem:[%s1810 + $0x10] sm:$0xf]
        %v1816 = vld [vmem:[%s1810 + $0x14] sm:$0xf]
        %v1817 = vld [vmem:[%s1810 + $0x18] sm:$0xf]
        %v1818 = vld [vmem:[%s1810 + $0x1c] sm:$0xf]
        %v1819 = vld [vmem:[%s1810 + $0x20] sm:$0xf]
        %v1820 = vld [vmem:[%s1810 + $0x24] sm:$0xf]
        %v1821 = vld [vmem:[%s1810 + $0x28] sm:$0xf]
        %v1822 = vld [vmem:[%s1810 + $0x2c] sm:$0xf]
        %v1823 = vld [vmem:[%s1810 + $0x30] sm:$0xf]
        %v1824 = vld [vmem:[%s1810 + $0x34] sm:$0xf]
        %v1825 = vld [vmem:[%s1810 + $0x38] sm:$0xf]
        %v1826 = vld [vmem:[%s1810 + $0x3c] sm:$0xf]
        %v1827 = vpack.c.bf16 %v1808, %v1808
        %v1828 = vpack.c.bf16 %v1809, %v1809
        %v1845 = vunpack.c.l.b16 %v1811
        %v1846 = vunpack.c.l.b16 %v1812
        %v1847 = vunpack.c.l.b16 %v1813
        %v1848 = vunpack.c.l.b16 %v1814
        %v1849 = vunpack.c.l.b16 %v1815
        %v1850 = vunpack.c.l.b16 %v1816
        %v1851 = vunpack.c.l.b16 %v1817
        %v1852 = vunpack.c.l.b16 %v1818
        %v1853 = vunpack.c.l.b16 %v1819
        %v1854 = vunpack.c.l.b16 %v1820
        %v1855 = vunpack.c.l.b16 %v1821
        %v1856 = vunpack.c.l.b16 %v1822
        %v1857 = vunpack.c.l.b16 %v1823
        %v1858 = vunpack.c.l.b16 %v1824
        %v1859 = vunpack.c.l.b16 %v1825
        %v1860 = vunpack.c.l.b16 %v1826
        %v1861 = vpack.c.b16 %v1846, %v1845
        %v1862 = vpack.c.b16 %v1848, %v1847
        %v1863 = vpack.c.b16 %v1850, %v1849
        %v1864 = vpack.c.b16 %v1852, %v1851
        %v1865 = vpack.c.b16 %v1854, %v1853
        %v1866 = vpack.c.b16 %v1856, %v1855
        %v1867 = vpack.c.b16 %v1858, %v1857
        %v1868 = vpack.c.b16 %v1860, %v1859
        %v1870 = vsel %vm510, %v1861, 0
        %v1873 = vsel %vm510, %v1862, 0
        %v1876 = vsel %vm510, %v1863, 0
        %v1879 = vsel %vm510, %v1864, 0
        %v1882 = vsel %vm510, %v1865, 0
        %v1885 = vsel %vm510, %v1866, 0
        %v1888 = vsel %vm510, %v1867, 0
        %v1891 = vsel %vm510, %v1868, 0
        %v1894 = vsel %vm535, %v1827, 0
        %v1897 = vsel %vm535, %v1828, 0
        %1899 = vmatpush.bf16.msra.mxu0 0
        %1900 = vmatpush.bf16.msra.mxu0 0
        %1901 = vmatpush.bf16.msra.mxu0 0
        %1902 = vmatpush.bf16.msra.mxu0 0
        %1903 = vmatpush.bf16.msra.mxu0 0
        %1904 = vmatpush.bf16.msra.mxu0 0
        %1905 = vmatpush.bf16.msra.mxu0 0
        %1906 = vmatpush.bf16.msra.mxu0 %v1894
        %1907 = vmatmul.bf16.gmra.mxu0 %v1870
        %v1908 = vpop.f32.mrf.mxu0
        %v1909 = vadd.f32 0.0, %v1908
        %v1910 = vpop.f32.mrf.mxu0
        %v1911 = vadd.f32 0.0, %v1910
        %1912 = vmatmul.bf16.gmra.mxu0 %v1873
        %v1913 = vpop.f32.mrf.mxu0
        %v1914 = vadd.f32 0.0, %v1913
        %v1915 = vpop.f32.mrf.mxu0
        %v1916 = vadd.f32 0.0, %v1915
        %1917 = vmatmul.bf16.gmra.mxu0 %v1876
        %v1918 = vpop.f32.mrf.mxu0
        %v1919 = vadd.f32 0.0, %v1918
        %v1920 = vpop.f32.mrf.mxu0
        %v1921 = vadd.f32 0.0, %v1920
        %1922 = vmatmul.bf16.gmra.mxu0 %v1879
        %v1923 = vpop.f32.mrf.mxu0
        %v1924 = vadd.f32 0.0, %v1923
        %v1925 = vpop.f32.mrf.mxu0
        %v1926 = vadd.f32 0.0, %v1925
        %1927 = vmatmul.bf16.gmra.mxu0 %v1882
        %v1928 = vpop.f32.mrf.mxu0
        %v1929 = vadd.f32 0.0, %v1928
        %v1930 = vpop.f32.mrf.mxu0
        %v1931 = vadd.f32 0.0, %v1930
        %1932 = vmatmul.bf16.gmra.mxu0 %v1885
        %v1933 = vpop.f32.mrf.mxu0
        %v1934 = vadd.f32 0.0, %v1933
        %v1935 = vpop.f32.mrf.mxu0
        %v1936 = vadd.f32 0.0, %v1935
        %1937 = vmatmul.bf16.gmra.mxu0 %v1888
        %v1938 = vpop.f32.mrf.mxu0
        %v1939 = vadd.f32 0.0, %v1938
        %v1940 = vpop.f32.mrf.mxu0
        %v1941 = vadd.f32 0.0, %v1940
        %1942 = vmatmul.bf16.gmra.mxu0 %v1891
        %v1943 = vpop.f32.mrf.mxu0
        %v1944 = vadd.f32 0.0, %v1943
        %v1945 = vpop.f32.mrf.mxu0
        %v1946 = vadd.f32 0.0, %v1945
        %1947 = vdwg.mxu0
        %1948 = vmatpush.bf16.msra.mxu0 0
        %1949 = vmatpush.bf16.msra.mxu0 0
        %1950 = vmatpush.bf16.msra.mxu0 0
        %1951 = vmatpush.bf16.msra.mxu0 0
        %1952 = vmatpush.bf16.msra.mxu0 0
        %1953 = vmatpush.bf16.msra.mxu0 0
        %1954 = vmatpush.bf16.msra.mxu0 0
        %1955 = vmatpush.bf16.msra.mxu0 %v1897
        %1956 = vmatmul.bf16.gmra.mxu0 %v1870
        %v1957 = vpop.f32.mrf.mxu0
        %v1958 = vadd.f32 0.0, %v1957
        %v1959 = vpop.f32.mrf.mxu0
        %v1960 = vadd.f32 0.0, %v1959
        %1961 = vmatmul.bf16.gmra.mxu0 %v1873
        %v1962 = vpop.f32.mrf.mxu0
        %v1963 = vadd.f32 0.0, %v1962
        %v1964 = vpop.f32.mrf.mxu0
        %v1965 = vadd.f32 0.0, %v1964
        %1966 = vmatmul.bf16.gmra.mxu0 %v1876
        %v1967 = vpop.f32.mrf.mxu0
        %v1968 = vadd.f32 0.0, %v1967
        %v1969 = vpop.f32.mrf.mxu0
        %v1970 = vadd.f32 0.0, %v1969
        %1971 = vmatmul.bf16.gmra.mxu0 %v1879
        %v1972 = vpop.f32.mrf.mxu0
        %v1973 = vadd.f32 0.0, %v1972
        %v1974 = vpop.f32.mrf.mxu0
        %v1975 = vadd.f32 0.0, %v1974
        %1976 = vmatmul.bf16.gmra.mxu0 %v1882
        %v1977 = vpop.f32.mrf.mxu0
        %v1978 = vadd.f32 0.0, %v1977
        %v1979 = vpop.f32.mrf.mxu0
        %v1980 = vadd.f32 0.0, %v1979
        %1981 = vmatmul.bf16.gmra.mxu0 %v1885
        %v1982 = vpop.f32.mrf.mxu0
        %v1983 = vadd.f32 0.0, %v1982
        %v1984 = vpop.f32.mrf.mxu0
        %v1985 = vadd.f32 0.0, %v1984
        %1986 = vmatmul.bf16.gmra.mxu0 %v1888
        %v1987 = vpop.f32.mrf.mxu0
        %v1988 = vadd.f32 0.0, %v1987
        %v1989 = vpop.f32.mrf.mxu0
        %v1990 = vadd.f32 0.0, %v1989
        %1991 = vmatmul.bf16.gmra.mxu0 %v1891
        %v1992 = vpop.f32.mrf.mxu0
        %v1993 = vadd.f32 0.0, %v1992
        %v1994 = vpop.f32.mrf.mxu0
        %v1995 = vadd.f32 0.0, %v1994
        %1996 = vdwg.mxu0
        %v1997 = vadd.f32 %v1755, %v1909
        %v1998 = vadd.f32 %v1756, %v1958
        %v1999 = vadd.f32 %v1757, %v1911
        %v2000 = vadd.f32 %v1758, %v1960
        %v2001 = vadd.f32 %v1759, %v1914
        %v2002 = vadd.f32 %v1760, %v1963
        %v2003 = vadd.f32 %v1761, %v1916
        %v2004 = vadd.f32 %v1762, %v1965
        %v2005 = vadd.f32 %v1763, %v1919
        %v2006 = vadd.f32 %v1764, %v1968
        %v2007 = vadd.f32 %v1765, %v1921
        %v2008 = vadd.f32 %v1766, %v1970
        %v2009 = vadd.f32 %v1767, %v1924
        %v2010 = vadd.f32 %v1768, %v1973
        %v2011 = vadd.f32 %v1769, %v1926
        %v2012 = vadd.f32 %v1770, %v1975
        %v2013 = vadd.f32 %v1771, %v1929
        %v2014 = vadd.f32 %v1772, %v1978
        %v2015 = vadd.f32 %v1773, %v1931
        %v2016 = vadd.f32 %v1774, %v1980
        %v2017 = vadd.f32 %v1775, %v1934
        %v2018 = vadd.f32 %v1776, %v1983
        %v2019 = vadd.f32 %v1777, %v1936
        %v2020 = vadd.f32 %v1778, %v1985
        %v2021 = vadd.f32 %v1779, %v1939
        %v2022 = vadd.f32 %v1780, %v1988
        %v2023 = vadd.f32 %v1781, %v1941
        %v2024 = vadd.f32 %v1782, %v1990
        %v2025 = vadd.f32 %v1783, %v1944
        %v2026 = vadd.f32 %v1784, %v1993
        %v2027 = vadd.f32 %v1785, %v1946
        %v2028 = vadd.f32 %v1786, %v1995
        %v2029 = vld [vmem:[%s356] sm:$0xff]
        %v2030 = vld [vmem:[%s356 + $0x8] sm:$0xf]
        %s2031 = scalar_lea.vmem %s2, 448
        %v2032 = vld [vmem:[%s2031] sm:$0xf]
        %v2033 = vld [vmem:[%s2031 + $0x4] sm:$0xf]
        %v2034 = vld [vmem:[%s2031 + $0x8] sm:$0xf]
        %v2035 = vld [vmem:[%s2031 + $0xc] sm:$0xf]
        %v2036 = vld [vmem:[%s2031 + $0x10] sm:$0xf]
        %v2037 = vld [vmem:[%s2031 + $0x14] sm:$0xf]
        %v2038 = vld [vmem:[%s2031 + $0x18] sm:$0xf]
        %v2039 = vld [vmem:[%s2031 + $0x1c] sm:$0xf]
        %v2040 = vld [vmem:[%s2031 + $0x20] sm:$0xf]
        %v2041 = vld [vmem:[%s2031 + $0x24] sm:$0xf]
        %v2042 = vld [vmem:[%s2031 + $0x28] sm:$0xf]
        %v2043 = vld [vmem:[%s2031 + $0x2c] sm:$0xf]
        %v2044 = vld [vmem:[%s2031 + $0x30] sm:$0xf]
        %v2045 = vld [vmem:[%s2031 + $0x34] sm:$0xf]
        %v2046 = vld [vmem:[%s2031 + $0x38] sm:$0xf]
        %v2047 = vld [vmem:[%s2031 + $0x3c] sm:$0xf]
        %2050 = vst [vmem:[#allocation1] ss:$2 sm:$0xff] %v2029
        %s2051 = scalar_lea.vmem [#allocation1], 16
        %2052 = vst [vmem:[%s2051] ss:$2 sm:$0xff] %v2030
        %v2053 = vld.sshfl [vmem:[#allocation1] sm:$0xff pattern:$0x75316420]
        %v2054 = vld.sshfl [vmem:[#allocation1 + $0x8] sm:$0xff pattern:$0x75316420]
        %v2055 = vld.sshfl [vmem:[#allocation1 + $0x10] sm:$0xff pattern:$0x75316420]
        %v2059 = vpack.c.bf16 %v2053, %v2053
        %v2060 = vpack.c.bf16 %v2054, %v2054
        %v2061 = vpack.c.bf16 %v2055, %v2055
        %v2078 = vunpack.c.l.b16 %v2032
        %v2079 = vunpack.c.l.b16 %v2033
        %v2080 = vunpack.c.l.b16 %v2034
        %v2081 = vunpack.c.l.b16 %v2035
        %v2082 = vunpack.c.l.b16 %v2036
        %v2083 = vunpack.c.l.b16 %v2037
        %v2084 = vunpack.c.l.b16 %v2038
        %v2085 = vunpack.c.l.b16 %v2039
        %v2086 = vunpack.c.l.b16 %v2040
        %v2087 = vunpack.c.l.b16 %v2041
        %v2088 = vunpack.c.l.b16 %v2042
        %v2089 = vunpack.c.l.b16 %v2043
        %v2090 = vunpack.c.l.b16 %v2044
        %v2091 = vunpack.c.l.b16 %v2045
        %v2092 = vunpack.c.l.b16 %v2046
        %v2093 = vunpack.c.l.b16 %v2047
        %v2094 = vpack.c.b16 %v2079, %v2078
        %v2095 = vpack.c.b16 %v2081, %v2080
        %v2096 = vpack.c.b16 %v2083, %v2082
        %v2097 = vpack.c.b16 %v2085, %v2084
        %v2098 = vpack.c.b16 %v2087, %v2086
        %v2099 = vpack.c.b16 %v2089, %v2088
        %v2100 = vpack.c.b16 %v2091, %v2090
        %v2101 = vpack.c.b16 %v2093, %v2092
        %2105 = vrot.lane.b32.xlu0 %v2059, 95
        %v2106 = vpop.permute.xlu0 %2105
        %2107 = vrot.lane.b32.xlu0 %v2060, 95
        %v2108 = vpop.permute.xlu0 %2107
        %2109 = vrot.lane.b32.xlu0 %v2061, 95
        %v2110 = vpop.permute.xlu0 %2109
        %vm2111 = vcmask 777216
        %v2112 = vsel %vm2111, %v2106, %v2108
        %v2113 = vsel %vm2111, %v2108, %v2110
        %v2115 = vsel %vm510, %v2094, 0
        %v2118 = vsel %vm510, %v2095, 0
        %v2121 = vsel %vm510, %v2096, 0
        %v2124 = vsel %vm510, %v2097, 0
        %v2127 = vsel %vm510, %v2098, 0
        %v2130 = vsel %vm510, %v2099, 0
        %v2133 = vsel %vm510, %v2100, 0
        %v2136 = vsel %vm510, %v2101, 0
        %v2139 = vsel %vm535, %v2112, 0
        %v2142 = vsel %vm535, %v2113, 0
        %2144 = vmatpush.bf16.msra.mxu0 0
        %2145 = vmatpush.bf16.msra.mxu0 0
        %2146 = vmatpush.bf16.msra.mxu0 0
        %2147 = vmatpush.bf16.msra.mxu0 0
        %2148 = vmatpush.bf16.msra.mxu0 0
        %2149 = vmatpush.bf16.msra.mxu0 0
        %2150 = vmatpush.bf16.msra.mxu0 0
        %2151 = vmatpush.bf16.msra.mxu0 %v2139
        %2152 = vmatmul.bf16.gmra.mxu0 %v2115
        %v2153 = vpop.f32.mrf.mxu0
        %v2154 = vadd.f32 0.0, %v2153
        %v2155 = vpop.f32.mrf.mxu0
        %v2156 = vadd.f32 0.0, %v2155
        %2157 = vmatmul.bf16.gmra.mxu0 %v2118
        %v2158 = vpop.f32.mrf.mxu0
        %v2159 = vadd.f32 0.0, %v2158
        %v2160 = vpop.f32.mrf.mxu0
        %v2161 = vadd.f32 0.0, %v2160
        %2162 = vmatmul.bf16.gmra.mxu0 %v2121
        %v2163 = vpop.f32.mrf.mxu0
        %v2164 = vadd.f32 0.0, %v2163
        %v2165 = vpop.f32.mrf.mxu0
        %v2166 = vadd.f32 0.0, %v2165
        %2167 = vmatmul.bf16.gmra.mxu0 %v2124
        %v2168 = vpop.f32.mrf.mxu0
        %v2169 = vadd.f32 0.0, %v2168
        %v2170 = vpop.f32.mrf.mxu0
        %v2171 = vadd.f32 0.0, %v2170
        %2172 = vmatmul.bf16.gmra.mxu0 %v2127
        %v2173 = vpop.f32.mrf.mxu0
        %v2174 = vadd.f32 0.0, %v2173
        %v2175 = vpop.f32.mrf.mxu0
        %v2176 = vadd.f32 0.0, %v2175
        %2177 = vmatmul.bf16.gmra.mxu0 %v2130
        %v2178 = vpop.f32.mrf.mxu0
        %v2179 = vadd.f32 0.0, %v2178
        %v2180 = vpop.f32.mrf.mxu0
        %v2181 = vadd.f32 0.0, %v2180
        %2182 = vmatmul.bf16.gmra.mxu0 %v2133
        %v2183 = vpop.f32.mrf.mxu0
        %v2184 = vadd.f32 0.0, %v2183
        %v2185 = vpop.f32.mrf.mxu0
        %v2186 = vadd.f32 0.0, %v2185
        %2187 = vmatmul.bf16.gmra.mxu0 %v2136
        %v2188 = vpop.f32.mrf.mxu0
        %v2189 = vadd.f32 0.0, %v2188
        %v2190 = vpop.f32.mrf.mxu0
        %v2191 = vadd.f32 0.0, %v2190
        %2192 = vdwg.mxu0
        %2193 = vmatpush.bf16.msra.mxu0 0
        %2194 = vmatpush.bf16.msra.mxu0 0
        %2195 = vmatpush.bf16.msra.mxu0 0
        %2196 = vmatpush.bf16.msra.mxu0 0
        %2197 = vmatpush.bf16.msra.mxu0 0
        %2198 = vmatpush.bf16.msra.mxu0 0
        %2199 = vmatpush.bf16.msra.mxu0 0
        %2200 = vmatpush.bf16.msra.mxu0 %v2142
        %2201 = vmatmul.bf16.gmra.mxu0 %v2115
        %v2202 = vpop.f32.mrf.mxu0
        %v2203 = vadd.f32 0.0, %v2202
        %v2204 = vpop.f32.mrf.mxu0
        %v2205 = vadd.f32 0.0, %v2204
        %2206 = vmatmul.bf16.gmra.mxu0 %v2118
        %v2207 = vpop.f32.mrf.mxu0
        %v2208 = vadd.f32 0.0, %v2207
        %v2209 = vpop.f32.mrf.mxu0
        %v2210 = vadd.f32 0.0, %v2209
        %2211 = vmatmul.bf16.gmra.mxu0 %v2121
        %v2212 = vpop.f32.mrf.mxu0
        %v2213 = vadd.f32 0.0, %v2212
        %v2214 = vpop.f32.mrf.mxu0
        %v2215 = vadd.f32 0.0, %v2214
        %2216 = vmatmul.bf16.gmra.mxu0 %v2124
        %v2217 = vpop.f32.mrf.mxu0
        %v2218 = vadd.f32 0.0, %v2217
        %v2219 = vpop.f32.mrf.mxu0
        %v2220 = vadd.f32 0.0, %v2219
        %2221 = vmatmul.bf16.gmra.mxu0 %v2127
        %v2222 = vpop.f32.mrf.mxu0
        %v2223 = vadd.f32 0.0, %v2222
        %v2224 = vpop.f32.mrf.mxu0
        %v2225 = vadd.f32 0.0, %v2224
        %2226 = vmatmul.bf16.gmra.mxu0 %v2130
        %v2227 = vpop.f32.mrf.mxu0
        %v2228 = vadd.f32 0.0, %v2227
        %v2229 = vpop.f32.mrf.mxu0
        %v2230 = vadd.f32 0.0, %v2229
        %2231 = vmatmul.bf16.gmra.mxu0 %v2133
        %v2232 = vpop.f32.mrf.mxu0
        %v2233 = vadd.f32 0.0, %v2232
        %v2234 = vpop.f32.mrf.mxu0
        %v2235 = vadd.f32 0.0, %v2234
        %2236 = vmatmul.bf16.gmra.mxu0 %v2136
        %v2237 = vpop.f32.mrf.mxu0
        %v2238 = vadd.f32 0.0, %v2237
        %v2239 = vpop.f32.mrf.mxu0
        %v2240 = vadd.f32 0.0, %v2239
        %2241 = vdwg.mxu0
        %v2242 = vadd.f32 %v1997, %v2154
        %v2243 = vadd.f32 %v1998, %v2203
        %v2244 = vadd.f32 %v1999, %v2156
        %v2245 = vadd.f32 %v2000, %v2205
        %v2246 = vadd.f32 %v2001, %v2159
        %v2247 = vadd.f32 %v2002, %v2208
        %v2248 = vadd.f32 %v2003, %v2161
        %v2249 = vadd.f32 %v2004, %v2210
        %v2250 = vadd.f32 %v2005, %v2164
        %v2251 = vadd.f32 %v2006, %v2213
        %v2252 = vadd.f32 %v2007, %v2166
        %v2253 = vadd.f32 %v2008, %v2215
        %v2254 = vadd.f32 %v2009, %v2169
        %v2255 = vadd.f32 %v2010, %v2218
        %v2256 = vadd.f32 %v2011, %v2171
        %v2257 = vadd.f32 %v2012, %v2220
        %v2258 = vadd.f32 %v2013, %v2174
        %v2259 = vadd.f32 %v2014, %v2223
        %v2260 = vadd.f32 %v2015, %v2176
        %v2261 = vadd.f32 %v2016, %v2225
        %v2262 = vadd.f32 %v2017, %v2179
        %v2263 = vadd.f32 %v2018, %v2228
        %v2264 = vadd.f32 %v2019, %v2181
        %v2265 = vadd.f32 %v2020, %v2230
        %v2266 = vadd.f32 %v2021, %v2184
        %v2267 = vadd.f32 %v2022, %v2233
        %v2268 = vadd.f32 %v2023, %v2186
        %v2269 = vadd.f32 %v2024, %v2235
        %v2270 = vadd.f32 %v2025, %v2189
        %v2271 = vadd.f32 %v2026, %v2238
        %v2272 = vadd.f32 %v2027, %v2191
        %v2273 = vadd.f32 %v2028, %v2240
        %v2274 = vld [vmem:[%s356] sm:$0xff]
        %v2275 = vld [vmem:[%s356 + $0x8] sm:$0xf]
        %2278 = vst [vmem:[#allocation1] ss:$2 sm:$0xff] %v2274
        %s2279 = scalar_lea.vmem [#allocation1], 16
        %2280 = vst [vmem:[%s2279] ss:$2 sm:$0xff] %v2275
        %v2281 = vld.sshfl [vmem:[#allocation1] sm:$0xff pattern:$0x75316420]
        %v2282 = vld.sshfl [vmem:[#allocation1 + $0x8] sm:$0xff pattern:$0x75316420]
        %v2283 = vld.sshfl [vmem:[#allocation1 + $0x10] sm:$0xff pattern:$0x75316420]
        %2284 = vrot.lane.b32.xlu0 %v2281, 94
        %v2285 = vpop.permute.xlu0 %2284
        %2286 = vrot.lane.b32.xlu0 %v2282, 94
        %v2287 = vpop.permute.xlu0 %2286
        %2288 = vrot.lane.b32.xlu0 %v2283, 94
        %v2289 = vpop.permute.xlu0 %2288
        %vm2290 = vcmask 769024
        %v2291 = vsel %vm2290, %v2285, %v2287
        %v2292 = vsel %vm2290, %v2287, %v2289
        %v2295 = vsel %vm816, %v2291, 0.0
        %v2296 = vsel %vm817, %v2292, 0.0
        %s2297 = scalar_lea.vmem %s2, 512
        %v2298 = vld [vmem:[%s2297] sm:$0xf]
        %v2299 = vld [vmem:[%s2297 + $0x4] sm:$0xf]
        %v2300 = vld [vmem:[%s2297 + $0x8] sm:$0xf]
        %v2301 = vld [vmem:[%s2297 + $0xc] sm:$0xf]
        %v2302 = vld [vmem:[%s2297 + $0x10] sm:$0xf]
        %v2303 = vld [vmem:[%s2297 + $0x14] sm:$0xf]
        %v2304 = vld [vmem:[%s2297 + $0x18] sm:$0xf]
        %v2305 = vld [vmem:[%s2297 + $0x1c] sm:$0xf]
        %v2306 = vld [vmem:[%s2297 + $0x20] sm:$0xf]
        %v2307 = vld [vmem:[%s2297 + $0x24] sm:$0xf]
        %v2308 = vld [vmem:[%s2297 + $0x28] sm:$0xf]
        %v2309 = vld [vmem:[%s2297 + $0x2c] sm:$0xf]
        %v2310 = vld [vmem:[%s2297 + $0x30] sm:$0xf]
        %v2311 = vld [vmem:[%s2297 + $0x34] sm:$0xf]
        %v2312 = vld [vmem:[%s2297 + $0x38] sm:$0xf]
        %v2313 = vld [vmem:[%s2297 + $0x3c] sm:$0xf]
        %v2314 = vpack.c.bf16 %v2295, %v2295
        %v2315 = vpack.c.bf16 %v2296, %v2296
        %v2332 = vunpack.c.l.b16 %v2298
        %v2333 = vunpack.c.l.b16 %v2299
        %v2334 = vunpack.c.l.b16 %v2300
        %v2335 = vunpack.c.l.b16 %v2301
        %v2336 = vunpack.c.l.b16 %v2302
        %v2337 = vunpack.c.l.b16 %v2303
        %v2338 = vunpack.c.l.b16 %v2304
        %v2339 = vunpack.c.l.b16 %v2305
        %v2340 = vunpack.c.l.b16 %v2306
        %v2341 = vunpack.c.l.b16 %v2307
        %v2342 = vunpack.c.l.b16 %v2308
        %v2343 = vunpack.c.l.b16 %v2309
        %v2344 = vunpack.c.l.b16 %v2310
        %v2345 = vunpack.c.l.b16 %v2311
        %v2346 = vunpack.c.l.b16 %v2312
        %v2347 = vunpack.c.l.b16 %v2313
        %v2348 = vpack.c.b16 %v2333, %v2332
        %v2349 = vpack.c.b16 %v2335, %v2334
        %v2350 = vpack.c.b16 %v2337, %v2336
        %v2351 = vpack.c.b16 %v2339, %v2338
        %v2352 = vpack.c.b16 %v2341, %v2340
        %v2353 = vpack.c.b16 %v2343, %v2342
        %v2354 = vpack.c.b16 %v2345, %v2344
        %v2355 = vpack.c.b16 %v2347, %v2346
        %v2357 = vsel %vm510, %v2348, 0
        %v2360 = vsel %vm510, %v2349, 0
        %v2363 = vsel %vm510, %v2350, 0
        %v2366 = vsel %vm510, %v2351, 0
        %v2369 = vsel %vm510, %v2352, 0
        %v2372 = vsel %vm510, %v2353, 0
        %v2375 = vsel %vm510, %v2354, 0
        %v2378 = vsel %vm510, %v2355, 0
        %v2381 = vsel %vm535, %v2314, 0
        %v2384 = vsel %vm535, %v2315, 0
        %2386 = vmatpush.bf16.msra.mxu0 0
        %2387 = vmatpush.bf16.msra.mxu0 0
        %2388 = vmatpush.bf16.msra.mxu0 0
        %2389 = vmatpush.bf16.msra.mxu0 0
        %2390 = vmatpush.bf16.msra.mxu0 0
        %2391 = vmatpush.bf16.msra.mxu0 0
        %2392 = vmatpush.bf16.msra.mxu0 0
        %2393 = vmatpush.bf16.msra.mxu0 %v2381
        %2394 = vmatmul.bf16.gmra.mxu0 %v2357
        %v2395 = vpop.f32.mrf.mxu0
        %v2396 = vadd.f32 0.0, %v2395
        %v2397 = vpop.f32.mrf.mxu0
        %v2398 = vadd.f32 0.0, %v2397
        %2399 = vmatmul.bf16.gmra.mxu0 %v2360
        %v2400 = vpop.f32.mrf.mxu0
        %v2401 = vadd.f32 0.0, %v2400
        %v2402 = vpop.f32.mrf.mxu0
        %v2403 = vadd.f32 0.0, %v2402
        %2404 = vmatmul.bf16.gmra.mxu0 %v2363
        %v2405 = vpop.f32.mrf.mxu0
        %v2406 = vadd.f32 0.0, %v2405
        %v2407 = vpop.f32.mrf.mxu0
        %v2408 = vadd.f32 0.0, %v2407
        %2409 = vmatmul.bf16.gmra.mxu0 %v2366
        %v2410 = vpop.f32.mrf.mxu0
        %v2411 = vadd.f32 0.0, %v2410
        %v2412 = vpop.f32.mrf.mxu0
        %v2413 = vadd.f32 0.0, %v2412
        %2414 = vmatmul.bf16.gmra.mxu0 %v2369
        %v2415 = vpop.f32.mrf.mxu0
        %v2416 = vadd.f32 0.0, %v2415
        %v2417 = vpop.f32.mrf.mxu0
        %v2418 = vadd.f32 0.0, %v2417
        %2419 = vmatmul.bf16.gmra.mxu0 %v2372
        %v2420 = vpop.f32.mrf.mxu0
        %v2421 = vadd.f32 0.0, %v2420
        %v2422 = vpop.f32.mrf.mxu0
        %v2423 = vadd.f32 0.0, %v2422
        %2424 = vmatmul.bf16.gmra.mxu0 %v2375
        %v2425 = vpop.f32.mrf.mxu0
        %v2426 = vadd.f32 0.0, %v2425
        %v2427 = vpop.f32.mrf.mxu0
        %v2428 = vadd.f32 0.0, %v2427
        %2429 = vmatmul.bf16.gmra.mxu0 %v2378
        %v2430 = vpop.f32.mrf.mxu0
        %v2431 = vadd.f32 0.0, %v2430
        %v2432 = vpop.f32.mrf.mxu0
        %v2433 = vadd.f32 0.0, %v2432
        %2434 = vdwg.mxu0
        %2435 = vmatpush.bf16.msra.mxu0 0
        %2436 = vmatpush.bf16.msra.mxu0 0
        %2437 = vmatpush.bf16.msra.mxu0 0
        %2438 = vmatpush.bf16.msra.mxu0 0
        %2439 = vmatpush.bf16.msra.mxu0 0
        %2440 = vmatpush.bf16.msra.mxu0 0
        %2441 = vmatpush.bf16.msra.mxu0 0
        %2442 = vmatpush.bf16.msra.mxu0 %v2384
        %2443 = vmatmul.bf16.gmra.mxu0 %v2357
        %v2444 = vpop.f32.mrf.mxu0
        %v2445 = vadd.f32 0.0, %v2444
        %v2446 = vpop.f32.mrf.mxu0
        %v2447 = vadd.f32 0.0, %v2446
        %2448 = vmatmul.bf16.gmra.mxu0 %v2360
        %v2449 = vpop.f32.mrf.mxu0
        %v2450 = vadd.f32 0.0, %v2449
        %v2451 = vpop.f32.mrf.mxu0
        %v2452 = vadd.f32 0.0, %v2451
        %2453 = vmatmul.bf16.gmra.mxu0 %v2363
        %v2454 = vpop.f32.mrf.mxu0
        %v2455 = vadd.f32 0.0, %v2454
        %v2456 = vpop.f32.mrf.mxu0
        %v2457 = vadd.f32 0.0, %v2456
        %2458 = vmatmul.bf16.gmra.mxu0 %v2366
        %v2459 = vpop.f32.mrf.mxu0
        %v2460 = vadd.f32 0.0, %v2459
        %v2461 = vpop.f32.mrf.mxu0
        %v2462 = vadd.f32 0.0, %v2461
        %2463 = vmatmul.bf16.gmra.mxu0 %v2369
        %v2464 = vpop.f32.mrf.mxu0
        %v2465 = vadd.f32 0.0, %v2464
        %v2466 = vpop.f32.mrf.mxu0
        %v2467 = vadd.f32 0.0, %v2466
        %2468 = vmatmul.bf16.gmra.mxu0 %v2372
        %v2469 = vpop.f32.mrf.mxu0
        %v2470 = vadd.f32 0.0, %v2469
        %v2471 = vpop.f32.mrf.mxu0
        %v2472 = vadd.f32 0.0, %v2471
        %2473 = vmatmul.bf16.gmra.mxu0 %v2375
        %v2474 = vpop.f32.mrf.mxu0
        %v2475 = vadd.f32 0.0, %v2474
        %v2476 = vpop.f32.mrf.mxu0
        %v2477 = vadd.f32 0.0, %v2476
        %2478 = vmatmul.bf16.gmra.mxu0 %v2378
        %v2479 = vpop.f32.mrf.mxu0
        %v2480 = vadd.f32 0.0, %v2479
        %v2481 = vpop.f32.mrf.mxu0
        %v2482 = vadd.f32 0.0, %v2481
        %2483 = vdwg.mxu0
        %v2484 = vadd.f32 %v2242, %v2396
        %v2485 = vadd.f32 %v2243, %v2445
        %v2486 = vadd.f32 %v2244, %v2398
        %v2487 = vadd.f32 %v2245, %v2447
        %v2488 = vadd.f32 %v2246, %v2401
        %v2489 = vadd.f32 %v2247, %v2450
        %v2490 = vadd.f32 %v2248, %v2403
        %v2491 = vadd.f32 %v2249, %v2452
        %v2492 = vadd.f32 %v2250, %v2406
        %v2493 = vadd.f32 %v2251, %v2455
        %v2494 = vadd.f32 %v2252, %v2408
        %v2495 = vadd.f32 %v2253, %v2457
        %v2496 = vadd.f32 %v2254, %v2411
        %v2497 = vadd.f32 %v2255, %v2460
        %v2498 = vadd.f32 %v2256, %v2413
        %v2499 = vadd.f32 %v2257, %v2462
        %v2500 = vadd.f32 %v2258, %v2416
        %v2501 = vadd.f32 %v2259, %v2465
        %v2502 = vadd.f32 %v2260, %v2418
        %v2503 = vadd.f32 %v2261, %v2467
        %v2504 = vadd.f32 %v2262, %v2421
        %v2505 = vadd.f32 %v2263, %v2470
        %v2506 = vadd.f32 %v2264, %v2423
        %v2507 = vadd.f32 %v2265, %v2472
        %v2508 = vadd.f32 %v2266, %v2426
        %v2509 = vadd.f32 %v2267, %v2475
        %v2510 = vadd.f32 %v2268, %v2428
        %v2511 = vadd.f32 %v2269, %v2477
        %v2512 = vadd.f32 %v2270, %v2431
        %v2513 = vadd.f32 %v2271, %v2480
        %v2514 = vadd.f32 %v2272, %v2433
        %v2515 = vadd.f32 %v2273, %v2482
        %v2516 = vld [vmem:[%s3] sm:$0xff]
        %v2517 = vld [vmem:[%s3 + $0x8] sm:$0xff]
        %v2518 = vld [vmem:[%s3 + $0x10] sm:$0xff]
        %v2519 = vld [vmem:[%s3 + $0x18] sm:$0xff]
        %v2520 = vld [vmem:[%s3 + $0x20] sm:$0xff]
        %v2521 = vld [vmem:[%s3 + $0x28] sm:$0xff]
        %v2522 = vld [vmem:[%s3 + $0x30] sm:$0xff]
        %v2523 = vld [vmem:[%s3 + $0x38] sm:$0xff]
        %v2524 = vld [vmem:[%s3 + $0x40] sm:$0xff]
        %v2525 = vld [vmem:[%s3 + $0x48] sm:$0xff]
        %v2526 = vld [vmem:[%s3 + $0x50] sm:$0xff]
        %v2527 = vld [vmem:[%s3 + $0x58] sm:$0xff]
        %v2528 = vld [vmem:[%s3 + $0x60] sm:$0xff]
        %v2529 = vld [vmem:[%s3 + $0x68] sm:$0xff]
        %v2530 = vld [vmem:[%s3 + $0x70] sm:$0xff]
        %v2531 = vld [vmem:[%s3 + $0x78] sm:$0xff]
        %2533 = vset.pattern.permute.xlu0 0
        %2534 = vperm.xlu0 %2533, %v2516
        %v2535 = vpop.permute.xlu0 %2534
        %2538 = vset.pattern.permute.xlu0 0
        %2539 = vperm.xlu0 %2538, %v2517
        %v2540 = vpop.permute.xlu0 %2539
        %2543 = vset.pattern.permute.xlu0 0
        %2544 = vperm.xlu0 %2543, %v2518
        %v2545 = vpop.permute.xlu0 %2544
        %2548 = vset.pattern.permute.xlu0 0
        %2549 = vperm.xlu0 %2548, %v2519
        %v2550 = vpop.permute.xlu0 %2549
        %2553 = vset.pattern.permute.xlu0 0
        %2554 = vperm.xlu0 %2553, %v2520
        %v2555 = vpop.permute.xlu0 %2554
        %2558 = vset.pattern.permute.xlu0 0
        %2559 = vperm.xlu0 %2558, %v2521
        %v2560 = vpop.permute.xlu0 %2559
        %2563 = vset.pattern.permute.xlu0 0
        %2564 = vperm.xlu0 %2563, %v2522
        %v2565 = vpop.permute.xlu0 %2564
        %2568 = vset.pattern.permute.xlu0 0
        %2569 = vperm.xlu0 %2568, %v2523
        %v2570 = vpop.permute.xlu0 %2569
        %2573 = vset.pattern.permute.xlu0 0
        %2574 = vperm.xlu0 %2573, %v2524
        %v2575 = vpop.permute.xlu0 %2574
        %2578 = vset.pattern.permute.xlu0 0
        %2579 = vperm.xlu0 %2578, %v2525
        %v2580 = vpop.permute.xlu0 %2579
        %2583 = vset.pattern.permute.xlu0 0
        %2584 = vperm.xlu0 %2583, %v2526
        %v2585 = vpop.permute.xlu0 %2584
        %2588 = vset.pattern.permute.xlu0 0
        %2589 = vperm.xlu0 %2588, %v2527
        %v2590 = vpop.permute.xlu0 %2589
        %2593 = vset.pattern.permute.xlu0 0
        %2594 = vperm.xlu0 %2593, %v2528
        %v2595 = vpop.permute.xlu0 %2594
        %2598 = vset.pattern.permute.xlu0 0
        %2599 = vperm.xlu0 %2598, %v2529
        %v2600 = vpop.permute.xlu0 %2599
        %2603 = vset.pattern.permute.xlu0 0
        %2604 = vperm.xlu0 %2603, %v2530
        %v2605 = vpop.permute.xlu0 %2604
        %2608 = vset.pattern.permute.xlu0 0
        %2609 = vperm.xlu0 %2608, %v2531
        %v2610 = vpop.permute.xlu0 %2609
        %v2612 = vadd.f32 %v2484, %v2535
        %v2613 = vadd.f32 %v2485, %v2535
        %v2614 = vadd.f32 %v2486, %v2540
        %v2615 = vadd.f32 %v2487, %v2540
        %v2616 = vadd.f32 %v2488, %v2545
        %v2617 = vadd.f32 %v2489, %v2545
        %v2618 = vadd.f32 %v2490, %v2550
        %v2619 = vadd.f32 %v2491, %v2550
        %v2620 = vadd.f32 %v2492, %v2555
        %v2621 = vadd.f32 %v2493, %v2555
        %v2622 = vadd.f32 %v2494, %v2560
        %v2623 = vadd.f32 %v2495, %v2560
        %v2624 = vadd.f32 %v2496, %v2565
        %v2625 = vadd.f32 %v2497, %v2565
        %v2626 = vadd.f32 %v2498, %v2570
        %v2627 = vadd.f32 %v2499, %v2570
        %v2628 = vadd.f32 %v2500, %v2575
        %v2629 = vadd.f32 %v2501, %v2575
        %v2630 = vadd.f32 %v2502, %v2580
        %v2631 = vadd.f32 %v2503, %v2580
        %v2632 = vadd.f32 %v2504, %v2585
        %v2633 = vadd.f32 %v2505, %v2585
        %v2634 = vadd.f32 %v2506, %v2590
        %v2635 = vadd.f32 %v2507, %v2590
        %v2636 = vadd.f32 %v2508, %v2595
        %v2637 = vadd.f32 %v2509, %v2595
        %v2638 = vadd.f32 %v2510, %v2600
        %v2639 = vadd.f32 %v2511, %v2600
        %v2640 = vadd.f32 %v2512, %v2605
        %v2641 = vadd.f32 %v2513, %v2605
        %v2642 = vadd.f32 %v2514, %v2610
        %v2643 = vadd.f32 %v2515, %v2610
        %v2644 = vadd.f32 %v2612, %v2613
        %v2645 = vadd.f32 %v2644, %v2614
        %v2646 = vadd.f32 %v2645, %v2615
        %v2647 = vadd.f32 %v2646, %v2616
        %v2648 = vadd.f32 %v2647, %v2617
        %v2649 = vadd.f32 %v2648, %v2618
        %v2650 = vadd.f32 %v2649, %v2619
        %v2651 = vadd.f32 %v2650, %v2620
        %v2652 = vadd.f32 %v2651, %v2621
        %v2653 = vadd.f32 %v2652, %v2622
        %v2654 = vadd.f32 %v2653, %v2623
        %v2655 = vadd.f32 %v2654, %v2624
        %v2656 = vadd.f32 %v2655, %v2625
        %v2657 = vadd.f32 %v2656, %v2626
        %v2658 = vadd.f32 %v2657, %v2627
        %v2659 = vadd.f32 %v2658, %v2628
        %v2660 = vadd.f32 %v2659, %v2629
        %v2661 = vadd.f32 %v2660, %v2630
        %v2662 = vadd.f32 %v2661, %v2631
        %v2663 = vadd.f32 %v2662, %v2632
        %v2664 = vadd.f32 %v2663, %v2633
        %v2665 = vadd.f32 %v2664, %v2634
        %v2666 = vadd.f32 %v2665, %v2635
        %v2667 = vadd.f32 %v2666, %v2636
        %v2668 = vadd.f32 %v2667, %v2637
        %v2669 = vadd.f32 %v2668, %v2638
        %v2670 = vadd.f32 %v2669, %v2639
        %v2671 = vadd.f32 %v2670, %v2640
        %v2672 = vadd.f32 %v2671, %v2641
        %v2673 = vadd.f32 %v2672, %v2642
        %v2674 = vadd.f32 %v2673, %v2643
        %2675 = vadd.xlane.f32.xlu0 %v2674
        %v2676 = vpop.xlane.xlu0 %2675
        %v2677 = vrot.slane %v2676, 4
        %v2678 = vadd.f32 %v2676, %v2677
        %v2679 = vrot.slane %v2678, 2
        %v2680 = vadd.f32 %v2678, %v2679
        %v2681 = vrot.slane %v2680, 1
        %v2682 = vadd.f32 %v2680, %v2681
        %s2683 = vtos %v2682
        %v2684 = vmul.f32 %v2612, %v2612
        %v2685 = vmul.f32 %v2613, %v2613
        %v2686 = vmul.f32 %v2614, %v2614
        %v2687 = vmul.f32 %v2615, %v2615
        %v2688 = vmul.f32 %v2616, %v2616
        %v2689 = vmul.f32 %v2617, %v2617
        %v2690 = vmul.f32 %v2618, %v2618
        %v2691 = vmul.f32 %v2619, %v2619
        %v2692 = vmul.f32 %v2620, %v2620
        %v2693 = vmul.f32 %v2621, %v2621
        %v2694 = vmul.f32 %v2622, %v2622
        %v2695 = vmul.f32 %v2623, %v2623
        %v2696 = vmul.f32 %v2624, %v2624
        %v2697 = vmul.f32 %v2625, %v2625
        %v2698 = vmul.f32 %v2626, %v2626
        %v2699 = vmul.f32 %v2627, %v2627
        %v2700 = vmul.f32 %v2628, %v2628
        %v2701 = vmul.f32 %v2629, %v2629
        %v2702 = vmul.f32 %v2630, %v2630
        %v2703 = vmul.f32 %v2631, %v2631
        %v2704 = vmul.f32 %v2632, %v2632
        %v2705 = vmul.f32 %v2633, %v2633
        %v2706 = vmul.f32 %v2634, %v2634
        %v2707 = vmul.f32 %v2635, %v2635
        %v2708 = vmul.f32 %v2636, %v2636
        %v2709 = vmul.f32 %v2637, %v2637
        %v2710 = vmul.f32 %v2638, %v2638
        %v2711 = vmul.f32 %v2639, %v2639
        %v2712 = vmul.f32 %v2640, %v2640
        %v2713 = vmul.f32 %v2641, %v2641
        %v2714 = vmul.f32 %v2642, %v2642
        %v2715 = vmul.f32 %v2643, %v2643
        %v2716 = vadd.f32 %v2684, %v2685
        %v2717 = vadd.f32 %v2716, %v2686
        %v2718 = vadd.f32 %v2717, %v2687
        %v2719 = vadd.f32 %v2718, %v2688
        %v2720 = vadd.f32 %v2719, %v2689
        %v2721 = vadd.f32 %v2720, %v2690
        %v2722 = vadd.f32 %v2721, %v2691
        %v2723 = vadd.f32 %v2722, %v2692
        %v2724 = vadd.f32 %v2723, %v2693
        %v2725 = vadd.f32 %v2724, %v2694
        %v2726 = vadd.f32 %v2725, %v2695
        %v2727 = vadd.f32 %v2726, %v2696
        %v2728 = vadd.f32 %v2727, %v2697
        %v2729 = vadd.f32 %v2728, %v2698
        %v2730 = vadd.f32 %v2729, %v2699
        %v2731 = vadd.f32 %v2730, %v2700
        %v2732 = vadd.f32 %v2731, %v2701
        %v2733 = vadd.f32 %v2732, %v2702
        %v2734 = vadd.f32 %v2733, %v2703
        %v2735 = vadd.f32 %v2734, %v2704
        %v2736 = vadd.f32 %v2735, %v2705
        %v2737 = vadd.f32 %v2736, %v2706
        %v2738 = vadd.f32 %v2737, %v2707
        %v2739 = vadd.f32 %v2738, %v2708
        %v2740 = vadd.f32 %v2739, %v2709
        %v2741 = vadd.f32 %v2740, %v2710
        %v2742 = vadd.f32 %v2741, %v2711
        %v2743 = vadd.f32 %v2742, %v2712
        %v2744 = vadd.f32 %v2743, %v2713
        %v2745 = vadd.f32 %v2744, %v2714
        %v2746 = vadd.f32 %v2745, %v2715
        %2747 = vadd.xlane.f32.xlu0 %v2746
        %v2748 = vpop.xlane.xlu0 %2747
        %v2749 = vrot.slane %v2748, 4
        %v2750 = vadd.f32 %v2748, %v2749
        %v2751 = vrot.slane %v2750, 2
        %v2752 = vadd.f32 %v2750, %v2751
        %v2753 = vrot.slane %v2752, 1
        %v2754 = vadd.f32 %v2752, %v2753
        %s2755 = vtos %v2754
        %v2756 = vrcp.pop 32768.0
        %v2757 = vmul.f32 32768.0, %v2756
        %v2758 = vsub.f32 1.0, %v2757
        %v2759 = vmul.f32 %v2756, %v2758
        %v2760 = vadd.f32 %v2756, %v2759
        %vm2761 = vweird.f32 %v2756
        %v2762 = vsel %vm2761, %v2756, %v2760
        %s2763 = vtos %v2762
        %s2764 = smul.f32 %s2683, %s2763
        %v2765 = vrcp.pop 32768.0
        %v2766 = vmul.f32 32768.0, %v2765
        %v2767 = vsub.f32 1.0, %v2766
        %v2768 = vmul.f32 %v2765, %v2767
        %v2769 = vadd.f32 %v2765, %v2768
        %vm2770 = vweird.f32 %v2765
        %v2771 = vsel %vm2770, %v2765, %v2769
        %s2772 = vtos %v2771
        %s2773 = smul.f32 %s2755, %s2772
        %s2774 = smul.f32 %s2764, %s2764
        %s2775 = ssub.f32 %s2773, %s2774
        %v2776 = vstv %s2764
        %v2777 = vsub.f32 %v2612, %v2776
        %v2778 = vsub.f32 %v2613, %v2776
        %v2779 = vsub.f32 %v2614, %v2776
        %v2780 = vsub.f32 %v2615, %v2776
        %v2781 = vsub.f32 %v2616, %v2776
        %v2782 = vsub.f32 %v2617, %v2776
        %v2783 = vsub.f32 %v2618, %v2776
        %v2784 = vsub.f32 %v2619, %v2776
        %v2785 = vsub.f32 %v2620, %v2776
        %v2786 = vsub.f32 %v2621, %v2776
        %v2787 = vsub.f32 %v2622, %v2776
        %v2788 = vsub.f32 %v2623, %v2776
        %v2789 = vsub.f32 %v2624, %v2776
        %v2790 = vsub.f32 %v2625, %v2776
        %v2791 = vsub.f32 %v2626, %v2776
        %v2792 = vsub.f32 %v2627, %v2776
        %v2793 = vsub.f32 %v2628, %v2776
        %v2794 = vsub.f32 %v2629, %v2776
        %v2795 = vsub.f32 %v2630, %v2776
        %v2796 = vsub.f32 %v2631, %v2776
        %v2797 = vsub.f32 %v2632, %v2776
        %v2798 = vsub.f32 %v2633, %v2776
        %v2799 = vsub.f32 %v2634, %v2776
        %v2800 = vsub.f32 %v2635, %v2776
        %v2801 = vsub.f32 %v2636, %v2776
        %v2802 = vsub.f32 %v2637, %v2776
        %v2803 = vsub.f32 %v2638, %v2776
        %v2804 = vsub.f32 %v2639, %v2776
        %v2805 = vsub.f32 %v2640, %v2776
        %v2806 = vsub.f32 %v2641, %v2776
        %v2807 = vsub.f32 %v2642, %v2776
        %v2808 = vsub.f32 %v2643, %v2776
        %s2809 = sadd.f32 %s2775, 1e-05
        %v2810 = vstv %s2809
        %v2811 = vrsqrt.pop %v2810
        %v2812 = vmul.f32 %v2811, %v2810
        %v2813 = vmul.f32 %v2812, %v2811
        %v2814 = vmul.f32 0.5, %v2813
        %v2815 = vsub.f32 1.5, %v2814
        %v2816 = vmul.f32 %v2811, %v2815
        %vm2817 = vweird.f32 %v2810
        %vm2818 = vweird.f32 %v2811
        %vm2819 = vmor %vm2817, %vm2818
        %v2820 = vsel %vm2819, %v2811, %v2816
        %s2821 = vtos %v2820
        %v2822 = vstv %s2821
        %v2823 = vmul.f32 %v2777, %v2822
        %v2824 = vmul.f32 %v2778, %v2822
        %v2825 = vmul.f32 %v2779, %v2822
        %v2826 = vmul.f32 %v2780, %v2822
        %v2827 = vmul.f32 %v2781, %v2822
        %v2828 = vmul.f32 %v2782, %v2822
        %v2829 = vmul.f32 %v2783, %v2822
        %v2830 = vmul.f32 %v2784, %v2822
        %v2831 = vmul.f32 %v2785, %v2822
        %v2832 = vmul.f32 %v2786, %v2822
        %v2833 = vmul.f32 %v2787, %v2822
        %v2834 = vmul.f32 %v2788, %v2822
        %v2835 = vmul.f32 %v2789, %v2822
        %v2836 = vmul.f32 %v2790, %v2822
        %v2837 = vmul.f32 %v2791, %v2822
        %v2838 = vmul.f32 %v2792, %v2822
        %v2839 = vmul.f32 %v2793, %v2822
        %v2840 = vmul.f32 %v2794, %v2822
        %v2841 = vmul.f32 %v2795, %v2822
        %v2842 = vmul.f32 %v2796, %v2822
        %v2843 = vmul.f32 %v2797, %v2822
        %v2844 = vmul.f32 %v2798, %v2822
        %v2845 = vmul.f32 %v2799, %v2822
        %v2846 = vmul.f32 %v2800, %v2822
        %v2847 = vmul.f32 %v2801, %v2822
        %v2848 = vmul.f32 %v2802, %v2822
        %v2849 = vmul.f32 %v2803, %v2822
        %v2850 = vmul.f32 %v2804, %v2822
        %v2851 = vmul.f32 %v2805, %v2822
        %v2852 = vmul.f32 %v2806, %v2822
        %v2853 = vmul.f32 %v2807, %v2822
        %v2854 = vmul.f32 %v2808, %v2822
        %v2855 = vld [vmem:[%s361] sm:$0xff]
        %v2856 = vld [vmem:[%s361 + $0x8] sm:$0xff]
        %v2857 = vld [vmem:[%s361 + $0x18] sm:$0xff]
        %v2858 = vld [vmem:[%s361 + $0x20] sm:$0xff]
        %v2859 = vld [vmem:[%s361 + $0x30] sm:$0xff]
        %v2860 = vld [vmem:[%s361 + $0x38] sm:$0xff]
        %v2861 = vld [vmem:[%s361 + $0x48] sm:$0xff]
        %v2862 = vld [vmem:[%s361 + $0x50] sm:$0xff]
        %v2863 = vsel %vm397, %v2855, 0.0
        %v2864 = vsel %vm398, %v2856, 0.0
        %v2865 = vsel %vm397, %v2857, 0.0
        %v2866 = vsel %vm398, %v2858, 0.0
        %v2867 = vsel %vm397, %v2859, 0.0
        %v2868 = vsel %vm398, %v2860, 0.0
        %v2869 = vsel %vm397, %v2861, 0.0
        %v2870 = vsel %vm398, %v2862, 0.0
        %v2871 = vld [vmem:[%s4] sm:$0xf]
        %v2872 = vld [vmem:[%s4 + $0x4] sm:$0xf]
        %v2873 = vld [vmem:[%s4 + $0x8] sm:$0xf]
        %v2874 = vld [vmem:[%s4 + $0xc] sm:$0xf]
        %v2875 = vld [vmem:[%s4 + $0x10] sm:$0xf]
        %v2876 = vld [vmem:[%s4 + $0x14] sm:$0xf]
        %v2877 = vld [vmem:[%s4 + $0x18] sm:$0xf]
        %v2878 = vld [vmem:[%s4 + $0x1c] sm:$0xf]
        %v2879 = vld [vmem:[%s4 + $0x20] sm:$0xf]
        %v2880 = vld [vmem:[%s4 + $0x24] sm:$0xf]
        %v2881 = vld [vmem:[%s4 + $0x28] sm:$0xf]
        %v2882 = vld [vmem:[%s4 + $0x2c] sm:$0xf]
        %v2883 = vpack.c.bf16 %v2865, %v2863
        %v2884 = vpack.c.bf16 %v2866, %v2864
        %v2885 = vpack.c.bf16 %v2869, %v2867
        %v2886 = vpack.c.bf16 %v2870, %v2868
        %v2887 = vld [vmem:[%s361 + $0x10] sm:$0xff]
        %v2888 = vld [vmem:[%s361 + $0x28] sm:$0xff]
        %v2889 = vld [vmem:[%s361 + $0x40] sm:$0xff]
        %v2890 = vld [vmem:[%s361 + $0x58] sm:$0xff]
        %s2891 = scalar_lea.vmem %s4, 48
        %v2892 = vld [vmem:[%s2891] sm:$0xf]
        %v2893 = vld [vmem:[%s2891 + $0x4] sm:$0xf]
        %v2894 = vld [vmem:[%s2891 + $0x8] sm:$0xf]
        %v2895 = vld [vmem:[%s2891 + $0xc] sm:$0xf]
        %v2896 = vld [vmem:[%s2891 + $0x10] sm:$0xf]
        %v2897 = vld [vmem:[%s2891 + $0x14] sm:$0xf]
        %v2898 = vld [vmem:[%s2891 + $0x18] sm:$0xf]
        %v2899 = vld [vmem:[%s2891 + $0x1c] sm:$0xf]
        %v2900 = vld [vmem:[%s2891 + $0x20] sm:$0xf]
        %v2901 = vld [vmem:[%s2891 + $0x24] sm:$0xf]
        %v2902 = vld [vmem:[%s2891 + $0x28] sm:$0xf]
        %v2903 = vld [vmem:[%s2891 + $0x2c] sm:$0xf]
        %v2904 = vpack.c.bf16 %v2857, %v2855
        %v2905 = vpack.c.bf16 %v2858, %v2856
        %v2906 = vpack.c.bf16 %v2888, %v2887
        %v2907 = vpack.c.bf16 %v2861, %v2859
        %v2908 = vpack.c.bf16 %v2862, %v2860
        %v2909 = vpack.c.bf16 %v2890, %v2889
        %v2922 = vunpack.c.l.b16 %v2892
        %v2923 = vunpack.c.l.b16 %v2893
        %v2924 = vunpack.c.l.b16 %v2894
        %v2925 = vunpack.c.l.b16 %v2895
        %v2926 = vunpack.c.l.b16 %v2896
        %v2927 = vunpack.c.l.b16 %v2897
        %v2928 = vunpack.c.l.b16 %v2898
        %v2929 = vunpack.c.l.b16 %v2899
        %v2930 = vunpack.c.l.b16 %v2900
        %v2931 = vunpack.c.l.b16 %v2901
        %v2932 = vunpack.c.l.b16 %v2902
        %v2933 = vunpack.c.l.b16 %v2903
        %v2934 = vpack.c.b16 %v2923, %v2922
        %v2935 = vpack.c.b16 %v2925, %v2924
        %v2936 = vpack.c.b16 %v2927, %v2926
        %v2937 = vpack.c.b16 %v2929, %v2928
        %v2938 = vpack.c.b16 %v2931, %v2930
        %v2939 = vpack.c.b16 %v2933, %v2932
        %2946 = vrot.lane.b32.xlu0 %v2904, 127
        %v2947 = vpop.permute.xlu0 %2946
        %2948 = vrot.lane.b32.xlu0 %v2905, 127
        %v2949 = vpop.permute.xlu0 %2948
        %2950 = vrot.lane.b32.xlu0 %v2906, 127
        %v2951 = vpop.permute.xlu0 %2950
        %2952 = vrot.lane.b32.xlu0 %v2907, 127
        %v2953 = vpop.permute.xlu0 %2952
        %2954 = vrot.lane.b32.xlu0 %v2908, 127
        %v2955 = vpop.permute.xlu0 %2954
        %2956 = vrot.lane.b32.xlu0 %v2909, 127
        %v2957 = vpop.permute.xlu0 %2956
        %v2958 = vsel %vm507, %v2947, %v2949
        %v2959 = vsel %vm507, %v2949, %v2951
        %v2960 = vsel %vm507, %v2953, %v2955
        %v2961 = vsel %vm507, %v2955, %v2957
        %vm2966 = vcmask 261120
        %v2968 = vsel %vm2966, %v2934, 0
        %v2971 = vsel %vm2966, %v2935, 0
        %v2974 = vsel %vm2966, %v2936, 0
        %v2977 = vsel %vm2966, %v2937, 0
        %v2980 = vsel %vm2966, %v2938, 0
        %v2983 = vsel %vm2966, %v2939, 0
        %2985 = vmatpush.bf16.msra.mxu0 0
        %2986 = vmatpush.bf16.msra.mxu0 0
        %2987 = vmatpush.bf16.msra.mxu0 0
        %2988 = vmatpush.bf16.msra.mxu0 0
        %2989 = vmatpush.bf16.msra.mxu0 0
        %2990 = vmatpush.bf16.msra.mxu0 0
        %2991 = vmatpush.bf16.msra.mxu0 %v2960
        %2992 = vmatpush.bf16.msra.mxu0 %v2958
        %2993 = vmatmul.bf16.gmra.mxu0 %v2968
        %v2994 = vpop.f32.mrf.mxu0
        %v2995 = vadd.f32 0.0, %v2994
        %v2996 = vpop.f32.mrf.mxu0
        %v2997 = vadd.f32 0.0, %v2996
        %2998 = vmatmul.bf16.gmra.mxu0 %v2971
        %v2999 = vpop.f32.mrf.mxu0
        %v3000 = vadd.f32 0.0, %v2999
        %v3001 = vpop.f32.mrf.mxu0
        %v3002 = vadd.f32 0.0, %v3001
        %3003 = vmatmul.bf16.gmra.mxu0 %v2974
        %v3004 = vpop.f32.mrf.mxu0
        %v3005 = vadd.f32 0.0, %v3004
        %v3006 = vpop.f32.mrf.mxu0
        %v3007 = vadd.f32 0.0, %v3006
        %3008 = vmatmul.bf16.gmra.mxu0 %v2977
        %v3009 = vpop.f32.mrf.mxu0
        %v3010 = vadd.f32 0.0, %v3009
        %v3011 = vpop.f32.mrf.mxu0
        %v3012 = vadd.f32 0.0, %v3011
        %3013 = vmatmul.bf16.gmra.mxu0 %v2980
        %v3014 = vpop.f32.mrf.mxu0
        %v3015 = vadd.f32 0.0, %v3014
        %v3016 = vpop.f32.mrf.mxu0
        %v3017 = vadd.f32 0.0, %v3016
        %3018 = vmatmul.bf16.gmra.mxu0 %v2983
        %v3019 = vpop.f32.mrf.mxu0
        %v3020 = vadd.f32 0.0, %v3019
        %v3021 = vpop.f32.mrf.mxu0
        %v3022 = vadd.f32 0.0, %v3021
        %3023 = vdwg.mxu0
        %3024 = vmatpush.bf16.msra.mxu0 0
        %3025 = vmatpush.bf16.msra.mxu0 0
        %3026 = vmatpush.bf16.msra.mxu0 0
        %3027 = vmatpush.bf16.msra.mxu0 0
        %3028 = vmatpush.bf16.msra.mxu0 0
        %3029 = vmatpush.bf16.msra.mxu0 0
        %3030 = vmatpush.bf16.msra.mxu0 %v2961
        %3031 = vmatpush.bf16.msra.mxu0 %v2959
        %3032 = vmatmul.bf16.gmra.mxu0 %v2968
        %v3033 = vpop.f32.mrf.mxu0
        %v3034 = vadd.f32 0.0, %v3033
        %v3035 = vpop.f32.mrf.mxu0
        %v3036 = vadd.f32 0.0, %v3035
        %3037 = vmatmul.bf16.gmra.mxu0 %v2971
        %v3038 = vpop.f32.mrf.mxu0
        %v3039 = vadd.f32 0.0, %v3038
        %v3040 = vpop.f32.mrf.mxu0
        %v3041 = vadd.f32 0.0, %v3040
        %3042 = vmatmul.bf16.gmra.mxu0 %v2974
        %v3043 = vpop.f32.mrf.mxu0
        %v3044 = vadd.f32 0.0, %v3043
        %v3045 = vpop.f32.mrf.mxu0
        %v3046 = vadd.f32 0.0, %v3045
        %3047 = vmatmul.bf16.gmra.mxu0 %v2977
        %v3048 = vpop.f32.mrf.mxu0
        %v3049 = vadd.f32 0.0, %v3048
        %v3050 = vpop.f32.mrf.mxu0
        %v3051 = vadd.f32 0.0, %v3050
        %3052 = vmatmul.bf16.gmra.mxu0 %v2980
        %v3053 = vpop.f32.mrf.mxu0
        %v3054 = vadd.f32 0.0, %v3053
        %v3055 = vpop.f32.mrf.mxu0
        %v3056 = vadd.f32 0.0, %v3055
        %3057 = vmatmul.bf16.gmra.mxu0 %v2983
        %v3058 = vpop.f32.mrf.mxu0
        %v3059 = vadd.f32 0.0, %v3058
        %v3060 = vpop.f32.mrf.mxu0
        %v3061 = vadd.f32 0.0, %v3060
        %3062 = vdwg.mxu0
        %v3075 = vunpack.c.l.b16 %v2871
        %v3076 = vunpack.c.l.b16 %v2872
        %v3077 = vunpack.c.l.b16 %v2873
        %v3078 = vunpack.c.l.b16 %v2874
        %v3079 = vunpack.c.l.b16 %v2875
        %v3080 = vunpack.c.l.b16 %v2876
        %v3081 = vunpack.c.l.b16 %v2877
        %v3082 = vunpack.c.l.b16 %v2878
        %v3083 = vunpack.c.l.b16 %v2879
        %v3084 = vunpack.c.l.b16 %v2880
        %v3085 = vunpack.c.l.b16 %v2881
        %v3086 = vunpack.c.l.b16 %v2882
        %v3087 = vpack.c.b16 %v3076, %v3075
        %v3088 = vpack.c.b16 %v3078, %v3077
        %v3089 = vpack.c.b16 %v3080, %v3079
        %v3090 = vpack.c.b16 %v3082, %v3081
        %v3091 = vpack.c.b16 %v3084, %v3083
        %v3092 = vpack.c.b16 %v3086, %v3085
        %v3094 = vsel %vm2966, %v3087, 0
        %v3097 = vsel %vm2966, %v3088, 0
        %v3100 = vsel %vm2966, %v3089, 0
        %v3103 = vsel %vm2966, %v3090, 0
        %v3106 = vsel %vm2966, %v3091, 0
        %v3109 = vsel %vm2966, %v3092, 0
        %3111 = vmatpush.bf16.msra.mxu0 0
        %3112 = vmatpush.bf16.msra.mxu0 0
        %3113 = vmatpush.bf16.msra.mxu0 0
        %3114 = vmatpush.bf16.msra.mxu0 0
        %3115 = vmatpush.bf16.msra.mxu0 0
        %3116 = vmatpush.bf16.msra.mxu0 0
        %3117 = vmatpush.bf16.msra.mxu0 %v2885
        %3118 = vmatpush.bf16.msra.mxu0 %v2883
        %3119 = vmatmul.bf16.gmra.mxu0 %v3094
        %v3120 = vpop.f32.mrf.mxu0
        %v3121 = vadd.f32 %v2995, %v3120
        %v3122 = vpop.f32.mrf.mxu0
        %v3123 = vadd.f32 %v2997, %v3122
        %3124 = vmatmul.bf16.gmra.mxu0 %v3097
        %v3125 = vpop.f32.mrf.mxu0
        %v3126 = vadd.f32 %v3000, %v3125
        %v3127 = vpop.f32.mrf.mxu0
        %v3128 = vadd.f32 %v3002, %v3127
        %3129 = vmatmul.bf16.gmra.mxu0 %v3100
        %v3130 = vpop.f32.mrf.mxu0
        %v3131 = vadd.f32 %v3005, %v3130
        %v3132 = vpop.f32.mrf.mxu0
        %v3133 = vadd.f32 %v3007, %v3132
        %3134 = vmatmul.bf16.gmra.mxu0 %v3103
        %v3135 = vpop.f32.mrf.mxu0
        %v3136 = vadd.f32 %v3010, %v3135
        %v3137 = vpop.f32.mrf.mxu0
        %v3138 = vadd.f32 %v3012, %v3137
        %3139 = vmatmul.bf16.gmra.mxu0 %v3106
        %v3140 = vpop.f32.mrf.mxu0
        %v3141 = vadd.f32 %v3015, %v3140
        %v3142 = vpop.f32.mrf.mxu0
        %v3143 = vadd.f32 %v3017, %v3142
        %3144 = vmatmul.bf16.gmra.mxu0 %v3109
        %v3145 = vpop.f32.mrf.mxu0
        %v3146 = vadd.f32 %v3020, %v3145
        %v3147 = vpop.f32.mrf.mxu0
        %v3148 = vadd.f32 %v3022, %v3147
        %3149 = vdwg.mxu0
        %3150 = vmatpush.bf16.msra.mxu0 0
        %3151 = vmatpush.bf16.msra.mxu0 0
        %3152 = vmatpush.bf16.msra.mxu0 0
        %3153 = vmatpush.bf16.msra.mxu0 0
        %3154 = vmatpush.bf16.msra.mxu0 0
        %3155 = vmatpush.bf16.msra.mxu0 0
        %3156 = vmatpush.bf16.msra.mxu0 %v2886
        %3157 = vmatpush.bf16.msra.mxu0 %v2884
        %3158 = vmatmul.bf16.gmra.mxu0 %v3094
        %v3159 = vpop.f32.mrf.mxu0
        %v3160 = vadd.f32 %v3034, %v3159
        %v3161 = vpop.f32.mrf.mxu0
        %v3162 = vadd.f32 %v3036, %v3161
        %3163 = vmatmul.bf16.gmra.mxu0 %v3097
        %v3164 = vpop.f32.mrf.mxu0
        %v3165 = vadd.f32 %v3039, %v3164
        %v3166 = vpop.f32.mrf.mxu0
        %v3167 = vadd.f32 %v3041, %v3166
        %3168 = vmatmul.bf16.gmra.mxu0 %v3100
        %v3169 = vpop.f32.mrf.mxu0
        %v3170 = vadd.f32 %v3044, %v3169
        %v3171 = vpop.f32.mrf.mxu0
        %v3172 = vadd.f32 %v3046, %v3171
        %3173 = vmatmul.bf16.gmra.mxu0 %v3103
        %v3174 = vpop.f32.mrf.mxu0
        %v3175 = vadd.f32 %v3049, %v3174
        %v3176 = vpop.f32.mrf.mxu0
        %v3177 = vadd.f32 %v3051, %v3176
        %3178 = vmatmul.bf16.gmra.mxu0 %v3106
        %v3179 = vpop.f32.mrf.mxu0
        %v3180 = vadd.f32 %v3054, %v3179
        %v3181 = vpop.f32.mrf.mxu0
        %v3182 = vadd.f32 %v3056, %v3181
        %3183 = vmatmul.bf16.gmra.mxu0 %v3109
        %v3184 = vpop.f32.mrf.mxu0
        %v3185 = vadd.f32 %v3059, %v3184
        %v3186 = vpop.f32.mrf.mxu0
        %v3187 = vadd.f32 %v3061, %v3186
        %3188 = vdwg.mxu0
        %3201 = vrot.lane.b32.xlu0 %v2855, 126
        %v3202 = vpop.permute.xlu0 %3201
        %3203 = vrot.lane.b32.xlu0 %v2856, 126
        %v3204 = vpop.permute.xlu0 %3203
        %3205 = vrot.lane.b32.xlu0 %v2887, 126
        %v3206 = vpop.permute.xlu0 %3205
        %3207 = vrot.lane.b32.xlu0 %v2857, 126
        %v3208 = vpop.permute.xlu0 %3207
        %3209 = vrot.lane.b32.xlu0 %v2858, 126
        %v3210 = vpop.permute.xlu0 %3209
        %3211 = vrot.lane.b32.xlu0 %v2888, 126
        %v3212 = vpop.permute.xlu0 %3211
        %3213 = vrot.lane.b32.xlu0 %v2859, 126
        %v3214 = vpop.permute.xlu0 %3213
        %3215 = vrot.lane.b32.xlu0 %v2860, 126
        %v3216 = vpop.permute.xlu0 %3215
        %3217 = vrot.lane.b32.xlu0 %v2889, 126
        %v3218 = vpop.permute.xlu0 %3217
        %3219 = vrot.lane.b32.xlu0 %v2861, 126
        %v3220 = vpop.permute.xlu0 %3219
        %3221 = vrot.lane.b32.xlu0 %v2862, 126
        %v3222 = vpop.permute.xlu0 %3221
        %3223 = vrot.lane.b32.xlu0 %v2890, 126
        %v3224 = vpop.permute.xlu0 %3223
        %v3225 = vsel %vm832, %v3202, %v3204
        %v3226 = vsel %vm832, %v3204, %v3206
        %v3227 = vsel %vm832, %v3208, %v3210
        %v3228 = vsel %vm832, %v3210, %v3212
        %v3229 = vsel %vm832, %v3214, %v3216
        %v3230 = vsel %vm832, %v3216, %v3218
        %v3231 = vsel %vm832, %v3220, %v3222
        %v3232 = vsel %vm832, %v3222, %v3224
        %v3241 = vsel %vm816, %v3225, 0.0
        %v3242 = vsel %vm817, %v3226, 0.0
        %v3243 = vsel %vm816, %v3227, 0.0
        %v3244 = vsel %vm817, %v3228, 0.0
        %v3245 = vsel %vm816, %v3229, 0.0
        %v3246 = vsel %vm817, %v3230, 0.0
        %v3247 = vsel %vm816, %v3231, 0.0
        %v3248 = vsel %vm817, %v3232, 0.0
        %s3249 = scalar_lea.vmem %s4, 96
        %v3250 = vld [vmem:[%s3249] sm:$0xf]
        %v3251 = vld [vmem:[%s3249 + $0x4] sm:$0xf]
        %v3252 = vld [vmem:[%s3249 + $0x8] sm:$0xf]
        %v3253 = vld [vmem:[%s3249 + $0xc] sm:$0xf]
        %v3254 = vld [vmem:[%s3249 + $0x10] sm:$0xf]
        %v3255 = vld [vmem:[%s3249 + $0x14] sm:$0xf]
        %v3256 = vld [vmem:[%s3249 + $0x18] sm:$0xf]
        %v3257 = vld [vmem:[%s3249 + $0x1c] sm:$0xf]
        %v3258 = vld [vmem:[%s3249 + $0x20] sm:$0xf]
        %v3259 = vld [vmem:[%s3249 + $0x24] sm:$0xf]
        %v3260 = vld [vmem:[%s3249 + $0x28] sm:$0xf]
        %v3261 = vld [vmem:[%s3249 + $0x2c] sm:$0xf]
        %v3262 = vpack.c.bf16 %v3243, %v3241
        %v3263 = vpack.c.bf16 %v3244, %v3242
        %v3264 = vpack.c.bf16 %v3247, %v3245
        %v3265 = vpack.c.bf16 %v3248, %v3246
        %v3278 = vunpack.c.l.b16 %v3250
        %v3279 = vunpack.c.l.b16 %v3251
        %v3280 = vunpack.c.l.b16 %v3252
        %v3281 = vunpack.c.l.b16 %v3253
        %v3282 = vunpack.c.l.b16 %v3254
        %v3283 = vunpack.c.l.b16 %v3255
        %v3284 = vunpack.c.l.b16 %v3256
        %v3285 = vunpack.c.l.b16 %v3257
        %v3286 = vunpack.c.l.b16 %v3258
        %v3287 = vunpack.c.l.b16 %v3259
        %v3288 = vunpack.c.l.b16 %v3260
        %v3289 = vunpack.c.l.b16 %v3261
        %v3290 = vpack.c.b16 %v3279, %v3278
        %v3291 = vpack.c.b16 %v3281, %v3280
        %v3292 = vpack.c.b16 %v3283, %v3282
        %v3293 = vpack.c.b16 %v3285, %v3284
        %v3294 = vpack.c.b16 %v3287, %v3286
        %v3295 = vpack.c.b16 %v3289, %v3288
        %v3297 = vsel %vm2966, %v3290, 0
        %v3300 = vsel %vm2966, %v3291, 0
        %v3303 = vsel %vm2966, %v3292, 0
        %v3306 = vsel %vm2966, %v3293, 0
        %v3309 = vsel %vm2966, %v3294, 0
        %v3312 = vsel %vm2966, %v3295, 0
        %3314 = vmatpush.bf16.msra.mxu0 0
        %3315 = vmatpush.bf16.msra.mxu0 0
        %3316 = vmatpush.bf16.msra.mxu0 0
        %3317 = vmatpush.bf16.msra.mxu0 0
        %3318 = vmatpush.bf16.msra.mxu0 0
        %3319 = vmatpush.bf16.msra.mxu0 0
        %3320 = vmatpush.bf16.msra.mxu0 %v3264
        %3321 = vmatpush.bf16.msra.mxu0 %v3262
        %3322 = vmatmul.bf16.gmra.mxu0 %v3297
        %v3323 = vpop.f32.mrf.mxu0
        %v3324 = vadd.f32 0.0, %v3323
        %v3325 = vpop.f32.mrf.mxu0
        %v3326 = vadd.f32 0.0, %v3325
        %3327 = vmatmul.bf16.gmra.mxu0 %v3300
        %v3328 = vpop.f32.mrf.mxu0
        %v3329 = vadd.f32 0.0, %v3328
        %v3330 = vpop.f32.mrf.mxu0
        %v3331 = vadd.f32 0.0, %v3330
        %3332 = vmatmul.bf16.gmra.mxu0 %v3303
        %v3333 = vpop.f32.mrf.mxu0
        %v3334 = vadd.f32 0.0, %v3333
        %v3335 = vpop.f32.mrf.mxu0
        %v3336 = vadd.f32 0.0, %v3335
        %3337 = vmatmul.bf16.gmra.mxu0 %v3306
        %v3338 = vpop.f32.mrf.mxu0
        %v3339 = vadd.f32 0.0, %v3338
        %v3340 = vpop.f32.mrf.mxu0
        %v3341 = vadd.f32 0.0, %v3340
        %3342 = vmatmul.bf16.gmra.mxu0 %v3309
        %v3343 = vpop.f32.mrf.mxu0
        %v3344 = vadd.f32 0.0, %v3343
        %v3345 = vpop.f32.mrf.mxu0
        %v3346 = vadd.f32 0.0, %v3345
        %3347 = vmatmul.bf16.gmra.mxu0 %v3312
        %v3348 = vpop.f32.mrf.mxu0
        %v3349 = vadd.f32 0.0, %v3348
        %v3350 = vpop.f32.mrf.mxu0
        %v3351 = vadd.f32 0.0, %v3350
        %3352 = vdwg.mxu0
        %3353 = vmatpush.bf16.msra.mxu0 0
        %3354 = vmatpush.bf16.msra.mxu0 0
        %3355 = vmatpush.bf16.msra.mxu0 0
        %3356 = vmatpush.bf16.msra.mxu0 0
        %3357 = vmatpush.bf16.msra.mxu0 0
        %3358 = vmatpush.bf16.msra.mxu0 0
        %3359 = vmatpush.bf16.msra.mxu0 %v3265
        %3360 = vmatpush.bf16.msra.mxu0 %v3263
        %3361 = vmatmul.bf16.gmra.mxu0 %v3297
        %v3362 = vpop.f32.mrf.mxu0
        %v3363 = vadd.f32 0.0, %v3362
        %v3364 = vpop.f32.mrf.mxu0
        %v3365 = vadd.f32 0.0, %v3364
        %3366 = vmatmul.bf16.gmra.mxu0 %v3300
        %v3367 = vpop.f32.mrf.mxu0
        %v3368 = vadd.f32 0.0, %v3367
        %v3369 = vpop.f32.mrf.mxu0
        %v3370 = vadd.f32 0.0, %v3369
        %3371 = vmatmul.bf16.gmra.mxu0 %v3303
        %v3372 = vpop.f32.mrf.mxu0
        %v3373 = vadd.f32 0.0, %v3372
        %v3374 = vpop.f32.mrf.mxu0
        %v3375 = vadd.f32 0.0, %v3374
        %3376 = vmatmul.bf16.gmra.mxu0 %v3306
        %v3377 = vpop.f32.mrf.mxu0
        %v3378 = vadd.f32 0.0, %v3377
        %v3379 = vpop.f32.mrf.mxu0
        %v3380 = vadd.f32 0.0, %v3379
        %3381 = vmatmul.bf16.gmra.mxu0 %v3309
        %v3382 = vpop.f32.mrf.mxu0
        %v3383 = vadd.f32 0.0, %v3382
        %v3384 = vpop.f32.mrf.mxu0
        %v3385 = vadd.f32 0.0, %v3384
        %3386 = vmatmul.bf16.gmra.mxu0 %v3312
        %v3387 = vpop.f32.mrf.mxu0
        %v3388 = vadd.f32 0.0, %v3387
        %v3389 = vpop.f32.mrf.mxu0
        %v3390 = vadd.f32 0.0, %v3389
        %3391 = vdwg.mxu0
        %v3392 = vadd.f32 %v3121, %v3324
        %v3393 = vadd.f32 %v3160, %v3363
        %v3394 = vadd.f32 %v3123, %v3326
        %v3395 = vadd.f32 %v3162, %v3365
        %v3396 = vadd.f32 %v3126, %v3329
        %v3397 = vadd.f32 %v3165, %v3368
        %v3398 = vadd.f32 %v3128, %v3331
        %v3399 = vadd.f32 %v3167, %v3370
        %v3400 = vadd.f32 %v3131, %v3334
        %v3401 = vadd.f32 %v3170, %v3373
        %v3402 = vadd.f32 %v3133, %v3336
        %v3403 = vadd.f32 %v3172, %v3375
        %v3404 = vadd.f32 %v3136, %v3339
        %v3405 = vadd.f32 %v3175, %v3378
        %v3406 = vadd.f32 %v3138, %v3341
        %v3407 = vadd.f32 %v3177, %v3380
        %v3408 = vadd.f32 %v3141, %v3344
        %v3409 = vadd.f32 %v3180, %v3383
        %v3410 = vadd.f32 %v3143, %v3346
        %v3411 = vadd.f32 %v3182, %v3385
        %v3412 = vadd.f32 %v3146, %v3349
        %v3413 = vadd.f32 %v3185, %v3388
        %v3414 = vadd.f32 %v3148, %v3351
        %v3415 = vadd.f32 %v3187, %v3390
        %3416 = vrot.lane.b32.xlu0 %v2855, 112
        %v3417 = vpop.permute.xlu0 %3416
        %3418 = vrot.lane.b32.xlu0 %v2856, 112
        %v3419 = vpop.permute.xlu0 %3418
        %3420 = vrot.lane.b32.xlu0 %v2887, 112
        %v3421 = vpop.permute.xlu0 %3420
        %3422 = vrot.lane.b32.xlu0 %v2857, 112
        %v3423 = vpop.permute.xlu0 %3422
        %3424 = vrot.lane.b32.xlu0 %v2858, 112
        %v3425 = vpop.permute.xlu0 %3424
        %3426 = vrot.lane.b32.xlu0 %v2888, 112
        %v3427 = vpop.permute.xlu0 %3426
        %3428 = vrot.lane.b32.xlu0 %v2859, 112
        %v3429 = vpop.permute.xlu0 %3428
        %3430 = vrot.lane.b32.xlu0 %v2860, 112
        %v3431 = vpop.permute.xlu0 %3430
        %3432 = vrot.lane.b32.xlu0 %v2889, 112
        %v3433 = vpop.permute.xlu0 %3432
        %3434 = vrot.lane.b32.xlu0 %v2861, 112
        %v3435 = vpop.permute.xlu0 %3434
        %3436 = vrot.lane.b32.xlu0 %v2862, 112
        %v3437 = vpop.permute.xlu0 %3436
        %3438 = vrot.lane.b32.xlu0 %v2890, 112
        %v3439 = vpop.permute.xlu0 %3438
        %v3440 = vsel %vm1074, %v3417, %v3419
        %v3441 = vsel %vm1074, %v3419, %v3421
        %v3442 = vsel %vm1074, %v3423, %v3425
        %v3443 = vsel %vm1074, %v3425, %v3427
        %v3444 = vsel %vm1074, %v3429, %v3431
        %v3445 = vsel %vm1074, %v3431, %v3433
        %v3446 = vsel %vm1074, %v3435, %v3437
        %v3447 = vsel %vm1074, %v3437, %v3439
        %v3456 = vsel %vm397, %v3440, 0.0
        %v3457 = vsel %vm398, %v3441, 0.0
        %v3458 = vsel %vm397, %v3442, 0.0
        %v3459 = vsel %vm398, %v3443, 0.0
        %v3460 = vsel %vm397, %v3444, 0.0
        %v3461 = vsel %vm398, %v3445, 0.0
        %v3462 = vsel %vm397, %v3446, 0.0
        %v3463 = vsel %vm398, %v3447, 0.0
        %s3464 = scalar_lea.vmem %s4, 144
        %v3465 = vld [vmem:[%s3464] sm:$0xf]
        %v3466 = vld [vmem:[%s3464 + $0x4] sm:$0xf]
        %v3467 = vld [vmem:[%s3464 + $0x8] sm:$0xf]
        %v3468 = vld [vmem:[%s3464 + $0xc] sm:$0xf]
        %v3469 = vld [vmem:[%s3464 + $0x10] sm:$0xf]
        %v3470 = vld [vmem:[%s3464 + $0x14] sm:$0xf]
        %v3471 = vld [vmem:[%s3464 + $0x18] sm:$0xf]
        %v3472 = vld [vmem:[%s3464 + $0x1c] sm:$0xf]
        %v3473 = vld [vmem:[%s3464 + $0x20] sm:$0xf]
        %v3474 = vld [vmem:[%s3464 + $0x24] sm:$0xf]
        %v3475 = vld [vmem:[%s3464 + $0x28] sm:$0xf]
        %v3476 = vld [vmem:[%s3464 + $0x2c] sm:$0xf]
        %v3477 = vpack.c.bf16 %v3458, %v3456
        %v3478 = vpack.c.bf16 %v3459, %v3457
        %v3479 = vpack.c.bf16 %v3462, %v3460
        %v3480 = vpack.c.bf16 %v3463, %v3461
        %v3493 = vunpack.c.l.b16 %v3465
        %v3494 = vunpack.c.l.b16 %v3466
        %v3495 = vunpack.c.l.b16 %v3467
        %v3496 = vunpack.c.l.b16 %v3468
        %v3497 = vunpack.c.l.b16 %v3469
        %v3498 = vunpack.c.l.b16 %v3470
        %v3499 = vunpack.c.l.b16 %v3471
        %v3500 = vunpack.c.l.b16 %v3472
        %v3501 = vunpack.c.l.b16 %v3473
        %v3502 = vunpack.c.l.b16 %v3474
        %v3503 = vunpack.c.l.b16 %v3475
        %v3504 = vunpack.c.l.b16 %v3476
        %v3505 = vpack.c.b16 %v3494, %v3493
        %v3506 = vpack.c.b16 %v3496, %v3495
        %v3507 = vpack.c.b16 %v3498, %v3497
        %v3508 = vpack.c.b16 %v3500, %v3499
        %v3509 = vpack.c.b16 %v3502, %v3501
        %v3510 = vpack.c.b16 %v3504, %v3503
        %v3512 = vsel %vm2966, %v3505, 0
        %v3515 = vsel %vm2966, %v3506, 0
        %v3518 = vsel %vm2966, %v3507, 0
        %v3521 = vsel %vm2966, %v3508, 0
        %v3524 = vsel %vm2966, %v3509, 0
        %v3527 = vsel %vm2966, %v3510, 0
        %3529 = vmatpush.bf16.msra.mxu0 0
        %3530 = vmatpush.bf16.msra.mxu0 0
        %3531 = vmatpush.bf16.msra.mxu0 0
        %3532 = vmatpush.bf16.msra.mxu0 0
        %3533 = vmatpush.bf16.msra.mxu0 0
        %3534 = vmatpush.bf16.msra.mxu0 0
        %3535 = vmatpush.bf16.msra.mxu0 %v3479
        %3536 = vmatpush.bf16.msra.mxu0 %v3477
        %3537 = vmatmul.bf16.gmra.mxu0 %v3512
        %v3538 = vpop.f32.mrf.mxu0
        %v3539 = vadd.f32 0.0, %v3538
        %v3540 = vpop.f32.mrf.mxu0
        %v3541 = vadd.f32 0.0, %v3540
        %3542 = vmatmul.bf16.gmra.mxu0 %v3515
        %v3543 = vpop.f32.mrf.mxu0
        %v3544 = vadd.f32 0.0, %v3543
        %v3545 = vpop.f32.mrf.mxu0
        %v3546 = vadd.f32 0.0, %v3545
        %3547 = vmatmul.bf16.gmra.mxu0 %v3518
        %v3548 = vpop.f32.mrf.mxu0
        %v3549 = vadd.f32 0.0, %v3548
        %v3550 = vpop.f32.mrf.mxu0
        %v3551 = vadd.f32 0.0, %v3550
        %3552 = vmatmul.bf16.gmra.mxu0 %v3521
        %v3553 = vpop.f32.mrf.mxu0
        %v3554 = vadd.f32 0.0, %v3553
        %v3555 = vpop.f32.mrf.mxu0
        %v3556 = vadd.f32 0.0, %v3555
        %3557 = vmatmul.bf16.gmra.mxu0 %v3524
        %v3558 = vpop.f32.mrf.mxu0
        %v3559 = vadd.f32 0.0, %v3558
        %v3560 = vpop.f32.mrf.mxu0
        %v3561 = vadd.f32 0.0, %v3560
        %3562 = vmatmul.bf16.gmra.mxu0 %v3527
        %v3563 = vpop.f32.mrf.mxu0
        %v3564 = vadd.f32 0.0, %v3563
        %v3565 = vpop.f32.mrf.mxu0
        %v3566 = vadd.f32 0.0, %v3565
        %3567 = vdwg.mxu0
        %3568 = vmatpush.bf16.msra.mxu0 0
        %3569 = vmatpush.bf16.msra.mxu0 0
        %3570 = vmatpush.bf16.msra.mxu0 0
        %3571 = vmatpush.bf16.msra.mxu0 0
        %3572 = vmatpush.bf16.msra.mxu0 0
        %3573 = vmatpush.bf16.msra.mxu0 0
        %3574 = vmatpush.bf16.msra.mxu0 %v3480
        %3575 = vmatpush.bf16.msra.mxu0 %v3478
        %3576 = vmatmul.bf16.gmra.mxu0 %v3512
        %v3577 = vpop.f32.mrf.mxu0
        %v3578 = vadd.f32 0.0, %v3577
        %v3579 = vpop.f32.mrf.mxu0
        %v3580 = vadd.f32 0.0, %v3579
        %3581 = vmatmul.bf16.gmra.mxu0 %v3515
        %v3582 = vpop.f32.mrf.mxu0
        %v3583 = vadd.f32 0.0, %v3582
        %v3584 = vpop.f32.mrf.mxu0
        %v3585 = vadd.f32 0.0, %v3584
        %3586 = vmatmul.bf16.gmra.mxu0 %v3518
        %v3587 = vpop.f32.mrf.mxu0
        %v3588 = vadd.f32 0.0, %v3587
        %v3589 = vpop.f32.mrf.mxu0
        %v3590 = vadd.f32 0.0, %v3589
        %3591 = vmatmul.bf16.gmra.mxu0 %v3521
        %v3592 = vpop.f32.mrf.mxu0
        %v3593 = vadd.f32 0.0, %v3592
        %v3594 = vpop.f32.mrf.mxu0
        %v3595 = vadd.f32 0.0, %v3594
        %3596 = vmatmul.bf16.gmra.mxu0 %v3524
        %v3597 = vpop.f32.mrf.mxu0
        %v3598 = vadd.f32 0.0, %v3597
        %v3599 = vpop.f32.mrf.mxu0
        %v3600 = vadd.f32 0.0, %v3599
        %3601 = vmatmul.bf16.gmra.mxu0 %v3527
        %v3602 = vpop.f32.mrf.mxu0
        %v3603 = vadd.f32 0.0, %v3602
        %v3604 = vpop.f32.mrf.mxu0
        %v3605 = vadd.f32 0.0, %v3604
        %3606 = vdwg.mxu0
        %v3607 = vadd.f32 %v3392, %v3539
        %v3608 = vadd.f32 %v3393, %v3578
        %v3609 = vadd.f32 %v3394, %v3541
        %v3610 = vadd.f32 %v3395, %v3580
        %v3611 = vadd.f32 %v3396, %v3544
        %v3612 = vadd.f32 %v3397, %v3583
        %v3613 = vadd.f32 %v3398, %v3546
        %v3614 = vadd.f32 %v3399, %v3585
        %v3615 = vadd.f32 %v3400, %v3549
        %v3616 = vadd.f32 %v3401, %v3588
        %v3617 = vadd.f32 %v3402, %v3551
        %v3618 = vadd.f32 %v3403, %v3590
        %v3619 = vadd.f32 %v3404, %v3554
        %v3620 = vadd.f32 %v3405, %v3593
        %v3621 = vadd.f32 %v3406, %v3556
        %v3622 = vadd.f32 %v3407, %v3595
        %v3623 = vadd.f32 %v3408, %v3559
        %v3624 = vadd.f32 %v3409, %v3598
        %v3625 = vadd.f32 %v3410, %v3561
        %v3626 = vadd.f32 %v3411, %v3600
        %v3627 = vadd.f32 %v3412, %v3564
        %v3628 = vadd.f32 %v3413, %v3603
        %v3629 = vadd.f32 %v3414, %v3566
        %v3630 = vadd.f32 %v3415, %v3605
        %s3631 = scalar_lea.vmem %s4, 192
        %v3632 = vld [vmem:[%s3631] sm:$0xf]
        %v3633 = vld [vmem:[%s3631 + $0x4] sm:$0xf]
        %v3634 = vld [vmem:[%s3631 + $0x8] sm:$0xf]
        %v3635 = vld [vmem:[%s3631 + $0xc] sm:$0xf]
        %v3636 = vld [vmem:[%s3631 + $0x10] sm:$0xf]
        %v3637 = vld [vmem:[%s3631 + $0x14] sm:$0xf]
        %v3638 = vld [vmem:[%s3631 + $0x18] sm:$0xf]
        %v3639 = vld [vmem:[%s3631 + $0x1c] sm:$0xf]
        %v3640 = vld [vmem:[%s3631 + $0x20] sm:$0xf]
        %v3641 = vld [vmem:[%s3631 + $0x24] sm:$0xf]
        %v3642 = vld [vmem:[%s3631 + $0x28] sm:$0xf]
        %v3643 = vld [vmem:[%s3631 + $0x2c] sm:$0xf]
        %v3656 = vunpack.c.l.b16 %v3632
        %v3657 = vunpack.c.l.b16 %v3633
        %v3658 = vunpack.c.l.b16 %v3634
        %v3659 = vunpack.c.l.b16 %v3635
        %v3660 = vunpack.c.l.b16 %v3636
        %v3661 = vunpack.c.l.b16 %v3637
        %v3662 = vunpack.c.l.b16 %v3638
        %v3663 = vunpack.c.l.b16 %v3639
        %v3664 = vunpack.c.l.b16 %v3640
        %v3665 = vunpack.c.l.b16 %v3641
        %v3666 = vunpack.c.l.b16 %v3642
        %v3667 = vunpack.c.l.b16 %v3643
        %v3668 = vpack.c.b16 %v3657, %v3656
        %v3669 = vpack.c.b16 %v3659, %v3658
        %v3670 = vpack.c.b16 %v3661, %v3660
        %v3671 = vpack.c.b16 %v3663, %v3662
        %v3672 = vpack.c.b16 %v3665, %v3664
        %v3673 = vpack.c.b16 %v3667, %v3666
        %3674 = vrot.lane.b32.xlu0 %v2904, 111
        %v3675 = vpop.permute.xlu0 %3674
        %3676 = vrot.lane.b32.xlu0 %v2905, 111
        %v3677 = vpop.permute.xlu0 %3676
        %3678 = vrot.lane.b32.xlu0 %v2906, 111
        %v3679 = vpop.permute.xlu0 %3678
        %3680 = vrot.lane.b32.xlu0 %v2907, 111
        %v3681 = vpop.permute.xlu0 %3680
        %3682 = vrot.lane.b32.xlu0 %v2908, 111
        %v3683 = vpop.permute.xlu0 %3682
        %3684 = vrot.lane.b32.xlu0 %v2909, 111
        %v3685 = vpop.permute.xlu0 %3684
        %v3686 = vsel %vm1382, %v3675, %v3677
        %v3687 = vsel %vm1382, %v3677, %v3679
        %v3688 = vsel %vm1382, %v3681, %v3683
        %v3689 = vsel %vm1382, %v3683, %v3685
        %v3695 = vsel %vm2966, %v3668, 0
        %v3698 = vsel %vm2966, %v3669, 0
        %v3701 = vsel %vm2966, %v3670, 0
        %v3704 = vsel %vm2966, %v3671, 0
        %v3707 = vsel %vm2966, %v3672, 0
        %v3710 = vsel %vm2966, %v3673, 0
        %3712 = vmatpush.bf16.msra.mxu0 0
        %3713 = vmatpush.bf16.msra.mxu0 0
        %3714 = vmatpush.bf16.msra.mxu0 0
        %3715 = vmatpush.bf16.msra.mxu0 0
        %3716 = vmatpush.bf16.msra.mxu0 0
        %3717 = vmatpush.bf16.msra.mxu0 0
        %3718 = vmatpush.bf16.msra.mxu0 %v3688
        %3719 = vmatpush.bf16.msra.mxu0 %v3686
        %3720 = vmatmul.bf16.gmra.mxu0 %v3695
        %v3721 = vpop.f32.mrf.mxu0
        %v3722 = vadd.f32 0.0, %v3721
        %v3723 = vpop.f32.mrf.mxu0
        %v3724 = vadd.f32 0.0, %v3723
        %3725 = vmatmul.bf16.gmra.mxu0 %v3698
        %v3726 = vpop.f32.mrf.mxu0
        %v3727 = vadd.f32 0.0, %v3726
        %v3728 = vpop.f32.mrf.mxu0
        %v3729 = vadd.f32 0.0, %v3728
        %3730 = vmatmul.bf16.gmra.mxu0 %v3701
        %v3731 = vpop.f32.mrf.mxu0
        %v3732 = vadd.f32 0.0, %v3731
        %v3733 = vpop.f32.mrf.mxu0
        %v3734 = vadd.f32 0.0, %v3733
        %3735 = vmatmul.bf16.gmra.mxu0 %v3704
        %v3736 = vpop.f32.mrf.mxu0
        %v3737 = vadd.f32 0.0, %v3736
        %v3738 = vpop.f32.mrf.mxu0
        %v3739 = vadd.f32 0.0, %v3738
        %3740 = vmatmul.bf16.gmra.mxu0 %v3707
        %v3741 = vpop.f32.mrf.mxu0
        %v3742 = vadd.f32 0.0, %v3741
        %v3743 = vpop.f32.mrf.mxu0
        %v3744 = vadd.f32 0.0, %v3743
        %3745 = vmatmul.bf16.gmra.mxu0 %v3710
        %v3746 = vpop.f32.mrf.mxu0
        %v3747 = vadd.f32 0.0, %v3746
        %v3748 = vpop.f32.mrf.mxu0
        %v3749 = vadd.f32 0.0, %v3748
        %3750 = vdwg.mxu0
        %3751 = vmatpush.bf16.msra.mxu0 0
        %3752 = vmatpush.bf16.msra.mxu0 0
        %3753 = vmatpush.bf16.msra.mxu0 0
        %3754 = vmatpush.bf16.msra.mxu0 0
        %3755 = vmatpush.bf16.msra.mxu0 0
        %3756 = vmatpush.bf16.msra.mxu0 0
        %3757 = vmatpush.bf16.msra.mxu0 %v3689
        %3758 = vmatpush.bf16.msra.mxu0 %v3687
        %3759 = vmatmul.bf16.gmra.mxu0 %v3695
        %v3760 = vpop.f32.mrf.mxu0
        %v3761 = vadd.f32 0.0, %v3760
        %v3762 = vpop.f32.mrf.mxu0
        %v3763 = vadd.f32 0.0, %v3762
        %3764 = vmatmul.bf16.gmra.mxu0 %v3698
        %v3765 = vpop.f32.mrf.mxu0
        %v3766 = vadd.f32 0.0, %v3765
        %v3767 = vpop.f32.mrf.mxu0
        %v3768 = vadd.f32 0.0, %v3767
        %3769 = vmatmul.bf16.gmra.mxu0 %v3701
        %v3770 = vpop.f32.mrf.mxu0
        %v3771 = vadd.f32 0.0, %v3770
        %v3772 = vpop.f32.mrf.mxu0
        %v3773 = vadd.f32 0.0, %v3772
        %3774 = vmatmul.bf16.gmra.mxu0 %v3704
        %v3775 = vpop.f32.mrf.mxu0
        %v3776 = vadd.f32 0.0, %v3775
        %v3777 = vpop.f32.mrf.mxu0
        %v3778 = vadd.f32 0.0, %v3777
        %3779 = vmatmul.bf16.gmra.mxu0 %v3707
        %v3780 = vpop.f32.mrf.mxu0
        %v3781 = vadd.f32 0.0, %v3780
        %v3782 = vpop.f32.mrf.mxu0
        %v3783 = vadd.f32 0.0, %v3782
        %3784 = vmatmul.bf16.gmra.mxu0 %v3710
        %v3785 = vpop.f32.mrf.mxu0
        %v3786 = vadd.f32 0.0, %v3785
        %v3787 = vpop.f32.mrf.mxu0
        %v3788 = vadd.f32 0.0, %v3787
        %3789 = vdwg.mxu0
        %v3790 = vadd.f32 %v3607, %v3722
        %v3791 = vadd.f32 %v3608, %v3761
        %v3792 = vadd.f32 %v3609, %v3724
        %v3793 = vadd.f32 %v3610, %v3763
        %v3794 = vadd.f32 %v3611, %v3727
        %v3795 = vadd.f32 %v3612, %v3766
        %v3796 = vadd.f32 %v3613, %v3729
        %v3797 = vadd.f32 %v3614, %v3768
        %v3798 = vadd.f32 %v3615, %v3732
        %v3799 = vadd.f32 %v3616, %v3771
        %v3800 = vadd.f32 %v3617, %v3734
        %v3801 = vadd.f32 %v3618, %v3773
        %v3802 = vadd.f32 %v3619, %v3737
        %v3803 = vadd.f32 %v3620, %v3776
        %v3804 = vadd.f32 %v3621, %v3739
        %v3805 = vadd.f32 %v3622, %v3778
        %v3806 = vadd.f32 %v3623, %v3742
        %v3807 = vadd.f32 %v3624, %v3781
        %v3808 = vadd.f32 %v3625, %v3744
        %v3809 = vadd.f32 %v3626, %v3783
        %v3810 = vadd.f32 %v3627, %v3747
        %v3811 = vadd.f32 %v3628, %v3786
        %v3812 = vadd.f32 %v3629, %v3749
        %v3813 = vadd.f32 %v3630, %v3788
        %3814 = vrot.lane.b32.xlu0 %v2855, 110
        %v3815 = vpop.permute.xlu0 %3814
        %3816 = vrot.lane.b32.xlu0 %v2856, 110
        %v3817 = vpop.permute.xlu0 %3816
        %3818 = vrot.lane.b32.xlu0 %v2887, 110
        %v3819 = vpop.permute.xlu0 %3818
        %3820 = vrot.lane.b32.xlu0 %v2857, 110
        %v3821 = vpop.permute.xlu0 %3820
        %3822 = vrot.lane.b32.xlu0 %v2858, 110
        %v3823 = vpop.permute.xlu0 %3822
        %3824 = vrot.lane.b32.xlu0 %v2888, 110
        %v3825 = vpop.permute.xlu0 %3824
        %3826 = vrot.lane.b32.xlu0 %v2859, 110
        %v3827 = vpop.permute.xlu0 %3826
        %3828 = vrot.lane.b32.xlu0 %v2860, 110
        %v3829 = vpop.permute.xlu0 %3828
        %3830 = vrot.lane.b32.xlu0 %v2889, 110
        %v3831 = vpop.permute.xlu0 %3830
        %3832 = vrot.lane.b32.xlu0 %v2861, 110
        %v3833 = vpop.permute.xlu0 %3832
        %3834 = vrot.lane.b32.xlu0 %v2862, 110
        %v3835 = vpop.permute.xlu0 %3834
        %3836 = vrot.lane.b32.xlu0 %v2890, 110
        %v3837 = vpop.permute.xlu0 %3836
        %v3838 = vsel %vm1561, %v3815, %v3817
        %v3839 = vsel %vm1561, %v3817, %v3819
        %v3840 = vsel %vm1561, %v3821, %v3823
        %v3841 = vsel %vm1561, %v3823, %v3825
        %v3842 = vsel %vm1561, %v3827, %v3829
        %v3843 = vsel %vm1561, %v3829, %v3831
        %v3844 = vsel %vm1561, %v3833, %v3835
        %v3845 = vsel %vm1561, %v3835, %v3837
        %v3854 = vsel %vm816, %v3838, 0.0
        %v3855 = vsel %vm817, %v3839, 0.0
        %v3856 = vsel %vm816, %v3840, 0.0
        %v3857 = vsel %vm817, %v3841, 0.0
        %v3858 = vsel %vm816, %v3842, 0.0
        %v3859 = vsel %vm817, %v3843, 0.0
        %v3860 = vsel %vm816, %v3844, 0.0
        %v3861 = vsel %vm817, %v3845, 0.0
        %s3862 = scalar_lea.vmem %s4, 240
        %v3863 = vld [vmem:[%s3862] sm:$0xf]
        %v3864 = vld [vmem:[%s3862 + $0x4] sm:$0xf]
        %v3865 = vld [vmem:[%s3862 + $0x8] sm:$0xf]
        %v3866 = vld [vmem:[%s3862 + $0xc] sm:$0xf]
        %v3867 = vld [vmem:[%s3862 + $0x10] sm:$0xf]
        %v3868 = vld [vmem:[%s3862 + $0x14] sm:$0xf]
        %v3869 = vld [vmem:[%s3862 + $0x18] sm:$0xf]
        %v3870 = vld [vmem:[%s3862 + $0x1c] sm:$0xf]
        %v3871 = vld [vmem:[%s3862 + $0x20] sm:$0xf]
        %v3872 = vld [vmem:[%s3862 + $0x24] sm:$0xf]
        %v3873 = vld [vmem:[%s3862 + $0x28] sm:$0xf]
        %v3874 = vld [vmem:[%s3862 + $0x2c] sm:$0xf]
        %v3875 = vpack.c.bf16 %v3856, %v3854
        %v3876 = vpack.c.bf16 %v3857, %v3855
        %v3877 = vpack.c.bf16 %v3860, %v3858
        %v3878 = vpack.c.bf16 %v3861, %v3859
        %v3891 = vunpack.c.l.b16 %v3863
        %v3892 = vunpack.c.l.b16 %v3864
        %v3893 = vunpack.c.l.b16 %v3865
        %v3894 = vunpack.c.l.b16 %v3866
        %v3895 = vunpack.c.l.b16 %v3867
        %v3896 = vunpack.c.l.b16 %v3868
        %v3897 = vunpack.c.l.b16 %v3869
        %v3898 = vunpack.c.l.b16 %v3870
        %v3899 = vunpack.c.l.b16 %v3871
        %v3900 = vunpack.c.l.b16 %v3872
        %v3901 = vunpack.c.l.b16 %v3873
        %v3902 = vunpack.c.l.b16 %v3874
        %v3903 = vpack.c.b16 %v3892, %v3891
        %v3904 = vpack.c.b16 %v3894, %v3893
        %v3905 = vpack.c.b16 %v3896, %v3895
        %v3906 = vpack.c.b16 %v3898, %v3897
        %v3907 = vpack.c.b16 %v3900, %v3899
        %v3908 = vpack.c.b16 %v3902, %v3901
        %v3910 = vsel %vm2966, %v3903, 0
        %v3913 = vsel %vm2966, %v3904, 0
        %v3916 = vsel %vm2966, %v3905, 0
        %v3919 = vsel %vm2966, %v3906, 0
        %v3922 = vsel %vm2966, %v3907, 0
        %v3925 = vsel %vm2966, %v3908, 0
        %3927 = vmatpush.bf16.msra.mxu0 0
        %3928 = vmatpush.bf16.msra.mxu0 0
        %3929 = vmatpush.bf16.msra.mxu0 0
        %3930 = vmatpush.bf16.msra.mxu0 0
        %3931 = vmatpush.bf16.msra.mxu0 0
        %3932 = vmatpush.bf16.msra.mxu0 0
        %3933 = vmatpush.bf16.msra.mxu0 %v3877
        %3934 = vmatpush.bf16.msra.mxu0 %v3875
        %3935 = vmatmul.bf16.gmra.mxu0 %v3910
        %v3936 = vpop.f32.mrf.mxu0
        %v3937 = vadd.f32 0.0, %v3936
        %v3938 = vpop.f32.mrf.mxu0
        %v3939 = vadd.f32 0.0, %v3938
        %3940 = vmatmul.bf16.gmra.mxu0 %v3913
        %v3941 = vpop.f32.mrf.mxu0
        %v3942 = vadd.f32 0.0, %v3941
        %v3943 = vpop.f32.mrf.mxu0
        %v3944 = vadd.f32 0.0, %v3943
        %3945 = vmatmul.bf16.gmra.mxu0 %v3916
        %v3946 = vpop.f32.mrf.mxu0
        %v3947 = vadd.f32 0.0, %v3946
        %v3948 = vpop.f32.mrf.mxu0
        %v3949 = vadd.f32 0.0, %v3948
        %3950 = vmatmul.bf16.gmra.mxu0 %v3919
        %v3951 = vpop.f32.mrf.mxu0
        %v3952 = vadd.f32 0.0, %v3951
        %v3953 = vpop.f32.mrf.mxu0
        %v3954 = vadd.f32 0.0, %v3953
        %3955 = vmatmul.bf16.gmra.mxu0 %v3922
        %v3956 = vpop.f32.mrf.mxu0
        %v3957 = vadd.f32 0.0, %v3956
        %v3958 = vpop.f32.mrf.mxu0
        %v3959 = vadd.f32 0.0, %v3958
        %3960 = vmatmul.bf16.gmra.mxu0 %v3925
        %v3961 = vpop.f32.mrf.mxu0
        %v3962 = vadd.f32 0.0, %v3961
        %v3963 = vpop.f32.mrf.mxu0
        %v3964 = vadd.f32 0.0, %v3963
        %3965 = vdwg.mxu0
        %3966 = vmatpush.bf16.msra.mxu0 0
        %3967 = vmatpush.bf16.msra.mxu0 0
        %3968 = vmatpush.bf16.msra.mxu0 0
        %3969 = vmatpush.bf16.msra.mxu0 0
        %3970 = vmatpush.bf16.msra.mxu0 0
        %3971 = vmatpush.bf16.msra.mxu0 0
        %3972 = vmatpush.bf16.msra.mxu0 %v3878
        %3973 = vmatpush.bf16.msra.mxu0 %v3876
        %3974 = vmatmul.bf16.gmra.mxu0 %v3910
        %v3975 = vpop.f32.mrf.mxu0
        %v3976 = vadd.f32 0.0, %v3975
        %v3977 = vpop.f32.mrf.mxu0
        %v3978 = vadd.f32 0.0, %v3977
        %3979 = vmatmul.bf16.gmra.mxu0 %v3913
        %v3980 = vpop.f32.mrf.mxu0
        %v3981 = vadd.f32 0.0, %v3980
        %v3982 = vpop.f32.mrf.mxu0
        %v3983 = vadd.f32 0.0, %v3982
        %3984 = vmatmul.bf16.gmra.mxu0 %v3916
        %v3985 = vpop.f32.mrf.mxu0
        %v3986 = vadd.f32 0.0, %v3985
        %v3987 = vpop.f32.mrf.mxu0
        %v3988 = vadd.f32 0.0, %v3987
        %3989 = vmatmul.bf16.gmra.mxu0 %v3919
        %v3990 = vpop.f32.mrf.mxu0
        %v3991 = vadd.f32 0.0, %v3990
        %v3992 = vpop.f32.mrf.mxu0
        %v3993 = vadd.f32 0.0, %v3992
        %3994 = vmatmul.bf16.gmra.mxu0 %v3922
        %v3995 = vpop.f32.mrf.mxu0
        %v3996 = vadd.f32 0.0, %v3995
        %v3997 = vpop.f32.mrf.mxu0
        %v3998 = vadd.f32 0.0, %v3997
        %3999 = vmatmul.bf16.gmra.mxu0 %v3925
        %v4000 = vpop.f32.mrf.mxu0
        %v4001 = vadd.f32 0.0, %v4000
        %v4002 = vpop.f32.mrf.mxu0
        %v4003 = vadd.f32 0.0, %v4002
        %4004 = vdwg.mxu0
        %v4005 = vadd.f32 %v3790, %v3937
        %v4006 = vadd.f32 %v3791, %v3976
        %v4007 = vadd.f32 %v3792, %v3939
        %v4008 = vadd.f32 %v3793, %v3978
        %v4009 = vadd.f32 %v3794, %v3942
        %v4010 = vadd.f32 %v3795, %v3981
        %v4011 = vadd.f32 %v3796, %v3944
        %v4012 = vadd.f32 %v3797, %v3983
        %v4013 = vadd.f32 %v3798, %v3947
        %v4014 = vadd.f32 %v3799, %v3986
        %v4015 = vadd.f32 %v3800, %v3949
        %v4016 = vadd.f32 %v3801, %v3988
        %v4017 = vadd.f32 %v3802, %v3952
        %v4018 = vadd.f32 %v3803, %v3991
        %v4019 = vadd.f32 %v3804, %v3954
        %v4020 = vadd.f32 %v3805, %v3993
        %v4021 = vadd.f32 %v3806, %v3957
        %v4022 = vadd.f32 %v3807, %v3996
        %v4023 = vadd.f32 %v3808, %v3959
        %v4024 = vadd.f32 %v3809, %v3998
        %v4025 = vadd.f32 %v3810, %v3962
        %v4026 = vadd.f32 %v3811, %v4001
        %v4027 = vadd.f32 %v3812, %v3964
        %v4028 = vadd.f32 %v3813, %v4003
        %4029 = vrot.lane.b32.xlu0 %v2855, 96
        %v4030 = vpop.permute.xlu0 %4029
        %4031 = vrot.lane.b32.xlu0 %v2856, 96
        %v4032 = vpop.permute.xlu0 %4031
        %4033 = vrot.lane.b32.xlu0 %v2887, 96
        %v4034 = vpop.permute.xlu0 %4033
        %4035 = vrot.lane.b32.xlu0 %v2857, 96
        %v4036 = vpop.permute.xlu0 %4035
        %4037 = vrot.lane.b32.xlu0 %v2858, 96
        %v4038 = vpop.permute.xlu0 %4037
        %4039 = vrot.lane.b32.xlu0 %v2888, 96
        %v4040 = vpop.permute.xlu0 %4039
        %4041 = vrot.lane.b32.xlu0 %v2859, 96
        %v4042 = vpop.permute.xlu0 %4041
        %4043 = vrot.lane.b32.xlu0 %v2860, 96
        %v4044 = vpop.permute.xlu0 %4043
        %4045 = vrot.lane.b32.xlu0 %v2889, 96
        %v4046 = vpop.permute.xlu0 %4045
        %4047 = vrot.lane.b32.xlu0 %v2861, 96
        %v4048 = vpop.permute.xlu0 %4047
        %4049 = vrot.lane.b32.xlu0 %v2862, 96
        %v4050 = vpop.permute.xlu0 %4049
        %4051 = vrot.lane.b32.xlu0 %v2890, 96
        %v4052 = vpop.permute.xlu0 %4051
        %v4053 = vsel %vm1803, %v4030, %v4032
        %v4054 = vsel %vm1803, %v4032, %v4034
        %v4055 = vsel %vm1803, %v4036, %v4038
        %v4056 = vsel %vm1803, %v4038, %v4040
        %v4057 = vsel %vm1803, %v4042, %v4044
        %v4058 = vsel %vm1803, %v4044, %v4046
        %v4059 = vsel %vm1803, %v4048, %v4050
        %v4060 = vsel %vm1803, %v4050, %v4052
        %v4069 = vsel %vm397, %v4053, 0.0
        %v4070 = vsel %vm398, %v4054, 0.0
        %v4071 = vsel %vm397, %v4055, 0.0
        %v4072 = vsel %vm398, %v4056, 0.0
        %v4073 = vsel %vm397, %v4057, 0.0
        %v4074 = vsel %vm398, %v4058, 0.0
        %v4075 = vsel %vm397, %v4059, 0.0
        %v4076 = vsel %vm398, %v4060, 0.0
        %s4077 = scalar_lea.vmem %s4, 288
        %v4078 = vld [vmem:[%s4077] sm:$0xf]
        %v4079 = vld [vmem:[%s4077 + $0x4] sm:$0xf]
        %v4080 = vld [vmem:[%s4077 + $0x8] sm:$0xf]
        %v4081 = vld [vmem:[%s4077 + $0xc] sm:$0xf]
        %v4082 = vld [vmem:[%s4077 + $0x10] sm:$0xf]
        %v4083 = vld [vmem:[%s4077 + $0x14] sm:$0xf]
        %v4084 = vld [vmem:[%s4077 + $0x18] sm:$0xf]
        %v4085 = vld [vmem:[%s4077 + $0x1c] sm:$0xf]
        %v4086 = vld [vmem:[%s4077 + $0x20] sm:$0xf]
        %v4087 = vld [vmem:[%s4077 + $0x24] sm:$0xf]
        %v4088 = vld [vmem:[%s4077 + $0x28] sm:$0xf]
        %v4089 = vld [vmem:[%s4077 + $0x2c] sm:$0xf]
        %v4090 = vpack.c.bf16 %v4071, %v4069
        %v4091 = vpack.c.bf16 %v4072, %v4070
        %v4092 = vpack.c.bf16 %v4075, %v4073
        %v4093 = vpack.c.bf16 %v4076, %v4074
        %v4106 = vunpack.c.l.b16 %v4078
        %v4107 = vunpack.c.l.b16 %v4079
        %v4108 = vunpack.c.l.b16 %v4080
        %v4109 = vunpack.c.l.b16 %v4081
        %v4110 = vunpack.c.l.b16 %v4082
        %v4111 = vunpack.c.l.b16 %v4083
        %v4112 = vunpack.c.l.b16 %v4084
        %v4113 = vunpack.c.l.b16 %v4085
        %v4114 = vunpack.c.l.b16 %v4086
        %v4115 = vunpack.c.l.b16 %v4087
        %v4116 = vunpack.c.l.b16 %v4088
        %v4117 = vunpack.c.l.b16 %v4089
        %v4118 = vpack.c.b16 %v4107, %v4106
        %v4119 = vpack.c.b16 %v4109, %v4108
        %v4120 = vpack.c.b16 %v4111, %v4110
        %v4121 = vpack.c.b16 %v4113, %v4112
        %v4122 = vpack.c.b16 %v4115, %v4114
        %v4123 = vpack.c.b16 %v4117, %v4116
        %v4125 = vsel %vm2966, %v4118, 0
        %v4128 = vsel %vm2966, %v4119, 0
        %v4131 = vsel %vm2966, %v4120, 0
        %v4134 = vsel %vm2966, %v4121, 0
        %v4137 = vsel %vm2966, %v4122, 0
        %v4140 = vsel %vm2966, %v4123, 0
        %4142 = vmatpush.bf16.msra.mxu0 0
        %4143 = vmatpush.bf16.msra.mxu0 0
        %4144 = vmatpush.bf16.msra.mxu0 0
        %4145 = vmatpush.bf16.msra.mxu0 0
        %4146 = vmatpush.bf16.msra.mxu0 0
        %4147 = vmatpush.bf16.msra.mxu0 0
        %4148 = vmatpush.bf16.msra.mxu0 %v4092
        %4149 = vmatpush.bf16.msra.mxu0 %v4090
        %4150 = vmatmul.bf16.gmra.mxu0 %v4125
        %v4151 = vpop.f32.mrf.mxu0
        %v4152 = vadd.f32 0.0, %v4151
        %v4153 = vpop.f32.mrf.mxu0
        %v4154 = vadd.f32 0.0, %v4153
        %4155 = vmatmul.bf16.gmra.mxu0 %v4128
        %v4156 = vpop.f32.mrf.mxu0
        %v4157 = vadd.f32 0.0, %v4156
        %v4158 = vpop.f32.mrf.mxu0
        %v4159 = vadd.f32 0.0, %v4158
        %4160 = vmatmul.bf16.gmra.mxu0 %v4131
        %v4161 = vpop.f32.mrf.mxu0
        %v4162 = vadd.f32 0.0, %v4161
        %v4163 = vpop.f32.mrf.mxu0
        %v4164 = vadd.f32 0.0, %v4163
        %4165 = vmatmul.bf16.gmra.mxu0 %v4134
        %v4166 = vpop.f32.mrf.mxu0
        %v4167 = vadd.f32 0.0, %v4166
        %v4168 = vpop.f32.mrf.mxu0
        %v4169 = vadd.f32 0.0, %v4168
        %4170 = vmatmul.bf16.gmra.mxu0 %v4137
        %v4171 = vpop.f32.mrf.mxu0
        %v4172 = vadd.f32 0.0, %v4171
        %v4173 = vpop.f32.mrf.mxu0
        %v4174 = vadd.f32 0.0, %v4173
        %4175 = vmatmul.bf16.gmra.mxu0 %v4140
        %v4176 = vpop.f32.mrf.mxu0
        %v4177 = vadd.f32 0.0, %v4176
        %v4178 = vpop.f32.mrf.mxu0
        %v4179 = vadd.f32 0.0, %v4178
        %4180 = vdwg.mxu0
        %4181 = vmatpush.bf16.msra.mxu0 0
        %4182 = vmatpush.bf16.msra.mxu0 0
        %4183 = vmatpush.bf16.msra.mxu0 0
        %4184 = vmatpush.bf16.msra.mxu0 0
        %4185 = vmatpush.bf16.msra.mxu0 0
        %4186 = vmatpush.bf16.msra.mxu0 0
        %4187 = vmatpush.bf16.msra.mxu0 %v4093
        %4188 = vmatpush.bf16.msra.mxu0 %v4091
        %4189 = vmatmul.bf16.gmra.mxu0 %v4125
        %v4190 = vpop.f32.mrf.mxu0
        %v4191 = vadd.f32 0.0, %v4190
        %v4192 = vpop.f32.mrf.mxu0
        %v4193 = vadd.f32 0.0, %v4192
        %4194 = vmatmul.bf16.gmra.mxu0 %v4128
        %v4195 = vpop.f32.mrf.mxu0
        %v4196 = vadd.f32 0.0, %v4195
        %v4197 = vpop.f32.mrf.mxu0
        %v4198 = vadd.f32 0.0, %v4197
        %4199 = vmatmul.bf16.gmra.mxu0 %v4131
        %v4200 = vpop.f32.mrf.mxu0
        %v4201 = vadd.f32 0.0, %v4200
        %v4202 = vpop.f32.mrf.mxu0
        %v4203 = vadd.f32 0.0, %v4202
        %4204 = vmatmul.bf16.gmra.mxu0 %v4134
        %v4205 = vpop.f32.mrf.mxu0
        %v4206 = vadd.f32 0.0, %v4205
        %v4207 = vpop.f32.mrf.mxu0
        %v4208 = vadd.f32 0.0, %v4207
        %4209 = vmatmul.bf16.gmra.mxu0 %v4137
        %v4210 = vpop.f32.mrf.mxu0
        %v4211 = vadd.f32 0.0, %v4210
        %v4212 = vpop.f32.mrf.mxu0
        %v4213 = vadd.f32 0.0, %v4212
        %4214 = vmatmul.bf16.gmra.mxu0 %v4140
        %v4215 = vpop.f32.mrf.mxu0
        %v4216 = vadd.f32 0.0, %v4215
        %v4217 = vpop.f32.mrf.mxu0
        %v4218 = vadd.f32 0.0, %v4217
        %4219 = vdwg.mxu0
        %v4220 = vadd.f32 %v4005, %v4152
        %v4221 = vadd.f32 %v4006, %v4191
        %v4222 = vadd.f32 %v4007, %v4154
        %v4223 = vadd.f32 %v4008, %v4193
        %v4224 = vadd.f32 %v4009, %v4157
        %v4225 = vadd.f32 %v4010, %v4196
        %v4226 = vadd.f32 %v4011, %v4159
        %v4227 = vadd.f32 %v4012, %v4198
        %v4228 = vadd.f32 %v4013, %v4162
        %v4229 = vadd.f32 %v4014, %v4201
        %v4230 = vadd.f32 %v4015, %v4164
        %v4231 = vadd.f32 %v4016, %v4203
        %v4232 = vadd.f32 %v4017, %v4167
        %v4233 = vadd.f32 %v4018, %v4206
        %v4234 = vadd.f32 %v4019, %v4169
        %v4235 = vadd.f32 %v4020, %v4208
        %v4236 = vadd.f32 %v4021, %v4172
        %v4237 = vadd.f32 %v4022, %v4211
        %v4238 = vadd.f32 %v4023, %v4174
        %v4239 = vadd.f32 %v4024, %v4213
        %v4240 = vadd.f32 %v4025, %v4177
        %v4241 = vadd.f32 %v4026, %v4216
        %v4242 = vadd.f32 %v4027, %v4179
        %v4243 = vadd.f32 %v4028, %v4218
        %s4244 = scalar_lea.vmem %s4, 336
        %v4245 = vld [vmem:[%s4244] sm:$0xf]
        %v4246 = vld [vmem:[%s4244 + $0x4] sm:$0xf]
        %v4247 = vld [vmem:[%s4244 + $0x8] sm:$0xf]
        %v4248 = vld [vmem:[%s4244 + $0xc] sm:$0xf]
        %v4249 = vld [vmem:[%s4244 + $0x10] sm:$0xf]
        %v4250 = vld [vmem:[%s4244 + $0x14] sm:$0xf]
        %v4251 = vld [vmem:[%s4244 + $0x18] sm:$0xf]
        %v4252 = vld [vmem:[%s4244 + $0x1c] sm:$0xf]
        %v4253 = vld [vmem:[%s4244 + $0x20] sm:$0xf]
        %v4254 = vld [vmem:[%s4244 + $0x24] sm:$0xf]
        %v4255 = vld [vmem:[%s4244 + $0x28] sm:$0xf]
        %v4256 = vld [vmem:[%s4244 + $0x2c] sm:$0xf]
        %v4269 = vunpack.c.l.b16 %v4245
        %v4270 = vunpack.c.l.b16 %v4246
        %v4271 = vunpack.c.l.b16 %v4247
        %v4272 = vunpack.c.l.b16 %v4248
        %v4273 = vunpack.c.l.b16 %v4249
        %v4274 = vunpack.c.l.b16 %v4250
        %v4275 = vunpack.c.l.b16 %v4251
        %v4276 = vunpack.c.l.b16 %v4252
        %v4277 = vunpack.c.l.b16 %v4253
        %v4278 = vunpack.c.l.b16 %v4254
        %v4279 = vunpack.c.l.b16 %v4255
        %v4280 = vunpack.c.l.b16 %v4256
        %v4281 = vpack.c.b16 %v4270, %v4269
        %v4282 = vpack.c.b16 %v4272, %v4271
        %v4283 = vpack.c.b16 %v4274, %v4273
        %v4284 = vpack.c.b16 %v4276, %v4275
        %v4285 = vpack.c.b16 %v4278, %v4277
        %v4286 = vpack.c.b16 %v4280, %v4279
        %4287 = vrot.lane.b32.xlu0 %v2904, 95
        %v4288 = vpop.permute.xlu0 %4287
        %4289 = vrot.lane.b32.xlu0 %v2905, 95
        %v4290 = vpop.permute.xlu0 %4289
        %4291 = vrot.lane.b32.xlu0 %v2906, 95
        %v4292 = vpop.permute.xlu0 %4291
        %4293 = vrot.lane.b32.xlu0 %v2907, 95
        %v4294 = vpop.permute.xlu0 %4293
        %4295 = vrot.lane.b32.xlu0 %v2908, 95
        %v4296 = vpop.permute.xlu0 %4295
        %4297 = vrot.lane.b32.xlu0 %v2909, 95
        %v4298 = vpop.permute.xlu0 %4297
        %v4299 = vsel %vm2111, %v4288, %v4290
        %v4300 = vsel %vm2111, %v4290, %v4292
        %v4301 = vsel %vm2111, %v4294, %v4296
        %v4302 = vsel %vm2111, %v4296, %v4298
        %v4308 = vsel %vm2966, %v4281, 0
        %v4311 = vsel %vm2966, %v4282, 0
        %v4314 = vsel %vm2966, %v4283, 0
        %v4317 = vsel %vm2966, %v4284, 0
        %v4320 = vsel %vm2966, %v4285, 0
        %v4323 = vsel %vm2966, %v4286, 0
        %4325 = vmatpush.bf16.msra.mxu0 0
        %4326 = vmatpush.bf16.msra.mxu0 0
        %4327 = vmatpush.bf16.msra.mxu0 0
        %4328 = vmatpush.bf16.msra.mxu0 0
        %4329 = vmatpush.bf16.msra.mxu0 0
        %4330 = vmatpush.bf16.msra.mxu0 0
        %4331 = vmatpush.bf16.msra.mxu0 %v4301
        %4332 = vmatpush.bf16.msra.mxu0 %v4299
        %4333 = vmatmul.bf16.gmra.mxu0 %v4308
        %v4334 = vpop.f32.mrf.mxu0
        %v4335 = vadd.f32 0.0, %v4334
        %v4336 = vpop.f32.mrf.mxu0
        %v4337 = vadd.f32 0.0, %v4336
        %4338 = vmatmul.bf16.gmra.mxu0 %v4311
        %v4339 = vpop.f32.mrf.mxu0
        %v4340 = vadd.f32 0.0, %v4339
        %v4341 = vpop.f32.mrf.mxu0
        %v4342 = vadd.f32 0.0, %v4341
        %4343 = vmatmul.bf16.gmra.mxu0 %v4314
        %v4344 = vpop.f32.mrf.mxu0
        %v4345 = vadd.f32 0.0, %v4344
        %v4346 = vpop.f32.mrf.mxu0
        %v4347 = vadd.f32 0.0, %v4346
        %4348 = vmatmul.bf16.gmra.mxu0 %v4317
        %v4349 = vpop.f32.mrf.mxu0
        %v4350 = vadd.f32 0.0, %v4349
        %v4351 = vpop.f32.mrf.mxu0
        %v4352 = vadd.f32 0.0, %v4351
        %4353 = vmatmul.bf16.gmra.mxu0 %v4320
        %v4354 = vpop.f32.mrf.mxu0
        %v4355 = vadd.f32 0.0, %v4354
        %v4356 = vpop.f32.mrf.mxu0
        %v4357 = vadd.f32 0.0, %v4356
        %4358 = vmatmul.bf16.gmra.mxu0 %v4323
        %v4359 = vpop.f32.mrf.mxu0
        %v4360 = vadd.f32 0.0, %v4359
        %v4361 = vpop.f32.mrf.mxu0
        %v4362 = vadd.f32 0.0, %v4361
        %4363 = vdwg.mxu0
        %4364 = vmatpush.bf16.msra.mxu0 0
        %4365 = vmatpush.bf16.msra.mxu0 0
        %4366 = vmatpush.bf16.msra.mxu0 0
        %4367 = vmatpush.bf16.msra.mxu0 0
        %4368 = vmatpush.bf16.msra.mxu0 0
        %4369 = vmatpush.bf16.msra.mxu0 0
        %4370 = vmatpush.bf16.msra.mxu0 %v4302
        %4371 = vmatpush.bf16.msra.mxu0 %v4300
        %4372 = vmatmul.bf16.gmra.mxu0 %v4308
        %v4373 = vpop.f32.mrf.mxu0
        %v4374 = vadd.f32 0.0, %v4373
        %v4375 = vpop.f32.mrf.mxu0
        %v4376 = vadd.f32 0.0, %v4375
        %4377 = vmatmul.bf16.gmra.mxu0 %v4311
        %v4378 = vpop.f32.mrf.mxu0
        %v4379 = vadd.f32 0.0, %v4378
        %v4380 = vpop.f32.mrf.mxu0
        %v4381 = vadd.f32 0.0, %v4380
        %4382 = vmatmul.bf16.gmra.mxu0 %v4314
        %v4383 = vpop.f32.mrf.mxu0
        %v4384 = vadd.f32 0.0, %v4383
        %v4385 = vpop.f32.mrf.mxu0
        %v4386 = vadd.f32 0.0, %v4385
        %4387 = vmatmul.bf16.gmra.mxu0 %v4317
        %v4388 = vpop.f32.mrf.mxu0
        %v4389 = vadd.f32 0.0, %v4388
        %v4390 = vpop.f32.mrf.mxu0
        %v4391 = vadd.f32 0.0, %v4390
        %4392 = vmatmul.bf16.gmra.mxu0 %v4320
        %v4393 = vpop.f32.mrf.mxu0
        %v4394 = vadd.f32 0.0, %v4393
        %v4395 = vpop.f32.mrf.mxu0
        %v4396 = vadd.f32 0.0, %v4395
        %4397 = vmatmul.bf16.gmra.mxu0 %v4323
        %v4398 = vpop.f32.mrf.mxu0
        %v4399 = vadd.f32 0.0, %v4398
        %v4400 = vpop.f32.mrf.mxu0
        %v4401 = vadd.f32 0.0, %v4400
        %4402 = vdwg.mxu0
        %v4403 = vadd.f32 %v4220, %v4335
        %v4404 = vadd.f32 %v4221, %v4374
        %v4405 = vadd.f32 %v4222, %v4337
        %v4406 = vadd.f32 %v4223, %v4376
        %v4407 = vadd.f32 %v4224, %v4340
        %v4408 = vadd.f32 %v4225, %v4379
        %v4409 = vadd.f32 %v4226, %v4342
        %v4410 = vadd.f32 %v4227, %v4381
        %v4411 = vadd.f32 %v4228, %v4345
        %v4412 = vadd.f32 %v4229, %v4384
        %v4413 = vadd.f32 %v4230, %v4347
        %v4414 = vadd.f32 %v4231, %v4386
        %v4415 = vadd.f32 %v4232, %v4350
        %v4416 = vadd.f32 %v4233, %v4389
        %v4417 = vadd.f32 %v4234, %v4352
        %v4418 = vadd.f32 %v4235, %v4391
        %v4419 = vadd.f32 %v4236, %v4355
        %v4420 = vadd.f32 %v4237, %v4394
        %v4421 = vadd.f32 %v4238, %v4357
        %v4422 = vadd.f32 %v4239, %v4396
        %v4423 = vadd.f32 %v4240, %v4360
        %v4424 = vadd.f32 %v4241, %v4399
        %v4425 = vadd.f32 %v4242, %v4362
        %v4426 = vadd.f32 %v4243, %v4401
        %4427 = vrot.lane.b32.xlu0 %v2855, 94
        %v4428 = vpop.permute.xlu0 %4427
        %4429 = vrot.lane.b32.xlu0 %v2856, 94
        %v4430 = vpop.permute.xlu0 %4429
        %4431 = vrot.lane.b32.xlu0 %v2887, 94
        %v4432 = vpop.permute.xlu0 %4431
        %4433 = vrot.lane.b32.xlu0 %v2857, 94
        %v4434 = vpop.permute.xlu0 %4433
        %4435 = vrot.lane.b32.xlu0 %v2858, 94
        %v4436 = vpop.permute.xlu0 %4435
        %4437 = vrot.lane.b32.xlu0 %v2888, 94
        %v4438 = vpop.permute.xlu0 %4437
        %4439 = vrot.lane.b32.xlu0 %v2859, 94
        %v4440 = vpop.permute.xlu0 %4439
        %4441 = vrot.lane.b32.xlu0 %v2860, 94
        %v4442 = vpop.permute.xlu0 %4441
        %4443 = vrot.lane.b32.xlu0 %v2889, 94
        %v4444 = vpop.permute.xlu0 %4443
        %4445 = vrot.lane.b32.xlu0 %v2861, 94
        %v4446 = vpop.permute.xlu0 %4445
        %4447 = vrot.lane.b32.xlu0 %v2862, 94
        %v4448 = vpop.permute.xlu0 %4447
        %4449 = vrot.lane.b32.xlu0 %v2890, 94
        %v4450 = vpop.permute.xlu0 %4449
        %v4451 = vsel %vm2290, %v4428, %v4430
        %v4452 = vsel %vm2290, %v4430, %v4432
        %v4453 = vsel %vm2290, %v4434, %v4436
        %v4454 = vsel %vm2290, %v4436, %v4438
        %v4455 = vsel %vm2290, %v4440, %v4442
        %v4456 = vsel %vm2290, %v4442, %v4444
        %v4457 = vsel %vm2290, %v4446, %v4448
        %v4458 = vsel %vm2290, %v4448, %v4450
        %v4467 = vsel %vm816, %v4451, 0.0
        %v4468 = vsel %vm817, %v4452, 0.0
        %v4469 = vsel %vm816, %v4453, 0.0
        %v4470 = vsel %vm817, %v4454, 0.0
        %v4471 = vsel %vm816, %v4455, 0.0
        %v4472 = vsel %vm817, %v4456, 0.0
        %v4473 = vsel %vm816, %v4457, 0.0
        %v4474 = vsel %vm817, %v4458, 0.0
        %s4475 = scalar_lea.vmem %s4, 384
        %v4476 = vld [vmem:[%s4475] sm:$0xf]
        %v4477 = vld [vmem:[%s4475 + $0x4] sm:$0xf]
        %v4478 = vld [vmem:[%s4475 + $0x8] sm:$0xf]
        %v4479 = vld [vmem:[%s4475 + $0xc] sm:$0xf]
        %v4480 = vld [vmem:[%s4475 + $0x10] sm:$0xf]
        %v4481 = vld [vmem:[%s4475 + $0x14] sm:$0xf]
        %v4482 = vld [vmem:[%s4475 + $0x18] sm:$0xf]
        %v4483 = vld [vmem:[%s4475 + $0x1c] sm:$0xf]
        %v4484 = vld [vmem:[%s4475 + $0x20] sm:$0xf]
        %v4485 = vld [vmem:[%s4475 + $0x24] sm:$0xf]
        %v4486 = vld [vmem:[%s4475 + $0x28] sm:$0xf]
        %v4487 = vld [vmem:[%s4475 + $0x2c] sm:$0xf]
        %v4488 = vpack.c.bf16 %v4469, %v4467
        %v4489 = vpack.c.bf16 %v4470, %v4468
        %v4490 = vpack.c.bf16 %v4473, %v4471
        %v4491 = vpack.c.bf16 %v4474, %v4472
        %v4504 = vunpack.c.l.b16 %v4476
        %v4505 = vunpack.c.l.b16 %v4477
        %v4506 = vunpack.c.l.b16 %v4478
        %v4507 = vunpack.c.l.b16 %v4479
        %v4508 = vunpack.c.l.b16 %v4480
        %v4509 = vunpack.c.l.b16 %v4481
        %v4510 = vunpack.c.l.b16 %v4482
        %v4511 = vunpack.c.l.b16 %v4483
        %v4512 = vunpack.c.l.b16 %v4484
        %v4513 = vunpack.c.l.b16 %v4485
        %v4514 = vunpack.c.l.b16 %v4486
        %v4515 = vunpack.c.l.b16 %v4487
        %v4516 = vpack.c.b16 %v4505, %v4504
        %v4517 = vpack.c.b16 %v4507, %v4506
        %v4518 = vpack.c.b16 %v4509, %v4508
        %v4519 = vpack.c.b16 %v4511, %v4510
        %v4520 = vpack.c.b16 %v4513, %v4512
        %v4521 = vpack.c.b16 %v4515, %v4514
        %v4523 = vsel %vm2966, %v4516, 0
        %v4526 = vsel %vm2966, %v4517, 0
        %v4529 = vsel %vm2966, %v4518, 0
        %v4532 = vsel %vm2966, %v4519, 0
        %v4535 = vsel %vm2966, %v4520, 0
        %v4538 = vsel %vm2966, %v4521, 0
        %4540 = vmatpush.bf16.msra.mxu0 0
        %4541 = vmatpush.bf16.msra.mxu0 0
        %4542 = vmatpush.bf16.msra.mxu0 0
        %4543 = vmatpush.bf16.msra.mxu0 0
        %4544 = vmatpush.bf16.msra.mxu0 0
        %4545 = vmatpush.bf16.msra.mxu0 0
        %4546 = vmatpush.bf16.msra.mxu0 %v4490
        %4547 = vmatpush.bf16.msra.mxu0 %v4488
        %4548 = vmatmul.bf16.gmra.mxu0 %v4523
        %v4549 = vpop.f32.mrf.mxu0
        %v4550 = vadd.f32 0.0, %v4549
        %v4551 = vpop.f32.mrf.mxu0
        %v4552 = vadd.f32 0.0, %v4551
        %4553 = vmatmul.bf16.gmra.mxu0 %v4526
        %v4554 = vpop.f32.mrf.mxu0
        %v4555 = vadd.f32 0.0, %v4554
        %v4556 = vpop.f32.mrf.mxu0
        %v4557 = vadd.f32 0.0, %v4556
        %4558 = vmatmul.bf16.gmra.mxu0 %v4529
        %v4559 = vpop.f32.mrf.mxu0
        %v4560 = vadd.f32 0.0, %v4559
        %v4561 = vpop.f32.mrf.mxu0
        %v4562 = vadd.f32 0.0, %v4561
        %4563 = vmatmul.bf16.gmra.mxu0 %v4532
        %v4564 = vpop.f32.mrf.mxu0
        %v4565 = vadd.f32 0.0, %v4564
        %v4566 = vpop.f32.mrf.mxu0
        %v4567 = vadd.f32 0.0, %v4566
        %4568 = vmatmul.bf16.gmra.mxu0 %v4535
        %v4569 = vpop.f32.mrf.mxu0
        %v4570 = vadd.f32 0.0, %v4569
        %v4571 = vpop.f32.mrf.mxu0
        %v4572 = vadd.f32 0.0, %v4571
        %4573 = vmatmul.bf16.gmra.mxu0 %v4538
        %v4574 = vpop.f32.mrf.mxu0
        %v4575 = vadd.f32 0.0, %v4574
        %v4576 = vpop.f32.mrf.mxu0
        %v4577 = vadd.f32 0.0, %v4576
        %4578 = vdwg.mxu0
        %4579 = vmatpush.bf16.msra.mxu0 0
        %4580 = vmatpush.bf16.msra.mxu0 0
        %4581 = vmatpush.bf16.msra.mxu0 0
        %4582 = vmatpush.bf16.msra.mxu0 0
        %4583 = vmatpush.bf16.msra.mxu0 0
        %4584 = vmatpush.bf16.msra.mxu0 0
        %4585 = vmatpush.bf16.msra.mxu0 %v4491
        %4586 = vmatpush.bf16.msra.mxu0 %v4489
        %4587 = vmatmul.bf16.gmra.mxu0 %v4523
        %v4588 = vpop.f32.mrf.mxu0
        %v4589 = vadd.f32 0.0, %v4588
        %v4590 = vpop.f32.mrf.mxu0
        %v4591 = vadd.f32 0.0, %v4590
        %4592 = vmatmul.bf16.gmra.mxu0 %v4526
        %v4593 = vpop.f32.mrf.mxu0
        %v4594 = vadd.f32 0.0, %v4593
        %v4595 = vpop.f32.mrf.mxu0
        %v4596 = vadd.f32 0.0, %v4595
        %4597 = vmatmul.bf16.gmra.mxu0 %v4529
        %v4598 = vpop.f32.mrf.mxu0
        %v4599 = vadd.f32 0.0, %v4598
        %v4600 = vpop.f32.mrf.mxu0
        %v4601 = vadd.f32 0.0, %v4600
        %4602 = vmatmul.bf16.gmra.mxu0 %v4532
        %v4603 = vpop.f32.mrf.mxu0
        %v4604 = vadd.f32 0.0, %v4603
        %v4605 = vpop.f32.mrf.mxu0
        %v4606 = vadd.f32 0.0, %v4605
        %4607 = vmatmul.bf16.gmra.mxu0 %v4535
        %v4608 = vpop.f32.mrf.mxu0
        %v4609 = vadd.f32 0.0, %v4608
        %v4610 = vpop.f32.mrf.mxu0
        %v4611 = vadd.f32 0.0, %v4610
        %4612 = vmatmul.bf16.gmra.mxu0 %v4538
        %v4613 = vpop.f32.mrf.mxu0
        %v4614 = vadd.f32 0.0, %v4613
        %v4615 = vpop.f32.mrf.mxu0
        %v4616 = vadd.f32 0.0, %v4615
        %4617 = vdwg.mxu0
        %v4618 = vadd.f32 %v4403, %v4550
        %v4619 = vadd.f32 %v4404, %v4589
        %v4620 = vadd.f32 %v4405, %v4552
        %v4621 = vadd.f32 %v4406, %v4591
        %v4622 = vadd.f32 %v4407, %v4555
        %v4623 = vadd.f32 %v4408, %v4594
        %v4624 = vadd.f32 %v4409, %v4557
        %v4625 = vadd.f32 %v4410, %v4596
        %v4626 = vadd.f32 %v4411, %v4560
        %v4627 = vadd.f32 %v4412, %v4599
        %v4628 = vadd.f32 %v4413, %v4562
        %v4629 = vadd.f32 %v4414, %v4601
        %v4630 = vadd.f32 %v4415, %v4565
        %v4631 = vadd.f32 %v4416, %v4604
        %v4632 = vadd.f32 %v4417, %v4567
        %v4633 = vadd.f32 %v4418, %v4606
        %v4634 = vadd.f32 %v4419, %v4570
        %v4635 = vadd.f32 %v4420, %v4609
        %v4636 = vadd.f32 %v4421, %v4572
        %v4637 = vadd.f32 %v4422, %v4611
        %v4638 = vadd.f32 %v4423, %v4575
        %v4639 = vadd.f32 %v4424, %v4614
        %v4640 = vadd.f32 %v4425, %v4577
        %v4641 = vadd.f32 %v4426, %v4616
        %v4642 = vld [vmem:[%s5] sm:$0xff]
        %v4643 = vld [vmem:[%s5 + $0x8] sm:$0xff]
        %v4644 = vld [vmem:[%s5 + $0x10] sm:$0xff]
        %v4645 = vld [vmem:[%s5 + $0x18] sm:$0xff]
        %v4646 = vld [vmem:[%s5 + $0x20] sm:$0xff]
        %v4647 = vld [vmem:[%s5 + $0x28] sm:$0xff]
        %v4648 = vld [vmem:[%s5 + $0x30] sm:$0xff]
        %v4649 = vld [vmem:[%s5 + $0x38] sm:$0xff]
        %v4650 = vld [vmem:[%s5 + $0x40] sm:$0xff]
        %v4651 = vld [vmem:[%s5 + $0x48] sm:$0xff]
        %v4652 = vld [vmem:[%s5 + $0x50] sm:$0xff]
        %v4653 = vld [vmem:[%s5 + $0x58] sm:$0xff]
        %4655 = vset.pattern.permute.xlu0 0
        %4656 = vperm.xlu0 %4655, %v4642
        %v4657 = vpop.permute.xlu0 %4656
        %4660 = vset.pattern.permute.xlu0 0
        %4661 = vperm.xlu0 %4660, %v4643
        %v4662 = vpop.permute.xlu0 %4661
        %4665 = vset.pattern.permute.xlu0 0
        %4666 = vperm.xlu0 %4665, %v4644
        %v4667 = vpop.permute.xlu0 %4666
        %4670 = vset.pattern.permute.xlu0 0
        %4671 = vperm.xlu0 %4670, %v4645
        %v4672 = vpop.permute.xlu0 %4671
        %4675 = vset.pattern.permute.xlu0 0
        %4676 = vperm.xlu0 %4675, %v4646
        %v4677 = vpop.permute.xlu0 %4676
        %4680 = vset.pattern.permute.xlu0 0
        %4681 = vperm.xlu0 %4680, %v4647
        %v4682 = vpop.permute.xlu0 %4681
        %4685 = vset.pattern.permute.xlu0 0
        %4686 = vperm.xlu0 %4685, %v4648
        %v4687 = vpop.permute.xlu0 %4686
        %4690 = vset.pattern.permute.xlu0 0
        %4691 = vperm.xlu0 %4690, %v4649
        %v4692 = vpop.permute.xlu0 %4691
        %4695 = vset.pattern.permute.xlu0 0
        %4696 = vperm.xlu0 %4695, %v4650
        %v4697 = vpop.permute.xlu0 %4696
        %4700 = vset.pattern.permute.xlu0 0
        %4701 = vperm.xlu0 %4700, %v4651
        %v4702 = vpop.permute.xlu0 %4701
        %4705 = vset.pattern.permute.xlu0 0
        %4706 = vperm.xlu0 %4705, %v4652
        %v4707 = vpop.permute.xlu0 %4706
        %4710 = vset.pattern.permute.xlu0 0
        %4711 = vperm.xlu0 %4710, %v4653
        %v4712 = vpop.permute.xlu0 %4711
        %v4714 = vadd.f32 %v4618, %v4657
        %v4715 = vadd.f32 %v4619, %v4657
        %v4716 = vadd.f32 %v4620, %v4662
        %v4717 = vadd.f32 %v4621, %v4662
        %v4718 = vadd.f32 %v4622, %v4667
        %v4719 = vadd.f32 %v4623, %v4667
        %v4720 = vadd.f32 %v4624, %v4672
        %v4721 = vadd.f32 %v4625, %v4672
        %v4722 = vadd.f32 %v4626, %v4677
        %v4723 = vadd.f32 %v4627, %v4677
        %v4724 = vadd.f32 %v4628, %v4682
        %v4725 = vadd.f32 %v4629, %v4682
        %v4726 = vadd.f32 %v4630, %v4687
        %v4727 = vadd.f32 %v4631, %v4687
        %v4728 = vadd.f32 %v4632, %v4692
        %v4729 = vadd.f32 %v4633, %v4692
        %v4730 = vadd.f32 %v4634, %v4697
        %v4731 = vadd.f32 %v4635, %v4697
        %v4732 = vadd.f32 %v4636, %v4702
        %v4733 = vadd.f32 %v4637, %v4702
        %v4734 = vadd.f32 %v4638, %v4707
        %v4735 = vadd.f32 %v4639, %v4707
        %v4736 = vadd.f32 %v4640, %v4712
        %v4737 = vadd.f32 %v4641, %v4712
        %v4738 = vadd.f32 %v4714, %v4715
        %v4739 = vadd.f32 %v4738, %v4716
        %v4740 = vadd.f32 %v4739, %v4717
        %v4741 = vadd.f32 %v4740, %v4718
        %v4742 = vadd.f32 %v4741, %v4719
        %v4743 = vadd.f32 %v4742, %v4720
        %v4744 = vadd.f32 %v4743, %v4721
        %v4745 = vadd.f32 %v4744, %v4722
        %v4746 = vadd.f32 %v4745, %v4723
        %v4747 = vadd.f32 %v4746, %v4724
        %v4748 = vadd.f32 %v4747, %v4725
        %v4749 = vadd.f32 %v4748, %v4726
        %v4750 = vadd.f32 %v4749, %v4727
        %v4751 = vadd.f32 %v4750, %v4728
        %v4752 = vadd.f32 %v4751, %v4729
        %v4753 = vadd.f32 %v4752, %v4730
        %v4754 = vadd.f32 %v4753, %v4731
        %v4755 = vadd.f32 %v4754, %v4732
        %v4756 = vadd.f32 %v4755, %v4733
        %v4757 = vadd.f32 %v4756, %v4734
        %v4758 = vadd.f32 %v4757, %v4735
        %v4759 = vadd.f32 %v4758, %v4736
        %v4760 = vadd.f32 %v4759, %v4737
        %4761 = vadd.xlane.f32.xlu0 %v4760
        %v4762 = vpop.xlane.xlu0 %4761
        %v4763 = vrot.slane %v4762, 4
        %v4764 = vadd.f32 %v4762, %v4763
        %v4765 = vrot.slane %v4764, 2
        %v4766 = vadd.f32 %v4764, %v4765
        %v4767 = vrot.slane %v4766, 1
        %v4768 = vadd.f32 %v4766, %v4767
        %s4769 = vtos %v4768
        %v4770 = vmul.f32 %v4714, %v4714
        %v4771 = vmul.f32 %v4715, %v4715
        %v4772 = vmul.f32 %v4716, %v4716
        %v4773 = vmul.f32 %v4717, %v4717
        %v4774 = vmul.f32 %v4718, %v4718
        %v4775 = vmul.f32 %v4719, %v4719
        %v4776 = vmul.f32 %v4720, %v4720
        %v4777 = vmul.f32 %v4721, %v4721
        %v4778 = vmul.f32 %v4722, %v4722
        %v4779 = vmul.f32 %v4723, %v4723
        %v4780 = vmul.f32 %v4724, %v4724
        %v4781 = vmul.f32 %v4725, %v4725
        %v4782 = vmul.f32 %v4726, %v4726
        %v4783 = vmul.f32 %v4727, %v4727
        %v4784 = vmul.f32 %v4728, %v4728
        %v4785 = vmul.f32 %v4729, %v4729
        %v4786 = vmul.f32 %v4730, %v4730
        %v4787 = vmul.f32 %v4731, %v4731
        %v4788 = vmul.f32 %v4732, %v4732
        %v4789 = vmul.f32 %v4733, %v4733
        %v4790 = vmul.f32 %v4734, %v4734
        %v4791 = vmul.f32 %v4735, %v4735
        %v4792 = vmul.f32 %v4736, %v4736
        %v4793 = vmul.f32 %v4737, %v4737
        %v4794 = vadd.f32 %v4770, %v4771
        %v4795 = vadd.f32 %v4794, %v4772
        %v4796 = vadd.f32 %v4795, %v4773
        %v4797 = vadd.f32 %v4796, %v4774
        %v4798 = vadd.f32 %v4797, %v4775
        %v4799 = vadd.f32 %v4798, %v4776
        %v4800 = vadd.f32 %v4799, %v4777
        %v4801 = vadd.f32 %v4800, %v4778
        %v4802 = vadd.f32 %v4801, %v4779
        %v4803 = vadd.f32 %v4802, %v4780
        %v4804 = vadd.f32 %v4803, %v4781
        %v4805 = vadd.f32 %v4804, %v4782
        %v4806 = vadd.f32 %v4805, %v4783
        %v4807 = vadd.f32 %v4806, %v4784
        %v4808 = vadd.f32 %v4807, %v4785
        %v4809 = vadd.f32 %v4808, %v4786
        %v4810 = vadd.f32 %v4809, %v4787
        %v4811 = vadd.f32 %v4810, %v4788
        %v4812 = vadd.f32 %v4811, %v4789
        %v4813 = vadd.f32 %v4812, %v4790
        %v4814 = vadd.f32 %v4813, %v4791
        %v4815 = vadd.f32 %v4814, %v4792
        %v4816 = vadd.f32 %v4815, %v4793
        %4817 = vadd.xlane.f32.xlu0 %v4816
        %v4818 = vpop.xlane.xlu0 %4817
        %v4819 = vrot.slane %v4818, 4
        %v4820 = vadd.f32 %v4818, %v4819
        %v4821 = vrot.slane %v4820, 2
        %v4822 = vadd.f32 %v4820, %v4821
        %v4823 = vrot.slane %v4822, 1
        %v4824 = vadd.f32 %v4822, %v4823
        %s4825 = vtos %v4824
        %v4826 = vrcp.pop 24576.0
        %v4827 = vmul.f32 24576.0, %v4826
        %v4828 = vsub.f32 1.0, %v4827
        %v4829 = vmul.f32 %v4826, %v4828
        %v4830 = vadd.f32 %v4826, %v4829
        %vm4831 = vweird.f32 %v4826
        %v4832 = vsel %vm4831, %v4826, %v4830
        %s4833 = vtos %v4832
        %s4834 = smul.f32 %s4769, %s4833
        %v4835 = vrcp.pop 24576.0
        %v4836 = vmul.f32 24576.0, %v4835
        %v4837 = vsub.f32 1.0, %v4836
        %v4838 = vmul.f32 %v4835, %v4837
        %v4839 = vadd.f32 %v4835, %v4838
        %vm4840 = vweird.f32 %v4835
        %v4841 = vsel %vm4840, %v4835, %v4839
        %s4842 = vtos %v4841
        %s4843 = smul.f32 %s4825, %s4842
        %s4844 = smul.f32 %s4834, %s4834
        %s4845 = ssub.f32 %s4843, %s4844
        %v4846 = vstv %s4834
        %v4847 = vsub.f32 %v4714, %v4846
        %v4848 = vsub.f32 %v4715, %v4846
        %v4849 = vsub.f32 %v4716, %v4846
        %v4850 = vsub.f32 %v4717, %v4846
        %v4851 = vsub.f32 %v4718, %v4846
        %v4852 = vsub.f32 %v4719, %v4846
        %v4853 = vsub.f32 %v4720, %v4846
        %v4854 = vsub.f32 %v4721, %v4846
        %v4855 = vsub.f32 %v4722, %v4846
        %v4856 = vsub.f32 %v4723, %v4846
        %v4857 = vsub.f32 %v4724, %v4846
        %v4858 = vsub.f32 %v4725, %v4846
        %v4859 = vsub.f32 %v4726, %v4846
        %v4860 = vsub.f32 %v4727, %v4846
        %v4861 = vsub.f32 %v4728, %v4846
        %v4862 = vsub.f32 %v4729, %v4846
        %v4863 = vsub.f32 %v4730, %v4846
        %v4864 = vsub.f32 %v4731, %v4846
        %v4865 = vsub.f32 %v4732, %v4846
        %v4866 = vsub.f32 %v4733, %v4846
        %v4867 = vsub.f32 %v4734, %v4846
        %v4868 = vsub.f32 %v4735, %v4846
        %v4869 = vsub.f32 %v4736, %v4846
        %v4870 = vsub.f32 %v4737, %v4846
        %s4871 = sadd.f32 %s4845, 1e-05
        %v4872 = vstv %s4871
        %v4873 = vrsqrt.pop %v4872
        %v4874 = vmul.f32 %v4873, %v4872
        %v4875 = vmul.f32 %v4874, %v4873
        %v4876 = vmul.f32 0.5, %v4875
        %v4877 = vsub.f32 1.5, %v4876
        %v4878 = vmul.f32 %v4873, %v4877
        %vm4879 = vweird.f32 %v4872
        %vm4880 = vweird.f32 %v4873
        %vm4881 = vmor %vm4879, %vm4880
        %v4882 = vsel %vm4881, %v4873, %v4878
        %s4883 = vtos %v4882
        %v4884 = vstv %s4883
        %v4885 = vmul.f32 %v4847, %v4884
        %v4886 = vmul.f32 %v4848, %v4884
        %v4887 = vmul.f32 %v4849, %v4884
        %v4888 = vmul.f32 %v4850, %v4884
        %v4889 = vmul.f32 %v4851, %v4884
        %v4890 = vmul.f32 %v4852, %v4884
        %v4891 = vmul.f32 %v4853, %v4884
        %v4892 = vmul.f32 %v4854, %v4884
        %v4893 = vmul.f32 %v4855, %v4884
        %v4894 = vmul.f32 %v4856, %v4884
        %v4895 = vmul.f32 %v4857, %v4884
        %v4896 = vmul.f32 %v4858, %v4884
        %v4897 = vmul.f32 %v4859, %v4884
        %v4898 = vmul.f32 %v4860, %v4884
        %v4899 = vmul.f32 %v4861, %v4884
        %v4900 = vmul.f32 %v4862, %v4884
        %v4901 = vmul.f32 %v4863, %v4884
        %v4902 = vmul.f32 %v4864, %v4884
        %v4903 = vmul.f32 %v4865, %v4884
        %v4904 = vmul.f32 %v4866, %v4884
        %v4905 = vmul.f32 %v4867, %v4884
        %v4906 = vmul.f32 %v4868, %v4884
        %v4907 = vmul.f32 %v4869, %v4884
        %v4908 = vmul.f32 %v4870, %v4884
        %v4909 = vadd.f32 %v2823, %v4885
        %v4910 = vadd.f32 %v2824, %v4886
        %v4911 = vadd.f32 %v2825, %v4887
        %v4912 = vadd.f32 %v2826, %v4888
        %v4913 = vadd.f32 %v2827, %v4889
        %v4914 = vadd.f32 %v2828, %v4890
        %v4915 = vadd.f32 %v2829, %v4891
        %v4916 = vadd.f32 %v2830, %v4892
        %v4917 = vtanh.pop %v4909
        %v4918 = vtanh.pop %v4910
        %v4919 = vtanh.pop %v4911
        %v4920 = vtanh.pop %v4912
        %v4921 = vtanh.pop %v4913
        %v4922 = vtanh.pop %v4914
        %v4923 = vtanh.pop %v4915
        %v4924 = vtanh.pop %v4916
        %v4925 = vadd.f32 %v2831, %v4893
        %v4926 = vadd.f32 %v2832, %v4894
        %v4927 = vadd.f32 %v2833, %v4895
        %v4928 = vadd.f32 %v2834, %v4896
        %v4929 = vadd.f32 %v2835, %v4897
        %v4930 = vadd.f32 %v2836, %v4898
        %v4931 = vadd.f32 %v2837, %v4899
        %v4932 = vadd.f32 %v2838, %v4900
        %v4933 = vxor.u32 %v4925, 2147483648
        %v4934 = vxor.u32 %v4926, 2147483648
        %v4935 = vxor.u32 %v4927, 2147483648
        %v4936 = vxor.u32 %v4928, 2147483648
        %v4937 = vxor.u32 %v4929, 2147483648
        %v4938 = vxor.u32 %v4930, 2147483648
        %v4939 = vxor.u32 %v4931, 2147483648
        %v4940 = vxor.u32 %v4932, 2147483648
        %v4941 = vmul.f32 %v4933, 1.442695
        %v4942 = vpow.pop %v4941
        %v4943 = vmul.f32 %v4934, 1.442695
        %v4944 = vpow.pop %v4943
        %v4945 = vmul.f32 %v4935, 1.442695
        %v4946 = vpow.pop %v4945
        %v4947 = vmul.f32 %v4936, 1.442695
        %v4948 = vpow.pop %v4947
        %v4949 = vmul.f32 %v4937, 1.442695
        %v4950 = vpow.pop %v4949
        %v4951 = vmul.f32 %v4938, 1.442695
        %v4952 = vpow.pop %v4951
        %v4953 = vmul.f32 %v4939, 1.442695
        %v4954 = vpow.pop %v4953
        %v4955 = vmul.f32 %v4940, 1.442695
        %v4956 = vpow.pop %v4955
        %v4957 = vadd.f32 %v4942, 1.0
        %v4958 = vadd.f32 %v4944, 1.0
        %v4959 = vadd.f32 %v4946, 1.0
        %v4960 = vadd.f32 %v4948, 1.0
        %v4961 = vadd.f32 %v4950, 1.0
        %v4962 = vadd.f32 %v4952, 1.0
        %v4963 = vadd.f32 %v4954, 1.0
        %v4964 = vadd.f32 %v4956, 1.0
        %v4965 = vrcp.pop %v4957
        %v4966 = vmul.f32 %v4957, %v4965
        %v4967 = vsub.f32 1.0, %v4966
        %v4968 = vmul.f32 %v4965, %v4967
        %v4969 = vadd.f32 %v4965, %v4968
        %vm4970 = vweird.f32 %v4957
        %vm4971 = vweird.f32 %v4965
        %vm4972 = vmor %vm4970, %vm4971
        %v4973 = vsel %vm4972, %v4965, %v4969
        %v4974 = vand.u32 2147483647, %v4957
        %vm4975 = vcmp.eq.f32.partialorder %v4974, 8.507059e+37
        %v4976 = vand.u32 %v4957, 2147483648
        %v4977 = vor.u32 1.1754944e-38, %v4976
        %v4978 = vsel %vm4975, %v4977, %v4973
        %v4979 = vmul.f32 1.0, %v4978
        %v4980 = vrcp.pop %v4958
        %v4981 = vmul.f32 %v4958, %v4980
        %v4982 = vsub.f32 1.0, %v4981
        %v4983 = vmul.f32 %v4980, %v4982
        %v4984 = vadd.f32 %v4980, %v4983
        %vm4985 = vweird.f32 %v4958
        %vm4986 = vweird.f32 %v4980
        %vm4987 = vmor %vm4985, %vm4986
        %v4988 = vsel %vm4987, %v4980, %v4984
        %v4989 = vand.u32 2147483647, %v4958
        %vm4990 = vcmp.eq.f32.partialorder %v4989, 8.507059e+37
        %v4991 = vand.u32 %v4958, 2147483648
        %v4992 = vor.u32 1.1754944e-38, %v4991
        %v4993 = vsel %vm4990, %v4992, %v4988
        %v4994 = vmul.f32 1.0, %v4993
        %v4995 = vrcp.pop %v4959
        %v4996 = vmul.f32 %v4959, %v4995
        %v4997 = vsub.f32 1.0, %v4996
        %v4998 = vmul.f32 %v4995, %v4997
        %v4999 = vadd.f32 %v4995, %v4998
        %vm5000 = vweird.f32 %v4959
        %vm5001 = vweird.f32 %v4995
        %vm5002 = vmor %vm5000, %vm5001
        %v5003 = vsel %vm5002, %v4995, %v4999
        %v5004 = vand.u32 2147483647, %v4959
        %vm5005 = vcmp.eq.f32.partialorder %v5004, 8.507059e+37
        %v5006 = vand.u32 %v4959, 2147483648
        %v5007 = vor.u32 1.1754944e-38, %v5006
        %v5008 = vsel %vm5005, %v5007, %v5003
        %v5009 = vmul.f32 1.0, %v5008
        %v5010 = vrcp.pop %v4960
        %v5011 = vmul.f32 %v4960, %v5010
        %v5012 = vsub.f32 1.0, %v5011
        %v5013 = vmul.f32 %v5010, %v5012
        %v5014 = vadd.f32 %v5010, %v5013
        %vm5015 = vweird.f32 %v4960
        %vm5016 = vweird.f32 %v5010
        %vm5017 = vmor %vm5015, %vm5016
        %v5018 = vsel %vm5017, %v5010, %v5014
        %v5019 = vand.u32 2147483647, %v4960
        %vm5020 = vcmp.eq.f32.partialorder %v5019, 8.507059e+37
        %v5021 = vand.u32 %v4960, 2147483648
        %v5022 = vor.u32 1.1754944e-38, %v5021
        %v5023 = vsel %vm5020, %v5022, %v5018
        %v5024 = vmul.f32 1.0, %v5023
        %v5025 = vrcp.pop %v4961
        %v5026 = vmul.f32 %v4961, %v5025
        %v5027 = vsub.f32 1.0, %v5026
        %v5028 = vmul.f32 %v5025, %v5027
        %v5029 = vadd.f32 %v5025, %v5028
        %vm5030 = vweird.f32 %v4961
        %vm5031 = vweird.f32 %v5025
        %vm5032 = vmor %vm5030, %vm5031
        %v5033 = vsel %vm5032, %v5025, %v5029
        %v5034 = vand.u32 2147483647, %v4961
        %vm5035 = vcmp.eq.f32.partialorder %v5034, 8.507059e+37
        %v5036 = vand.u32 %v4961, 2147483648
        %v5037 = vor.u32 1.1754944e-38, %v5036
        %v5038 = vsel %vm5035, %v5037, %v5033
        %v5039 = vmul.f32 1.0, %v5038
        %v5040 = vrcp.pop %v4962
        %v5041 = vmul.f32 %v4962, %v5040
        %v5042 = vsub.f32 1.0, %v5041
        %v5043 = vmul.f32 %v5040, %v5042
        %v5044 = vadd.f32 %v5040, %v5043
        %vm5045 = vweird.f32 %v4962
        %vm5046 = vweird.f32 %v5040
        %vm5047 = vmor %vm5045, %vm5046
        %v5048 = vsel %vm5047, %v5040, %v5044
        %v5049 = vand.u32 2147483647, %v4962
        %vm5050 = vcmp.eq.f32.partialorder %v5049, 8.507059e+37
        %v5051 = vand.u32 %v4962, 2147483648
        %v5052 = vor.u32 1.1754944e-38, %v5051
        %v5053 = vsel %vm5050, %v5052, %v5048
        %v5054 = vmul.f32 1.0, %v5053
        %v5055 = vrcp.pop %v4963
        %v5056 = vmul.f32 %v4963, %v5055
        %v5057 = vsub.f32 1.0, %v5056
        %v5058 = vmul.f32 %v5055, %v5057
        %v5059 = vadd.f32 %v5055, %v5058
        %vm5060 = vweird.f32 %v4963
        %vm5061 = vweird.f32 %v5055
        %vm5062 = vmor %vm5060, %vm5061
        %v5063 = vsel %vm5062, %v5055, %v5059
        %v5064 = vand.u32 2147483647, %v4963
        %vm5065 = vcmp.eq.f32.partialorder %v5064, 8.507059e+37
        %v5066 = vand.u32 %v4963, 2147483648
        %v5067 = vor.u32 1.1754944e-38, %v5066
        %v5068 = vsel %vm5065, %v5067, %v5063
        %v5069 = vmul.f32 1.0, %v5068
        %v5070 = vrcp.pop %v4964
        %v5071 = vmul.f32 %v4964, %v5070
        %v5072 = vsub.f32 1.0, %v5071
        %v5073 = vmul.f32 %v5070, %v5072
        %v5074 = vadd.f32 %v5070, %v5073
        %vm5075 = vweird.f32 %v4964
        %vm5076 = vweird.f32 %v5070
        %vm5077 = vmor %vm5075, %vm5076
        %v5078 = vsel %vm5077, %v5070, %v5074
        %v5079 = vand.u32 2147483647, %v4964
        %vm5080 = vcmp.eq.f32.partialorder %v5079, 8.507059e+37
        %v5081 = vand.u32 %v4964, 2147483648
        %v5082 = vor.u32 1.1754944e-38, %v5081
        %v5083 = vsel %vm5080, %v5082, %v5078
        %v5084 = vmul.f32 1.0, %v5083
        %v5085 = vadd.f32 %v2839, %v4901
        %v5086 = vadd.f32 %v2840, %v4902
        %v5087 = vadd.f32 %v2841, %v4903
        %v5088 = vadd.f32 %v2842, %v4904
        %v5089 = vadd.f32 %v2843, %v4905
        %v5090 = vadd.f32 %v2844, %v4906
        %v5091 = vadd.f32 %v2845, %v4907
        %v5092 = vadd.f32 %v2846, %v4908
        %v5093 = vadd.f32 %v5085, 0.01
        %v5094 = vadd.f32 %v5086, 0.01
        %v5095 = vadd.f32 %v5087, 0.01
        %v5096 = vadd.f32 %v5088, 0.01
        %v5097 = vadd.f32 %v5089, 0.01
        %v5098 = vadd.f32 %v5090, 0.01
        %v5099 = vadd.f32 %v5091, 0.01
        %v5100 = vadd.f32 %v5092, 0.01
        %v5101 = vxor.u32 %v5093, 2147483648
        %v5102 = vxor.u32 %v5094, 2147483648
        %v5103 = vxor.u32 %v5095, 2147483648
        %v5104 = vxor.u32 %v5096, 2147483648
        %v5105 = vxor.u32 %v5097, 2147483648
        %v5106 = vxor.u32 %v5098, 2147483648
        %v5107 = vxor.u32 %v5099, 2147483648
        %v5108 = vxor.u32 %v5100, 2147483648
        %v5109 = vmul.f32 %v5101, 1.442695
        %v5110 = vpow.pop %v5109
        %v5111 = vmul.f32 %v5102, 1.442695
        %v5112 = vpow.pop %v5111
        %v5113 = vmul.f32 %v5103, 1.442695
        %v5114 = vpow.pop %v5113
        %v5115 = vmul.f32 %v5104, 1.442695
        %v5116 = vpow.pop %v5115
        %v5117 = vmul.f32 %v5105, 1.442695
        %v5118 = vpow.pop %v5117
        %v5119 = vmul.f32 %v5106, 1.442695
        %v5120 = vpow.pop %v5119
        %v5121 = vmul.f32 %v5107, 1.442695
        %v5122 = vpow.pop %v5121
        %v5123 = vmul.f32 %v5108, 1.442695
        %v5124 = vpow.pop %v5123
        %v5125 = vadd.f32 %v5110, 1.0
        %v5126 = vadd.f32 %v5112, 1.0
        %v5127 = vadd.f32 %v5114, 1.0
        %v5128 = vadd.f32 %v5116, 1.0
        %v5129 = vadd.f32 %v5118, 1.0
        %v5130 = vadd.f32 %v5120, 1.0
        %v5131 = vadd.f32 %v5122, 1.0
        %v5132 = vadd.f32 %v5124, 1.0
        %v5133 = vrcp.pop %v5125
        %v5134 = vmul.f32 %v5125, %v5133
        %v5135 = vsub.f32 1.0, %v5134
        %v5136 = vmul.f32 %v5133, %v5135
        %v5137 = vadd.f32 %v5133, %v5136
        %vm5138 = vweird.f32 %v5125
        %vm5139 = vweird.f32 %v5133
        %vm5140 = vmor %vm5138, %vm5139
        %v5141 = vsel %vm5140, %v5133, %v5137
        %v5142 = vand.u32 2147483647, %v5125
        %vm5143 = vcmp.eq.f32.partialorder %v5142, 8.507059e+37
        %v5144 = vand.u32 %v5125, 2147483648
        %v5145 = vor.u32 1.1754944e-38, %v5144
        %v5146 = vsel %vm5143, %v5145, %v5141
        %v5147 = vmul.f32 1.0, %v5146
        %v5148 = vrcp.pop %v5126
        %v5149 = vmul.f32 %v5126, %v5148
        %v5150 = vsub.f32 1.0, %v5149
        %v5151 = vmul.f32 %v5148, %v5150
        %v5152 = vadd.f32 %v5148, %v5151
        %vm5153 = vweird.f32 %v5126
        %vm5154 = vweird.f32 %v5148
        %vm5155 = vmor %vm5153, %vm5154
        %v5156 = vsel %vm5155, %v5148, %v5152
        %v5157 = vand.u32 2147483647, %v5126
        %vm5158 = vcmp.eq.f32.partialorder %v5157, 8.507059e+37
        %v5159 = vand.u32 %v5126, 2147483648
        %v5160 = vor.u32 1.1754944e-38, %v5159
        %v5161 = vsel %vm5158, %v5160, %v5156
        %v5162 = vmul.f32 1.0, %v5161
        %v5163 = vrcp.pop %v5127
        %v5164 = vmul.f32 %v5127, %v5163
        %v5165 = vsub.f32 1.0, %v5164
        %v5166 = vmul.f32 %v5163, %v5165
        %v5167 = vadd.f32 %v5163, %v5166
        %vm5168 = vweird.f32 %v5127
        %vm5169 = vweird.f32 %v5163
        %vm5170 = vmor %vm5168, %vm5169
        %v5171 = vsel %vm5170, %v5163, %v5167
        %v5172 = vand.u32 2147483647, %v5127
        %vm5173 = vcmp.eq.f32.partialorder %v5172, 8.507059e+37
        %v5174 = vand.u32 %v5127, 2147483648
        %v5175 = vor.u32 1.1754944e-38, %v5174
        %v5176 = vsel %vm5173, %v5175, %v5171
        %v5177 = vmul.f32 1.0, %v5176
        %v5178 = vrcp.pop %v5128
        %v5179 = vmul.f32 %v5128, %v5178
        %v5180 = vsub.f32 1.0, %v5179
        %v5181 = vmul.f32 %v5178, %v5180
        %v5182 = vadd.f32 %v5178, %v5181
        %vm5183 = vweird.f32 %v5128
        %vm5184 = vweird.f32 %v5178
        %vm5185 = vmor %vm5183, %vm5184
        %v5186 = vsel %vm5185, %v5178, %v5182
        %v5187 = vand.u32 2147483647, %v5128
        %vm5188 = vcmp.eq.f32.partialorder %v5187, 8.507059e+37
        %v5189 = vand.u32 %v5128, 2147483648
        %v5190 = vor.u32 1.1754944e-38, %v5189
        %v5191 = vsel %vm5188, %v5190, %v5186
        %v5192 = vmul.f32 1.0, %v5191
        %v5193 = vrcp.pop %v5129
        %v5194 = vmul.f32 %v5129, %v5193
        %v5195 = vsub.f32 1.0, %v5194
        %v5196 = vmul.f32 %v5193, %v5195
        %v5197 = vadd.f32 %v5193, %v5196
        %vm5198 = vweird.f32 %v5129
        %vm5199 = vweird.f32 %v5193
        %vm5200 = vmor %vm5198, %vm5199
        %v5201 = vsel %vm5200, %v5193, %v5197
        %v5202 = vand.u32 2147483647, %v5129
        %vm5203 = vcmp.eq.f32.partialorder %v5202, 8.507059e+37
        %v5204 = vand.u32 %v5129, 2147483648
        %v5205 = vor.u32 1.1754944e-38, %v5204
        %v5206 = vsel %vm5203, %v5205, %v5201
        %v5207 = vmul.f32 1.0, %v5206
        %v5208 = vrcp.pop %v5130
        %v5209 = vmul.f32 %v5130, %v5208
        %v5210 = vsub.f32 1.0, %v5209
        %v5211 = vmul.f32 %v5208, %v5210
        %v5212 = vadd.f32 %v5208, %v5211
        %vm5213 = vweird.f32 %v5130
        %vm5214 = vweird.f32 %v5208
        %vm5215 = vmor %vm5213, %vm5214
        %v5216 = vsel %vm5215, %v5208, %v5212
        %v5217 = vand.u32 2147483647, %v5130
        %vm5218 = vcmp.eq.f32.partialorder %v5217, 8.507059e+37
        %v5219 = vand.u32 %v5130, 2147483648
        %v5220 = vor.u32 1.1754944e-38, %v5219
        %v5221 = vsel %vm5218, %v5220, %v5216
        %v5222 = vmul.f32 1.0, %v5221
        %v5223 = vrcp.pop %v5131
        %v5224 = vmul.f32 %v5131, %v5223
        %v5225 = vsub.f32 1.0, %v5224
        %v5226 = vmul.f32 %v5223, %v5225
        %v5227 = vadd.f32 %v5223, %v5226
        %vm5228 = vweird.f32 %v5131
        %vm5229 = vweird.f32 %v5223
        %vm5230 = vmor %vm5228, %vm5229
        %v5231 = vsel %vm5230, %v5223, %v5227
        %v5232 = vand.u32 2147483647, %v5131
        %vm5233 = vcmp.eq.f32.partialorder %v5232, 8.507059e+37
        %v5234 = vand.u32 %v5131, 2147483648
        %v5235 = vor.u32 1.1754944e-38, %v5234
        %v5236 = vsel %vm5233, %v5235, %v5231
        %v5237 = vmul.f32 1.0, %v5236
        %v5238 = vrcp.pop %v5132
        %v5239 = vmul.f32 %v5132, %v5238
        %v5240 = vsub.f32 1.0, %v5239
        %v5241 = vmul.f32 %v5238, %v5240
        %v5242 = vadd.f32 %v5238, %v5241
        %vm5243 = vweird.f32 %v5132
        %vm5244 = vweird.f32 %v5238
        %vm5245 = vmor %vm5243, %vm5244
        %v5246 = vsel %vm5245, %v5238, %v5242
        %v5247 = vand.u32 2147483647, %v5132
        %vm5248 = vcmp.eq.f32.partialorder %v5247, 8.507059e+37
        %v5249 = vand.u32 %v5132, 2147483648
        %v5250 = vor.u32 1.1754944e-38, %v5249
        %v5251 = vsel %vm5248, %v5250, %v5246
        %v5252 = vmul.f32 1.0, %v5251
        %5253 = vrot.lane.b32.xlu0 %v2855, 111
        %v5254 = vpop.permute.xlu0 %5253
        %5255 = vrot.lane.b32.xlu0 %v2856, 111
        %v5256 = vpop.permute.xlu0 %5255
        %5257 = vrot.lane.b32.xlu0 %v2887, 111
        %v5258 = vpop.permute.xlu0 %5257
        %5259 = vrot.lane.b32.xlu0 %v2857, 111
        %v5260 = vpop.permute.xlu0 %5259
        %5261 = vrot.lane.b32.xlu0 %v2858, 111
        %v5262 = vpop.permute.xlu0 %5261
        %5263 = vrot.lane.b32.xlu0 %v2888, 111
        %v5264 = vpop.permute.xlu0 %5263
        %5265 = vrot.lane.b32.xlu0 %v2859, 111
        %v5266 = vpop.permute.xlu0 %5265
        %5267 = vrot.lane.b32.xlu0 %v2860, 111
        %v5268 = vpop.permute.xlu0 %5267
        %5269 = vrot.lane.b32.xlu0 %v2889, 111
        %v5270 = vpop.permute.xlu0 %5269
        %5271 = vrot.lane.b32.xlu0 %v2861, 111
        %v5272 = vpop.permute.xlu0 %5271
        %5273 = vrot.lane.b32.xlu0 %v2862, 111
        %v5274 = vpop.permute.xlu0 %5273
        %5275 = vrot.lane.b32.xlu0 %v2890, 111
        %v5276 = vpop.permute.xlu0 %5275
        %vm5277 = vcmask 908288
        %v5278 = vsel %vm5277, %v5254, %v5256
        %v5279 = vsel %vm5277, %v5256, %v5258
        %v5280 = vsel %vm5277, %v5260, %v5262
        %v5281 = vsel %vm5277, %v5262, %v5264
        %v5282 = vsel %vm5277, %v5266, %v5268
        %v5283 = vsel %vm5277, %v5268, %v5270
        %v5284 = vsel %vm5277, %v5272, %v5274
        %v5285 = vsel %vm5277, %v5274, %v5276
        %v5294 = vmul.f32 %v5147, %v5278
        %v5295 = vmul.f32 %v5162, %v5279
        %v5296 = vmul.f32 %v5177, %v5280
        %v5297 = vmul.f32 %v5192, %v5281
        %v5298 = vmul.f32 %v5207, %v5282
        %v5299 = vmul.f32 %v5222, %v5283
        %v5300 = vmul.f32 %v5237, %v5284
        %v5301 = vmul.f32 %v5252, %v5285
        %v5302 = vmul.f32 %v4979, %v4917
        %v5303 = vmul.f32 %v4994, %v4918
        %v5304 = vmul.f32 %v5009, %v4919
        %v5305 = vmul.f32 %v5024, %v4920
        %v5306 = vmul.f32 %v5039, %v4921
        %v5307 = vmul.f32 %v5054, %v4922
        %v5308 = vmul.f32 %v5069, %v4923
        %v5309 = vmul.f32 %v5084, %v4924
        %v5310 = vadd.f32 %v5294, %v5302
        %v5311 = vadd.f32 %v5295, %v5303
        %v5312 = vadd.f32 %v5296, %v5304
        %v5313 = vadd.f32 %v5297, %v5305
        %v5314 = vadd.f32 %v5298, %v5306
        %v5315 = vadd.f32 %v5299, %v5307
        %v5316 = vadd.f32 %v5300, %v5308
        %v5317 = vadd.f32 %v5301, %v5309
        %vm5318 = vcmask 138240
        %5319 = vst.msk [vmem:[#allocation2] sm:$0xff] %vm5318, 0.0
        %5320 = vst.msk [vmem:[#allocation2 + $0x18] sm:$0xff] %vm5318, 0.0
        %5321 = vst.msk [vmem:[#allocation2 + $0x30] sm:$0xff] %vm5318, 0.0
        %5322 = vst.msk [vmem:[#allocation2 + $0x48] sm:$0xff] %vm5318, 0.0
        %vm5323 = vcmask 277640
        %5324 = vst.msk [vmem:[#allocation2 + $0x10] sm:$0xff] %vm5323, 0.0
        %5325 = vst.msk [vmem:[#allocation2 + $0x28] sm:$0xff] %vm5323, 0.0
        %5326 = vst.msk [vmem:[#allocation2 + $0x40] sm:$0xff] %vm5323, 0.0
        %5327 = vst.msk [vmem:[#allocation2 + $0x58] sm:$0xff] %vm5323, 0.0
        %5336 = vrot.lane.b32.xlu0 %v5310, 17
        %v5337 = vpop.permute.xlu0 %5336
        %5338 = vrot.lane.b32.xlu0 %v5311, 17
        %v5339 = vpop.permute.xlu0 %5338
        %5340 = vrot.lane.b32.xlu0 %v5312, 17
        %v5341 = vpop.permute.xlu0 %5340
        %5342 = vrot.lane.b32.xlu0 %v5313, 17
        %v5343 = vpop.permute.xlu0 %5342
        %5344 = vrot.lane.b32.xlu0 %v5314, 17
        %v5345 = vpop.permute.xlu0 %5344
        %5346 = vrot.lane.b32.xlu0 %v5315, 17
        %v5347 = vpop.permute.xlu0 %5346
        %5348 = vrot.lane.b32.xlu0 %v5316, 17
        %v5349 = vpop.permute.xlu0 %5348
        %5350 = vrot.lane.b32.xlu0 %v5317, 17
        %v5351 = vpop.permute.xlu0 %5350
        %v5352 = vsel %vm5318, %v5337, %v5339
        %v5353 = vsel %vm5318, %v5341, %v5343
        %v5354 = vsel %vm5318, %v5345, %v5347
        %v5355 = vsel %vm5318, %v5349, %v5351
        %vm5368 = vcmask 1047688
        %5369 = vst.msk [vmem:[#allocation2] sm:$0xff] %vm5368, %v5337
        %5370 = vst [vmem:[#allocation2 + $0x8] sm:$0xff] %v5352
        %5371 = vst.msk [vmem:[#allocation2 + $0x10] sm:$0xff] %vm5318, %v5339
        %5372 = vst.msk [vmem:[#allocation2 + $0x18] sm:$0xff] %vm5368, %v5341
        %5373 = vst [vmem:[#allocation2 + $0x20] sm:$0xff] %v5353
        %5374 = vst.msk [vmem:[#allocation2 + $0x28] sm:$0xff] %vm5318, %v5343
        %5375 = vst.msk [vmem:[#allocation2 + $0x30] sm:$0xff] %vm5368, %v5345
        %5376 = vst [vmem:[#allocation2 + $0x38] sm:$0xff] %v5354
        %5377 = vst.msk [vmem:[#allocation2 + $0x40] sm:$0xff] %vm5318, %v5347
        %5378 = vst.msk [vmem:[#allocation2 + $0x48] sm:$0xff] %vm5368, %v5349
        %5379 = vst [vmem:[#allocation2 + $0x50] sm:$0xff] %v5355
        %5380 = vst.msk [vmem:[#allocation2 + $0x58] sm:$0xff] %vm5318, %v5351
        %v5381 = vld [vmem:[#allocation2] sm:$0xff]
        %v5382 = vld [vmem:[#allocation2 + $0x8] sm:$0xff]
        %v5383 = vld [vmem:[#allocation2 + $0x18] sm:$0xff]
        %v5384 = vld [vmem:[#allocation2 + $0x20] sm:$0xff]
        %v5385 = vld [vmem:[#allocation2 + $0x30] sm:$0xff]
        %v5386 = vld [vmem:[#allocation2 + $0x38] sm:$0xff]
        %v5387 = vld [vmem:[#allocation2 + $0x48] sm:$0xff]
        %v5388 = vld [vmem:[#allocation2 + $0x50] sm:$0xff]
        %v5389 = vsel %vm397, %v5381, 0.0
        %v5390 = vsel %vm398, %v5382, 0.0
        %v5391 = vsel %vm397, %v5383, 0.0
        %v5392 = vsel %vm398, %v5384, 0.0
        %v5393 = vsel %vm397, %v5385, 0.0
        %v5394 = vsel %vm398, %v5386, 0.0
        %v5395 = vsel %vm397, %v5387, 0.0
        %v5396 = vsel %vm398, %v5388, 0.0
        %v5397 = vld [vmem:[%s6] sm:$0xf]
        %v5398 = vld [vmem:[%s6 + $0x4] sm:$0xf]
        %v5399 = vld [vmem:[%s6 + $0x8] sm:$0xf]
        %v5400 = vld [vmem:[%s6 + $0xc] sm:$0xf]
        %v5401 = vpack.c.bf16 %v5391, %v5389
        %v5402 = vpack.c.bf16 %v5392, %v5390
        %v5403 = vpack.c.bf16 %v5395, %v5393
        %v5404 = vpack.c.bf16 %v5396, %v5394
        %v5405 = vld [vmem:[#allocation2 + $0x10] sm:$0xff]
        %v5406 = vld [vmem:[#allocation2 + $0x28] sm:$0xff]
        %v5407 = vld [vmem:[#allocation2 + $0x40] sm:$0xff]
        %v5408 = vld [vmem:[#allocation2 + $0x58] sm:$0xff]
        %s5409 = scalar_lea.vmem %s6, 16
        %v5410 = vld [vmem:[%s5409] sm:$0xf]
        %v5411 = vld [vmem:[%s5409 + $0x4] sm:$0xf]
        %v5412 = vld [vmem:[%s5409 + $0x8] sm:$0xf]
        %v5413 = vld [vmem:[%s5409 + $0xc] sm:$0xf]
        %v5414 = vpack.c.bf16 %v5383, %v5381
        %v5415 = vpack.c.bf16 %v5384, %v5382
        %v5416 = vpack.c.bf16 %v5406, %v5405
        %v5417 = vpack.c.bf16 %v5387, %v5385
        %v5418 = vpack.c.bf16 %v5388, %v5386
        %v5419 = vpack.c.bf16 %v5408, %v5407
        %v5424 = vunpack.c.l.b16 %v5410
        %v5425 = vunpack.c.l.b16 %v5411
        %v5426 = vunpack.c.l.b16 %v5412
        %v5427 = vunpack.c.l.b16 %v5413
        %v5428 = vpack.c.b16 %v5425, %v5424
        %v5429 = vpack.c.b16 %v5427, %v5426
        %5436 = vrot.lane.b32.xlu0 %v5414, 127
        %v5437 = vpop.permute.xlu0 %5436
        %5438 = vrot.lane.b32.xlu0 %v5415, 127
        %v5439 = vpop.permute.xlu0 %5438
        %5440 = vrot.lane.b32.xlu0 %v5416, 127
        %v5441 = vpop.permute.xlu0 %5440
        %5442 = vrot.lane.b32.xlu0 %v5417, 127
        %v5443 = vpop.permute.xlu0 %5442
        %5444 = vrot.lane.b32.xlu0 %v5418, 127
        %v5445 = vpop.permute.xlu0 %5444
        %5446 = vrot.lane.b32.xlu0 %v5419, 127
        %v5447 = vpop.permute.xlu0 %5446
        %v5448 = vsel %vm507, %v5437, %v5439
        %v5449 = vsel %vm507, %v5439, %v5441
        %v5450 = vsel %vm507, %v5443, %v5445
        %v5451 = vsel %vm507, %v5445, %v5447
        %v5457 = vsel %vm2966, %v5428, 0
        %v5460 = vsel %vm2966, %v5429, 0
        %5462 = vmatpush.bf16.msra.mxu0 0
        %5463 = vmatpush.bf16.msra.mxu0 0
        %5464 = vmatpush.bf16.msra.mxu0 0
        %5465 = vmatpush.bf16.msra.mxu0 0
        %5466 = vmatpush.bf16.msra.mxu0 0
        %5467 = vmatpush.bf16.msra.mxu0 0
        %5468 = vmatpush.bf16.msra.mxu0 %v5450
        %5469 = vmatpush.bf16.msra.mxu0 %v5448
        %5470 = vmatmul.bf16.gmra.mxu0 %v5457
        %v5471 = vpop.f32.mrf.mxu0
        %v5472 = vadd.f32 0.0, %v5471
        %v5473 = vpop.f32.mrf.mxu0
        %v5474 = vadd.f32 0.0, %v5473
        %5475 = vmatmul.bf16.gmra.mxu0 %v5460
        %v5476 = vpop.f32.mrf.mxu0
        %v5477 = vadd.f32 0.0, %v5476
        %v5478 = vpop.f32.mrf.mxu0
        %v5479 = vadd.f32 0.0, %v5478
        %5480 = vdwg.mxu0
        %5481 = vmatpush.bf16.msra.mxu0 0
        %5482 = vmatpush.bf16.msra.mxu0 0
        %5483 = vmatpush.bf16.msra.mxu0 0
        %5484 = vmatpush.bf16.msra.mxu0 0
        %5485 = vmatpush.bf16.msra.mxu0 0
        %5486 = vmatpush.bf16.msra.mxu0 0
        %5487 = vmatpush.bf16.msra.mxu0 %v5451
        %5488 = vmatpush.bf16.msra.mxu0 %v5449
        %5489 = vmatmul.bf16.gmra.mxu0 %v5457
        %v5490 = vpop.f32.mrf.mxu0
        %v5491 = vadd.f32 0.0, %v5490
        %v5492 = vpop.f32.mrf.mxu0
        %v5493 = vadd.f32 0.0, %v5492
        %5494 = vmatmul.bf16.gmra.mxu0 %v5460
        %v5495 = vpop.f32.mrf.mxu0
        %v5496 = vadd.f32 0.0, %v5495
        %v5497 = vpop.f32.mrf.mxu0
        %v5498 = vadd.f32 0.0, %v5497
        %5499 = vdwg.mxu0
        %v5504 = vunpack.c.l.b16 %v5397
        %v5505 = vunpack.c.l.b16 %v5398
        %v5506 = vunpack.c.l.b16 %v5399
        %v5507 = vunpack.c.l.b16 %v5400
        %v5508 = vpack.c.b16 %v5505, %v5504
        %v5509 = vpack.c.b16 %v5507, %v5506
        %v5511 = vsel %vm2966, %v5508, 0
        %v5514 = vsel %vm2966, %v5509, 0
        %5516 = vmatpush.bf16.msra.mxu0 0
        %5517 = vmatpush.bf16.msra.mxu0 0
        %5518 = vmatpush.bf16.msra.mxu0 0
        %5519 = vmatpush.bf16.msra.mxu0 0
        %5520 = vmatpush.bf16.msra.mxu0 0
        %5521 = vmatpush.bf16.msra.mxu0 0
        %5522 = vmatpush.bf16.msra.mxu0 %v5403
        %5523 = vmatpush.bf16.msra.mxu0 %v5401
        %5524 = vmatmul.bf16.gmra.mxu0 %v5511
        %v5525 = vpop.f32.mrf.mxu0
        %v5526 = vadd.f32 %v5472, %v5525
        %v5527 = vpop.f32.mrf.mxu0
        %v5528 = vadd.f32 %v5474, %v5527
        %5529 = vmatmul.bf16.gmra.mxu0 %v5514
        %v5530 = vpop.f32.mrf.mxu0
        %v5531 = vadd.f32 %v5477, %v5530
        %v5532 = vpop.f32.mrf.mxu0
        %v5533 = vadd.f32 %v5479, %v5532
        %5534 = vdwg.mxu0
        %5535 = vmatpush.bf16.msra.mxu0 0
        %5536 = vmatpush.bf16.msra.mxu0 0
        %5537 = vmatpush.bf16.msra.mxu0 0
        %5538 = vmatpush.bf16.msra.mxu0 0
        %5539 = vmatpush.bf16.msra.mxu0 0
        %5540 = vmatpush.bf16.msra.mxu0 0
        %5541 = vmatpush.bf16.msra.mxu0 %v5404
        %5542 = vmatpush.bf16.msra.mxu0 %v5402
        %5543 = vmatmul.bf16.gmra.mxu0 %v5511
        %v5544 = vpop.f32.mrf.mxu0
        %v5545 = vadd.f32 %v5491, %v5544
        %v5546 = vpop.f32.mrf.mxu0
        %v5547 = vadd.f32 %v5493, %v5546
        %5548 = vmatmul.bf16.gmra.mxu0 %v5514
        %v5549 = vpop.f32.mrf.mxu0
        %v5550 = vadd.f32 %v5496, %v5549
        %v5551 = vpop.f32.mrf.mxu0
        %v5552 = vadd.f32 %v5498, %v5551
        %5553 = vdwg.mxu0
        %5566 = vrot.lane.b32.xlu0 %v5381, 126
        %v5567 = vpop.permute.xlu0 %5566
        %5568 = vrot.lane.b32.xlu0 %v5382, 126
        %v5569 = vpop.permute.xlu0 %5568
        %5570 = vrot.lane.b32.xlu0 %v5405, 126
        %v5571 = vpop.permute.xlu0 %5570
        %5572 = vrot.lane.b32.xlu0 %v5383, 126
        %v5573 = vpop.permute.xlu0 %5572
        %5574 = vrot.lane.b32.xlu0 %v5384, 126
        %v5575 = vpop.permute.xlu0 %5574
        %5576 = vrot.lane.b32.xlu0 %v5406, 126
        %v5577 = vpop.permute.xlu0 %5576
        %5578 = vrot.lane.b32.xlu0 %v5385, 126
        %v5579 = vpop.permute.xlu0 %5578
        %5580 = vrot.lane.b32.xlu0 %v5386, 126
        %v5581 = vpop.permute.xlu0 %5580
        %5582 = vrot.lane.b32.xlu0 %v5407, 126
        %v5583 = vpop.permute.xlu0 %5582
        %5584 = vrot.lane.b32.xlu0 %v5387, 126
        %v5585 = vpop.permute.xlu0 %5584
        %5586 = vrot.lane.b32.xlu0 %v5388, 126
        %v5587 = vpop.permute.xlu0 %5586
        %5588 = vrot.lane.b32.xlu0 %v5408, 126
        %v5589 = vpop.permute.xlu0 %5588
        %v5590 = vsel %vm832, %v5567, %v5569
        %v5591 = vsel %vm832, %v5569, %v5571
        %v5592 = vsel %vm832, %v5573, %v5575
        %v5593 = vsel %vm832, %v5575, %v5577
        %v5594 = vsel %vm832, %v5579, %v5581
        %v5595 = vsel %vm832, %v5581, %v5583
        %v5596 = vsel %vm832, %v5585, %v5587
        %v5597 = vsel %vm832, %v5587, %v5589
        %v5606 = vsel %vm816, %v5590, 0.0
        %v5607 = vsel %vm817, %v5591, 0.0
        %v5608 = vsel %vm816, %v5592, 0.0
        %v5609 = vsel %vm817, %v5593, 0.0
        %v5610 = vsel %vm816, %v5594, 0.0
        %v5611 = vsel %vm817, %v5595, 0.0
        %v5612 = vsel %vm816, %v5596, 0.0
        %v5613 = vsel %vm817, %v5597, 0.0
        %s5614 = scalar_lea.vmem %s6, 32
        %v5615 = vld [vmem:[%s5614] sm:$0xf]
        %v5616 = vld [vmem:[%s5614 + $0x4] sm:$0xf]
        %v5617 = vld [vmem:[%s5614 + $0x8] sm:$0xf]
        %v5618 = vld [vmem:[%s5614 + $0xc] sm:$0xf]
        %v5619 = vpack.c.bf16 %v5608, %v5606
        %v5620 = vpack.c.bf16 %v5609, %v5607
        %v5621 = vpack.c.bf16 %v5612, %v5610
        %v5622 = vpack.c.bf16 %v5613, %v5611
        %v5627 = vunpack.c.l.b16 %v5615
        %v5628 = vunpack.c.l.b16 %v5616
        %v5629 = vunpack.c.l.b16 %v5617
        %v5630 = vunpack.c.l.b16 %v5618
        %v5631 = vpack.c.b16 %v5628, %v5627
        %v5632 = vpack.c.b16 %v5630, %v5629
        %v5634 = vsel %vm2966, %v5631, 0
        %v5637 = vsel %vm2966, %v5632, 0
        %5639 = vmatpush.bf16.msra.mxu0 0
        %5640 = vmatpush.bf16.msra.mxu0 0
        %5641 = vmatpush.bf16.msra.mxu0 0
        %5642 = vmatpush.bf16.msra.mxu0 0
        %5643 = vmatpush.bf16.msra.mxu0 0
        %5644 = vmatpush.bf16.msra.mxu0 0
        %5645 = vmatpush.bf16.msra.mxu0 %v5621
        %5646 = vmatpush.bf16.msra.mxu0 %v5619
        %5647 = vmatmul.bf16.gmra.mxu0 %v5634
        %v5648 = vpop.f32.mrf.mxu0
        %v5649 = vadd.f32 0.0, %v5648
        %v5650 = vpop.f32.mrf.mxu0
        %v5651 = vadd.f32 0.0, %v5650
        %5652 = vmatmul.bf16.gmra.mxu0 %v5637
        %v5653 = vpop.f32.mrf.mxu0
        %v5654 = vadd.f32 0.0, %v5653
        %v5655 = vpop.f32.mrf.mxu0
        %v5656 = vadd.f32 0.0, %v5655
        %5657 = vdwg.mxu0
        %5658 = vmatpush.bf16.msra.mxu0 0
        %5659 = vmatpush.bf16.msra.mxu0 0
        %5660 = vmatpush.bf16.msra.mxu0 0
        %5661 = vmatpush.bf16.msra.mxu0 0
        %5662 = vmatpush.bf16.msra.mxu0 0
        %5663 = vmatpush.bf16.msra.mxu0 0
        %5664 = vmatpush.bf16.msra.mxu0 %v5622
        %5665 = vmatpush.bf16.msra.mxu0 %v5620
        %5666 = vmatmul.bf16.gmra.mxu0 %v5634
        %v5667 = vpop.f32.mrf.mxu0
        %v5668 = vadd.f32 0.0, %v5667
        %v5669 = vpop.f32.mrf.mxu0
        %v5670 = vadd.f32 0.0, %v5669
        %5671 = vmatmul.bf16.gmra.mxu0 %v5637
        %v5672 = vpop.f32.mrf.mxu0
        %v5673 = vadd.f32 0.0, %v5672
        %v5674 = vpop.f32.mrf.mxu0
        %v5675 = vadd.f32 0.0, %v5674
        %5676 = vdwg.mxu0
        %v5677 = vadd.f32 %v5526, %v5649
        %v5678 = vadd.f32 %v5545, %v5668
        %v5679 = vadd.f32 %v5528, %v5651
        %v5680 = vadd.f32 %v5547, %v5670
        %v5681 = vadd.f32 %v5531, %v5654
        %v5682 = vadd.f32 %v5550, %v5673
        %v5683 = vadd.f32 %v5533, %v5656
        %v5684 = vadd.f32 %v5552, %v5675
        %5685 = vrot.lane.b32.xlu0 %v5381, 112
        %v5686 = vpop.permute.xlu0 %5685
        %5687 = vrot.lane.b32.xlu0 %v5382, 112
        %v5688 = vpop.permute.xlu0 %5687
        %5689 = vrot.lane.b32.xlu0 %v5405, 112
        %v5690 = vpop.permute.xlu0 %5689
        %5691 = vrot.lane.b32.xlu0 %v5383, 112
        %v5692 = vpop.permute.xlu0 %5691
        %5693 = vrot.lane.b32.xlu0 %v5384, 112
        %v5694 = vpop.permute.xlu0 %5693
        %5695 = vrot.lane.b32.xlu0 %v5406, 112
        %v5696 = vpop.permute.xlu0 %5695
        %5697 = vrot.lane.b32.xlu0 %v5385, 112
        %v5698 = vpop.permute.xlu0 %5697
        %5699 = vrot.lane.b32.xlu0 %v5386, 112
        %v5700 = vpop.permute.xlu0 %5699
        %5701 = vrot.lane.b32.xlu0 %v5407, 112
        %v5702 = vpop.permute.xlu0 %5701
        %5703 = vrot.lane.b32.xlu0 %v5387, 112
        %v5704 = vpop.permute.xlu0 %5703
        %5705 = vrot.lane.b32.xlu0 %v5388, 112
        %v5706 = vpop.permute.xlu0 %5705
        %5707 = vrot.lane.b32.xlu0 %v5408, 112
        %v5708 = vpop.permute.xlu0 %5707
        %v5709 = vsel %vm1074, %v5686, %v5688
        %v5710 = vsel %vm1074, %v5688, %v5690
        %v5711 = vsel %vm1074, %v5692, %v5694
        %v5712 = vsel %vm1074, %v5694, %v5696
        %v5713 = vsel %vm1074, %v5698, %v5700
        %v5714 = vsel %vm1074, %v5700, %v5702
        %v5715 = vsel %vm1074, %v5704, %v5706
        %v5716 = vsel %vm1074, %v5706, %v5708
        %v5725 = vsel %vm397, %v5709, 0.0
        %v5726 = vsel %vm398, %v5710, 0.0
        %v5727 = vsel %vm397, %v5711, 0.0
        %v5728 = vsel %vm398, %v5712, 0.0
        %v5729 = vsel %vm397, %v5713, 0.0
        %v5730 = vsel %vm398, %v5714, 0.0
        %v5731 = vsel %vm397, %v5715, 0.0
        %v5732 = vsel %vm398, %v5716, 0.0
        %s5733 = scalar_lea.vmem %s6, 48
        %v5734 = vld [vmem:[%s5733] sm:$0xf]
        %v5735 = vld [vmem:[%s5733 + $0x4] sm:$0xf]
        %v5736 = vld [vmem:[%s5733 + $0x8] sm:$0xf]
        %v5737 = vld [vmem:[%s5733 + $0xc] sm:$0xf]
        %v5738 = vpack.c.bf16 %v5727, %v5725
        %v5739 = vpack.c.bf16 %v5728, %v5726
        %v5740 = vpack.c.bf16 %v5731, %v5729
        %v5741 = vpack.c.bf16 %v5732, %v5730
        %v5746 = vunpack.c.l.b16 %v5734
        %v5747 = vunpack.c.l.b16 %v5735
        %v5748 = vunpack.c.l.b16 %v5736
        %v5749 = vunpack.c.l.b16 %v5737
        %v5750 = vpack.c.b16 %v5747, %v5746
        %v5751 = vpack.c.b16 %v5749, %v5748
        %v5753 = vsel %vm2966, %v5750, 0
        %v5756 = vsel %vm2966, %v5751, 0
        %5758 = vmatpush.bf16.msra.mxu0 0
        %5759 = vmatpush.bf16.msra.mxu0 0
        %5760 = vmatpush.bf16.msra.mxu0 0
        %5761 = vmatpush.bf16.msra.mxu0 0
        %5762 = vmatpush.bf16.msra.mxu0 0
        %5763 = vmatpush.bf16.msra.mxu0 0
        %5764 = vmatpush.bf16.msra.mxu0 %v5740
        %5765 = vmatpush.bf16.msra.mxu0 %v5738
        %5766 = vmatmul.bf16.gmra.mxu0 %v5753
        %v5767 = vpop.f32.mrf.mxu0
        %v5768 = vadd.f32 0.0, %v5767
        %v5769 = vpop.f32.mrf.mxu0
        %v5770 = vadd.f32 0.0, %v5769
        %5771 = vmatmul.bf16.gmra.mxu0 %v5756
        %v5772 = vpop.f32.mrf.mxu0
        %v5773 = vadd.f32 0.0, %v5772
        %v5774 = vpop.f32.mrf.mxu0
        %v5775 = vadd.f32 0.0, %v5774
        %5776 = vdwg.mxu0
        %5777 = vmatpush.bf16.msra.mxu0 0
        %5778 = vmatpush.bf16.msra.mxu0 0
        %5779 = vmatpush.bf16.msra.mxu0 0
        %5780 = vmatpush.bf16.msra.mxu0 0
        %5781 = vmatpush.bf16.msra.mxu0 0
        %5782 = vmatpush.bf16.msra.mxu0 0
        %5783 = vmatpush.bf16.msra.mxu0 %v5741
        %5784 = vmatpush.bf16.msra.mxu0 %v5739
        %5785 = vmatmul.bf16.gmra.mxu0 %v5753
        %v5786 = vpop.f32.mrf.mxu0
        %v5787 = vadd.f32 0.0, %v5786
        %v5788 = vpop.f32.mrf.mxu0
        %v5789 = vadd.f32 0.0, %v5788
        %5790 = vmatmul.bf16.gmra.mxu0 %v5756
        %v5791 = vpop.f32.mrf.mxu0
        %v5792 = vadd.f32 0.0, %v5791
        %v5793 = vpop.f32.mrf.mxu0
        %v5794 = vadd.f32 0.0, %v5793
        %5795 = vdwg.mxu0
        %v5796 = vadd.f32 %v5677, %v5768
        %v5797 = vadd.f32 %v5678, %v5787
        %v5798 = vadd.f32 %v5679, %v5770
        %v5799 = vadd.f32 %v5680, %v5789
        %v5800 = vadd.f32 %v5681, %v5773
        %v5801 = vadd.f32 %v5682, %v5792
        %v5802 = vadd.f32 %v5683, %v5775
        %v5803 = vadd.f32 %v5684, %v5794
        %s5804 = scalar_lea.vmem %s6, 64
        %v5805 = vld [vmem:[%s5804] sm:$0xf]
        %v5806 = vld [vmem:[%s5804 + $0x4] sm:$0xf]
        %v5807 = vld [vmem:[%s5804 + $0x8] sm:$0xf]
        %v5808 = vld [vmem:[%s5804 + $0xc] sm:$0xf]
        %v5813 = vunpack.c.l.b16 %v5805
        %v5814 = vunpack.c.l.b16 %v5806
        %v5815 = vunpack.c.l.b16 %v5807
        %v5816 = vunpack.c.l.b16 %v5808
        %v5817 = vpack.c.b16 %v5814, %v5813
        %v5818 = vpack.c.b16 %v5816, %v5815
        %5819 = vrot.lane.b32.xlu0 %v5414, 111
        %v5820 = vpop.permute.xlu0 %5819
        %5821 = vrot.lane.b32.xlu0 %v5415, 111
        %v5822 = vpop.permute.xlu0 %5821
        %5823 = vrot.lane.b32.xlu0 %v5416, 111
        %v5824 = vpop.permute.xlu0 %5823
        %5825 = vrot.lane.b32.xlu0 %v5417, 111
        %v5826 = vpop.permute.xlu0 %5825
        %5827 = vrot.lane.b32.xlu0 %v5418, 111
        %v5828 = vpop.permute.xlu0 %5827
        %5829 = vrot.lane.b32.xlu0 %v5419, 111
        %v5830 = vpop.permute.xlu0 %5829
        %v5831 = vsel %vm1382, %v5820, %v5822
        %v5832 = vsel %vm1382, %v5822, %v5824
        %v5833 = vsel %vm1382, %v5826, %v5828
        %v5834 = vsel %vm1382, %v5828, %v5830
        %v5840 = vsel %vm2966, %v5817, 0
        %v5843 = vsel %vm2966, %v5818, 0
        %5845 = vmatpush.bf16.msra.mxu0 0
        %5846 = vmatpush.bf16.msra.mxu0 0
        %5847 = vmatpush.bf16.msra.mxu0 0
        %5848 = vmatpush.bf16.msra.mxu0 0
        %5849 = vmatpush.bf16.msra.mxu0 0
        %5850 = vmatpush.bf16.msra.mxu0 0
        %5851 = vmatpush.bf16.msra.mxu0 %v5833
        %5852 = vmatpush.bf16.msra.mxu0 %v5831
        %5853 = vmatmul.bf16.gmra.mxu0 %v5840
        %v5854 = vpop.f32.mrf.mxu0
        %v5855 = vadd.f32 0.0, %v5854
        %v5856 = vpop.f32.mrf.mxu0
        %v5857 = vadd.f32 0.0, %v5856
        %5858 = vmatmul.bf16.gmra.mxu0 %v5843
        %v5859 = vpop.f32.mrf.mxu0
        %v5860 = vadd.f32 0.0, %v5859
        %v5861 = vpop.f32.mrf.mxu0
        %v5862 = vadd.f32 0.0, %v5861
        %5863 = vdwg.mxu0
        %5864 = vmatpush.bf16.msra.mxu0 0
        %5865 = vmatpush.bf16.msra.mxu0 0
        %5866 = vmatpush.bf16.msra.mxu0 0
        %5867 = vmatpush.bf16.msra.mxu0 0
        %5868 = vmatpush.bf16.msra.mxu0 0
        %5869 = vmatpush.bf16.msra.mxu0 0
        %5870 = vmatpush.bf16.msra.mxu0 %v5834
        %5871 = vmatpush.bf16.msra.mxu0 %v5832
        %5872 = vmatmul.bf16.gmra.mxu0 %v5840
        %v5873 = vpop.f32.mrf.mxu0
        %v5874 = vadd.f32 0.0, %v5873
        %v5875 = vpop.f32.mrf.mxu0
        %v5876 = vadd.f32 0.0, %v5875
        %5877 = vmatmul.bf16.gmra.mxu0 %v5843
        %v5878 = vpop.f32.mrf.mxu0
        %v5879 = vadd.f32 0.0, %v5878
        %v5880 = vpop.f32.mrf.mxu0
        %v5881 = vadd.f32 0.0, %v5880
        %5882 = vdwg.mxu0
        %v5883 = vadd.f32 %v5796, %v5855
        %v5884 = vadd.f32 %v5797, %v5874
        %v5885 = vadd.f32 %v5798, %v5857
        %v5886 = vadd.f32 %v5799, %v5876
        %v5887 = vadd.f32 %v5800, %v5860
        %v5888 = vadd.f32 %v5801, %v5879
        %v5889 = vadd.f32 %v5802, %v5862
        %v5890 = vadd.f32 %v5803, %v5881
        %5891 = vrot.lane.b32.xlu0 %v5381, 110
        %v5892 = vpop.permute.xlu0 %5891
        %5893 = vrot.lane.b32.xlu0 %v5382, 110
        %v5894 = vpop.permute.xlu0 %5893
        %5895 = vrot.lane.b32.xlu0 %v5405, 110
        %v5896 = vpop.permute.xlu0 %5895
        %5897 = vrot.lane.b32.xlu0 %v5383, 110
        %v5898 = vpop.permute.xlu0 %5897
        %5899 = vrot.lane.b32.xlu0 %v5384, 110
        %v5900 = vpop.permute.xlu0 %5899
        %5901 = vrot.lane.b32.xlu0 %v5406, 110
        %v5902 = vpop.permute.xlu0 %5901
        %5903 = vrot.lane.b32.xlu0 %v5385, 110
        %v5904 = vpop.permute.xlu0 %5903
        %5905 = vrot.lane.b32.xlu0 %v5386, 110
        %v5906 = vpop.permute.xlu0 %5905
        %5907 = vrot.lane.b32.xlu0 %v5407, 110
        %v5908 = vpop.permute.xlu0 %5907
        %5909 = vrot.lane.b32.xlu0 %v5387, 110
        %v5910 = vpop.permute.xlu0 %5909
        %5911 = vrot.lane.b32.xlu0 %v5388, 110
        %v5912 = vpop.permute.xlu0 %5911
        %5913 = vrot.lane.b32.xlu0 %v5408, 110
        %v5914 = vpop.permute.xlu0 %5913
        %v5915 = vsel %vm1561, %v5892, %v5894
        %v5916 = vsel %vm1561, %v5894, %v5896
        %v5917 = vsel %vm1561, %v5898, %v5900
        %v5918 = vsel %vm1561, %v5900, %v5902
        %v5919 = vsel %vm1561, %v5904, %v5906
        %v5920 = vsel %vm1561, %v5906, %v5908
        %v5921 = vsel %vm1561, %v5910, %v5912
        %v5922 = vsel %vm1561, %v5912, %v5914
        %v5931 = vsel %vm816, %v5915, 0.0
        %v5932 = vsel %vm817, %v5916, 0.0
        %v5933 = vsel %vm816, %v5917, 0.0
        %v5934 = vsel %vm817, %v5918, 0.0
        %v5935 = vsel %vm816, %v5919, 0.0
        %v5936 = vsel %vm817, %v5920, 0.0
        %v5937 = vsel %vm816, %v5921, 0.0
        %v5938 = vsel %vm817, %v5922, 0.0
        %s5939 = scalar_lea.vmem %s6, 80
        %v5940 = vld [vmem:[%s5939] sm:$0xf]
        %v5941 = vld [vmem:[%s5939 + $0x4] sm:$0xf]
        %v5942 = vld [vmem:[%s5939 + $0x8] sm:$0xf]
        %v5943 = vld [vmem:[%s5939 + $0xc] sm:$0xf]
        %v5944 = vpack.c.bf16 %v5933, %v5931
        %v5945 = vpack.c.bf16 %v5934, %v5932
        %v5946 = vpack.c.bf16 %v5937, %v5935
        %v5947 = vpack.c.bf16 %v5938, %v5936
        %v5952 = vunpack.c.l.b16 %v5940
        %v5953 = vunpack.c.l.b16 %v5941
        %v5954 = vunpack.c.l.b16 %v5942
        %v5955 = vunpack.c.l.b16 %v5943
        %v5956 = vpack.c.b16 %v5953, %v5952
        %v5957 = vpack.c.b16 %v5955, %v5954
        %v5959 = vsel %vm2966, %v5956, 0
        %v5962 = vsel %vm2966, %v5957, 0
        %5964 = vmatpush.bf16.msra.mxu0 0
        %5965 = vmatpush.bf16.msra.mxu0 0
        %5966 = vmatpush.bf16.msra.mxu0 0
        %5967 = vmatpush.bf16.msra.mxu0 0
        %5968 = vmatpush.bf16.msra.mxu0 0
        %5969 = vmatpush.bf16.msra.mxu0 0
        %5970 = vmatpush.bf16.msra.mxu0 %v5946
        %5971 = vmatpush.bf16.msra.mxu0 %v5944
        %5972 = vmatmul.bf16.gmra.mxu0 %v5959
        %v5973 = vpop.f32.mrf.mxu0
        %v5974 = vadd.f32 0.0, %v5973
        %v5975 = vpop.f32.mrf.mxu0
        %v5976 = vadd.f32 0.0, %v5975
        %5977 = vmatmul.bf16.gmra.mxu0 %v5962
        %v5978 = vpop.f32.mrf.mxu0
        %v5979 = vadd.f32 0.0, %v5978
        %v5980 = vpop.f32.mrf.mxu0
        %v5981 = vadd.f32 0.0, %v5980
        %5982 = vdwg.mxu0
        %5983 = vmatpush.bf16.msra.mxu0 0
        %5984 = vmatpush.bf16.msra.mxu0 0
        %5985 = vmatpush.bf16.msra.mxu0 0
        %5986 = vmatpush.bf16.msra.mxu0 0
        %5987 = vmatpush.bf16.msra.mxu0 0
        %5988 = vmatpush.bf16.msra.mxu0 0
        %5989 = vmatpush.bf16.msra.mxu0 %v5947
        %5990 = vmatpush.bf16.msra.mxu0 %v5945
        %5991 = vmatmul.bf16.gmra.mxu0 %v5959
        %v5992 = vpop.f32.mrf.mxu0
        %v5993 = vadd.f32 0.0, %v5992
        %v5994 = vpop.f32.mrf.mxu0
        %v5995 = vadd.f32 0.0, %v5994
        %5996 = vmatmul.bf16.gmra.mxu0 %v5962
        %v5997 = vpop.f32.mrf.mxu0
        %v5998 = vadd.f32 0.0, %v5997
        %v5999 = vpop.f32.mrf.mxu0
        %v6000 = vadd.f32 0.0, %v5999
        %6001 = vdwg.mxu0
        %v6002 = vadd.f32 %v5883, %v5974
        %v6003 = vadd.f32 %v5884, %v5993
        %v6004 = vadd.f32 %v5885, %v5976
        %v6005 = vadd.f32 %v5886, %v5995
        %v6006 = vadd.f32 %v5887, %v5979
        %v6007 = vadd.f32 %v5888, %v5998
        %v6008 = vadd.f32 %v5889, %v5981
        %v6009 = vadd.f32 %v5890, %v6000
        %6010 = vrot.lane.b32.xlu0 %v5381, 96
        %v6011 = vpop.permute.xlu0 %6010
        %6012 = vrot.lane.b32.xlu0 %v5382, 96
        %v6013 = vpop.permute.xlu0 %6012
        %6014 = vrot.lane.b32.xlu0 %v5405, 96
        %v6015 = vpop.permute.xlu0 %6014
        %6016 = vrot.lane.b32.xlu0 %v5383, 96
        %v6017 = vpop.permute.xlu0 %6016
        %6018 = vrot.lane.b32.xlu0 %v5384, 96
        %v6019 = vpop.permute.xlu0 %6018
        %6020 = vrot.lane.b32.xlu0 %v5406, 96
        %v6021 = vpop.permute.xlu0 %6020
        %6022 = vrot.lane.b32.xlu0 %v5385, 96
        %v6023 = vpop.permute.xlu0 %6022
        %6024 = vrot.lane.b32.xlu0 %v5386, 96
        %v6025 = vpop.permute.xlu0 %6024
        %6026 = vrot.lane.b32.xlu0 %v5407, 96
        %v6027 = vpop.permute.xlu0 %6026
        %6028 = vrot.lane.b32.xlu0 %v5387, 96
        %v6029 = vpop.permute.xlu0 %6028
        %6030 = vrot.lane.b32.xlu0 %v5388, 96
        %v6031 = vpop.permute.xlu0 %6030
        %6032 = vrot.lane.b32.xlu0 %v5408, 96
        %v6033 = vpop.permute.xlu0 %6032
        %v6034 = vsel %vm1803, %v6011, %v6013
        %v6035 = vsel %vm1803, %v6013, %v6015
        %v6036 = vsel %vm1803, %v6017, %v6019
        %v6037 = vsel %vm1803, %v6019, %v6021
        %v6038 = vsel %vm1803, %v6023, %v6025
        %v6039 = vsel %vm1803, %v6025, %v6027
        %v6040 = vsel %vm1803, %v6029, %v6031
        %v6041 = vsel %vm1803, %v6031, %v6033
        %v6050 = vsel %vm397, %v6034, 0.0
        %v6051 = vsel %vm398, %v6035, 0.0
        %v6052 = vsel %vm397, %v6036, 0.0
        %v6053 = vsel %vm398, %v6037, 0.0
        %v6054 = vsel %vm397, %v6038, 0.0
        %v6055 = vsel %vm398, %v6039, 0.0
        %v6056 = vsel %vm397, %v6040, 0.0
        %v6057 = vsel %vm398, %v6041, 0.0
        %s6058 = scalar_lea.vmem %s6, 96
        %v6059 = vld [vmem:[%s6058] sm:$0xf]
        %v6060 = vld [vmem:[%s6058 + $0x4] sm:$0xf]
        %v6061 = vld [vmem:[%s6058 + $0x8] sm:$0xf]
        %v6062 = vld [vmem:[%s6058 + $0xc] sm:$0xf]
        %v6063 = vpack.c.bf16 %v6052, %v6050
        %v6064 = vpack.c.bf16 %v6053, %v6051
        %v6065 = vpack.c.bf16 %v6056, %v6054
        %v6066 = vpack.c.bf16 %v6057, %v6055
        %v6071 = vunpack.c.l.b16 %v6059
        %v6072 = vunpack.c.l.b16 %v6060
        %v6073 = vunpack.c.l.b16 %v6061
        %v6074 = vunpack.c.l.b16 %v6062
        %v6075 = vpack.c.b16 %v6072, %v6071
        %v6076 = vpack.c.b16 %v6074, %v6073
        %v6078 = vsel %vm2966, %v6075, 0
        %v6081 = vsel %vm2966, %v6076, 0
        %6083 = vmatpush.bf16.msra.mxu0 0
        %6084 = vmatpush.bf16.msra.mxu0 0
        %6085 = vmatpush.bf16.msra.mxu0 0
        %6086 = vmatpush.bf16.msra.mxu0 0
        %6087 = vmatpush.bf16.msra.mxu0 0
        %6088 = vmatpush.bf16.msra.mxu0 0
        %6089 = vmatpush.bf16.msra.mxu0 %v6065
        %6090 = vmatpush.bf16.msra.mxu0 %v6063
        %6091 = vmatmul.bf16.gmra.mxu0 %v6078
        %v6092 = vpop.f32.mrf.mxu0
        %v6093 = vadd.f32 0.0, %v6092
        %v6094 = vpop.f32.mrf.mxu0
        %v6095 = vadd.f32 0.0, %v6094
        %6096 = vmatmul.bf16.gmra.mxu0 %v6081
        %v6097 = vpop.f32.mrf.mxu0
        %v6098 = vadd.f32 0.0, %v6097
        %v6099 = vpop.f32.mrf.mxu0
        %v6100 = vadd.f32 0.0, %v6099
        %6101 = vdwg.mxu0
        %6102 = vmatpush.bf16.msra.mxu0 0
        %6103 = vmatpush.bf16.msra.mxu0 0
        %6104 = vmatpush.bf16.msra.mxu0 0
        %6105 = vmatpush.bf16.msra.mxu0 0
        %6106 = vmatpush.bf16.msra.mxu0 0
        %6107 = vmatpush.bf16.msra.mxu0 0
        %6108 = vmatpush.bf16.msra.mxu0 %v6066
        %6109 = vmatpush.bf16.msra.mxu0 %v6064
        %6110 = vmatmul.bf16.gmra.mxu0 %v6078
        %v6111 = vpop.f32.mrf.mxu0
        %v6112 = vadd.f32 0.0, %v6111
        %v6113 = vpop.f32.mrf.mxu0
        %v6114 = vadd.f32 0.0, %v6113
        %6115 = vmatmul.bf16.gmra.mxu0 %v6081
        %v6116 = vpop.f32.mrf.mxu0
        %v6117 = vadd.f32 0.0, %v6116
        %v6118 = vpop.f32.mrf.mxu0
        %v6119 = vadd.f32 0.0, %v6118
        %6120 = vdwg.mxu0
        %v6121 = vadd.f32 %v6002, %v6093
        %v6122 = vadd.f32 %v6003, %v6112
        %v6123 = vadd.f32 %v6004, %v6095
        %v6124 = vadd.f32 %v6005, %v6114
        %v6125 = vadd.f32 %v6006, %v6098
        %v6126 = vadd.f32 %v6007, %v6117
        %v6127 = vadd.f32 %v6008, %v6100
        %v6128 = vadd.f32 %v6009, %v6119
        %s6129 = scalar_lea.vmem %s6, 112
        %v6130 = vld [vmem:[%s6129] sm:$0xf]
        %v6131 = vld [vmem:[%s6129 + $0x4] sm:$0xf]
        %v6132 = vld [vmem:[%s6129 + $0x8] sm:$0xf]
        %v6133 = vld [vmem:[%s6129 + $0xc] sm:$0xf]
        %v6138 = vunpack.c.l.b16 %v6130
        %v6139 = vunpack.c.l.b16 %v6131
        %v6140 = vunpack.c.l.b16 %v6132
        %v6141 = vunpack.c.l.b16 %v6133
        %v6142 = vpack.c.b16 %v6139, %v6138
        %v6143 = vpack.c.b16 %v6141, %v6140
        %6144 = vrot.lane.b32.xlu0 %v5414, 95
        %v6145 = vpop.permute.xlu0 %6144
        %6146 = vrot.lane.b32.xlu0 %v5415, 95
        %v6147 = vpop.permute.xlu0 %6146
        %6148 = vrot.lane.b32.xlu0 %v5416, 95
        %v6149 = vpop.permute.xlu0 %6148
        %6150 = vrot.lane.b32.xlu0 %v5417, 95
        %v6151 = vpop.permute.xlu0 %6150
        %6152 = vrot.lane.b32.xlu0 %v5418, 95
        %v6153 = vpop.permute.xlu0 %6152
        %6154 = vrot.lane.b32.xlu0 %v5419, 95
        %v6155 = vpop.permute.xlu0 %6154
        %v6156 = vsel %vm2111, %v6145, %v6147
        %v6157 = vsel %vm2111, %v6147, %v6149
        %v6158 = vsel %vm2111, %v6151, %v6153
        %v6159 = vsel %vm2111, %v6153, %v6155
        %v6165 = vsel %vm2966, %v6142, 0
        %v6168 = vsel %vm2966, %v6143, 0
        %6170 = vmatpush.bf16.msra.mxu0 0
        %6171 = vmatpush.bf16.msra.mxu0 0
        %6172 = vmatpush.bf16.msra.mxu0 0
        %6173 = vmatpush.bf16.msra.mxu0 0
        %6174 = vmatpush.bf16.msra.mxu0 0
        %6175 = vmatpush.bf16.msra.mxu0 0
        %6176 = vmatpush.bf16.msra.mxu0 %v6158
        %6177 = vmatpush.bf16.msra.mxu0 %v6156
        %6178 = vmatmul.bf16.gmra.mxu0 %v6165
        %v6179 = vpop.f32.mrf.mxu0
        %v6180 = vadd.f32 0.0, %v6179
        %v6181 = vpop.f32.mrf.mxu0
        %v6182 = vadd.f32 0.0, %v6181
        %6183 = vmatmul.bf16.gmra.mxu0 %v6168
        %v6184 = vpop.f32.mrf.mxu0
        %v6185 = vadd.f32 0.0, %v6184
        %v6186 = vpop.f32.mrf.mxu0
        %v6187 = vadd.f32 0.0, %v6186
        %6188 = vdwg.mxu0
        %6189 = vmatpush.bf16.msra.mxu0 0
        %6190 = vmatpush.bf16.msra.mxu0 0
        %6191 = vmatpush.bf16.msra.mxu0 0
        %6192 = vmatpush.bf16.msra.mxu0 0
        %6193 = vmatpush.bf16.msra.mxu0 0
        %6194 = vmatpush.bf16.msra.mxu0 0
        %6195 = vmatpush.bf16.msra.mxu0 %v6159
        %6196 = vmatpush.bf16.msra.mxu0 %v6157
        %6197 = vmatmul.bf16.gmra.mxu0 %v6165
        %v6198 = vpop.f32.mrf.mxu0
        %v6199 = vadd.f32 0.0, %v6198
        %v6200 = vpop.f32.mrf.mxu0
        %v6201 = vadd.f32 0.0, %v6200
        %6202 = vmatmul.bf16.gmra.mxu0 %v6168
        %v6203 = vpop.f32.mrf.mxu0
        %v6204 = vadd.f32 0.0, %v6203
        %v6205 = vpop.f32.mrf.mxu0
        %v6206 = vadd.f32 0.0, %v6205
        %6207 = vdwg.mxu0
        %v6208 = vadd.f32 %v6121, %v6180
        %v6209 = vadd.f32 %v6122, %v6199
        %v6210 = vadd.f32 %v6123, %v6182
        %v6211 = vadd.f32 %v6124, %v6201
        %v6212 = vadd.f32 %v6125, %v6185
        %v6213 = vadd.f32 %v6126, %v6204
        %v6214 = vadd.f32 %v6127, %v6187
        %v6215 = vadd.f32 %v6128, %v6206
        %6216 = vrot.lane.b32.xlu0 %v5381, 94
        %v6217 = vpop.permute.xlu0 %6216
        %6218 = vrot.lane.b32.xlu0 %v5382, 94
        %v6219 = vpop.permute.xlu0 %6218
        %6220 = vrot.lane.b32.xlu0 %v5405, 94
        %v6221 = vpop.permute.xlu0 %6220
        %6222 = vrot.lane.b32.xlu0 %v5383, 94
        %v6223 = vpop.permute.xlu0 %6222
        %6224 = vrot.lane.b32.xlu0 %v5384, 94
        %v6225 = vpop.permute.xlu0 %6224
        %6226 = vrot.lane.b32.xlu0 %v5406, 94
        %v6227 = vpop.permute.xlu0 %6226
        %6228 = vrot.lane.b32.xlu0 %v5385, 94
        %v6229 = vpop.permute.xlu0 %6228
        %6230 = vrot.lane.b32.xlu0 %v5386, 94
        %v6231 = vpop.permute.xlu0 %6230
        %6232 = vrot.lane.b32.xlu0 %v5407, 94
        %v6233 = vpop.permute.xlu0 %6232
        %6234 = vrot.lane.b32.xlu0 %v5387, 94
        %v6235 = vpop.permute.xlu0 %6234
        %6236 = vrot.lane.b32.xlu0 %v5388, 94
        %v6237 = vpop.permute.xlu0 %6236
        %6238 = vrot.lane.b32.xlu0 %v5408, 94
        %v6239 = vpop.permute.xlu0 %6238
        %v6240 = vsel %vm2290, %v6217, %v6219
        %v6241 = vsel %vm2290, %v6219, %v6221
        %v6242 = vsel %vm2290, %v6223, %v6225
        %v6243 = vsel %vm2290, %v6225, %v6227
        %v6244 = vsel %vm2290, %v6229, %v6231
        %v6245 = vsel %vm2290, %v6231, %v6233
        %v6246 = vsel %vm2290, %v6235, %v6237
        %v6247 = vsel %vm2290, %v6237, %v6239
        %v6256 = vsel %vm816, %v6240, 0.0
        %v6257 = vsel %vm817, %v6241, 0.0
        %v6258 = vsel %vm816, %v6242, 0.0
        %v6259 = vsel %vm817, %v6243, 0.0
        %v6260 = vsel %vm816, %v6244, 0.0
        %v6261 = vsel %vm817, %v6245, 0.0
        %v6262 = vsel %vm816, %v6246, 0.0
        %v6263 = vsel %vm817, %v6247, 0.0
        %s6264 = scalar_lea.vmem %s6, 128
        %v6265 = vld [vmem:[%s6264] sm:$0xf]
        %v6266 = vld [vmem:[%s6264 + $0x4] sm:$0xf]
        %v6267 = vld [vmem:[%s6264 + $0x8] sm:$0xf]
        %v6268 = vld [vmem:[%s6264 + $0xc] sm:$0xf]
        %v6269 = vpack.c.bf16 %v6258, %v6256
        %v6270 = vpack.c.bf16 %v6259, %v6257
        %v6271 = vpack.c.bf16 %v6262, %v6260
        %v6272 = vpack.c.bf16 %v6263, %v6261
        %v6277 = vunpack.c.l.b16 %v6265
        %v6278 = vunpack.c.l.b16 %v6266
        %v6279 = vunpack.c.l.b16 %v6267
        %v6280 = vunpack.c.l.b16 %v6268
        %v6281 = vpack.c.b16 %v6278, %v6277
        %v6282 = vpack.c.b16 %v6280, %v6279
        %v6284 = vsel %vm2966, %v6281, 0
        %v6287 = vsel %vm2966, %v6282, 0
        %6289 = vmatpush.bf16.msra.mxu0 0
        %6290 = vmatpush.bf16.msra.mxu0 0
        %6291 = vmatpush.bf16.msra.mxu0 0
        %6292 = vmatpush.bf16.msra.mxu0 0
        %6293 = vmatpush.bf16.msra.mxu0 0
        %6294 = vmatpush.bf16.msra.mxu0 0
        %6295 = vmatpush.bf16.msra.mxu0 %v6271
        %6296 = vmatpush.bf16.msra.mxu0 %v6269
        %6297 = vmatmul.bf16.gmra.mxu0 %v6284
        %v6298 = vpop.f32.mrf.mxu0
        %v6299 = vadd.f32 0.0, %v6298
        %v6300 = vpop.f32.mrf.mxu0
        %v6301 = vadd.f32 0.0, %v6300
        %6302 = vmatmul.bf16.gmra.mxu0 %v6287
        %v6303 = vpop.f32.mrf.mxu0
        %v6304 = vadd.f32 0.0, %v6303
        %v6305 = vpop.f32.mrf.mxu0
        %v6306 = vadd.f32 0.0, %v6305
        %6307 = vdwg.mxu0
        %6308 = vmatpush.bf16.msra.mxu0 0
        %6309 = vmatpush.bf16.msra.mxu0 0
        %6310 = vmatpush.bf16.msra.mxu0 0
        %6311 = vmatpush.bf16.msra.mxu0 0
        %6312 = vmatpush.bf16.msra.mxu0 0
        %6313 = vmatpush.bf16.msra.mxu0 0
        %6314 = vmatpush.bf16.msra.mxu0 %v6272
        %6315 = vmatpush.bf16.msra.mxu0 %v6270
        %6316 = vmatmul.bf16.gmra.mxu0 %v6284
        %v6317 = vpop.f32.mrf.mxu0
        %v6318 = vadd.f32 0.0, %v6317
        %v6319 = vpop.f32.mrf.mxu0
        %v6320 = vadd.f32 0.0, %v6319
        %6321 = vmatmul.bf16.gmra.mxu0 %v6287
        %v6322 = vpop.f32.mrf.mxu0
        %v6323 = vadd.f32 0.0, %v6322
        %v6324 = vpop.f32.mrf.mxu0
        %v6325 = vadd.f32 0.0, %v6324
        %6326 = vdwg.mxu0
        %v6327 = vadd.f32 %v6208, %v6299
        %v6328 = vadd.f32 %v6209, %v6318
        %v6329 = vadd.f32 %v6210, %v6301
        %v6330 = vadd.f32 %v6211, %v6320
        %v6331 = vadd.f32 %v6212, %v6304
        %v6332 = vadd.f32 %v6213, %v6323
        %v6333 = vadd.f32 %v6214, %v6306
        %v6334 = vadd.f32 %v6215, %v6325
        %v6335 = vld [vmem:[%s7] sm:$0xff]
        %v6336 = vld [vmem:[%s7 + $0x8] sm:$0xff]
        %v6337 = vld [vmem:[%s7 + $0x10] sm:$0xff]
        %v6338 = vld [vmem:[%s7 + $0x18] sm:$0xff]
        %6340 = vset.pattern.permute.xlu0 0
        %6341 = vperm.xlu0 %6340, %v6335
        %v6342 = vpop.permute.xlu0 %6341
        %6345 = vset.pattern.permute.xlu0 0
        %6346 = vperm.xlu0 %6345, %v6336
        %v6347 = vpop.permute.xlu0 %6346
        %6350 = vset.pattern.permute.xlu0 0
        %6351 = vperm.xlu0 %6350, %v6337
        %v6352 = vpop.permute.xlu0 %6351
        %6355 = vset.pattern.permute.xlu0 0
        %6356 = vperm.xlu0 %6355, %v6338
        %v6357 = vpop.permute.xlu0 %6356
        %v6359 = vadd.f32 %v6327, %v6342
        %v6360 = vadd.f32 %v6328, %v6342
        %v6361 = vadd.f32 %v6329, %v6347
        %v6362 = vadd.f32 %v6330, %v6347
        %v6363 = vadd.f32 %v6331, %v6352
        %v6364 = vadd.f32 %v6332, %v6352
        %v6365 = vadd.f32 %v6333, %v6357
        %v6366 = vadd.f32 %v6334, %v6357
        %v6367 = vadd.f32 %v6359, %v6360
        %v6368 = vadd.f32 %v6367, %v6361
        %v6369 = vadd.f32 %v6368, %v6362
        %v6370 = vadd.f32 %v6369, %v6363
        %v6371 = vadd.f32 %v6370, %v6364
        %v6372 = vadd.f32 %v6371, %v6365
        %v6373 = vadd.f32 %v6372, %v6366
        %6374 = vadd.xlane.f32.xlu0 %v6373
        %v6375 = vpop.xlane.xlu0 %6374
        %v6376 = vrot.slane %v6375, 4
        %v6377 = vadd.f32 %v6375, %v6376
        %v6378 = vrot.slane %v6377, 2
        %v6379 = vadd.f32 %v6377, %v6378
        %v6380 = vrot.slane %v6379, 1
        %v6381 = vadd.f32 %v6379, %v6380
        %s6382 = vtos %v6381
        %v6383 = vmul.f32 %v6359, %v6359
        %v6384 = vmul.f32 %v6360, %v6360
        %v6385 = vmul.f32 %v6361, %v6361
        %v6386 = vmul.f32 %v6362, %v6362
        %v6387 = vmul.f32 %v6363, %v6363
        %v6388 = vmul.f32 %v6364, %v6364
        %v6389 = vmul.f32 %v6365, %v6365
        %v6390 = vmul.f32 %v6366, %v6366
        %v6391 = vadd.f32 %v6383, %v6384
        %v6392 = vadd.f32 %v6391, %v6385
        %v6393 = vadd.f32 %v6392, %v6386
        %v6394 = vadd.f32 %v6393, %v6387
        %v6395 = vadd.f32 %v6394, %v6388
        %v6396 = vadd.f32 %v6395, %v6389
        %v6397 = vadd.f32 %v6396, %v6390
        %6398 = vadd.xlane.f32.xlu0 %v6397
        %v6399 = vpop.xlane.xlu0 %6398
        %v6400 = vrot.slane %v6399, 4
        %v6401 = vadd.f32 %v6399, %v6400
        %v6402 = vrot.slane %v6401, 2
        %v6403 = vadd.f32 %v6401, %v6402
        %v6404 = vrot.slane %v6403, 1
        %v6405 = vadd.f32 %v6403, %v6404
        %s6406 = vtos %v6405
        %v6407 = vrcp.pop 8192.0
        %v6408 = vmul.f32 8192.0, %v6407
        %v6409 = vsub.f32 1.0, %v6408
        %v6410 = vmul.f32 %v6407, %v6409
        %v6411 = vadd.f32 %v6407, %v6410
        %vm6412 = vweird.f32 %v6407
        %v6413 = vsel %vm6412, %v6407, %v6411
        %s6414 = vtos %v6413
        %s6415 = smul.f32 %s6382, %s6414
        %v6416 = vrcp.pop 8192.0
        %v6417 = vmul.f32 8192.0, %v6416
        %v6418 = vsub.f32 1.0, %v6417
        %v6419 = vmul.f32 %v6416, %v6418
        %v6420 = vadd.f32 %v6416, %v6419
        %vm6421 = vweird.f32 %v6416
        %v6422 = vsel %vm6421, %v6416, %v6420
        %s6423 = vtos %v6422
        %s6424 = smul.f32 %s6406, %s6423
        %s6425 = smul.f32 %s6415, %s6415
        %s6426 = ssub.f32 %s6424, %s6425
        %v6427 = vstv %s6415
        %v6428 = vsub.f32 %v6359, %v6427
        %v6429 = vsub.f32 %v6360, %v6427
        %v6430 = vsub.f32 %v6361, %v6427
        %v6431 = vsub.f32 %v6362, %v6427
        %v6432 = vsub.f32 %v6363, %v6427
        %v6433 = vsub.f32 %v6364, %v6427
        %v6434 = vsub.f32 %v6365, %v6427
        %v6435 = vsub.f32 %v6366, %v6427
        %s6436 = sadd.f32 %s6426, 1e-05
        %v6437 = vstv %s6436
        %v6438 = vrsqrt.pop %v6437
        %v6439 = vmul.f32 %v6438, %v6437
        %v6440 = vmul.f32 %v6439, %v6438
        %v6441 = vmul.f32 0.5, %v6440
        %v6442 = vsub.f32 1.5, %v6441
        %v6443 = vmul.f32 %v6438, %v6442
        %vm6444 = vweird.f32 %v6437
        %vm6445 = vweird.f32 %v6438
        %vm6446 = vmor %vm6444, %vm6445
        %v6447 = vsel %vm6446, %v6438, %v6443
        %s6448 = vtos %v6447
        %v6449 = vstv %s6448
        %v6450 = vmul.f32 %v6428, %v6449
        %v6451 = vmul.f32 %v6429, %v6449
        %v6452 = vmul.f32 %v6430, %v6449
        %v6453 = vmul.f32 %v6431, %v6449
        %v6454 = vmul.f32 %v6432, %v6449
        %v6455 = vmul.f32 %v6433, %v6449
        %v6456 = vmul.f32 %v6434, %v6449
        %v6457 = vmul.f32 %v6435, %v6449
        %v6458 = vadd.f32 %v2847, %v6450
        %v6459 = vadd.f32 %v2848, %v6451
        %v6460 = vadd.f32 %v2849, %v6452
        %v6461 = vadd.f32 %v2850, %v6453
        %v6462 = vadd.f32 %v2851, %v6454
        %v6463 = vadd.f32 %v2852, %v6455
        %v6464 = vadd.f32 %v2853, %v6456
        %v6465 = vadd.f32 %v2854, %v6457
        %v6466 = vxor.u32 %v6458, 2147483648
        %v6467 = vxor.u32 %v6459, 2147483648
        %v6468 = vxor.u32 %v6460, 2147483648
        %v6469 = vxor.u32 %v6461, 2147483648
        %v6470 = vxor.u32 %v6462, 2147483648
        %v6471 = vxor.u32 %v6463, 2147483648
        %v6472 = vxor.u32 %v6464, 2147483648
        %v6473 = vxor.u32 %v6465, 2147483648
        %v6474 = vmul.f32 %v6466, 1.442695
        %v6475 = vpow.pop %v6474
        %v6476 = vmul.f32 %v6467, 1.442695
        %v6477 = vpow.pop %v6476
        %v6478 = vmul.f32 %v6468, 1.442695
        %v6479 = vpow.pop %v6478
        %v6480 = vmul.f32 %v6469, 1.442695
        %v6481 = vpow.pop %v6480
        %v6482 = vmul.f32 %v6470, 1.442695
        %v6483 = vpow.pop %v6482
        %v6484 = vmul.f32 %v6471, 1.442695
        %v6485 = vpow.pop %v6484
        %v6486 = vmul.f32 %v6472, 1.442695
        %v6487 = vpow.pop %v6486
        %v6488 = vmul.f32 %v6473, 1.442695
        %v6489 = vpow.pop %v6488
        %v6490 = vadd.f32 %v6475, 1.0
        %v6491 = vadd.f32 %v6477, 1.0
        %v6492 = vadd.f32 %v6479, 1.0
        %v6493 = vadd.f32 %v6481, 1.0
        %v6494 = vadd.f32 %v6483, 1.0
        %v6495 = vadd.f32 %v6485, 1.0
        %v6496 = vadd.f32 %v6487, 1.0
        %v6497 = vadd.f32 %v6489, 1.0
        %v6498 = vrcp.pop %v6490
        %v6499 = vmul.f32 %v6490, %v6498
        %v6500 = vsub.f32 1.0, %v6499
        %v6501 = vmul.f32 %v6498, %v6500
        %v6502 = vadd.f32 %v6498, %v6501
        %vm6503 = vweird.f32 %v6490
        %vm6504 = vweird.f32 %v6498
        %vm6505 = vmor %vm6503, %vm6504
        %v6506 = vsel %vm6505, %v6498, %v6502
        %v6507 = vand.u32 2147483647, %v6490
        %vm6508 = vcmp.eq.f32.partialorder %v6507, 8.507059e+37
        %v6509 = vand.u32 %v6490, 2147483648
        %v6510 = vor.u32 1.1754944e-38, %v6509
        %v6511 = vsel %vm6508, %v6510, %v6506
        %v6512 = vmul.f32 1.0, %v6511
        %v6513 = vrcp.pop %v6491
        %v6514 = vmul.f32 %v6491, %v6513
        %v6515 = vsub.f32 1.0, %v6514
        %v6516 = vmul.f32 %v6513, %v6515
        %v6517 = vadd.f32 %v6513, %v6516
        %vm6518 = vweird.f32 %v6491
        %vm6519 = vweird.f32 %v6513
        %vm6520 = vmor %vm6518, %vm6519
        %v6521 = vsel %vm6520, %v6513, %v6517
        %v6522 = vand.u32 2147483647, %v6491
        %vm6523 = vcmp.eq.f32.partialorder %v6522, 8.507059e+37
        %v6524 = vand.u32 %v6491, 2147483648
        %v6525 = vor.u32 1.1754944e-38, %v6524
        %v6526 = vsel %vm6523, %v6525, %v6521
        %v6527 = vmul.f32 1.0, %v6526
        %v6528 = vrcp.pop %v6492
        %v6529 = vmul.f32 %v6492, %v6528
        %v6530 = vsub.f32 1.0, %v6529
        %v6531 = vmul.f32 %v6528, %v6530
        %v6532 = vadd.f32 %v6528, %v6531
        %vm6533 = vweird.f32 %v6492
        %vm6534 = vweird.f32 %v6528
        %vm6535 = vmor %vm6533, %vm6534
        %v6536 = vsel %vm6535, %v6528, %v6532
        %v6537 = vand.u32 2147483647, %v6492
        %vm6538 = vcmp.eq.f32.partialorder %v6537, 8.507059e+37
        %v6539 = vand.u32 %v6492, 2147483648
        %v6540 = vor.u32 1.1754944e-38, %v6539
        %v6541 = vsel %vm6538, %v6540, %v6536
        %v6542 = vmul.f32 1.0, %v6541
        %v6543 = vrcp.pop %v6493
        %v6544 = vmul.f32 %v6493, %v6543
        %v6545 = vsub.f32 1.0, %v6544
        %v6546 = vmul.f32 %v6543, %v6545
        %v6547 = vadd.f32 %v6543, %v6546
        %vm6548 = vweird.f32 %v6493
        %vm6549 = vweird.f32 %v6543
        %vm6550 = vmor %vm6548, %vm6549
        %v6551 = vsel %vm6550, %v6543, %v6547
        %v6552 = vand.u32 2147483647, %v6493
        %vm6553 = vcmp.eq.f32.partialorder %v6552, 8.507059e+37
        %v6554 = vand.u32 %v6493, 2147483648
        %v6555 = vor.u32 1.1754944e-38, %v6554
        %v6556 = vsel %vm6553, %v6555, %v6551
        %v6557 = vmul.f32 1.0, %v6556
        %v6558 = vrcp.pop %v6494
        %v6559 = vmul.f32 %v6494, %v6558
        %v6560 = vsub.f32 1.0, %v6559
        %v6561 = vmul.f32 %v6558, %v6560
        %v6562 = vadd.f32 %v6558, %v6561
        %vm6563 = vweird.f32 %v6494
        %vm6564 = vweird.f32 %v6558
        %vm6565 = vmor %vm6563, %vm6564
        %v6566 = vsel %vm6565, %v6558, %v6562
        %v6567 = vand.u32 2147483647, %v6494
        %vm6568 = vcmp.eq.f32.partialorder %v6567, 8.507059e+37
        %v6569 = vand.u32 %v6494, 2147483648
        %v6570 = vor.u32 1.1754944e-38, %v6569
        %v6571 = vsel %vm6568, %v6570, %v6566
        %v6572 = vmul.f32 1.0, %v6571
        %v6573 = vrcp.pop %v6495
        %v6574 = vmul.f32 %v6495, %v6573
        %v6575 = vsub.f32 1.0, %v6574
        %v6576 = vmul.f32 %v6573, %v6575
        %v6577 = vadd.f32 %v6573, %v6576
        %vm6578 = vweird.f32 %v6495
        %vm6579 = vweird.f32 %v6573
        %vm6580 = vmor %vm6578, %vm6579
        %v6581 = vsel %vm6580, %v6573, %v6577
        %v6582 = vand.u32 2147483647, %v6495
        %vm6583 = vcmp.eq.f32.partialorder %v6582, 8.507059e+37
        %v6584 = vand.u32 %v6495, 2147483648
        %v6585 = vor.u32 1.1754944e-38, %v6584
        %v6586 = vsel %vm6583, %v6585, %v6581
        %v6587 = vmul.f32 1.0, %v6586
        %v6588 = vrcp.pop %v6496
        %v6589 = vmul.f32 %v6496, %v6588
        %v6590 = vsub.f32 1.0, %v6589
        %v6591 = vmul.f32 %v6588, %v6590
        %v6592 = vadd.f32 %v6588, %v6591
        %vm6593 = vweird.f32 %v6496
        %vm6594 = vweird.f32 %v6588
        %vm6595 = vmor %vm6593, %vm6594
        %v6596 = vsel %vm6595, %v6588, %v6592
        %v6597 = vand.u32 2147483647, %v6496
        %vm6598 = vcmp.eq.f32.partialorder %v6597, 8.507059e+37
        %v6599 = vand.u32 %v6496, 2147483648
        %v6600 = vor.u32 1.1754944e-38, %v6599
        %v6601 = vsel %vm6598, %v6600, %v6596
        %v6602 = vmul.f32 1.0, %v6601
        %v6603 = vrcp.pop %v6497
        %v6604 = vmul.f32 %v6497, %v6603
        %v6605 = vsub.f32 1.0, %v6604
        %v6606 = vmul.f32 %v6603, %v6605
        %v6607 = vadd.f32 %v6603, %v6606
        %vm6608 = vweird.f32 %v6497
        %vm6609 = vweird.f32 %v6603
        %vm6610 = vmor %vm6608, %vm6609
        %v6611 = vsel %vm6610, %v6603, %v6607
        %v6612 = vand.u32 2147483647, %v6497
        %vm6613 = vcmp.eq.f32.partialorder %v6612, 8.507059e+37
        %v6614 = vand.u32 %v6497, 2147483648
        %v6615 = vor.u32 1.1754944e-38, %v6614
        %v6616 = vsel %vm6613, %v6615, %v6611
        %v6617 = vmul.f32 1.0, %v6616
        %6618 = vst [vmem:[%s344] sm:$0xff] %v5310
        %6619 = vst [vmem:[%s344 + $0x8] sm:$0xff] %v5311
        %6620 = vst [vmem:[%s344 + $0x10] sm:$0xff] %v5312
        %6621 = vst [vmem:[%s344 + $0x18] sm:$0xff] %v5313
        %6622 = vst [vmem:[%s344 + $0x20] sm:$0xff] %v5314
        %6623 = vst [vmem:[%s344 + $0x28] sm:$0xff] %v5315
        %6624 = vst [vmem:[%s344 + $0x30] sm:$0xff] %v5316
        %6625 = vst [vmem:[%s344 + $0x38] sm:$0xff] %v5317
        %v6626 = vtanh.pop %v5310
        %v6627 = vtanh.pop %v5311
        %v6628 = vtanh.pop %v5312
        %v6629 = vtanh.pop %v5313
        %v6630 = vtanh.pop %v5314
        %v6631 = vtanh.pop %v5315
        %v6632 = vtanh.pop %v5316
        %v6633 = vtanh.pop %v5317
        %v6634 = vmul.f32 %v6512, %v6626
        %v6635 = vmul.f32 %v6527, %v6627
        %v6636 = vmul.f32 %v6542, %v6628
        %v6637 = vmul.f32 %v6557, %v6629
        %v6638 = vmul.f32 %v6572, %v6630
        %v6639 = vmul.f32 %v6587, %v6631
        %v6640 = vmul.f32 %v6602, %v6632
        %v6641 = vmul.f32 %v6617, %v6633
        %6642 = vst [vmem:[%s351] sm:$0xff] %v6634
        %6643 = vst [vmem:[%s351 + $0x8] sm:$0xff] %v6635
        %6644 = vst [vmem:[%s351 + $0x10] sm:$0xff] %v6636
        %6645 = vst [vmem:[%s351 + $0x18] sm:$0xff] %v6637
        %6646 = vst [vmem:[%s351 + $0x20] sm:$0xff] %v6638
        %6647 = vst [vmem:[%s351 + $0x28] sm:$0xff] %v6639
        %6648 = vst [vmem:[%s351 + $0x30] sm:$0xff] %v6640
        %6649 = vst [vmem:[%s351 + $0x38] sm:$0xff] %v6641
        %s6650 = sand.u32 %s213, 1
        %s6651 = scalar_lea.sflag [#allocation4], %s6650
        %s6652 = sand.u32 %s213, 1
        %s6653 = smul.addr %s6652, 64
        %s6654 = scalar_lea.vmem [#allocation3], %s6653
        %s6655 = sand.u32 %s239, 1
        %s6656 = scalar_lea.sflag [#allocation6], %s6655
        %s6657 = sand.u32 %s239, 1
        %s6658 = smul.addr %s6657, 64
        %s6659 = scalar_lea.vmem [#allocation5], %s6658
        // Predicated region
        $region53: #{tpu_custom_call.1} parent=51 // pred_check
          %p6660 = pneg %p223
        $region54: #{tpu_custom_call.1} parent=51 // pred_check_branch
          %6662 = sbr.rel (%p6660) target = $region56
        $region55: #{tpu_custom_call.1} parent=51 // pred_region
          %6664 = vsyncadd %s6651, 0
          %s6665 = smul.addr %s27, 8
          %s6666 = smul.addr %s6665, 8
          %s6667 = scalar_lea.hbm %s8, %s6666
          %s6668 = sshll.u32 %s6654, 4
          %s6669 = int_to_ptr.vmem [resolvable:$true] %s6668
          %s6670 = sshll.u32 %s6667, 4
          %s6671 = int_to_ptr.hbm [resolvable:$true] %s6670
          %6676 = dma.vmem_to_hbm [thread:$0]  %s6669, 1024, %s6671, %s6651, 256, 256, 16
        $region56: #{tpu_custom_call.1} parent=51 // pred_fallthru
          _
        // Predicated region
        $region57: #{tpu_custom_call.1} parent=51 // pred_check
          %p6677 = pneg %p249
        $region58: #{tpu_custom_call.1} parent=51 // pred_check_branch
          %6679 = sbr.rel (%p6677) target = $region60
        $region59: #{tpu_custom_call.1} parent=51 // pred_region
          %6681 = vsyncadd %s6656, 0
          %s6682 = smul.addr %s27, 8
          %s6683 = smul.addr %s6682, 8
          %s6684 = scalar_lea.hbm %s9, %s6683
          %s6685 = sshll.u32 %s6659, 4
          %s6686 = int_to_ptr.vmem [resolvable:$true] %s6685
          %s6687 = sshll.u32 %s6684, 4
          %s6688 = int_to_ptr.hbm [resolvable:$true] %s6687
          %6693 = dma.vmem_to_hbm [thread:$0]  %s6686, 1024, %s6688, %s6656, 256, 256, 16
        $region60: #{tpu_custom_call.1} parent=51 // pred_fallthru
          _
      $region52: #{tpu_custom_call.1} parent=5 // pred_fallthru
        _
      %p6694 = scmp.le.s32.totalorder 2, %s22
      // Predicated region
      $region61: #{tpu_custom_call.1} parent=5 // pred_check
        %p6695 = pneg %p6694
      $region62: #{tpu_custom_call.1} parent=5 // pred_check_branch
        %6697 = sbr.rel (%p6695) target = $region64
      $region63: #{tpu_custom_call.1} parent=5 // pred_region
        %s6698 = ssub.s32 %s22, 2
        // Predicated region
        $region65: #{tpu_custom_call.1} parent=63 // pred_check
          %p6699 = pneg %p229
        $region66: #{tpu_custom_call.1} parent=63 // pred_check_branch
          %6701 = sbr.rel (%p6699) target = $region68
        $region67: #{tpu_custom_call.1} parent=63 // pred_region
          %s6702 = sand.u32 %s214, 1
          %s6703 = scalar_lea.sflag [#allocation4], %s6702
          %s6704 = sand.u32 %s214, 1
          %s6705 = smul.addr %s6704, 64
          %s6706 = scalar_lea.vmem [#allocation3], %s6705
          %6708 = dma.done %s6703, 1024
        $region68: #{tpu_custom_call.1} parent=63 // pred_fallthru
          _
        // Predicated region
        $region69: #{tpu_custom_call.1} parent=63 // pred_check
          %p6709 = pneg %p255
        $region70: #{tpu_custom_call.1} parent=63 // pred_check_branch
          %6711 = sbr.rel (%p6709) target = $region72
        $region71: #{tpu_custom_call.1} parent=63 // pred_region
          %s6712 = sand.u32 %s240, 1
          %s6713 = scalar_lea.sflag [#allocation6], %s6712
          %s6714 = sand.u32 %s240, 1
          %s6715 = smul.addr %s6714, 64
          %s6716 = scalar_lea.vmem [#allocation5], %s6715
          %6718 = dma.done %s6713, 1024
        $region72: #{tpu_custom_call.1} parent=63 // pred_fallthru
          _
      $region64: #{tpu_custom_call.1} parent=5 // pred_fallthru
        _
    $region6: #{tpu_custom_call.1} parent=1 // loop_footer
      %s26 = sadd.s32 1, %s22
    $region7: #{tpu_custom_call.1} parent=1 // loop_footer_branch
      %21 = sbr.rel target = $region3
    $region8: #{tpu_custom_call.1} parent=1 // loop_exit
      _
    %6719 = vsyncpa [#allocation4], 1
    %s6720 = scalar_lea.sflag [#allocation4], 1
    %6721 = vsyncpa %s6720, 1
    %6722 = vsyncpa [#allocation6], 1
    %s6723 = scalar_lea.sflag [#allocation6], 1
    %6724 = vsyncpa %s6723, 1

</llo_original>
